<compile_context>
chip_gen: v7x
topology: tpu7x:2x2x1
jax: 0.10.0
libtpu: 0.0.40
codegen_flags: <defaults>
</compile_context>

<pallas_src>
import functools

import numpy as np
import jax
import jax.numpy as jnp
from jax import lax
from jax.experimental import pallas as pl
from jax.experimental.pallas import tpu as pltpu


def _cdiv(a, b):
    return -(-a // b)


def _largest_divisor(n, cap):
    for d in range(min(n, cap), 0, -1):
        if n % d == 0:
            return d
    return 1


# ----------------------------------------------------------------------------
# Bidirectional LSTM layer (optionally with fused pyramidal max-pool on its input).
#   grid = (direction, time-tile).  Direction 0 walks time tiles forward, direction 1
#   walks them backward; hidden/cell state lives in VMEM scratch across tiles.
# ----------------------------------------------------------------------------
def _bilstm_kernel(x_ref, lx_ref, wih_ref, whh_ref, b_ref, y_ref,
                   h_sc, c_sc, xw_sc, *, TT, H, C, pool):
    d = pl.program_id(0)            # 0 = forward, 1 = backward
    j = pl.program_id(1)            # tile index (in grid order)
    NT = pl.num_programs(1)
    B = h_sc.shape[0]
    H4 = 4 * H

    @pl.when(j == 0)
    def _():
        h_sc[...] = jnp.zeros_like(h_sc)
        c_sc[...] = jnp.zeros_like(c_sc)

    lx = lx_ref[...]                            # (B, 1) int32 valid lengths
    whh = whh_ref[0]                            # (H, 4H) bf16 (i/f/o columns pre-scaled 0.5)
    b = b_ref[0]                                # (1, 4H) f32  (likewise pre-scaled)

    # ---- hoisted input projection: one MXU-filling matmul per input chunk per tile ----
    xw = None
    for c in range(C):
        x_c = x_ref[c]                          # (TIN, B, Dh)
        if pool:
            # vectorized pyramidal max-pool over the whole tile (max BEFORE matmul)
            x_c = x_c.reshape(TT, 2, B, x_c.shape[-1])
            x_c = jnp.maximum(x_c[:, 0], x_c[:, 1])          # (TT, B, Dh)
        x_flat = x_c.reshape(TT * B, x_c.shape[-1]).astype(jnp.bfloat16)
        part = jnp.dot(x_flat, wih_ref[0, c], preferred_element_type=jnp.float32)
        xw = part if xw is None else xw + part
    xw_sc[...] = xw + b                         # bias added once per tile; (TT*B, 4H) f32

    # ---- per-tile packed-sequence validity mask, computed once ----
    tb = j + d * (NT - 1 - 2 * j)               # output time-block handled this grid step
    base = tb * TT
    ts = base + lax.broadcasted_iota(jnp.int32, (TT, B, 1), 0)
    valid_all = ts < lx[None]                   # (TT, B, 1) bool

    # tanh-only gate nonlinearity: sigmoid(x) = 0.5*tanh(0.5x)+0.5, 0.5 pre-scale already
    # folded into the i/f/o weight columns -> one EUP pass over the fused (B, 4H) slab.
    col = lax.broadcasted_iota(jnp.int32, (B, H4), 1)
    is_g = (col >= 2 * H) & (col < 3 * H)
    post_s = jnp.where(is_g, 1.0, 0.5).astype(jnp.float32)
    post_o = jnp.where(is_g, 0.0, 0.5).astype(jnp.float32)

    y_view = y_ref.at[0]                        # (TT, B, H) ref view

    def run(order):
        h = h_sc[...]
        c = c_sc[...]
        for r in order:                         # static (Python-constant) in-tile indices
            pre = xw_sc[pl.ds(r * B, B), :] + jnp.dot(
                h.astype(jnp.bfloat16), whh, preferred_element_type=jnp.float32)
            act = jnp.tanh(pre) * post_s + post_o          # (B, 4H); gate order i|f|g|o
            i_g = act[:, 0 * H:1 * H]
            f_g = act[:, 1 * H:2 * H]
            g_g = act[:, 2 * H:3 * H]
            o_g = act[:, 3 * H:4 * H]
            c_new = f_g * c + i_g * g_g
            h_new = o_g * jnp.tanh(c_new)
            valid = valid_all[r]                # (B, 1) precomputed mask
            h = jnp.where(valid, h_new, h)
            c = jnp.where(valid, c_new, c)
            y_view[r] = jnp.where(valid, h_new, 0.0).astype(y_ref.dtype)
        h_sc[...] = h
        c_sc[...] = c

    @pl.when(d == 0)
    def _():
        run(range(TT))                          # forward: static indices 0 .. TT-1

    @pl.when(d == 1)
    def _():
        run(range(TT - 1, -1, -1))              # backward: static indices TT-1 .. 0


def bilstm_layer(x, t_out, lx_vec, p, tile_t, pool):
    """x: (C, T_in, B, Dh).  Returns ((2, T_out_pad, B, H) bf16, t_out)."""
    C, t_in_avail, B, Dh = x.shape
    H = p["whh"].shape[1]

    TT = max(1, min(tile_t, t_out))
    NT = _cdiv(t_out, TT)
    t_out_pad = NT * TT
    TIN = (2 * TT) if pool else TT
    t_in_need = NT * TIN
    if t_in_avail < t_in_need:                  # zero-pad time (padded frames are masked)
        x = jnp.pad(x, ((0, 0), (0, t_in_need - t_in_avail), (0, 0), (0, 0)))
    elif t_in_avail > t_in_need:
        x = x[:, :t_in_need]

    lx_col = jnp.asarray(np.asarray(lx_vec, np.int32).reshape(B, 1))

    # Fold the 0.5 pre-scale of sigmoid(x)=0.5*tanh(0.5x)+0.5 into the i/f/o gate columns
    # (power-of-two scale -> exact in both f32 and bf16); g-gate columns untouched.
    gs = np.full((4 * H,), 0.5, np.float32)
    gs[2 * H:3 * H] = 1.0
    gs = jnp.asarray(gs)
    wih = (p["wih"] * gs).astype(jnp.bfloat16)
    whh = (p["whh"] * gs).astype(jnp.bfloat16)
    b = p["b"] * gs

    def tmap(d, j, NT=NT):                      # forward: j ; backward: NT-1-j
        return j + d * (NT - 1 - 2 * j)

    kern = functools.partial(_bilstm_kernel, TT=TT, H=H, C=C, pool=pool)

    y = pl.pallas_call(
        kern,
        out_shape=jax.ShapeDtypeStruct((2, t_out_pad, B, H), jnp.bfloat16),
        grid=(2, NT),
        in_specs=[
            pl.BlockSpec((C, TIN, B, Dh), lambda d, j: (0, tmap(d, j), 0, 0)),
            pl.BlockSpec((B, 1), lambda d, j: (0, 0)),
            pl.BlockSpec((1, C, Dh, 4 * H), lambda d, j: (d, 0, 0, 0)),
            pl.BlockSpec((1, H, 4 * H), lambda d, j: (d, 0, 0)),
            pl.BlockSpec((1, 1, 4 * H), lambda d, j: (d, 0, 0)),
        ],
        out_specs=pl.BlockSpec((1, TT, B, H), lambda d, j: (d, tmap(d, j), 0, 0)),
        scratch_shapes=[pltpu.VMEM((B, H), jnp.float32),           # h state
                        pltpu.VMEM((B, H), jnp.float32),           # c state
                        pltpu.VMEM((TT * B, 4 * H), jnp.float32)], # hoisted x @ Wih + b
        compiler_params=pltpu.CompilerParams(
            dimension_semantics=("parallel", "arbitrary"),
            vmem_limit_bytes=32 * 1024 * 1024),
    )(x, lx_col, wih, whh, b)
    return y, t_out


# ----------------------------------------------------------------------------
# Fused key/value projection: single (2H, 2K) weight, lane-dense 2K output, time-tiled.
# Consumes the (2, T, B, H) direction-stacked bf16 LSTM output directly (split-weight dots).
# ----------------------------------------------------------------------------
def _kv_kernel(y_ref, w_ref, b_ref, k_ref, v_ref, *, K):
    TKV, B, _ = k_ref.shape
    H = y_ref.shape[-1]
    ya = y_ref[0].reshape(TKV * B, H).astype(jnp.bfloat16)   # forward-direction features
    yb = y_ref[1].reshape(TKV * B, H).astype(jnp.bfloat16)   # backward-direction features
    kv = (jnp.dot(ya, w_ref[0], preferred_element_type=jnp.float32)
          + jnp.dot(yb, w_ref[1], preferred_element_type=jnp.float32)
          + b_ref[...])
    k_ref[...] = kv[:, :K].reshape(TKV, B, K)
    v_ref[...] = kv[:, K:].reshape(TKV, B, K)


def kv_project(y, wkv, bkv):
    _, t_pad, B, H = y.shape
    K2 = wkv.shape[-1]
    K = K2 // 2
    TKV = _largest_divisor(t_pad, 64)
    return pl.pallas_call(
        functools.partial(_kv_kernel, K=K),
        out_shape=(jax.ShapeDtypeStruct((t_pad, B, K), jnp.float32),
                   jax.ShapeDtypeStruct((t_pad, B, K), jnp.float32)),
        grid=(t_pad // TKV,),
        in_specs=[
            pl.BlockSpec((2, TKV, B, H), lambda i: (0, i, 0, 0)),
            pl.BlockSpec((2, H, K2), lambda i: (0, 0, 0)),
            pl.BlockSpec((1, K2), lambda i: (0, 0)),
        ],
        out_specs=(pl.BlockSpec((TKV, B, K), lambda i: (i, 0, 0)),
                   pl.BlockSpec((TKV, B, K), lambda i: (i, 0, 0))),
        compiler_params=pltpu.CompilerParams(dimension_semantics=("parallel",)),
    )(y, wkv.astype(jnp.bfloat16), bkv)


# ----------------------------------------------------------------------------
# Encoder forward (Pallas kernels + minimal JAX glue for layout / padding).
# ----------------------------------------------------------------------------
def encoder_forward(x_btd, lx_np, params, *, tile_t=16):
    B0, _, _ = x_btd.shape
    lx = np.asarray(lx_np).astype(np.int64).copy()
    t_true = int(lx.max())
    Bp = int(_cdiv(B0, 16) * 16)                    # pad batch: bf16 sublane packing = 16

    x = jnp.transpose(x_btd[:, :t_true].astype(jnp.float32), (1, 0, 2))   # (T, B0, Din)
    if Bp != B0:
        x = jnp.pad(x, ((0, 0), (0, Bp - B0), (0, 0)))
    x = x[None]                                     # (C=1, T, Bp, Din)

    def padded_lengths(l):
        out = np.zeros((Bp,), np.int32)
        out[:B0] = l
        return out

    # 1. first BiLSTM (no pooling)
    y, cur_t = bilstm_layer(x, t_true, padded_lengths(lx), params["lstm"], tile_t, pool=False)

    # 2. three pyramidal BiLSTM layers (max-pool over adjacent frames fused into the kernel)
    for p in params["pblstms"]:
        t_next = cur_t // 2                         # odd-frame truncation + //2 (PyTorch trunc)
        lx = lx // 2
        y, cur_t = bilstm_layer(y, t_next, padded_lengths(lx), p, tile_t, pool=True)

    # 3. fused key / value projection, then back to batch-first and un-padded shapes
    k, v = kv_project(y, params["Wkv"], params["bkv"])
    k = jnp.transpose(k[:cur_t, :B0], (1, 0, 2))    # (B, T', K)
    v = jnp.transpose(v[:cur_t, :B0], (1, 0, 2))
    return k, v, lx


# ----------------------------------------------------------------------------
# Pure-JAX reference (original weights, sigmoid gates, f32 activations).
# ----------------------------------------------------------------------------
def ref_bilstm(x, lx_col, p):
    T, B, _ = x.shape
    H = p["whh"].shape[1]
    ts = jnp.arange(T)

    def run_dir(d, xs, tss):
        wih = p["wih"][d].reshape(-1, 4 * H).astype(jnp.bfloat16)
        whh = p["whh"][d].astype(jnp.bfloat16)
        b = p["b"][d]

        def step(carry, xt_t):
            h, c = carry
            xt, t = xt_t
            gates = (jnp.dot(xt.astype(jnp.bfloat16), wih, preferred_element_type=jnp.float32)
                     + jnp.dot(h.astype(jnp.bfloat16), whh, preferred_element_type=jnp.float32)
                     + b)
            i = jax.nn.sigmoid(gates[:, :H])
            f = jax.nn.sigmoid(gates[:, H:2 * H])
            g = jnp.tanh(gates[:, 2 * H:3 * H])
            o = jax.nn.sigmoid(gates[:, 3 * H:])
            c_new = f * c + i * g
            h_new = o * jnp.tanh(c_new)
            valid = t < lx_col
            return ((jnp.where(valid, h_new, h), jnp.where(valid, c_new, c)),
                    jnp.where(valid, h_new, 0.0))

        init = (jnp.zeros((B, H), jnp.float32), jnp.zeros((B, H), jnp.float32))
        _, ys = lax.scan(step, init, (xs, tss))
        return ys

    yf = run_dir(0, x, ts)
    yb = run_dir(1, x[::-1], ts[::-1])[::-1]
    return jnp.concatenate([yf, yb], axis=-1)


def encoder_ref(x_btd, lx_np, params):
    B0 = x_btd.shape[0]
    lx = np.asarray(lx_np).astype(np.int64).copy()
    T = int(lx.max())
    x = jnp.transpose(x_btd[:, :T].astype(jnp.float32), (1, 0, 2))
    y = ref_bilstm(x, jnp.asarray(lx.reshape(B0, 1), jnp.int32), params["lstm"])
    for p in params["pblstms"]:
        Tc = y.shape[0]
        if Tc % 2 == 1:
            y = y[:Tc - 1]
        y = jnp.max(y.reshape(y.shape[0] // 2, 2, B0, y.shape[-1]), axis=1)
        lx = lx // 2
        y = ref_bilstm(y, jnp.asarray(lx.reshape(B0, 1), jnp.int32), p)
    Tf, _, D2 = y.shape
    W2 = params["Wkv"].astype(jnp.bfloat16).reshape(D2, -1)
    kv = (jnp.dot(y.reshape(Tf * B0, D2).astype(jnp.bfloat16), W2,
                  preferred_element_type=jnp.float32) + params["bkv"])
    K = W2.shape[-1] // 2
    k = jnp.transpose(kv[:, :K].reshape(Tf, B0, K), (1, 0, 2))
    v = jnp.transpose(kv[:, K:].reshape(Tf, B0, K), (1, 0, 2))
    return k, v, lx


# ----------------------------------------------------------------------------
# Deterministic synthetic parameter init (fused-gate layout; shapes follow the PyTorch module).
# ----------------------------------------------------------------------------
def _uniform(key, shape, scale):
    return jax.random.uniform(key, shape, jnp.float32, -scale, scale)


def init_bilstm_params(key, c, dh, H):
    s = 1.0 / np.sqrt(H)
    ks = jax.random.split(key, 3)
    return dict(
        wih=_uniform(ks[0], (2, c, dh, 4 * H), s),   # (dir, input-half, Dh, 4H), gates i|f|g|o
        whh=_uniform(ks[1], (2, H, 4 * H), s),
        b=_uniform(ks[2], (2, 1, 4 * H), s),         # b_ih + b_hh folded together
    )


def init_encoder_params(key, input_size, H, KV):
    ks = jax.random.split(key, 6)
    s_lin = 1.0 / np.sqrt(2 * H)
    return dict(
        lstm=init_bilstm_params(ks[0], 1, input_size, H),
        pblstms=[init_bilstm_params(ks[1], 2, H, H),
                 init_bilstm_params(ks[2], 2, H, H),
                 init_bilstm_params(ks[3], 2, H, H)],
        Wkv=_uniform(ks[4], (2, H, 2 * KV), s_lin),  # [Wk | Wv] fused, split by input half
        bkv=jnp.zeros((1, 2 * KV), jnp.float32),
    )


if __name__ == "__main__":
    B, T, input_size, H, KV = 2, 16, 8, 32, 128
    key = jax.random.PRNGKey(0)
    kx, kp = jax.random.split(key)
    x = jax.random.normal(kx, (B, T, input_size), jnp.float32)
    lx = np.array([16, 12], dtype=np.int32)          # variable-length utterances (max == T)
    params = init_encoder_params(kp, input_size, H, KV)

    k, v, lx_out = encoder_forward(x, lx, params)
    jax.block_until_ready((k, v))

    k_ref, v_ref, lx_ref = encoder_ref(x, lx, params)
    np.testing.assert_allclose(np.asarray(k), np.asarray(k_ref), rtol=5e-3, atol=5e-3)
    np.testing.assert_allclose(np.asarray(v), np.asarray(v_ref), rtol=5e-3, atol=5e-3)
    assert np.array_equal(np.asarray(lx_out), np.asarray(lx_ref))

    print("KERNEL_OK")
</pallas_src>

<mosaic_0001>
module attributes {stable_mosaic.version = 11 : i64} {
  func.func @_bilstm_kernel(%arg0: i32, %arg1: i32, %arg2: memref<1x16x16x8xf32, #tpu.memory_space<vmem>>, %arg3: memref<16x1xi32, #tpu.memory_space<vmem>>, %arg4: memref<1x1x8x128xbf16, #tpu.memory_space<vmem>>, %arg5: memref<1x32x128xbf16, #tpu.memory_space<vmem>>, %arg6: memref<1x1x128xf32, #tpu.memory_space<vmem>>, %arg7: memref<1x16x16x32xbf16, #tpu.memory_space<vmem>>, %arg8: memref<16x32xf32, #tpu.memory_space<vmem>>, %arg9: memref<16x32xf32, #tpu.memory_space<vmem>>, %arg10: memref<256x128xf32, #tpu.memory_space<vmem>>) attributes {dimension_semantics = [#tpu.dimension_semantics<parallel>, #tpu.dimension_semantics<arbitrary>], iteration_bounds = array<i64: 2, 1>, scalar_prefetch = 0 : i64, scratch_operands = 3 : i64, tpu.core_type = #tpu.core_type<tc>, window_params = [{transform_indices = @transform_0, window_bounds = array<i64: 1, 16, 16, 8>}, {pipeline_mode = #tpu.pipeline_mode<synchronous>, transform_indices = @transform_1, window_bounds = array<i64: 16, 1>}, {transform_indices = @transform_2, window_bounds = array<i64: 1, 1, 8, 128>}, {transform_indices = @transform_3, window_bounds = array<i64: 1, 32, 128>}, {transform_indices = @transform_4, window_bounds = array<i64: 1, 1, 128>}, {transform_indices = @transform_5, window_bounds = array<i64: 1, 16, 16, 32>}]} {
    %c0_i32 = arith.constant 0 : i32
    %0 = arith.cmpi eq, %arg1, %c0_i32 : i32
    %1 = arith.extui %0 : i1 to i32
    %c0_i32_0 = arith.constant 0 : i32
    %2 = arith.cmpi ne, %1, %c0_i32_0 : i32
    scf.if %2 {
      %cst_28 = arith.constant 0.000000e+00 : f32
      %47 = vector.broadcast %cst_28 : f32 to vector<16x32xf32>
      %c0_29 = arith.constant 0 : index
      %c0_30 = arith.constant 0 : index
      %48 = vector.load %arg8[%c0_29, %c0_30] : memref<16x32xf32, #tpu.memory_space<vmem>>, vector<16x32xf32>
      tpu.vector_store %arg8[%c0_29, %c0_30], %47 {strides = array<i32>} : memref<16x32xf32, #tpu.memory_space<vmem>>, vector<16x32xf32>,
      %cst_31 = arith.constant 0.000000e+00 : f32
      %49 = vector.broadcast %cst_31 : f32 to vector<16x32xf32>
      %c0_32 = arith.constant 0 : index
      %c0_33 = arith.constant 0 : index
      %50 = vector.load %arg9[%c0_32, %c0_33] : memref<16x32xf32, #tpu.memory_space<vmem>>, vector<16x32xf32>
      tpu.vector_store %arg9[%c0_32, %c0_33], %49 {strides = array<i32>} : memref<16x32xf32, #tpu.memory_space<vmem>>, vector<16x32xf32>,
    } else {
    }
    %c0 = arith.constant 0 : index
    %c0_1 = arith.constant 0 : index
    %3 = vector.load %arg3[%c0, %c0_1] : memref<16x1xi32, #tpu.memory_space<vmem>>, vector<16x1xi32>
    %c0_2 = arith.constant 0 : index
    %c0_3 = arith.constant 0 : index
    %c0_4 = arith.constant 0 : index
    %4 = vector.load %arg5[%c0_2, %c0_3, %c0_4] : memref<1x32x128xbf16, #tpu.memory_space<vmem>>, vector<1x32x128xbf16>
    %5 = vector.shape_cast %4 : vector<1x32x128xbf16> to vector<32x128xbf16>
    %c0_5 = arith.constant 0 : index
    %c0_6 = arith.constant 0 : index
    %c0_7 = arith.constant 0 : index
    %6 = vector.load %arg6[%c0_5, %c0_6, %c0_7] : memref<1x1x128xf32, #tpu.memory_space<vmem>>, vector<1x1x128xf32>
    %7 = vector.shape_cast %6 : vector<1x1x128xf32> to vector<1x128xf32>
    %c0_8 = arith.constant 0 : index
    %c0_9 = arith.constant 0 : index
    %c0_10 = arith.constant 0 : index
    %c0_11 = arith.constant 0 : index
    %8 = vector.load %arg2[%c0_8, %c0_9, %c0_10, %c0_11] : memref<1x16x16x8xf32, #tpu.memory_space<vmem>>, vector<1x16x16x8xf32>
    %9 = vector.shape_cast %8 : vector<1x16x16x8xf32> to vector<16x16x8xf32>
    %10 = vector.shape_cast %9 : vector<16x16x8xf32> to vector<256x8xf32>
    %11 = arith.truncf %10 : vector<256x8xf32> to vector<256x8xbf16>
    %c0_12 = arith.constant 0 : index
    %c0_13 = arith.constant 0 : index
    %c0_14 = arith.constant 0 : index
    %c0_15 = arith.constant 0 : index
    %12 = vector.load %arg4[%c0_12, %c0_13, %c0_14, %c0_15] : memref<1x1x8x128xbf16, #tpu.memory_space<vmem>>, vector<1x1x8x128xbf16>
    %13 = vector.shape_cast %12 : vector<1x1x8x128xbf16> to vector<8x128xbf16>
    %cst = arith.constant dense<0.000000e+00> : vector<256x128xf32>
    %14 = tpu.matmul %11, %13, %cst {dimension_numbers = #tpu.dot_dimension_numbers<[1], [0], [0], [1], [0, 0, 1, 1], [], []>} : vector<256x8xbf16>, vector<8x128xbf16>, vector<256x128xf32> -> vector<256x128xf32>
    %15 = vector.broadcast %7 : vector<1x128xf32> to vector<256x128xf32>
    %16 = arith.addf %14, %15 : vector<256x128xf32>
    %c0_16 = arith.constant 0 : index
    %c0_17 = arith.constant 0 : index
    %17 = vector.load %arg10[%c0_16, %c0_17] : memref<256x128xf32, #tpu.memory_space<vmem>>, vector<256x128xf32>
    tpu.vector_store %arg10[%c0_16, %c0_17], %16 {strides = array<i32>} : memref<256x128xf32, #tpu.memory_space<vmem>>, vector<256x128xf32>,
    %c2_i32 = arith.constant 2 : i32
    %18 = arith.muli %c2_i32, %arg1 : i32
    %c0_i32_18 = arith.constant 0 : i32
    %19 = arith.subi %c0_i32_18, %18 : i32
    %20 = arith.muli %arg0, %19 : i32
    %21 = arith.addi %arg1, %20 : i32
    %c16_i32 = arith.constant 16 : i32
    %22 = arith.muli %21, %c16_i32 : i32
    %23 = tpu.iota {dimensions = array<i32: 0>} : vector<16x16x1xi32>
    %24 = vector.broadcast %22 : i32 to vector<16x16x1xi32>
    %25 = arith.addi %24, %23 : vector<16x16x1xi32>
    %26 = vector.shape_cast %3 : vector<16x1xi32> to vector<1x16x1xi32>
    %27 = vector.broadcast %26 : vector<1x16x1xi32> to vector<16x16x1xi32>
    %28 = arith.cmpi slt, %25, %27 : vector<16x16x1xi32>
    %29 = tpu.iota {dimensions = array<i32: 1>} : vector<16x128xi32>
    %c64_i32 = arith.constant 64 : i32
    %30 = vector.broadcast %c64_i32 : i32 to vector<16x128xi32>
    %31 = arith.cmpi sge, %29, %30 : vector<16x128xi32>
    %c96_i32 = arith.constant 96 : i32
    %32 = vector.broadcast %c96_i32 : i32 to vector<16x128xi32>
    %33 = arith.cmpi slt, %29, %32 : vector<16x128xi32>
    %34 = arith.andi %31, %33 : vector<16x128xi1>
    %cst_19 = arith.constant 1.000000e+00 : f32
    %cst_20 = arith.constant 5.000000e-01 : f32
    %35 = vector.broadcast %cst_19 : f32 to vector<16x128xf32>
    %36 = vector.broadcast %cst_20 : f32 to vector<16x128xf32>
    %37 = arith.select %34, %35, %36 : vector<16x128xi1>, vector<16x128xf32>
    %cst_21 = arith.constant 0.000000e+00 : f32
    %cst_22 = arith.constant 5.000000e-01 : f32
    %38 = vector.broadcast %cst_21 : f32 to vector<16x128xf32>
    %39 = vector.broadcast %cst_22 : f32 to vector<16x128xf32>
    %40 = arith.select %34, %38, %39 : vector<16x128xi1>, vector<16x128xf32>
    %c0_i32_23 = arith.constant 0 : i32
    %41 = arith.cmpi eq, %arg0, %c0_i32_23 : i32
    %42 = arith.extui %41 : i1 to i32
    %c0_i32_24 = arith.constant 0 : i32
    %c0_i32_25 = arith.constant 0 : i32
    %43 = arith.cmpi ne, %42, %c0_i32_25 : i32
    scf.if %43 {
      %c0_28 = arith.constant 0 : index
      %c0_29 = arith.constant 0 : index
      %47 = vector.load %arg8[%c0_28, %c0_29] : memref<16x32xf32, #tpu.memory_space<vmem>>, vector<16x32xf32>
      %c0_30 = arith.constant 0 : index
      %c0_31 = arith.constant 0 : index
      %48 = vector.load %arg9[%c0_30, %c0_31] : memref<16x32xf32, #tpu.memory_space<vmem>>, vector<16x32xf32>
      %c0_32 = arith.constant 0 : index
      %c0_33 = arith.constant 0 : index
      %49 = vector.load %arg10[%c0_32, %c0_33] : memref<256x128xf32, #tpu.memory_space<vmem>>, vector<16x128xf32>
      %50 = arith.truncf %47 : vector<16x32xf32> to vector<16x32xbf16>
      %cst_34 = arith.constant dense<0.000000e+00> : vector<16x128xf32>
      %51 = tpu.matmul %50, %5, %cst_34 {dimension_numbers = #tpu.dot_dimension_numbers<[1], [0], [0], [1], [0, 0, 1, 1], [], []>} : vector<16x32xbf16>, vector<32x128xbf16>, vector<16x128xf32> -> vector<16x128xf32>
      %52 = arith.addf %49, %51 : vector<16x128xf32>
      %53 = math.tanh %52 : vector<16x128xf32>
      %54 = arith.mulf %53, %37 : vector<16x128xf32>
      %55 = arith.addf %54, %40 : vector<16x128xf32>
      %56 = vector.extract_strided_slice %55 {offsets = [0, 0], sizes = [16, 32], strides = [1, 1]} : vector<16x128xf32> to vector<16x32xf32>
      %57 = vector.extract_strided_slice %55 {offsets = [0, 32], sizes = [16, 32], strides = [1, 1]} : vector<16x128xf32> to vector<16x32xf32>
      %58 = vector.extract_strided_slice %55 {offsets = [0, 64], sizes = [16, 32], strides = [1, 1]} : vector<16x128xf32> to vector<16x32xf32>
      %59 = vector.extract_strided_slice %55 {offsets = [0, 96], sizes = [16, 32], strides = [1, 1]} : vector<16x128xf32> to vector<16x32xf32>
      %60 = arith.mulf %57, %48 : vector<16x32xf32>
      %61 = arith.mulf %56, %58 : vector<16x32xf32>
      %62 = arith.addf %60, %61 : vector<16x32xf32>
      %63 = math.tanh %62 : vector<16x32xf32>
      %64 = arith.mulf %59, %63 : vector<16x32xf32>
      %65 = vector.extract_strided_slice %28 {offsets = [0, 0, 0], sizes = [1, 16, 1], strides = [1, 1, 1]} : vector<16x16x1xi1> to vector<1x16x1xi1>
      %66 = vector.shape_cast %65 : vector<1x16x1xi1> to vector<16x1xi1>
      %67 = vector.shape_cast %66 : vector<16x1xi1> to vector<16x1xi1>
      %68 = vector.broadcast %67 : vector<16x1xi1> to vector<16x32xi1>
      %69 = arith.select %68, %64, %47 : vector<16x32xi1>, vector<16x32xf32>
      %70 = vector.shape_cast %66 : vector<16x1xi1> to vector<16x1xi1>
      %71 = vector.broadcast %70 : vector<16x1xi1> to vector<16x32xi1>
      %72 = arith.select %71, %62, %48 : vector<16x32xi1>, vector<16x32xf32>
      %cst_35 = arith.constant 0.000000e+00 : f32
      %73 = vector.shape_cast %66 : vector<16x1xi1> to vector<16x1xi1>
      %74 = vector.broadcast %73 : vector<16x1xi1> to vector<16x32xi1>
      %75 = vector.broadcast %cst_35 : f32 to vector<16x32xf32>
      %76 = arith.select %74, %64, %75 : vector<16x32xi1>, vector<16x32xf32>
      %77 = arith.truncf %76 : vector<16x32xf32> to vector<16x32xbf16>
      %c0_i32_36 = arith.constant 0 : i32
      %c0_i32_37 = arith.constant 0 : i32
      %c0_i32_38 = arith.constant 0 : i32
      %78 = tpu.memref_slice %arg7[%c0_i32_24, %c0_i32_36, %c0_i32_37, %c0_i32_38] : memref<1x16x16x32xbf16, #tpu.memory_space<vmem>> -> memref<1x16x16x32xbf16, #tpu.memory_space<vmem>>
      %79 = tpu.memref_squeeze %78 : memref<1x16x16x32xbf16, #tpu.memory_space<vmem>> -> memref<16x16x32xbf16, #tpu.memory_space<vmem>>
      %c0_39 = arith.constant 0 : index
      %c0_40 = arith.constant 0 : index
      %c0_41 = arith.constant 0 : index
      %80 = vector.load %79[%c0_39, %c0_40, %c0_41] : memref<16x16x32xbf16, #tpu.memory_space<vmem>>, vector<1x16x32xbf16>
      %81 = vector.shape_cast %80 : vector<1x16x32xbf16> to vector<16x32xbf16>
      %82 = vector.shape_cast %77 : vector<16x32xbf16> to vector<1x16x32xbf16>
      tpu.vector_store %79[%c0_39, %c0_40, %c0_41], %82 {strides = array<i32>} : memref<16x16x32xbf16, #tpu.memory_space<vmem>>, vector<1x16x32xbf16>,
      %c16 = arith.constant 16 : index
      %c0_42 = arith.constant 0 : index
      %83 = vector.load %arg10[%c16, %c0_42] : memref<256x128xf32, #tpu.memory_space<vmem>>, vector<16x128xf32>
      %84 = arith.truncf %69 : vector<16x32xf32> to vector<16x32xbf16>
      %cst_43 = arith.constant dense<0.000000e+00> : vector<16x128xf32>
      %85 = tpu.matmul %84, %5, %cst_43 {dimension_numbers = #tpu.dot_dimension_numbers<[1], [0], [0], [1], [0, 0, 1, 1], [], []>} : vector<16x32xbf16>, vector<32x128xbf16>, vector<16x128xf32> -> vector<16x128xf32>
      %86 = arith.addf %83, %85 : vector<16x128xf32>
      %87 = math.tanh %86 : vector<16x128xf32>
      %88 = arith.mulf %87, %37 : vector<16x128xf32>
      %89 = arith.addf %88, %40 : vector<16x128xf32>
      %90 = vector.extract_strided_slice %89 {offsets = [0, 0], sizes = [16, 32], strides = [1, 1]} : vector<16x128xf32> to vector<16x32xf32>
      %91 = vector.extract_strided_slice %89 {offsets = [0, 32], sizes = [16, 32], strides = [1, 1]} : vector<16x128xf32> to vector<16x32xf32>
      %92 = vector.extract_strided_slice %89 {offsets = [0, 64], sizes = [16, 32], strides = [1, 1]} : vector<16x128xf32> to vector<16x32xf32>
      %93 = vector.extract_strided_slice %89 {offsets = [0, 96], sizes = [16, 32], strides = [1, 1]} : vector<16x128xf32> to vector<16x32xf32>
      %94 = arith.mulf %91, %72 : vector<16x32xf32>
      %95 = arith.mulf %90, %92 : vector<16x32xf32>
      %96 = arith.addf %94, %95 : vector<16x32xf32>
      %97 = math.tanh %96 : vector<16x32xf32>
      %98 = arith.mulf %93, %97 : vector<16x32xf32>
      %99 = vector.extract_strided_slice %28 {offsets = [1, 0, 0], sizes = [1, 16, 1], strides = [1, 1, 1]} : vector<16x16x1xi1> to vector<1x16x1xi1>
      %100 = vector.shape_cast %99 : vector<1x16x1xi1> to vector<16x1xi1>
      %101 = vector.shape_cast %100 : vector<16x1xi1> to vector<16x1xi1>
      %102 = vector.broadcast %101 : vector<16x1xi1> to vector<16x32xi1>
      %103 = arith.select %102, %98, %69 : vector<16x32xi1>, vector<16x32xf32>
      %104 = vector.shape_cast %100 : vector<16x1xi1> to vector<16x1xi1>
      %105 = vector.broadcast %104 : vector<16x1xi1> to vector<16x32xi1>
      %106 = arith.select %105, %96, %72 : vector<16x32xi1>, vector<16x32xf32>
      %cst_44 = arith.constant 0.000000e+00 : f32
      %107 = vector.shape_cast %100 : vector<16x1xi1> to vector<16x1xi1>
      %108 = vector.broadcast %107 : vector<16x1xi1> to vector<16x32xi1>
      %109 = vector.broadcast %cst_44 : f32 to vector<16x32xf32>
      %110 = arith.select %108, %98, %109 : vector<16x32xi1>, vector<16x32xf32>
      %111 = arith.truncf %110 : vector<16x32xf32> to vector<16x32xbf16>
      %c0_i32_45 = arith.constant 0 : i32
      %c0_i32_46 = arith.constant 0 : i32
      %c0_i32_47 = arith.constant 0 : i32
      %112 = tpu.memref_slice %arg7[%c0_i32_24, %c0_i32_45, %c0_i32_46, %c0_i32_47] : memref<1x16x16x32xbf16, #tpu.memory_space<vmem>> -> memref<1x16x16x32xbf16, #tpu.memory_space<vmem>>
      %113 = tpu.memref_squeeze %112 : memref<1x16x16x32xbf16, #tpu.memory_space<vmem>> -> memref<16x16x32xbf16, #tpu.memory_space<vmem>>
      %c1 = arith.constant 1 : index
      %c0_48 = arith.constant 0 : index
      %c0_49 = arith.constant 0 : index
      %114 = vector.load %113[%c1, %c0_48, %c0_49] : memref<16x16x32xbf16, #tpu.memory_space<vmem>>, vector<1x16x32xbf16>
      %115 = vector.shape_cast %114 : vector<1x16x32xbf16> to vector<16x32xbf16>
      %116 = vector.shape_cast %111 : vector<16x32xbf16> to vector<1x16x32xbf16>
      tpu.vector_store %113[%c1, %c0_48, %c0_49], %116 {strides = array<i32>} : memref<16x16x32xbf16, #tpu.memory_space<vmem>>, vector<1x16x32xbf16>,
      %c32 = arith.constant 32 : index
      %c0_50 = arith.constant 0 : index
      %117 = vector.load %arg10[%c32, %c0_50] : memref<256x128xf32, #tpu.memory_space<vmem>>, vector<16x128xf32>
      %118 = arith.truncf %103 : vector<16x32xf32> to vector<16x32xbf16>
      %cst_51 = arith.constant dense<0.000000e+00> : vector<16x128xf32>
      %119 = tpu.matmul %118, %5, %cst_51 {dimension_numbers = #tpu.dot_dimension_numbers<[1], [0], [0], [1], [0, 0, 1, 1], [], []>} : vector<16x32xbf16>, vector<32x128xbf16>, vector<16x128xf32> -> vector<16x128xf32>
      %120 = arith.addf %117, %119 : vector<16x128xf32>
      %121 = math.tanh %120 : vector<16x128xf32>
      %122 = arith.mulf %121, %37 : vector<16x128xf32>
      %123 = arith.addf %122, %40 : vector<16x128xf32>
      %124 = vector.extract_strided_slice %123 {offsets = [0, 0], sizes = [16, 32], strides = [1, 1]} : vector<16x128xf32> to vector<16x32xf32>
      %125 = vector.extract_strided_slice %123 {offsets = [0, 32], sizes = [16, 32], strides = [1, 1]} : vector<16x128xf32> to vector<16x32xf32>
      %126 = vector.extract_strided_slice %123 {offsets = [0, 64], sizes = [16, 32], strides = [1, 1]} : vector<16x128xf32> to vector<16x32xf32>
      %127 = vector.extract_strided_slice %123 {offsets = [0, 96], sizes = [16, 32], strides = [1, 1]} : vector<16x128xf32> to vector<16x32xf32>
      %128 = arith.mulf %125, %106 : vector<16x32xf32>
      %129 = arith.mulf %124, %126 : vector<16x32xf32>
      %130 = arith.addf %128, %129 : vector<16x32xf32>
      %131 = math.tanh %130 : vector<16x32xf32>
      %132 = arith.mulf %127, %131 : vector<16x32xf32>
      %133 = vector.extract_strided_slice %28 {offsets = [2, 0, 0], sizes = [1, 16, 1], strides = [1, 1, 1]} : vector<16x16x1xi1> to vector<1x16x1xi1>
      %134 = vector.shape_cast %133 : vector<1x16x1xi1> to vector<16x1xi1>
      %135 = vector.shape_cast %134 : vector<16x1xi1> to vector<16x1xi1>
      %136 = vector.broadcast %135 : vector<16x1xi1> to vector<16x32xi1>
      %137 = arith.select %136, %132, %103 : vector<16x32xi1>, vector<16x32xf32>
      %138 = vector.shape_cast %134 : vector<16x1xi1> to vector<16x1xi1>
      %139 = vector.broadcast %138 : vector<16x1xi1> to vector<16x32xi1>
      %140 = arith.select %139, %130, %106 : vector<16x32xi1>, vector<16x32xf32>
      %cst_52 = arith.constant 0.000000e+00 : f32
      %141 = vector.shape_cast %134 : vector<16x1xi1> to vector<16x1xi1>
      %142 = vector.broadcast %141 : vector<16x1xi1> to vector<16x32xi1>
      %143 = vector.broadcast %cst_52 : f32 to vector<16x32xf32>
      %144 = arith.select %142, %132, %143 : vector<16x32xi1>, vector<16x32xf32>
      %145 = arith.truncf %144 : vector<16x32xf32> to vector<16x32xbf16>
      %c0_i32_53 = arith.constant 0 : i32
      %c0_i32_54 = arith.constant 0 : i32
      %c0_i32_55 = arith.constant 0 : i32
      %146 = tpu.memref_slice %arg7[%c0_i32_24, %c0_i32_53, %c0_i32_54, %c0_i32_55] : memref<1x16x16x32xbf16, #tpu.memory_space<vmem>> -> memref<1x16x16x32xbf16, #tpu.memory_space<vmem>>
      %147 = tpu.memref_squeeze %146 : memref<1x16x16x32xbf16, #tpu.memory_space<vmem>> -> memref<16x16x32xbf16, #tpu.memory_space<vmem>>
      %c2 = arith.constant 2 : index
      %c0_56 = arith.constant 0 : index
      %c0_57 = arith.constant 0 : index
      %148 = vector.load %147[%c2, %c0_56, %c0_57] : memref<16x16x32xbf16, #tpu.memory_space<vmem>>, vector<1x16x32xbf16>
      %149 = vector.shape_cast %148 : vector<1x16x32xbf16> to vector<16x32xbf16>
      %150 = vector.shape_cast %145 : vector<16x32xbf16> to vector<1x16x32xbf16>
      tpu.vector_store %147[%c2, %c0_56, %c0_57], %150 {strides = array<i32>} : memref<16x16x32xbf16, #tpu.memory_space<vmem>>, vector<1x16x32xbf16>,
      %c48 = arith.constant 48 : index
      %c0_58 = arith.constant 0 : index
      %151 = vector.load %arg10[%c48, %c0_58] : memref<256x128xf32, #tpu.memory_space<vmem>>, vector<16x128xf32>
      %152 = arith.truncf %137 : vector<16x32xf32> to vector<16x32xbf16>
      %cst_59 = arith.constant dense<0.000000e+00> : vector<16x128xf32>
      %153 = tpu.matmul %152, %5, %cst_59 {dimension_numbers = #tpu.dot_dimension_numbers<[1], [0], [0], [1], [0, 0, 1, 1], [], []>} : vector<16x32xbf16>, vector<32x128xbf16>, vector<16x128xf32> -> vector<16x128xf32>
      %154 = arith.addf %151, %153 : vector<16x128xf32>
      %155 = math.tanh %154 : vector<16x128xf32>
      %156 = arith.mulf %155, %37 : vector<16x128xf32>
      %157 = arith.addf %156, %40 : vector<16x128xf32>
      %158 = vector.extract_strided_slice %157 {offsets = [0, 0], sizes = [16, 32], strides = [1, 1]} : vector<16x128xf32> to vector<16x32xf32>
      %159 = vector.extract_strided_slice %157 {offsets = [0, 32], sizes = [16, 32], strides = [1, 1]} : vector<16x128xf32> to vector<16x32xf32>
      %160 = vector.extract_strided_slice %157 {offsets = [0, 64], sizes = [16, 32], strides = [1, 1]} : vector<16x128xf32> to vector<16x32xf32>
      %161 = vector.extract_strided_slice %157 {offsets = [0, 96], sizes = [16, 32], strides = [1, 1]} : vector<16x128xf32> to vector<16x32xf32>
      %162 = arith.mulf %159, %140 : vector<16x32xf32>
      %163 = arith.mulf %158, %160 : vector<16x32xf32>
      %164 = arith.addf %162, %163 : vector<16x32xf32>
      %165 = math.tanh %164 : vector<16x32xf32>
      %166 = arith.mulf %161, %165 : vector<16x32xf32>
      %167 = vector.extract_strided_slice %28 {offsets = [3, 0, 0], sizes = [1, 16, 1], strides = [1, 1, 1]} : vector<16x16x1xi1> to vector<1x16x1xi1>
      %168 = vector.shape_cast %167 : vector<1x16x1xi1> to vector<16x1xi1>
      %169 = vector.shape_cast %168 : vector<16x1xi1> to vector<16x1xi1>
      %170 = vector.broadcast %169 : vector<16x1xi1> to vector<16x32xi1>
      %171 = arith.select %170, %166, %137 : vector<16x32xi1>, vector<16x32xf32>
      %172 = vector.shape_cast %168 : vector<16x1xi1> to vector<16x1xi1>
      %173 = vector.broadcast %172 : vector<16x1xi1> to vector<16x32xi1>
      %174 = arith.select %173, %164, %140 : vector<16x32xi1>, vector<16x32xf32>
      %cst_60 = arith.constant 0.000000e+00 : f32
      %175 = vector.shape_cast %168 : vector<16x1xi1> to vector<16x1xi1>
      %176 = vector.broadcast %175 : vector<16x1xi1> to vector<16x32xi1>
      %177 = vector.broadcast %cst_60 : f32 to vector<16x32xf32>
      %178 = arith.select %176, %166, %177 : vector<16x32xi1>, vector<16x32xf32>
      %179 = arith.truncf %178 : vector<16x32xf32> to vector<16x32xbf16>
      %c0_i32_61 = arith.constant 0 : i32
      %c0_i32_62 = arith.constant 0 : i32
      %c0_i32_63 = arith.constant 0 : i32
      %180 = tpu.memref_slice %arg7[%c0_i32_24, %c0_i32_61, %c0_i32_62, %c0_i32_63] : memref<1x16x16x32xbf16, #tpu.memory_space<vmem>> -> memref<1x16x16x32xbf16, #tpu.memory_space<vmem>>
      %181 = tpu.memref_squeeze %180 : memref<1x16x16x32xbf16, #tpu.memory_space<vmem>> -> memref<16x16x32xbf16, #tpu.memory_space<vmem>>
      %c3 = arith.constant 3 : index
      %c0_64 = arith.constant 0 : index
      %c0_65 = arith.constant 0 : index
      %182 = vector.load %181[%c3, %c0_64, %c0_65] : memref<16x16x32xbf16, #tpu.memory_space<vmem>>, vector<1x16x32xbf16>
      %183 = vector.shape_cast %182 : vector<1x16x32xbf16> to vector<16x32xbf16>
      %184 = vector.shape_cast %179 : vector<16x32xbf16> to vector<1x16x32xbf16>
      tpu.vector_store %181[%c3, %c0_64, %c0_65], %184 {strides = array<i32>} : memref<16x16x32xbf16, #tpu.memory_space<vmem>>, vector<1x16x32xbf16>,
      %c64 = arith.constant 64 : index
      %c0_66 = arith.constant 0 : index
      %185 = vector.load %arg10[%c64, %c0_66] : memref<256x128xf32, #tpu.memory_space<vmem>>, vector<16x128xf32>
      %186 = arith.truncf %171 : vector<16x32xf32> to vector<16x32xbf16>
      %cst_67 = arith.constant dense<0.000000e+00> : vector<16x128xf32>
      %187 = tpu.matmul %186, %5, %cst_67 {dimension_numbers = #tpu.dot_dimension_numbers<[1], [0], [0], [1], [0, 0, 1, 1], [], []>} : vector<16x32xbf16>, vector<32x128xbf16>, vector<16x128xf32> -> vector<16x128xf32>
      %188 = arith.addf %185, %187 : vector<16x128xf32>
      %189 = math.tanh %188 : vector<16x128xf32>
      %190 = arith.mulf %189, %37 : vector<16x128xf32>
      %191 = arith.addf %190, %40 : vector<16x128xf32>
      %192 = vector.extract_strided_slice %191 {offsets = [0, 0], sizes = [16, 32], strides = [1, 1]} : vector<16x128xf32> to vector<16x32xf32>
      %193 = vector.extract_strided_slice %191 {offsets = [0, 32], sizes = [16, 32], strides = [1, 1]} : vector<16x128xf32> to vector<16x32xf32>
      %194 = vector.extract_strided_slice %191 {offsets = [0, 64], sizes = [16, 32], strides = [1, 1]} : vector<16x128xf32> to vector<16x32xf32>
      %195 = vector.extract_strided_slice %191 {offsets = [0, 96], sizes = [16, 32], strides = [1, 1]} : vector<16x128xf32> to vector<16x32xf32>
      %196 = arith.mulf %193, %174 : vector<16x32xf32>
      %197 = arith.mulf %192, %194 : vector<16x32xf32>
      %198 = arith.addf %196, %197 : vector<16x32xf32>
      %199 = math.tanh %198 : vector<16x32xf32>
      %200 = arith.mulf %195, %199 : vector<16x32xf32>
      %201 = vector.extract_strided_slice %28 {offsets = [4, 0, 0], sizes = [1, 16, 1], strides = [1, 1, 1]} : vector<16x16x1xi1> to vector<1x16x1xi1>
      %202 = vector.shape_cast %201 : vector<1x16x1xi1> to vector<16x1xi1>
      %203 = vector.shape_cast %202 : vector<16x1xi1> to vector<16x1xi1>
      %204 = vector.broadcast %203 : vector<16x1xi1> to vector<16x32xi1>
      %205 = arith.select %204, %200, %171 : vector<16x32xi1>, vector<16x32xf32>
      %206 = vector.shape_cast %202 : vector<16x1xi1> to vector<16x1xi1>
      %207 = vector.broadcast %206 : vector<16x1xi1> to vector<16x32xi1>
      %208 = arith.select %207, %198, %174 : vector<16x32xi1>, vector<16x32xf32>
      %cst_68 = arith.constant 0.000000e+00 : f32
      %209 = vector.shape_cast %202 : vector<16x1xi1> to vector<16x1xi1>
      %210 = vector.broadcast %209 : vector<16x1xi1> to vector<16x32xi1>
      %211 = vector.broadcast %cst_68 : f32 to vector<16x32xf32>
      %212 = arith.select %210, %200, %211 : vector<16x32xi1>, vector<16x32xf32>
      %213 = arith.truncf %212 : vector<16x32xf32> to vector<16x32xbf16>
      %c0_i32_69 = arith.constant 0 : i32
      %c0_i32_70 = arith.constant 0 : i32
      %c0_i32_71 = arith.constant 0 : i32
      %214 = tpu.memref_slice %arg7[%c0_i32_24, %c0_i32_69, %c0_i32_70, %c0_i32_71] : memref<1x16x16x32xbf16, #tpu.memory_space<vmem>> -> memref<1x16x16x32xbf16, #tpu.memory_space<vmem>>
      %215 = tpu.memref_squeeze %214 : memref<1x16x16x32xbf16, #tpu.memory_space<vmem>> -> memref<16x16x32xbf16, #tpu.memory_space<vmem>>
      %c4 = arith.constant 4 : index
      %c0_72 = arith.constant 0 : index
      %c0_73 = arith.constant 0 : index
      %216 = vector.load %215[%c4, %c0_72, %c0_73] : memref<16x16x32xbf16, #tpu.memory_space<vmem>>, vector<1x16x32xbf16>
      %217 = vector.shape_cast %216 : vector<1x16x32xbf16> to vector<16x32xbf16>
      %218 = vector.shape_cast %213 : vector<16x32xbf16> to vector<1x16x32xbf16>
      tpu.vector_store %215[%c4, %c0_72, %c0_73], %218 {strides = array<i32>} : memref<16x16x32xbf16, #tpu.memory_space<vmem>>, vector<1x16x32xbf16>,
      %c80 = arith.constant 80 : index
      %c0_74 = arith.constant 0 : index
      %219 = vector.load %arg10[%c80, %c0_74] : memref<256x128xf32, #tpu.memory_space<vmem>>, vector<16x128xf32>
      %220 = arith.truncf %205 : vector<16x32xf32> to vector<16x32xbf16>
      %cst_75 = arith.constant dense<0.000000e+00> : vector<16x128xf32>
      %221 = tpu.matmul %220, %5, %cst_75 {dimension_numbers = #tpu.dot_dimension_numbers<[1], [0], [0], [1], [0, 0, 1, 1], [], []>} : vector<16x32xbf16>, vector<32x128xbf16>, vector<16x128xf32> -> vector<16x128xf32>
      %222 = arith.addf %219, %221 : vector<16x128xf32>
      %223 = math.tanh %222 : vector<16x128xf32>
      %224 = arith.mulf %223, %37 : vector<16x128xf32>
      %225 = arith.addf %224, %40 : vector<16x128xf32>
      %226 = vector.extract_strided_slice %225 {offsets = [0, 0], sizes = [16, 32], strides = [1, 1]} : vector<16x128xf32> to vector<16x32xf32>
      %227 = vector.extract_strided_slice %225 {offsets = [0, 32], sizes = [16, 32], strides = [1, 1]} : vector<16x128xf32> to vector<16x32xf32>
      %228 = vector.extract_strided_slice %225 {offsets = [0, 64], sizes = [16, 32], strides = [1, 1]} : vector<16x128xf32> to vector<16x32xf32>
      %229 = vector.extract_strided_slice %225 {offsets = [0, 96], sizes = [16, 32], strides = [1, 1]} : vector<16x128xf32> to vector<16x32xf32>
      %230 = arith.mulf %227, %208 : vector<16x32xf32>
      %231 = arith.mulf %226, %228 : vector<16x32xf32>
      %232 = arith.addf %230, %231 : vector<16x32xf32>
      %233 = math.tanh %232 : vector<16x32xf32>
      %234 = arith.mulf %229, %233 : vector<16x32xf32>
      %235 = vector.extract_strided_slice %28 {offsets = [5, 0, 0], sizes = [1, 16, 1], strides = [1, 1, 1]} : vector<16x16x1xi1> to vector<1x16x1xi1>
      %236 = vector.shape_cast %235 : vector<1x16x1xi1> to vector<16x1xi1>
      %237 = vector.shape_cast %236 : vector<16x1xi1> to vector<16x1xi1>
      %238 = vector.broadcast %237 : vector<16x1xi1> to vector<16x32xi1>
      %239 = arith.select %238, %234, %205 : vector<16x32xi1>, vector<16x32xf32>
      %240 = vector.shape_cast %236 : vector<16x1xi1> to vector<16x1xi1>
      %241 = vector.broadcast %240 : vector<16x1xi1> to vector<16x32xi1>
      %242 = arith.select %241, %232, %208 : vector<16x32xi1>, vector<16x32xf32>
      %cst_76 = arith.constant 0.000000e+00 : f32
      %243 = vector.shape_cast %236 : vector<16x1xi1> to vector<16x1xi1>
      %244 = vector.broadcast %243 : vector<16x1xi1> to vector<16x32xi1>
      %245 = vector.broadcast %cst_76 : f32 to vector<16x32xf32>
      %246 = arith.select %244, %234, %245 : vector<16x32xi1>, vector<16x32xf32>
      %247 = arith.truncf %246 : vector<16x32xf32> to vector<16x32xbf16>
      %c0_i32_77 = arith.constant 0 : i32
      %c0_i32_78 = arith.constant 0 : i32
      %c0_i32_79 = arith.constant 0 : i32
      %248 = tpu.memref_slice %arg7[%c0_i32_24, %c0_i32_77, %c0_i32_78, %c0_i32_79] : memref<1x16x16x32xbf16, #tpu.memory_space<vmem>> -> memref<1x16x16x32xbf16, #tpu.memory_space<vmem>>
      %249 = tpu.memref_squeeze %248 : memref<1x16x16x32xbf16, #tpu.memory_space<vmem>> -> memref<16x16x32xbf16, #tpu.memory_space<vmem>>
      %c5 = arith.constant 5 : index
      %c0_80 = arith.constant 0 : index
      %c0_81 = arith.constant 0 : index
      %250 = vector.load %249[%c5, %c0_80, %c0_81] : memref<16x16x32xbf16, #tpu.memory_space<vmem>>, vector<1x16x32xbf16>
      %251 = vector.shape_cast %250 : vector<1x16x32xbf16> to vector<16x32xbf16>
      %252 = vector.shape_cast %247 : vector<16x32xbf16> to vector<1x16x32xbf16>
      tpu.vector_store %249[%c5, %c0_80, %c0_81], %252 {strides = array<i32>} : memref<16x16x32xbf16, #tpu.memory_space<vmem>>, vector<1x16x32xbf16>,
      %c96 = arith.constant 96 : index
      %c0_82 = arith.constant 0 : index
      %253 = vector.load %arg10[%c96, %c0_82] : memref<256x128xf32, #tpu.memory_space<vmem>>, vector<16x128xf32>
      %254 = arith.truncf %239 : vector<16x32xf32> to vector<16x32xbf16>
      %cst_83 = arith.constant dense<0.000000e+00> : vector<16x128xf32>
      %255 = tpu.matmul %254, %5, %cst_83 {dimension_numbers = #tpu.dot_dimension_numbers<[1], [0], [0], [1], [0, 0, 1, 1], [], []>} : vector<16x32xbf16>, vector<32x128xbf16>, vector<16x128xf32> -> vector<16x128xf32>
      %256 = arith.addf %253, %255 : vector<16x128xf32>
      %257 = math.tanh %256 : vector<16x128xf32>
      %258 = arith.mulf %257, %37 : vector<16x128xf32>
      %259 = arith.addf %258, %40 : vector<16x128xf32>
      %260 = vector.extract_strided_slice %259 {offsets = [0, 0], sizes = [16, 32], strides = [1, 1]} : vector<16x128xf32> to vector<16x32xf32>
      %261 = vector.extract_strided_slice %259 {offsets = [0, 32], sizes = [16, 32], strides = [1, 1]} : vector<16x128xf32> to vector<16x32xf32>
      %262 = vector.extract_strided_slice %259 {offsets = [0, 64], sizes = [16, 32], strides = [1, 1]} : vector<16x128xf32> to vector<16x32xf32>
      %263 = vector.extract_strided_slice %259 {offsets = [0, 96], sizes = [16, 32], strides = [1, 1]} : vector<16x128xf32> to vector<16x32xf32>
      %264 = arith.mulf %261, %242 : vector<16x32xf32>
      %265 = arith.mulf %260, %262 : vector<16x32xf32>
      %266 = arith.addf %264, %265 : vector<16x32xf32>
      %267 = math.tanh %266 : vector<16x32xf32>
      %268 = arith.mulf %263, %267 : vector<16x32xf32>
      %269 = vector.extract_strided_slice %28 {offsets = [6, 0, 0], sizes = [1, 16, 1], strides = [1, 1, 1]} : vector<16x16x1xi1> to vector<1x16x1xi1>
      %270 = vector.shape_cast %269 : vector<1x16x1xi1> to vector<16x1xi1>
      %271 = vector.shape_cast %270 : vector<16x1xi1> to vector<16x1xi1>
      %272 = vector.broadcast %271 : vector<16x1xi1> to vector<16x32xi1>
      %273 = arith.select %272, %268, %239 : vector<16x32xi1>, vector<16x32xf32>
      %274 = vector.shape_cast %270 : vector<16x1xi1> to vector<16x1xi1>
      %275 = vector.broadcast %274 : vector<16x1xi1> to vector<16x32xi1>
      %276 = arith.select %275, %266, %242 : vector<16x32xi1>, vector<16x32xf32>
      %cst_84 = arith.constant 0.000000e+00 : f32
      %277 = vector.shape_cast %270 : vector<16x1xi1> to vector<16x1xi1>
      %278 = vector.broadcast %277 : vector<16x1xi1> to vector<16x32xi1>
      %279 = vector.broadcast %cst_84 : f32 to vector<16x32xf32>
      %280 = arith.select %278, %268, %279 : vector<16x32xi1>, vector<16x32xf32>
      %281 = arith.truncf %280 : vector<16x32xf32> to vector<16x32xbf16>
      %c0_i32_85 = arith.constant 0 : i32
      %c0_i32_86 = arith.constant 0 : i32
      %c0_i32_87 = arith.constant 0 : i32
      %282 = tpu.memref_slice %arg7[%c0_i32_24, %c0_i32_85, %c0_i32_86, %c0_i32_87] : memref<1x16x16x32xbf16, #tpu.memory_space<vmem>> -> memref<1x16x16x32xbf16, #tpu.memory_space<vmem>>
      %283 = tpu.memref_squeeze %282 : memref<1x16x16x32xbf16, #tpu.memory_space<vmem>> -> memref<16x16x32xbf16, #tpu.memory_space<vmem>>
      %c6 = arith.constant 6 : index
      %c0_88 = arith.constant 0 : index
      %c0_89 = arith.constant 0 : index
      %284 = vector.load %283[%c6, %c0_88, %c0_89] : memref<16x16x32xbf16, #tpu.memory_space<vmem>>, vector<1x16x32xbf16>
      %285 = vector.shape_cast %284 : vector<1x16x32xbf16> to vector<16x32xbf16>
      %286 = vector.shape_cast %281 : vector<16x32xbf16> to vector<1x16x32xbf16>
      tpu.vector_store %283[%c6, %c0_88, %c0_89], %286 {strides = array<i32>} : memref<16x16x32xbf16, #tpu.memory_space<vmem>>, vector<1x16x32xbf16>,
      %c112 = arith.constant 112 : index
      %c0_90 = arith.constant 0 : index
      %287 = vector.load %arg10[%c112, %c0_90] : memref<256x128xf32, #tpu.memory_space<vmem>>, vector<16x128xf32>
      %288 = arith.truncf %273 : vector<16x32xf32> to vector<16x32xbf16>
      %cst_91 = arith.constant dense<0.000000e+00> : vector<16x128xf32>
      %289 = tpu.matmul %288, %5, %cst_91 {dimension_numbers = #tpu.dot_dimension_numbers<[1], [0], [0], [1], [0, 0, 1, 1], [], []>} : vector<16x32xbf16>, vector<32x128xbf16>, vector<16x128xf32> -> vector<16x128xf32>
      %290 = arith.addf %287, %289 : vector<16x128xf32>
      %291 = math.tanh %290 : vector<16x128xf32>
      %292 = arith.mulf %291, %37 : vector<16x128xf32>
      %293 = arith.addf %292, %40 : vector<16x128xf32>
      %294 = vector.extract_strided_slice %293 {offsets = [0, 0], sizes = [16, 32], strides = [1, 1]} : vector<16x128xf32> to vector<16x32xf32>
      %295 = vector.extract_strided_slice %293 {offsets = [0, 32], sizes = [16, 32], strides = [1, 1]} : vector<16x128xf32> to vector<16x32xf32>
      %296 = vector.extract_strided_slice %293 {offsets = [0, 64], sizes = [16, 32], strides = [1, 1]} : vector<16x128xf32> to vector<16x32xf32>
      %297 = vector.extract_strided_slice %293 {offsets = [0, 96], sizes = [16, 32], strides = [1, 1]} : vector<16x128xf32> to vector<16x32xf32>
      %298 = arith.mulf %295, %276 : vector<16x32xf32>
      %299 = arith.mulf %294, %296 : vector<16x32xf32>
      %300 = arith.addf %298, %299 : vector<16x32xf32>
      %301 = math.tanh %300 : vector<16x32xf32>
      %302 = arith.mulf %297, %301 : vector<16x32xf32>
      %303 = vector.extract_strided_slice %28 {offsets = [7, 0, 0], sizes = [1, 16, 1], strides = [1, 1, 1]} : vector<16x16x1xi1> to vector<1x16x1xi1>
      %304 = vector.shape_cast %303 : vector<1x16x1xi1> to vector<16x1xi1>
      %305 = vector.shape_cast %304 : vector<16x1xi1> to vector<16x1xi1>
      %306 = vector.broadcast %305 : vector<16x1xi1> to vector<16x32xi1>
      %307 = arith.select %306, %302, %273 : vector<16x32xi1>, vector<16x32xf32>
      %308 = vector.shape_cast %304 : vector<16x1xi1> to vector<16x1xi1>
      %309 = vector.broadcast %308 : vector<16x1xi1> to vector<16x32xi1>
      %310 = arith.select %309, %300, %276 : vector<16x32xi1>, vector<16x32xf32>
      %cst_92 = arith.constant 0.000000e+00 : f32
      %311 = vector.shape_cast %304 : vector<16x1xi1> to vector<16x1xi1>
      %312 = vector.broadcast %311 : vector<16x1xi1> to vector<16x32xi1>
      %313 = vector.broadcast %cst_92 : f32 to vector<16x32xf32>
      %314 = arith.select %312, %302, %313 : vector<16x32xi1>, vector<16x32xf32>
      %315 = arith.truncf %314 : vector<16x32xf32> to vector<16x32xbf16>
      %c0_i32_93 = arith.constant 0 : i32
      %c0_i32_94 = arith.constant 0 : i32
      %c0_i32_95 = arith.constant 0 : i32
      %316 = tpu.memref_slice %arg7[%c0_i32_24, %c0_i32_93, %c0_i32_94, %c0_i32_95] : memref<1x16x16x32xbf16, #tpu.memory_space<vmem>> -> memref<1x16x16x32xbf16, #tpu.memory_space<vmem>>
      %317 = tpu.memref_squeeze %316 : memref<1x16x16x32xbf16, #tpu.memory_space<vmem>> -> memref<16x16x32xbf16, #tpu.memory_space<vmem>>
      %c7 = arith.constant 7 : index
      %c0_96 = arith.constant 0 : index
      %c0_97 = arith.constant 0 : index
      %318 = vector.load %317[%c7, %c0_96, %c0_97] : memref<16x16x32xbf16, #tpu.memory_space<vmem>>, vector<1x16x32xbf16>
      %319 = vector.shape_cast %318 : vector<1x16x32xbf16> to vector<16x32xbf16>
      %320 = vector.shape_cast %315 : vector<16x32xbf16> to vector<1x16x32xbf16>
      tpu.vector_store %317[%c7, %c0_96, %c0_97], %320 {strides = array<i32>} : memref<16x16x32xbf16, #tpu.memory_space<vmem>>, vector<1x16x32xbf16>,
      %c128 = arith.constant 128 : index
      %c0_98 = arith.constant 0 : index
      %321 = vector.load %arg10[%c128, %c0_98] : memref<256x128xf32, #tpu.memory_space<vmem>>, vector<16x128xf32>
      %322 = arith.truncf %307 : vector<16x32xf32> to vector<16x32xbf16>
      %cst_99 = arith.constant dense<0.000000e+00> : vector<16x128xf32>
      %323 = tpu.matmul %322, %5, %cst_99 {dimension_numbers = #tpu.dot_dimension_numbers<[1], [0], [0], [1], [0, 0, 1, 1], [], []>} : vector<16x32xbf16>, vector<32x128xbf16>, vector<16x128xf32> -> vector<16x128xf32>
      %324 = arith.addf %321, %323 : vector<16x128xf32>
      %325 = math.tanh %324 : vector<16x128xf32>
      %326 = arith.mulf %325, %37 : vector<16x128xf32>
      %327 = arith.addf %326, %40 : vector<16x128xf32>
      %328 = vector.extract_strided_slice %327 {offsets = [0, 0], sizes = [16, 32], strides = [1, 1]} : vector<16x128xf32> to vector<16x32xf32>
      %329 = vector.extract_strided_slice %327 {offsets = [0, 32], sizes = [16, 32], strides = [1, 1]} : vector<16x128xf32> to vector<16x32xf32>
      %330 = vector.extract_strided_slice %327 {offsets = [0, 64], sizes = [16, 32], strides = [1, 1]} : vector<16x128xf32> to vector<16x32xf32>
      %331 = vector.extract_strided_slice %327 {offsets = [0, 96], sizes = [16, 32], strides = [1, 1]} : vector<16x128xf32> to vector<16x32xf32>
      %332 = arith.mulf %329, %310 : vector<16x32xf32>
      %333 = arith.mulf %328, %330 : vector<16x32xf32>
      %334 = arith.addf %332, %333 : vector<16x32xf32>
      %335 = math.tanh %334 : vector<16x32xf32>
      %336 = arith.mulf %331, %335 : vector<16x32xf32>
      %337 = vector.extract_strided_slice %28 {offsets = [8, 0, 0], sizes = [1, 16, 1], strides = [1, 1, 1]} : vector<16x16x1xi1> to vector<1x16x1xi1>
      %338 = vector.shape_cast %337 : vector<1x16x1xi1> to vector<16x1xi1>
      %339 = vector.shape_cast %338 : vector<16x1xi1> to vector<16x1xi1>
      %340 = vector.broadcast %339 : vector<16x1xi1> to vector<16x32xi1>
      %341 = arith.select %340, %336, %307 : vector<16x32xi1>, vector<16x32xf32>
      %342 = vector.shape_cast %338 : vector<16x1xi1> to vector<16x1xi1>
      %343 = vector.broadcast %342 : vector<16x1xi1> to vector<16x32xi1>
      %344 = arith.select %343, %334, %310 : vector<16x32xi1>, vector<16x32xf32>
      %cst_100 = arith.constant 0.000000e+00 : f32
      %345 = vector.shape_cast %338 : vector<16x1xi1> to vector<16x1xi1>
      %346 = vector.broadcast %345 : vector<16x1xi1> to vector<16x32xi1>
      %347 = vector.broadcast %cst_100 : f32 to vector<16x32xf32>
      %348 = arith.select %346, %336, %347 : vector<16x32xi1>, vector<16x32xf32>
      %349 = arith.truncf %348 : vector<16x32xf32> to vector<16x32xbf16>
      %c0_i32_101 = arith.constant 0 : i32
      %c0_i32_102 = arith.constant 0 : i32
      %c0_i32_103 = arith.constant 0 : i32
      %350 = tpu.memref_slice %arg7[%c0_i32_24, %c0_i32_101, %c0_i32_102, %c0_i32_103] : memref<1x16x16x32xbf16, #tpu.memory_space<vmem>> -> memref<1x16x16x32xbf16, #tpu.memory_space<vmem>>
      %351 = tpu.memref_squeeze %350 : memref<1x16x16x32xbf16, #tpu.memory_space<vmem>> -> memref<16x16x32xbf16, #tpu.memory_space<vmem>>
      %c8 = arith.constant 8 : index
      %c0_104 = arith.constant 0 : index
      %c0_105 = arith.constant 0 : index
      %352 = vector.load %351[%c8, %c0_104, %c0_105] : memref<16x16x32xbf16, #tpu.memory_space<vmem>>, vector<1x16x32xbf16>
      %353 = vector.shape_cast %352 : vector<1x16x32xbf16> to vector<16x32xbf16>
      %354 = vector.shape_cast %349 : vector<16x32xbf16> to vector<1x16x32xbf16>
      tpu.vector_store %351[%c8, %c0_104, %c0_105], %354 {strides = array<i32>} : memref<16x16x32xbf16, #tpu.memory_space<vmem>>, vector<1x16x32xbf16>,
      %c144 = arith.constant 144 : index
      %c0_106 = arith.constant 0 : index
      %355 = vector.load %arg10[%c144, %c0_106] : memref<256x128xf32, #tpu.memory_space<vmem>>, vector<16x128xf32>
      %356 = arith.truncf %341 : vector<16x32xf32> to vector<16x32xbf16>
      %cst_107 = arith.constant dense<0.000000e+00> : vector<16x128xf32>
      %357 = tpu.matmul %356, %5, %cst_107 {dimension_numbers = #tpu.dot_dimension_numbers<[1], [0], [0], [1], [0, 0, 1, 1], [], []>} : vector<16x32xbf16>, vector<32x128xbf16>, vector<16x128xf32> -> vector<16x128xf32>
      %358 = arith.addf %355, %357 : vector<16x128xf32>
      %359 = math.tanh %358 : vector<16x128xf32>
      %360 = arith.mulf %359, %37 : vector<16x128xf32>
      %361 = arith.addf %360, %40 : vector<16x128xf32>
      %362 = vector.extract_strided_slice %361 {offsets = [0, 0], sizes = [16, 32], strides = [1, 1]} : vector<16x128xf32> to vector<16x32xf32>
      %363 = vector.extract_strided_slice %361 {offsets = [0, 32], sizes = [16, 32], strides = [1, 1]} : vector<16x128xf32> to vector<16x32xf32>
      %364 = vector.extract_strided_slice %361 {offsets = [0, 64], sizes = [16, 32], strides = [1, 1]} : vector<16x128xf32> to vector<16x32xf32>
      %365 = vector.extract_strided_slice %361 {offsets = [0, 96], sizes = [16, 32], strides = [1, 1]} : vector<16x128xf32> to vector<16x32xf32>
      %366 = arith.mulf %363, %344 : vector<16x32xf32>
      %367 = arith.mulf %362, %364 : vector<16x32xf32>
      %368 = arith.addf %366, %367 : vector<16x32xf32>
      %369 = math.tanh %368 : vector<16x32xf32>
      %370 = arith.mulf %365, %369 : vector<16x32xf32>
      %371 = vector.extract_strided_slice %28 {offsets = [9, 0, 0], sizes = [1, 16, 1], strides = [1, 1, 1]} : vector<16x16x1xi1> to vector<1x16x1xi1>
      %372 = vector.shape_cast %371 : vector<1x16x1xi1> to vector<16x1xi1>
      %373 = vector.shape_cast %372 : vector<16x1xi1> to vector<16x1xi1>
      %374 = vector.broadcast %373 : vector<16x1xi1> to vector<16x32xi1>
      %375 = arith.select %374, %370, %341 : vector<16x32xi1>, vector<16x32xf32>
      %376 = vector.shape_cast %372 : vector<16x1xi1> to vector<16x1xi1>
      %377 = vector.broadcast %376 : vector<16x1xi1> to vector<16x32xi1>
      %378 = arith.select %377, %368, %344 : vector<16x32xi1>, vector<16x32xf32>
      %cst_108 = arith.constant 0.000000e+00 : f32
      %379 = vector.shape_cast %372 : vector<16x1xi1> to vector<16x1xi1>
      %380 = vector.broadcast %379 : vector<16x1xi1> to vector<16x32xi1>
      %381 = vector.broadcast %cst_108 : f32 to vector<16x32xf32>
      %382 = arith.select %380, %370, %381 : vector<16x32xi1>, vector<16x32xf32>
      %383 = arith.truncf %382 : vector<16x32xf32> to vector<16x32xbf16>
      %c0_i32_109 = arith.constant 0 : i32
      %c0_i32_110 = arith.constant 0 : i32
      %c0_i32_111 = arith.constant 0 : i32
      %384 = tpu.memref_slice %arg7[%c0_i32_24, %c0_i32_109, %c0_i32_110, %c0_i32_111] : memref<1x16x16x32xbf16, #tpu.memory_space<vmem>> -> memref<1x16x16x32xbf16, #tpu.memory_space<vmem>>
      %385 = tpu.memref_squeeze %384 : memref<1x16x16x32xbf16, #tpu.memory_space<vmem>> -> memref<16x16x32xbf16, #tpu.memory_space<vmem>>
      %c9 = arith.constant 9 : index
      %c0_112 = arith.constant 0 : index
      %c0_113 = arith.constant 0 : index
      %386 = vector.load %385[%c9, %c0_112, %c0_113] : memref<16x16x32xbf16, #tpu.memory_space<vmem>>, vector<1x16x32xbf16>
      %387 = vector.shape_cast %386 : vector<1x16x32xbf16> to vector<16x32xbf16>
      %388 = vector.shape_cast %383 : vector<16x32xbf16> to vector<1x16x32xbf16>
      tpu.vector_store %385[%c9, %c0_112, %c0_113], %388 {strides = array<i32>} : memref<16x16x32xbf16, #tpu.memory_space<vmem>>, vector<1x16x32xbf16>,
      %c160 = arith.constant 160 : index
      %c0_114 = arith.constant 0 : index
      %389 = vector.load %arg10[%c160, %c0_114] : memref<256x128xf32, #tpu.memory_space<vmem>>, vector<16x128xf32>
      %390 = arith.truncf %375 : vector<16x32xf32> to vector<16x32xbf16>
      %cst_115 = arith.constant dense<0.000000e+00> : vector<16x128xf32>
      %391 = tpu.matmul %390, %5, %cst_115 {dimension_numbers = #tpu.dot_dimension_numbers<[1], [0], [0], [1], [0, 0, 1, 1], [], []>} : vector<16x32xbf16>, vector<32x128xbf16>, vector<16x128xf32> -> vector<16x128xf32>
      %392 = arith.addf %389, %391 : vector<16x128xf32>
      %393 = math.tanh %392 : vector<16x128xf32>
      %394 = arith.mulf %393, %37 : vector<16x128xf32>
      %395 = arith.addf %394, %40 : vector<16x128xf32>
      %396 = vector.extract_strided_slice %395 {offsets = [0, 0], sizes = [16, 32], strides = [1, 1]} : vector<16x128xf32> to vector<16x32xf32>
      %397 = vector.extract_strided_slice %395 {offsets = [0, 32], sizes = [16, 32], strides = [1, 1]} : vector<16x128xf32> to vector<16x32xf32>
      %398 = vector.extract_strided_slice %395 {offsets = [0, 64], sizes = [16, 32], strides = [1, 1]} : vector<16x128xf32> to vector<16x32xf32>
      %399 = vector.extract_strided_slice %395 {offsets = [0, 96], sizes = [16, 32], strides = [1, 1]} : vector<16x128xf32> to vector<16x32xf32>
      %400 = arith.mulf %397, %378 : vector<16x32xf32>
      %401 = arith.mulf %396, %398 : vector<16x32xf32>
      %402 = arith.addf %400, %401 : vector<16x32xf32>
      %403 = math.tanh %402 : vector<16x32xf32>
      %404 = arith.mulf %399, %403 : vector<16x32xf32>
      %405 = vector.extract_strided_slice %28 {offsets = [10, 0, 0], sizes = [1, 16, 1], strides = [1, 1, 1]} : vector<16x16x1xi1> to vector<1x16x1xi1>
      %406 = vector.shape_cast %405 : vector<1x16x1xi1> to vector<16x1xi1>
      %407 = vector.shape_cast %406 : vector<16x1xi1> to vector<16x1xi1>
      %408 = vector.broadcast %407 : vector<16x1xi1> to vector<16x32xi1>
      %409 = arith.select %408, %404, %375 : vector<16x32xi1>, vector<16x32xf32>
      %410 = vector.shape_cast %406 : vector<16x1xi1> to vector<16x1xi1>
      %411 = vector.broadcast %410 : vector<16x1xi1> to vector<16x32xi1>
      %412 = arith.select %411, %402, %378 : vector<16x32xi1>, vector<16x32xf32>
      %cst_116 = arith.constant 0.000000e+00 : f32
      %413 = vector.shape_cast %406 : vector<16x1xi1> to vector<16x1xi1>
      %414 = vector.broadcast %413 : vector<16x1xi1> to vector<16x32xi1>
      %415 = vector.broadcast %cst_116 : f32 to vector<16x32xf32>
      %416 = arith.select %414, %404, %415 : vector<16x32xi1>, vector<16x32xf32>
      %417 = arith.truncf %416 : vector<16x32xf32> to vector<16x32xbf16>
      %c0_i32_117 = arith.constant 0 : i32
      %c0_i32_118 = arith.constant 0 : i32
      %c0_i32_119 = arith.constant 0 : i32
      %418 = tpu.memref_slice %arg7[%c0_i32_24, %c0_i32_117, %c0_i32_118, %c0_i32_119] : memref<1x16x16x32xbf16, #tpu.memory_space<vmem>> -> memref<1x16x16x32xbf16, #tpu.memory_space<vmem>>
      %419 = tpu.memref_squeeze %418 : memref<1x16x16x32xbf16, #tpu.memory_space<vmem>> -> memref<16x16x32xbf16, #tpu.memory_space<vmem>>
      %c10 = arith.constant 10 : index
      %c0_120 = arith.constant 0 : index
      %c0_121 = arith.constant 0 : index
      %420 = vector.load %419[%c10, %c0_120, %c0_121] : memref<16x16x32xbf16, #tpu.memory_space<vmem>>, vector<1x16x32xbf16>
      %421 = vector.shape_cast %420 : vector<1x16x32xbf16> to vector<16x32xbf16>
      %422 = vector.shape_cast %417 : vector<16x32xbf16> to vector<1x16x32xbf16>
      tpu.vector_store %419[%c10, %c0_120, %c0_121], %422 {strides = array<i32>} : memref<16x16x32xbf16, #tpu.memory_space<vmem>>, vector<1x16x32xbf16>,
      %c176 = arith.constant 176 : index
      %c0_122 = arith.constant 0 : index
      %423 = vector.load %arg10[%c176, %c0_122] : memref<256x128xf32, #tpu.memory_space<vmem>>, vector<16x128xf32>
      %424 = arith.truncf %409 : vector<16x32xf32> to vector<16x32xbf16>
      %cst_123 = arith.constant dense<0.000000e+00> : vector<16x128xf32>
      %425 = tpu.matmul %424, %5, %cst_123 {dimension_numbers = #tpu.dot_dimension_numbers<[1], [0], [0], [1], [0, 0, 1, 1], [], []>} : vector<16x32xbf16>, vector<32x128xbf16>, vector<16x128xf32> -> vector<16x128xf32>
      %426 = arith.addf %423, %425 : vector<16x128xf32>
      %427 = math.tanh %426 : vector<16x128xf32>
      %428 = arith.mulf %427, %37 : vector<16x128xf32>
      %429 = arith.addf %428, %40 : vector<16x128xf32>
      %430 = vector.extract_strided_slice %429 {offsets = [0, 0], sizes = [16, 32], strides = [1, 1]} : vector<16x128xf32> to vector<16x32xf32>
      %431 = vector.extract_strided_slice %429 {offsets = [0, 32], sizes = [16, 32], strides = [1, 1]} : vector<16x128xf32> to vector<16x32xf32>
      %432 = vector.extract_strided_slice %429 {offsets = [0, 64], sizes = [16, 32], strides = [1, 1]} : vector<16x128xf32> to vector<16x32xf32>
      %433 = vector.extract_strided_slice %429 {offsets = [0, 96], sizes = [16, 32], strides = [1, 1]} : vector<16x128xf32> to vector<16x32xf32>
      %434 = arith.mulf %431, %412 : vector<16x32xf32>
      %435 = arith.mulf %430, %432 : vector<16x32xf32>
      %436 = arith.addf %434, %435 : vector<16x32xf32>
      %437 = math.tanh %436 : vector<16x32xf32>
      %438 = arith.mulf %433, %437 : vector<16x32xf32>
      %439 = vector.extract_strided_slice %28 {offsets = [11, 0, 0], sizes = [1, 16, 1], strides = [1, 1, 1]} : vector<16x16x1xi1> to vector<1x16x1xi1>
      %440 = vector.shape_cast %439 : vector<1x16x1xi1> to vector<16x1xi1>
      %441 = vector.shape_cast %440 : vector<16x1xi1> to vector<16x1xi1>
      %442 = vector.broadcast %441 : vector<16x1xi1> to vector<16x32xi1>
      %443 = arith.select %442, %438, %409 : vector<16x32xi1>, vector<16x32xf32>
      %444 = vector.shape_cast %440 : vector<16x1xi1> to vector<16x1xi1>
      %445 = vector.broadcast %444 : vector<16x1xi1> to vector<16x32xi1>
      %446 = arith.select %445, %436, %412 : vector<16x32xi1>, vector<16x32xf32>
      %cst_124 = arith.constant 0.000000e+00 : f32
      %447 = vector.shape_cast %440 : vector<16x1xi1> to vector<16x1xi1>
      %448 = vector.broadcast %447 : vector<16x1xi1> to vector<16x32xi1>
      %449 = vector.broadcast %cst_124 : f32 to vector<16x32xf32>
      %450 = arith.select %448, %438, %449 : vector<16x32xi1>, vector<16x32xf32>
      %451 = arith.truncf %450 : vector<16x32xf32> to vector<16x32xbf16>
      %c0_i32_125 = arith.constant 0 : i32
      %c0_i32_126 = arith.constant 0 : i32
      %c0_i32_127 = arith.constant 0 : i32
      %452 = tpu.memref_slice %arg7[%c0_i32_24, %c0_i32_125, %c0_i32_126, %c0_i32_127] : memref<1x16x16x32xbf16, #tpu.memory_space<vmem>> -> memref<1x16x16x32xbf16, #tpu.memory_space<vmem>>
      %453 = tpu.memref_squeeze %452 : memref<1x16x16x32xbf16, #tpu.memory_space<vmem>> -> memref<16x16x32xbf16, #tpu.memory_space<vmem>>
      %c11 = arith.constant 11 : index
      %c0_128 = arith.constant 0 : index
      %c0_129 = arith.constant 0 : index
      %454 = vector.load %453[%c11, %c0_128, %c0_129] : memref<16x16x32xbf16, #tpu.memory_space<vmem>>, vector<1x16x32xbf16>
      %455 = vector.shape_cast %454 : vector<1x16x32xbf16> to vector<16x32xbf16>
      %456 = vector.shape_cast %451 : vector<16x32xbf16> to vector<1x16x32xbf16>
      tpu.vector_store %453[%c11, %c0_128, %c0_129], %456 {strides = array<i32>} : memref<16x16x32xbf16, #tpu.memory_space<vmem>>, vector<1x16x32xbf16>,
      %c192 = arith.constant 192 : index
      %c0_130 = arith.constant 0 : index
      %457 = vector.load %arg10[%c192, %c0_130] : memref<256x128xf32, #tpu.memory_space<vmem>>, vector<16x128xf32>
      %458 = arith.truncf %443 : vector<16x32xf32> to vector<16x32xbf16>
      %cst_131 = arith.constant dense<0.000000e+00> : vector<16x128xf32>
      %459 = tpu.matmul %458, %5, %cst_131 {dimension_numbers = #tpu.dot_dimension_numbers<[1], [0], [0], [1], [0, 0, 1, 1], [], []>} : vector<16x32xbf16>, vector<32x128xbf16>, vector<16x128xf32> -> vector<16x128xf32>
      %460 = arith.addf %457, %459 : vector<16x128xf32>
      %461 = math.tanh %460 : vector<16x128xf32>
      %462 = arith.mulf %461, %37 : vector<16x128xf32>
      %463 = arith.addf %462, %40 : vector<16x128xf32>
      %464 = vector.extract_strided_slice %463 {offsets = [0, 0], sizes = [16, 32], strides = [1, 1]} : vector<16x128xf32> to vector<16x32xf32>
      %465 = vector.extract_strided_slice %463 {offsets = [0, 32], sizes = [16, 32], strides = [1, 1]} : vector<16x128xf32> to vector<16x32xf32>
      %466 = vector.extract_strided_slice %463 {offsets = [0, 64], sizes = [16, 32], strides = [1, 1]} : vector<16x128xf32> to vector<16x32xf32>
      %467 = vector.extract_strided_slice %463 {offsets = [0, 96], sizes = [16, 32], strides = [1, 1]} : vector<16x128xf32> to vector<16x32xf32>
      %468 = arith.mulf %465, %446 : vector<16x32xf32>
      %469 = arith.mulf %464, %466 : vector<16x32xf32>
      %470 = arith.addf %468, %469 : vector<16x32xf32>
      %471 = math.tanh %470 : vector<16x32xf32>
      %472 = arith.mulf %467, %471 : vector<16x32xf32>
      %473 = vector.extract_strided_slice %28 {offsets = [12, 0, 0], sizes = [1, 16, 1], strides = [1, 1, 1]} : vector<16x16x1xi1> to vector<1x16x1xi1>
      %474 = vector.shape_cast %473 : vector<1x16x1xi1> to vector<16x1xi1>
      %475 = vector.shape_cast %474 : vector<16x1xi1> to vector<16x1xi1>
      %476 = vector.broadcast %475 : vector<16x1xi1> to vector<16x32xi1>
      %477 = arith.select %476, %472, %443 : vector<16x32xi1>, vector<16x32xf32>
      %478 = vector.shape_cast %474 : vector<16x1xi1> to vector<16x1xi1>
      %479 = vector.broadcast %478 : vector<16x1xi1> to vector<16x32xi1>
      %480 = arith.select %479, %470, %446 : vector<16x32xi1>, vector<16x32xf32>
      %cst_132 = arith.constant 0.000000e+00 : f32
      %481 = vector.shape_cast %474 : vector<16x1xi1> to vector<16x1xi1>
      %482 = vector.broadcast %481 : vector<16x1xi1> to vector<16x32xi1>
      %483 = vector.broadcast %cst_132 : f32 to vector<16x32xf32>
      %484 = arith.select %482, %472, %483 : vector<16x32xi1>, vector<16x32xf32>
      %485 = arith.truncf %484 : vector<16x32xf32> to vector<16x32xbf16>
      %c0_i32_133 = arith.constant 0 : i32
      %c0_i32_134 = arith.constant 0 : i32
      %c0_i32_135 = arith.constant 0 : i32
      %486 = tpu.memref_slice %arg7[%c0_i32_24, %c0_i32_133, %c0_i32_134, %c0_i32_135] : memref<1x16x16x32xbf16, #tpu.memory_space<vmem>> -> memref<1x16x16x32xbf16, #tpu.memory_space<vmem>>
      %487 = tpu.memref_squeeze %486 : memref<1x16x16x32xbf16, #tpu.memory_space<vmem>> -> memref<16x16x32xbf16, #tpu.memory_space<vmem>>
      %c12 = arith.constant 12 : index
      %c0_136 = arith.constant 0 : index
      %c0_137 = arith.constant 0 : index
      %488 = vector.load %487[%c12, %c0_136, %c0_137] : memref<16x16x32xbf16, #tpu.memory_space<vmem>>, vector<1x16x32xbf16>
      %489 = vector.shape_cast %488 : vector<1x16x32xbf16> to vector<16x32xbf16>
      %490 = vector.shape_cast %485 : vector<16x32xbf16> to vector<1x16x32xbf16>
      tpu.vector_store %487[%c12, %c0_136, %c0_137], %490 {strides = array<i32>} : memref<16x16x32xbf16, #tpu.memory_space<vmem>>, vector<1x16x32xbf16>,
      %c208 = arith.constant 208 : index
      %c0_138 = arith.constant 0 : index
      %491 = vector.load %arg10[%c208, %c0_138] : memref<256x128xf32, #tpu.memory_space<vmem>>, vector<16x128xf32>
      %492 = arith.truncf %477 : vector<16x32xf32> to vector<16x32xbf16>
      %cst_139 = arith.constant dense<0.000000e+00> : vector<16x128xf32>
      %493 = tpu.matmul %492, %5, %cst_139 {dimension_numbers = #tpu.dot_dimension_numbers<[1], [0], [0], [1], [0, 0, 1, 1], [], []>} : vector<16x32xbf16>, vector<32x128xbf16>, vector<16x128xf32> -> vector<16x128xf32>
      %494 = arith.addf %491, %493 : vector<16x128xf32>
      %495 = math.tanh %494 : vector<16x128xf32>
      %496 = arith.mulf %495, %37 : vector<16x128xf32>
      %497 = arith.addf %496, %40 : vector<16x128xf32>
      %498 = vector.extract_strided_slice %497 {offsets = [0, 0], sizes = [16, 32], strides = [1, 1]} : vector<16x128xf32> to vector<16x32xf32>
      %499 = vector.extract_strided_slice %497 {offsets = [0, 32], sizes = [16, 32], strides = [1, 1]} : vector<16x128xf32> to vector<16x32xf32>
      %500 = vector.extract_strided_slice %497 {offsets = [0, 64], sizes = [16, 32], strides = [1, 1]} : vector<16x128xf32> to vector<16x32xf32>
      %501 = vector.extract_strided_slice %497 {offsets = [0, 96], sizes = [16, 32], strides = [1, 1]} : vector<16x128xf32> to vector<16x32xf32>
      %502 = arith.mulf %499, %480 : vector<16x32xf32>
      %503 = arith.mulf %498, %500 : vector<16x32xf32>
      %504 = arith.addf %502, %503 : vector<16x32xf32>
      %505 = math.tanh %504 : vector<16x32xf32>
      %506 = arith.mulf %501, %505 : vector<16x32xf32>
      %507 = vector.extract_strided_slice %28 {offsets = [13, 0, 0], sizes = [1, 16, 1], strides = [1, 1, 1]} : vector<16x16x1xi1> to vector<1x16x1xi1>
      %508 = vector.shape_cast %507 : vector<1x16x1xi1> to vector<16x1xi1>
      %509 = vector.shape_cast %508 : vector<16x1xi1> to vector<16x1xi1>
      %510 = vector.broadcast %509 : vector<16x1xi1> to vector<16x32xi1>
      %511 = arith.select %510, %506, %477 : vector<16x32xi1>, vector<16x32xf32>
      %512 = vector.shape_cast %508 : vector<16x1xi1> to vector<16x1xi1>
      %513 = vector.broadcast %512 : vector<16x1xi1> to vector<16x32xi1>
      %514 = arith.select %513, %504, %480 : vector<16x32xi1>, vector<16x32xf32>
      %cst_140 = arith.constant 0.000000e+00 : f32
      %515 = vector.shape_cast %508 : vector<16x1xi1> to vector<16x1xi1>
      %516 = vector.broadcast %515 : vector<16x1xi1> to vector<16x32xi1>
      %517 = vector.broadcast %cst_140 : f32 to vector<16x32xf32>
      %518 = arith.select %516, %506, %517 : vector<16x32xi1>, vector<16x32xf32>
      %519 = arith.truncf %518 : vector<16x32xf32> to vector<16x32xbf16>
      %c0_i32_141 = arith.constant 0 : i32
      %c0_i32_142 = arith.constant 0 : i32
      %c0_i32_143 = arith.constant 0 : i32
      %520 = tpu.memref_slice %arg7[%c0_i32_24, %c0_i32_141, %c0_i32_142, %c0_i32_143] : memref<1x16x16x32xbf16, #tpu.memory_space<vmem>> -> memref<1x16x16x32xbf16, #tpu.memory_space<vmem>>
      %521 = tpu.memref_squeeze %520 : memref<1x16x16x32xbf16, #tpu.memory_space<vmem>> -> memref<16x16x32xbf16, #tpu.memory_space<vmem>>
      %c13 = arith.constant 13 : index
      %c0_144 = arith.constant 0 : index
      %c0_145 = arith.constant 0 : index
      %522 = vector.load %521[%c13, %c0_144, %c0_145] : memref<16x16x32xbf16, #tpu.memory_space<vmem>>, vector<1x16x32xbf16>
      %523 = vector.shape_cast %522 : vector<1x16x32xbf16> to vector<16x32xbf16>
      %524 = vector.shape_cast %519 : vector<16x32xbf16> to vector<1x16x32xbf16>
      tpu.vector_store %521[%c13, %c0_144, %c0_145], %524 {strides = array<i32>} : memref<16x16x32xbf16, #tpu.memory_space<vmem>>, vector<1x16x32xbf16>,
      %c224 = arith.constant 224 : index
      %c0_146 = arith.constant 0 : index
      %525 = vector.load %arg10[%c224, %c0_146] : memref<256x128xf32, #tpu.memory_space<vmem>>, vector<16x128xf32>
      %526 = arith.truncf %511 : vector<16x32xf32> to vector<16x32xbf16>
      %cst_147 = arith.constant dense<0.000000e+00> : vector<16x128xf32>
      %527 = tpu.matmul %526, %5, %cst_147 {dimension_numbers = #tpu.dot_dimension_numbers<[1], [0], [0], [1], [0, 0, 1, 1], [], []>} : vector<16x32xbf16>, vector<32x128xbf16>, vector<16x128xf32> -> vector<16x128xf32>
      %528 = arith.addf %525, %527 : vector<16x128xf32>
      %529 = math.tanh %528 : vector<16x128xf32>
      %530 = arith.mulf %529, %37 : vector<16x128xf32>
      %531 = arith.addf %530, %40 : vector<16x128xf32>
      %532 = vector.extract_strided_slice %531 {offsets = [0, 0], sizes = [16, 32], strides = [1, 1]} : vector<16x128xf32> to vector<16x32xf32>
      %533 = vector.extract_strided_slice %531 {offsets = [0, 32], sizes = [16, 32], strides = [1, 1]} : vector<16x128xf32> to vector<16x32xf32>
      %534 = vector.extract_strided_slice %531 {offsets = [0, 64], sizes = [16, 32], strides = [1, 1]} : vector<16x128xf32> to vector<16x32xf32>
      %535 = vector.extract_strided_slice %531 {offsets = [0, 96], sizes = [16, 32], strides = [1, 1]} : vector<16x128xf32> to vector<16x32xf32>
      %536 = arith.mulf %533, %514 : vector<16x32xf32>
      %537 = arith.mulf %532, %534 : vector<16x32xf32>
      %538 = arith.addf %536, %537 : vector<16x32xf32>
      %539 = math.tanh %538 : vector<16x32xf32>
      %540 = arith.mulf %535, %539 : vector<16x32xf32>
      %541 = vector.extract_strided_slice %28 {offsets = [14, 0, 0], sizes = [1, 16, 1], strides = [1, 1, 1]} : vector<16x16x1xi1> to vector<1x16x1xi1>
      %542 = vector.shape_cast %541 : vector<1x16x1xi1> to vector<16x1xi1>
      %543 = vector.shape_cast %542 : vector<16x1xi1> to vector<16x1xi1>
      %544 = vector.broadcast %543 : vector<16x1xi1> to vector<16x32xi1>
      %545 = arith.select %544, %540, %511 : vector<16x32xi1>, vector<16x32xf32>
      %546 = vector.shape_cast %542 : vector<16x1xi1> to vector<16x1xi1>
      %547 = vector.broadcast %546 : vector<16x1xi1> to vector<16x32xi1>
      %548 = arith.select %547, %538, %514 : vector<16x32xi1>, vector<16x32xf32>
      %cst_148 = arith.constant 0.000000e+00 : f32
      %549 = vector.shape_cast %542 : vector<16x1xi1> to vector<16x1xi1>
      %550 = vector.broadcast %549 : vector<16x1xi1> to vector<16x32xi1>
      %551 = vector.broadcast %cst_148 : f32 to vector<16x32xf32>
      %552 = arith.select %550, %540, %551 : vector<16x32xi1>, vector<16x32xf32>
      %553 = arith.truncf %552 : vector<16x32xf32> to vector<16x32xbf16>
      %c0_i32_149 = arith.constant 0 : i32
      %c0_i32_150 = arith.constant 0 : i32
      %c0_i32_151 = arith.constant 0 : i32
      %554 = tpu.memref_slice %arg7[%c0_i32_24, %c0_i32_149, %c0_i32_150, %c0_i32_151] : memref<1x16x16x32xbf16, #tpu.memory_space<vmem>> -> memref<1x16x16x32xbf16, #tpu.memory_space<vmem>>
      %555 = tpu.memref_squeeze %554 : memref<1x16x16x32xbf16, #tpu.memory_space<vmem>> -> memref<16x16x32xbf16, #tpu.memory_space<vmem>>
      %c14 = arith.constant 14 : index
      %c0_152 = arith.constant 0 : index
      %c0_153 = arith.constant 0 : index
      %556 = vector.load %555[%c14, %c0_152, %c0_153] : memref<16x16x32xbf16, #tpu.memory_space<vmem>>, vector<1x16x32xbf16>
      %557 = vector.shape_cast %556 : vector<1x16x32xbf16> to vector<16x32xbf16>
      %558 = vector.shape_cast %553 : vector<16x32xbf16> to vector<1x16x32xbf16>
      tpu.vector_store %555[%c14, %c0_152, %c0_153], %558 {strides = array<i32>} : memref<16x16x32xbf16, #tpu.memory_space<vmem>>, vector<1x16x32xbf16>,
      %c240 = arith.constant 240 : index
      %c0_154 = arith.constant 0 : index
      %559 = vector.load %arg10[%c240, %c0_154] : memref<256x128xf32, #tpu.memory_space<vmem>>, vector<16x128xf32>
      %560 = arith.truncf %545 : vector<16x32xf32> to vector<16x32xbf16>
      %cst_155 = arith.constant dense<0.000000e+00> : vector<16x128xf32>
      %561 = tpu.matmul %560, %5, %cst_155 {dimension_numbers = #tpu.dot_dimension_numbers<[1], [0], [0], [1], [0, 0, 1, 1], [], []>} : vector<16x32xbf16>, vector<32x128xbf16>, vector<16x128xf32> -> vector<16x128xf32>
      %562 = arith.addf %559, %561 : vector<16x128xf32>
      %563 = math.tanh %562 : vector<16x128xf32>
      %564 = arith.mulf %563, %37 : vector<16x128xf32>
      %565 = arith.addf %564, %40 : vector<16x128xf32>
      %566 = vector.extract_strided_slice %565 {offsets = [0, 0], sizes = [16, 32], strides = [1, 1]} : vector<16x128xf32> to vector<16x32xf32>
      %567 = vector.extract_strided_slice %565 {offsets = [0, 32], sizes = [16, 32], strides = [1, 1]} : vector<16x128xf32> to vector<16x32xf32>
      %568 = vector.extract_strided_slice %565 {offsets = [0, 64], sizes = [16, 32], strides = [1, 1]} : vector<16x128xf32> to vector<16x32xf32>
      %569 = vector.extract_strided_slice %565 {offsets = [0, 96], sizes = [16, 32], strides = [1, 1]} : vector<16x128xf32> to vector<16x32xf32>
      %570 = arith.mulf %567, %548 : vector<16x32xf32>
      %571 = arith.mulf %566, %568 : vector<16x32xf32>
      %572 = arith.addf %570, %571 : vector<16x32xf32>
      %573 = math.tanh %572 : vector<16x32xf32>
      %574 = arith.mulf %569, %573 : vector<16x32xf32>
      %575 = vector.extract_strided_slice %28 {offsets = [15, 0, 0], sizes = [1, 16, 1], strides = [1, 1, 1]} : vector<16x16x1xi1> to vector<1x16x1xi1>
      %576 = vector.shape_cast %575 : vector<1x16x1xi1> to vector<16x1xi1>
      %577 = vector.shape_cast %576 : vector<16x1xi1> to vector<16x1xi1>
      %578 = vector.broadcast %577 : vector<16x1xi1> to vector<16x32xi1>
      %579 = arith.select %578, %574, %545 : vector<16x32xi1>, vector<16x32xf32>
      %580 = vector.shape_cast %576 : vector<16x1xi1> to vector<16x1xi1>
      %581 = vector.broadcast %580 : vector<16x1xi1> to vector<16x32xi1>
      %582 = arith.select %581, %572, %548 : vector<16x32xi1>, vector<16x32xf32>
      %cst_156 = arith.constant 0.000000e+00 : f32
      %583 = vector.shape_cast %576 : vector<16x1xi1> to vector<16x1xi1>
      %584 = vector.broadcast %583 : vector<16x1xi1> to vector<16x32xi1>
      %585 = vector.broadcast %cst_156 : f32 to vector<16x32xf32>
      %586 = arith.select %584, %574, %585 : vector<16x32xi1>, vector<16x32xf32>
      %587 = arith.truncf %586 : vector<16x32xf32> to vector<16x32xbf16>
      %c0_i32_157 = arith.constant 0 : i32
      %c0_i32_158 = arith.constant 0 : i32
      %c0_i32_159 = arith.constant 0 : i32
      %588 = tpu.memref_slice %arg7[%c0_i32_24, %c0_i32_157, %c0_i32_158, %c0_i32_159] : memref<1x16x16x32xbf16, #tpu.memory_space<vmem>> -> memref<1x16x16x32xbf16, #tpu.memory_space<vmem>>
      %589 = tpu.memref_squeeze %588 : memref<1x16x16x32xbf16, #tpu.memory_space<vmem>> -> memref<16x16x32xbf16, #tpu.memory_space<vmem>>
      %c15 = arith.constant 15 : index
      %c0_160 = arith.constant 0 : index
      %c0_161 = arith.constant 0 : index
      %590 = vector.load %589[%c15, %c0_160, %c0_161] : memref<16x16x32xbf16, #tpu.memory_space<vmem>>, vector<1x16x32xbf16>
      %591 = vector.shape_cast %590 : vector<1x16x32xbf16> to vector<16x32xbf16>
      %592 = vector.shape_cast %587 : vector<16x32xbf16> to vector<1x16x32xbf16>
      tpu.vector_store %589[%c15, %c0_160, %c0_161], %592 {strides = array<i32>} : memref<16x16x32xbf16, #tpu.memory_space<vmem>>, vector<1x16x32xbf16>,
      %c0_162 = arith.constant 0 : index
      %c0_163 = arith.constant 0 : index
      %593 = vector.load %arg8[%c0_162, %c0_163] : memref<16x32xf32, #tpu.memory_space<vmem>>, vector<16x32xf32>
      tpu.vector_store %arg8[%c0_162, %c0_163], %579 {strides = array<i32>} : memref<16x32xf32, #tpu.memory_space<vmem>>, vector<16x32xf32>,
      %c0_164 = arith.constant 0 : index
      %c0_165 = arith.constant 0 : index
      %594 = vector.load %arg9[%c0_164, %c0_165] : memref<16x32xf32, #tpu.memory_space<vmem>>, vector<16x32xf32>
      tpu.vector_store %arg9[%c0_164, %c0_165], %582 {strides = array<i32>} : memref<16x32xf32, #tpu.memory_space<vmem>>, vector<16x32xf32>,
    } else {
    }
    %c1_i32 = arith.constant 1 : i32
    %44 = arith.cmpi eq, %arg0, %c1_i32 : i32
    %45 = arith.extui %44 : i1 to i32
    %c0_i32_26 = arith.constant 0 : i32
    %c0_i32_27 = arith.constant 0 : i32
    %46 = arith.cmpi ne, %45, %c0_i32_27 : i32
    scf.if %46 {
      %c0_28 = arith.constant 0 : index
      %c0_29 = arith.constant 0 : index
      %47 = vector.load %arg8[%c0_28, %c0_29] : memref<16x32xf32, #tpu.memory_space<vmem>>, vector<16x32xf32>
      %c0_30 = arith.constant 0 : index
      %c0_31 = arith.constant 0 : index
      %48 = vector.load %arg9[%c0_30, %c0_31] : memref<16x32xf32, #tpu.memory_space<vmem>>, vector<16x32xf32>
      %c240 = arith.constant 240 : index
      %c0_32 = arith.constant 0 : index
      %49 = vector.load %arg10[%c240, %c0_32] : memref<256x128xf32, #tpu.memory_space<vmem>>, vector<16x128xf32>
      %50 = arith.truncf %47 : vector<16x32xf32> to vector<16x32xbf16>
      %cst_33 = arith.constant dense<0.000000e+00> : vector<16x128xf32>
      %51 = tpu.matmul %50, %5, %cst_33 {dimension_numbers = #tpu.dot_dimension_numbers<[1], [0], [0], [1], [0, 0, 1, 1], [], []>} : vector<16x32xbf16>, vector<32x128xbf16>, vector<16x128xf32> -> vector<16x128xf32>
      %52 = arith.addf %49, %51 : vector<16x128xf32>
      %53 = math.tanh %52 : vector<16x128xf32>
      %54 = arith.mulf %53, %37 : vector<16x128xf32>
      %55 = arith.addf %54, %40 : vector<16x128xf32>
      %56 = vector.extract_strided_slice %55 {offsets = [0, 0], sizes = [16, 32], strides = [1, 1]} : vector<16x128xf32> to vector<16x32xf32>
      %57 = vector.extract_strided_slice %55 {offsets = [0, 32], sizes = [16, 32], strides = [1, 1]} : vector<16x128xf32> to vector<16x32xf32>
      %58 = vector.extract_strided_slice %55 {offsets = [0, 64], sizes = [16, 32], strides = [1, 1]} : vector<16x128xf32> to vector<16x32xf32>
      %59 = vector.extract_strided_slice %55 {offsets = [0, 96], sizes = [16, 32], strides = [1, 1]} : vector<16x128xf32> to vector<16x32xf32>
      %60 = arith.mulf %57, %48 : vector<16x32xf32>
      %61 = arith.mulf %56, %58 : vector<16x32xf32>
      %62 = arith.addf %60, %61 : vector<16x32xf32>
      %63 = math.tanh %62 : vector<16x32xf32>
      %64 = arith.mulf %59, %63 : vector<16x32xf32>
      %65 = vector.extract_strided_slice %28 {offsets = [15, 0, 0], sizes = [1, 16, 1], strides = [1, 1, 1]} : vector<16x16x1xi1> to vector<1x16x1xi1>
      %66 = vector.shape_cast %65 : vector<1x16x1xi1> to vector<16x1xi1>
      %67 = vector.shape_cast %66 : vector<16x1xi1> to vector<16x1xi1>
      %68 = vector.broadcast %67 : vector<16x1xi1> to vector<16x32xi1>
      %69 = arith.select %68, %64, %47 : vector<16x32xi1>, vector<16x32xf32>
      %70 = vector.shape_cast %66 : vector<16x1xi1> to vector<16x1xi1>
      %71 = vector.broadcast %70 : vector<16x1xi1> to vector<16x32xi1>
      %72 = arith.select %71, %62, %48 : vector<16x32xi1>, vector<16x32xf32>
      %cst_34 = arith.constant 0.000000e+00 : f32
      %73 = vector.shape_cast %66 : vector<16x1xi1> to vector<16x1xi1>
      %74 = vector.broadcast %73 : vector<16x1xi1> to vector<16x32xi1>
      %75 = vector.broadcast %cst_34 : f32 to vector<16x32xf32>
      %76 = arith.select %74, %64, %75 : vector<16x32xi1>, vector<16x32xf32>
      %77 = arith.truncf %76 : vector<16x32xf32> to vector<16x32xbf16>
      %c0_i32_35 = arith.constant 0 : i32
      %c0_i32_36 = arith.constant 0 : i32
      %c0_i32_37 = arith.constant 0 : i32
      %78 = tpu.memref_slice %arg7[%c0_i32_26, %c0_i32_35, %c0_i32_36, %c0_i32_37] : memref<1x16x16x32xbf16, #tpu.memory_space<vmem>> -> memref<1x16x16x32xbf16, #tpu.memory_space<vmem>>
      %79 = tpu.memref_squeeze %78 : memref<1x16x16x32xbf16, #tpu.memory_space<vmem>> -> memref<16x16x32xbf16, #tpu.memory_space<vmem>>
      %c15 = arith.constant 15 : index
      %c0_38 = arith.constant 0 : index
      %c0_39 = arith.constant 0 : index
      %80 = vector.load %79[%c15, %c0_38, %c0_39] : memref<16x16x32xbf16, #tpu.memory_space<vmem>>, vector<1x16x32xbf16>
      %81 = vector.shape_cast %80 : vector<1x16x32xbf16> to vector<16x32xbf16>
      %82 = vector.shape_cast %77 : vector<16x32xbf16> to vector<1x16x32xbf16>
      tpu.vector_store %79[%c15, %c0_38, %c0_39], %82 {strides = array<i32>} : memref<16x16x32xbf16, #tpu.memory_space<vmem>>, vector<1x16x32xbf16>,
      %c224 = arith.constant 224 : index
      %c0_40 = arith.constant 0 : index
      %83 = vector.load %arg10[%c224, %c0_40] : memref<256x128xf32, #tpu.memory_space<vmem>>, vector<16x128xf32>
      %84 = arith.truncf %69 : vector<16x32xf32> to vector<16x32xbf16>
      %cst_41 = arith.constant dense<0.000000e+00> : vector<16x128xf32>
      %85 = tpu.matmul %84, %5, %cst_41 {dimension_numbers = #tpu.dot_dimension_numbers<[1], [0], [0], [1], [0, 0, 1, 1], [], []>} : vector<16x32xbf16>, vector<32x128xbf16>, vector<16x128xf32> -> vector<16x128xf32>
      %86 = arith.addf %83, %85 : vector<16x128xf32>
      %87 = math.tanh %86 : vector<16x128xf32>
      %88 = arith.mulf %87, %37 : vector<16x128xf32>
      %89 = arith.addf %88, %40 : vector<16x128xf32>
      %90 = vector.extract_strided_slice %89 {offsets = [0, 0], sizes = [16, 32], strides = [1, 1]} : vector<16x128xf32> to vector<16x32xf32>
      %91 = vector.extract_strided_slice %89 {offsets = [0, 32], sizes = [16, 32], strides = [1, 1]} : vector<16x128xf32> to vector<16x32xf32>
      %92 = vector.extract_strided_slice %89 {offsets = [0, 64], sizes = [16, 32], strides = [1, 1]} : vector<16x128xf32> to vector<16x32xf32>
      %93 = vector.extract_strided_slice %89 {offsets = [0, 96], sizes = [16, 32], strides = [1, 1]} : vector<16x128xf32> to vector<16x32xf32>
      %94 = arith.mulf %91, %72 : vector<16x32xf32>
      %95 = arith.mulf %90, %92 : vector<16x32xf32>
      %96 = arith.addf %94, %95 : vector<16x32xf32>
      %97 = math.tanh %96 : vector<16x32xf32>
      %98 = arith.mulf %93, %97 : vector<16x32xf32>
      %99 = vector.extract_strided_slice %28 {offsets = [14, 0, 0], sizes = [1, 16, 1], strides = [1, 1, 1]} : vector<16x16x1xi1> to vector<1x16x1xi1>
      %100 = vector.shape_cast %99 : vector<1x16x1xi1> to vector<16x1xi1>
      %101 = vector.shape_cast %100 : vector<16x1xi1> to vector<16x1xi1>
      %102 = vector.broadcast %101 : vector<16x1xi1> to vector<16x32xi1>
      %103 = arith.select %102, %98, %69 : vector<16x32xi1>, vector<16x32xf32>
      %104 = vector.shape_cast %100 : vector<16x1xi1> to vector<16x1xi1>
      %105 = vector.broadcast %104 : vector<16x1xi1> to vector<16x32xi1>
      %106 = arith.select %105, %96, %72 : vector<16x32xi1>, vector<16x32xf32>
      %cst_42 = arith.constant 0.000000e+00 : f32
      %107 = vector.shape_cast %100 : vector<16x1xi1> to vector<16x1xi1>
      %108 = vector.broadcast %107 : vector<16x1xi1> to vector<16x32xi1>
      %109 = vector.broadcast %cst_42 : f32 to vector<16x32xf32>
      %110 = arith.select %108, %98, %109 : vector<16x32xi1>, vector<16x32xf32>
      %111 = arith.truncf %110 : vector<16x32xf32> to vector<16x32xbf16>
      %c0_i32_43 = arith.constant 0 : i32
      %c0_i32_44 = arith.constant 0 : i32
      %c0_i32_45 = arith.constant 0 : i32
      %112 = tpu.memref_slice %arg7[%c0_i32_26, %c0_i32_43, %c0_i32_44, %c0_i32_45] : memref<1x16x16x32xbf16, #tpu.memory_space<vmem>> -> memref<1x16x16x32xbf16, #tpu.memory_space<vmem>>
      %113 = tpu.memref_squeeze %112 : memref<1x16x16x32xbf16, #tpu.memory_space<vmem>> -> memref<16x16x32xbf16, #tpu.memory_space<vmem>>
      %c14 = arith.constant 14 : index
      %c0_46 = arith.constant 0 : index
      %c0_47 = arith.constant 0 : index
      %114 = vector.load %113[%c14, %c0_46, %c0_47] : memref<16x16x32xbf16, #tpu.memory_space<vmem>>, vector<1x16x32xbf16>
      %115 = vector.shape_cast %114 : vector<1x16x32xbf16> to vector<16x32xbf16>
      %116 = vector.shape_cast %111 : vector<16x32xbf16> to vector<1x16x32xbf16>
      tpu.vector_store %113[%c14, %c0_46, %c0_47], %116 {strides = array<i32>} : memref<16x16x32xbf16, #tpu.memory_space<vmem>>, vector<1x16x32xbf16>,
      %c208 = arith.constant 208 : index
      %c0_48 = arith.constant 0 : index
      %117 = vector.load %arg10[%c208, %c0_48] : memref<256x128xf32, #tpu.memory_space<vmem>>, vector<16x128xf32>
      %118 = arith.truncf %103 : vector<16x32xf32> to vector<16x32xbf16>
      %cst_49 = arith.constant dense<0.000000e+00> : vector<16x128xf32>
      %119 = tpu.matmul %118, %5, %cst_49 {dimension_numbers = #tpu.dot_dimension_numbers<[1], [0], [0], [1], [0, 0, 1, 1], [], []>} : vector<16x32xbf16>, vector<32x128xbf16>, vector<16x128xf32> -> vector<16x128xf32>
      %120 = arith.addf %117, %119 : vector<16x128xf32>
      %121 = math.tanh %120 : vector<16x128xf32>
      %122 = arith.mulf %121, %37 : vector<16x128xf32>
      %123 = arith.addf %122, %40 : vector<16x128xf32>
      %124 = vector.extract_strided_slice %123 {offsets = [0, 0], sizes = [16, 32], strides = [1, 1]} : vector<16x128xf32> to vector<16x32xf32>
      %125 = vector.extract_strided_slice %123 {offsets = [0, 32], sizes = [16, 32], strides = [1, 1]} : vector<16x128xf32> to vector<16x32xf32>
      %126 = vector.extract_strided_slice %123 {offsets = [0, 64], sizes = [16, 32], strides = [1, 1]} : vector<16x128xf32> to vector<16x32xf32>
      %127 = vector.extract_strided_slice %123 {offsets = [0, 96], sizes = [16, 32], strides = [1, 1]} : vector<16x128xf32> to vector<16x32xf32>
      %128 = arith.mulf %125, %106 : vector<16x32xf32>
      %129 = arith.mulf %124, %126 : vector<16x32xf32>
      %130 = arith.addf %128, %129 : vector<16x32xf32>
      %131 = math.tanh %130 : vector<16x32xf32>
      %132 = arith.mulf %127, %131 : vector<16x32xf32>
      %133 = vector.extract_strided_slice %28 {offsets = [13, 0, 0], sizes = [1, 16, 1], strides = [1, 1, 1]} : vector<16x16x1xi1> to vector<1x16x1xi1>
      %134 = vector.shape_cast %133 : vector<1x16x1xi1> to vector<16x1xi1>
      %135 = vector.shape_cast %134 : vector<16x1xi1> to vector<16x1xi1>
      %136 = vector.broadcast %135 : vector<16x1xi1> to vector<16x32xi1>
      %137 = arith.select %136, %132, %103 : vector<16x32xi1>, vector<16x32xf32>
      %138 = vector.shape_cast %134 : vector<16x1xi1> to vector<16x1xi1>
      %139 = vector.broadcast %138 : vector<16x1xi1> to vector<16x32xi1>
      %140 = arith.select %139, %130, %106 : vector<16x32xi1>, vector<16x32xf32>
      %cst_50 = arith.constant 0.000000e+00 : f32
      %141 = vector.shape_cast %134 : vector<16x1xi1> to vector<16x1xi1>
      %142 = vector.broadcast %141 : vector<16x1xi1> to vector<16x32xi1>
      %143 = vector.broadcast %cst_50 : f32 to vector<16x32xf32>
      %144 = arith.select %142, %132, %143 : vector<16x32xi1>, vector<16x32xf32>
      %145 = arith.truncf %144 : vector<16x32xf32> to vector<16x32xbf16>
      %c0_i32_51 = arith.constant 0 : i32
      %c0_i32_52 = arith.constant 0 : i32
      %c0_i32_53 = arith.constant 0 : i32
      %146 = tpu.memref_slice %arg7[%c0_i32_26, %c0_i32_51, %c0_i32_52, %c0_i32_53] : memref<1x16x16x32xbf16, #tpu.memory_space<vmem>> -> memref<1x16x16x32xbf16, #tpu.memory_space<vmem>>
      %147 = tpu.memref_squeeze %146 : memref<1x16x16x32xbf16, #tpu.memory_space<vmem>> -> memref<16x16x32xbf16, #tpu.memory_space<vmem>>
      %c13 = arith.constant 13 : index
      %c0_54 = arith.constant 0 : index
      %c0_55 = arith.constant 0 : index
      %148 = vector.load %147[%c13, %c0_54, %c0_55] : memref<16x16x32xbf16, #tpu.memory_space<vmem>>, vector<1x16x32xbf16>
      %149 = vector.shape_cast %148 : vector<1x16x32xbf16> to vector<16x32xbf16>
      %150 = vector.shape_cast %145 : vector<16x32xbf16> to vector<1x16x32xbf16>
      tpu.vector_store %147[%c13, %c0_54, %c0_55], %150 {strides = array<i32>} : memref<16x16x32xbf16, #tpu.memory_space<vmem>>, vector<1x16x32xbf16>,
      %c192 = arith.constant 192 : index
      %c0_56 = arith.constant 0 : index
      %151 = vector.load %arg10[%c192, %c0_56] : memref<256x128xf32, #tpu.memory_space<vmem>>, vector<16x128xf32>
      %152 = arith.truncf %137 : vector<16x32xf32> to vector<16x32xbf16>
      %cst_57 = arith.constant dense<0.000000e+00> : vector<16x128xf32>
      %153 = tpu.matmul %152, %5, %cst_57 {dimension_numbers = #tpu.dot_dimension_numbers<[1], [0], [0], [1], [0, 0, 1, 1], [], []>} : vector<16x32xbf16>, vector<32x128xbf16>, vector<16x128xf32> -> vector<16x128xf32>
      %154 = arith.addf %151, %153 : vector<16x128xf32>
      %155 = math.tanh %154 : vector<16x128xf32>
      %156 = arith.mulf %155, %37 : vector<16x128xf32>
      %157 = arith.addf %156, %40 : vector<16x128xf32>
      %158 = vector.extract_strided_slice %157 {offsets = [0, 0], sizes = [16, 32], strides = [1, 1]} : vector<16x128xf32> to vector<16x32xf32>
      %159 = vector.extract_strided_slice %157 {offsets = [0, 32], sizes = [16, 32], strides = [1, 1]} : vector<16x128xf32> to vector<16x32xf32>
      %160 = vector.extract_strided_slice %157 {offsets = [0, 64], sizes = [16, 32], strides = [1, 1]} : vector<16x128xf32> to vector<16x32xf32>
      %161 = vector.extract_strided_slice %157 {offsets = [0, 96], sizes = [16, 32], strides = [1, 1]} : vector<16x128xf32> to vector<16x32xf32>
      %162 = arith.mulf %159, %140 : vector<16x32xf32>
      %163 = arith.mulf %158, %160 : vector<16x32xf32>
      %164 = arith.addf %162, %163 : vector<16x32xf32>
      %165 = math.tanh %164 : vector<16x32xf32>
      %166 = arith.mulf %161, %165 : vector<16x32xf32>
      %167 = vector.extract_strided_slice %28 {offsets = [12, 0, 0], sizes = [1, 16, 1], strides = [1, 1, 1]} : vector<16x16x1xi1> to vector<1x16x1xi1>
      %168 = vector.shape_cast %167 : vector<1x16x1xi1> to vector<16x1xi1>
      %169 = vector.shape_cast %168 : vector<16x1xi1> to vector<16x1xi1>
      %170 = vector.broadcast %169 : vector<16x1xi1> to vector<16x32xi1>
      %171 = arith.select %170, %166, %137 : vector<16x32xi1>, vector<16x32xf32>
      %172 = vector.shape_cast %168 : vector<16x1xi1> to vector<16x1xi1>
      %173 = vector.broadcast %172 : vector<16x1xi1> to vector<16x32xi1>
      %174 = arith.select %173, %164, %140 : vector<16x32xi1>, vector<16x32xf32>
      %cst_58 = arith.constant 0.000000e+00 : f32
      %175 = vector.shape_cast %168 : vector<16x1xi1> to vector<16x1xi1>
      %176 = vector.broadcast %175 : vector<16x1xi1> to vector<16x32xi1>
      %177 = vector.broadcast %cst_58 : f32 to vector<16x32xf32>
      %178 = arith.select %176, %166, %177 : vector<16x32xi1>, vector<16x32xf32>
      %179 = arith.truncf %178 : vector<16x32xf32> to vector<16x32xbf16>
      %c0_i32_59 = arith.constant 0 : i32
      %c0_i32_60 = arith.constant 0 : i32
      %c0_i32_61 = arith.constant 0 : i32
      %180 = tpu.memref_slice %arg7[%c0_i32_26, %c0_i32_59, %c0_i32_60, %c0_i32_61] : memref<1x16x16x32xbf16, #tpu.memory_space<vmem>> -> memref<1x16x16x32xbf16, #tpu.memory_space<vmem>>
      %181 = tpu.memref_squeeze %180 : memref<1x16x16x32xbf16, #tpu.memory_space<vmem>> -> memref<16x16x32xbf16, #tpu.memory_space<vmem>>
      %c12 = arith.constant 12 : index
      %c0_62 = arith.constant 0 : index
      %c0_63 = arith.constant 0 : index
      %182 = vector.load %181[%c12, %c0_62, %c0_63] : memref<16x16x32xbf16, #tpu.memory_space<vmem>>, vector<1x16x32xbf16>
      %183 = vector.shape_cast %182 : vector<1x16x32xbf16> to vector<16x32xbf16>
      %184 = vector.shape_cast %179 : vector<16x32xbf16> to vector<1x16x32xbf16>
      tpu.vector_store %181[%c12, %c0_62, %c0_63], %184 {strides = array<i32>} : memref<16x16x32xbf16, #tpu.memory_space<vmem>>, vector<1x16x32xbf16>,
      %c176 = arith.constant 176 : index
      %c0_64 = arith.constant 0 : index
      %185 = vector.load %arg10[%c176, %c0_64] : memref<256x128xf32, #tpu.memory_space<vmem>>, vector<16x128xf32>
      %186 = arith.truncf %171 : vector<16x32xf32> to vector<16x32xbf16>
      %cst_65 = arith.constant dense<0.000000e+00> : vector<16x128xf32>
      %187 = tpu.matmul %186, %5, %cst_65 {dimension_numbers = #tpu.dot_dimension_numbers<[1], [0], [0], [1], [0, 0, 1, 1], [], []>} : vector<16x32xbf16>, vector<32x128xbf16>, vector<16x128xf32> -> vector<16x128xf32>
      %188 = arith.addf %185, %187 : vector<16x128xf32>
      %189 = math.tanh %188 : vector<16x128xf32>
      %190 = arith.mulf %189, %37 : vector<16x128xf32>
      %191 = arith.addf %190, %40 : vector<16x128xf32>
      %192 = vector.extract_strided_slice %191 {offsets = [0, 0], sizes = [16, 32], strides = [1, 1]} : vector<16x128xf32> to vector<16x32xf32>
      %193 = vector.extract_strided_slice %191 {offsets = [0, 32], sizes = [16, 32], strides = [1, 1]} : vector<16x128xf32> to vector<16x32xf32>
      %194 = vector.extract_strided_slice %191 {offsets = [0, 64], sizes = [16, 32], strides = [1, 1]} : vector<16x128xf32> to vector<16x32xf32>
      %195 = vector.extract_strided_slice %191 {offsets = [0, 96], sizes = [16, 32], strides = [1, 1]} : vector<16x128xf32> to vector<16x32xf32>
      %196 = arith.mulf %193, %174 : vector<16x32xf32>
      %197 = arith.mulf %192, %194 : vector<16x32xf32>
      %198 = arith.addf %196, %197 : vector<16x32xf32>
      %199 = math.tanh %198 : vector<16x32xf32>
      %200 = arith.mulf %195, %199 : vector<16x32xf32>
      %201 = vector.extract_strided_slice %28 {offsets = [11, 0, 0], sizes = [1, 16, 1], strides = [1, 1, 1]} : vector<16x16x1xi1> to vector<1x16x1xi1>
      %202 = vector.shape_cast %201 : vector<1x16x1xi1> to vector<16x1xi1>
      %203 = vector.shape_cast %202 : vector<16x1xi1> to vector<16x1xi1>
      %204 = vector.broadcast %203 : vector<16x1xi1> to vector<16x32xi1>
      %205 = arith.select %204, %200, %171 : vector<16x32xi1>, vector<16x32xf32>
      %206 = vector.shape_cast %202 : vector<16x1xi1> to vector<16x1xi1>
      %207 = vector.broadcast %206 : vector<16x1xi1> to vector<16x32xi1>
      %208 = arith.select %207, %198, %174 : vector<16x32xi1>, vector<16x32xf32>
      %cst_66 = arith.constant 0.000000e+00 : f32
      %209 = vector.shape_cast %202 : vector<16x1xi1> to vector<16x1xi1>
      %210 = vector.broadcast %209 : vector<16x1xi1> to vector<16x32xi1>
      %211 = vector.broadcast %cst_66 : f32 to vector<16x32xf32>
      %212 = arith.select %210, %200, %211 : vector<16x32xi1>, vector<16x32xf32>
      %213 = arith.truncf %212 : vector<16x32xf32> to vector<16x32xbf16>
      %c0_i32_67 = arith.constant 0 : i32
      %c0_i32_68 = arith.constant 0 : i32
      %c0_i32_69 = arith.constant 0 : i32
      %214 = tpu.memref_slice %arg7[%c0_i32_26, %c0_i32_67, %c0_i32_68, %c0_i32_69] : memref<1x16x16x32xbf16, #tpu.memory_space<vmem>> -> memref<1x16x16x32xbf16, #tpu.memory_space<vmem>>
      %215 = tpu.memref_squeeze %214 : memref<1x16x16x32xbf16, #tpu.memory_space<vmem>> -> memref<16x16x32xbf16, #tpu.memory_space<vmem>>
      %c11 = arith.constant 11 : index
      %c0_70 = arith.constant 0 : index
      %c0_71 = arith.constant 0 : index
      %216 = vector.load %215[%c11, %c0_70, %c0_71] : memref<16x16x32xbf16, #tpu.memory_space<vmem>>, vector<1x16x32xbf16>
      %217 = vector.shape_cast %216 : vector<1x16x32xbf16> to vector<16x32xbf16>
      %218 = vector.shape_cast %213 : vector<16x32xbf16> to vector<1x16x32xbf16>
      tpu.vector_store %215[%c11, %c0_70, %c0_71], %218 {strides = array<i32>} : memref<16x16x32xbf16, #tpu.memory_space<vmem>>, vector<1x16x32xbf16>,
      %c160 = arith.constant 160 : index
      %c0_72 = arith.constant 0 : index
      %219 = vector.load %arg10[%c160, %c0_72] : memref<256x128xf32, #tpu.memory_space<vmem>>, vector<16x128xf32>
      %220 = arith.truncf %205 : vector<16x32xf32> to vector<16x32xbf16>
      %cst_73 = arith.constant dense<0.000000e+00> : vector<16x128xf32>
      %221 = tpu.matmul %220, %5, %cst_73 {dimension_numbers = #tpu.dot_dimension_numbers<[1], [0], [0], [1], [0, 0, 1, 1], [], []>} : vector<16x32xbf16>, vector<32x128xbf16>, vector<16x128xf32> -> vector<16x128xf32>
      %222 = arith.addf %219, %221 : vector<16x128xf32>
      %223 = math.tanh %222 : vector<16x128xf32>
      %224 = arith.mulf %223, %37 : vector<16x128xf32>
      %225 = arith.addf %224, %40 : vector<16x128xf32>
      %226 = vector.extract_strided_slice %225 {offsets = [0, 0], sizes = [16, 32], strides = [1, 1]} : vector<16x128xf32> to vector<16x32xf32>
      %227 = vector.extract_strided_slice %225 {offsets = [0, 32], sizes = [16, 32], strides = [1, 1]} : vector<16x128xf32> to vector<16x32xf32>
      %228 = vector.extract_strided_slice %225 {offsets = [0, 64], sizes = [16, 32], strides = [1, 1]} : vector<16x128xf32> to vector<16x32xf32>
      %229 = vector.extract_strided_slice %225 {offsets = [0, 96], sizes = [16, 32], strides = [1, 1]} : vector<16x128xf32> to vector<16x32xf32>
      %230 = arith.mulf %227, %208 : vector<16x32xf32>
      %231 = arith.mulf %226, %228 : vector<16x32xf32>
      %232 = arith.addf %230, %231 : vector<16x32xf32>
      %233 = math.tanh %232 : vector<16x32xf32>
      %234 = arith.mulf %229, %233 : vector<16x32xf32>
      %235 = vector.extract_strided_slice %28 {offsets = [10, 0, 0], sizes = [1, 16, 1], strides = [1, 1, 1]} : vector<16x16x1xi1> to vector<1x16x1xi1>
      %236 = vector.shape_cast %235 : vector<1x16x1xi1> to vector<16x1xi1>
      %237 = vector.shape_cast %236 : vector<16x1xi1> to vector<16x1xi1>
      %238 = vector.broadcast %237 : vector<16x1xi1> to vector<16x32xi1>
      %239 = arith.select %238, %234, %205 : vector<16x32xi1>, vector<16x32xf32>
      %240 = vector.shape_cast %236 : vector<16x1xi1> to vector<16x1xi1>
      %241 = vector.broadcast %240 : vector<16x1xi1> to vector<16x32xi1>
      %242 = arith.select %241, %232, %208 : vector<16x32xi1>, vector<16x32xf32>
      %cst_74 = arith.constant 0.000000e+00 : f32
      %243 = vector.shape_cast %236 : vector<16x1xi1> to vector<16x1xi1>
      %244 = vector.broadcast %243 : vector<16x1xi1> to vector<16x32xi1>
      %245 = vector.broadcast %cst_74 : f32 to vector<16x32xf32>
      %246 = arith.select %244, %234, %245 : vector<16x32xi1>, vector<16x32xf32>
      %247 = arith.truncf %246 : vector<16x32xf32> to vector<16x32xbf16>
      %c0_i32_75 = arith.constant 0 : i32
      %c0_i32_76 = arith.constant 0 : i32
      %c0_i32_77 = arith.constant 0 : i32
      %248 = tpu.memref_slice %arg7[%c0_i32_26, %c0_i32_75, %c0_i32_76, %c0_i32_77] : memref<1x16x16x32xbf16, #tpu.memory_space<vmem>> -> memref<1x16x16x32xbf16, #tpu.memory_space<vmem>>
      %249 = tpu.memref_squeeze %248 : memref<1x16x16x32xbf16, #tpu.memory_space<vmem>> -> memref<16x16x32xbf16, #tpu.memory_space<vmem>>
      %c10 = arith.constant 10 : index
      %c0_78 = arith.constant 0 : index
      %c0_79 = arith.constant 0 : index
      %250 = vector.load %249[%c10, %c0_78, %c0_79] : memref<16x16x32xbf16, #tpu.memory_space<vmem>>, vector<1x16x32xbf16>
      %251 = vector.shape_cast %250 : vector<1x16x32xbf16> to vector<16x32xbf16>
      %252 = vector.shape_cast %247 : vector<16x32xbf16> to vector<1x16x32xbf16>
      tpu.vector_store %249[%c10, %c0_78, %c0_79], %252 {strides = array<i32>} : memref<16x16x32xbf16, #tpu.memory_space<vmem>>, vector<1x16x32xbf16>,
      %c144 = arith.constant 144 : index
      %c0_80 = arith.constant 0 : index
      %253 = vector.load %arg10[%c144, %c0_80] : memref<256x128xf32, #tpu.memory_space<vmem>>, vector<16x128xf32>
      %254 = arith.truncf %239 : vector<16x32xf32> to vector<16x32xbf16>
      %cst_81 = arith.constant dense<0.000000e+00> : vector<16x128xf32>
      %255 = tpu.matmul %254, %5, %cst_81 {dimension_numbers = #tpu.dot_dimension_numbers<[1], [0], [0], [1], [0, 0, 1, 1], [], []>} : vector<16x32xbf16>, vector<32x128xbf16>, vector<16x128xf32> -> vector<16x128xf32>
      %256 = arith.addf %253, %255 : vector<16x128xf32>
      %257 = math.tanh %256 : vector<16x128xf32>
      %258 = arith.mulf %257, %37 : vector<16x128xf32>
      %259 = arith.addf %258, %40 : vector<16x128xf32>
      %260 = vector.extract_strided_slice %259 {offsets = [0, 0], sizes = [16, 32], strides = [1, 1]} : vector<16x128xf32> to vector<16x32xf32>
      %261 = vector.extract_strided_slice %259 {offsets = [0, 32], sizes = [16, 32], strides = [1, 1]} : vector<16x128xf32> to vector<16x32xf32>
      %262 = vector.extract_strided_slice %259 {offsets = [0, 64], sizes = [16, 32], strides = [1, 1]} : vector<16x128xf32> to vector<16x32xf32>
      %263 = vector.extract_strided_slice %259 {offsets = [0, 96], sizes = [16, 32], strides = [1, 1]} : vector<16x128xf32> to vector<16x32xf32>
      %264 = arith.mulf %261, %242 : vector<16x32xf32>
      %265 = arith.mulf %260, %262 : vector<16x32xf32>
      %266 = arith.addf %264, %265 : vector<16x32xf32>
      %267 = math.tanh %266 : vector<16x32xf32>
      %268 = arith.mulf %263, %267 : vector<16x32xf32>
      %269 = vector.extract_strided_slice %28 {offsets = [9, 0, 0], sizes = [1, 16, 1], strides = [1, 1, 1]} : vector<16x16x1xi1> to vector<1x16x1xi1>
      %270 = vector.shape_cast %269 : vector<1x16x1xi1> to vector<16x1xi1>
      %271 = vector.shape_cast %270 : vector<16x1xi1> to vector<16x1xi1>
      %272 = vector.broadcast %271 : vector<16x1xi1> to vector<16x32xi1>
      %273 = arith.select %272, %268, %239 : vector<16x32xi1>, vector<16x32xf32>
      %274 = vector.shape_cast %270 : vector<16x1xi1> to vector<16x1xi1>
      %275 = vector.broadcast %274 : vector<16x1xi1> to vector<16x32xi1>
      %276 = arith.select %275, %266, %242 : vector<16x32xi1>, vector<16x32xf32>
      %cst_82 = arith.constant 0.000000e+00 : f32
      %277 = vector.shape_cast %270 : vector<16x1xi1> to vector<16x1xi1>
      %278 = vector.broadcast %277 : vector<16x1xi1> to vector<16x32xi1>
      %279 = vector.broadcast %cst_82 : f32 to vector<16x32xf32>
      %280 = arith.select %278, %268, %279 : vector<16x32xi1>, vector<16x32xf32>
      %281 = arith.truncf %280 : vector<16x32xf32> to vector<16x32xbf16>
      %c0_i32_83 = arith.constant 0 : i32
      %c0_i32_84 = arith.constant 0 : i32
      %c0_i32_85 = arith.constant 0 : i32
      %282 = tpu.memref_slice %arg7[%c0_i32_26, %c0_i32_83, %c0_i32_84, %c0_i32_85] : memref<1x16x16x32xbf16, #tpu.memory_space<vmem>> -> memref<1x16x16x32xbf16, #tpu.memory_space<vmem>>
      %283 = tpu.memref_squeeze %282 : memref<1x16x16x32xbf16, #tpu.memory_space<vmem>> -> memref<16x16x32xbf16, #tpu.memory_space<vmem>>
      %c9 = arith.constant 9 : index
      %c0_86 = arith.constant 0 : index
      %c0_87 = arith.constant 0 : index
      %284 = vector.load %283[%c9, %c0_86, %c0_87] : memref<16x16x32xbf16, #tpu.memory_space<vmem>>, vector<1x16x32xbf16>
      %285 = vector.shape_cast %284 : vector<1x16x32xbf16> to vector<16x32xbf16>
      %286 = vector.shape_cast %281 : vector<16x32xbf16> to vector<1x16x32xbf16>
      tpu.vector_store %283[%c9, %c0_86, %c0_87], %286 {strides = array<i32>} : memref<16x16x32xbf16, #tpu.memory_space<vmem>>, vector<1x16x32xbf16>,
      %c128 = arith.constant 128 : index
      %c0_88 = arith.constant 0 : index
      %287 = vector.load %arg10[%c128, %c0_88] : memref<256x128xf32, #tpu.memory_space<vmem>>, vector<16x128xf32>
      %288 = arith.truncf %273 : vector<16x32xf32> to vector<16x32xbf16>
      %cst_89 = arith.constant dense<0.000000e+00> : vector<16x128xf32>
      %289 = tpu.matmul %288, %5, %cst_89 {dimension_numbers = #tpu.dot_dimension_numbers<[1], [0], [0], [1], [0, 0, 1, 1], [], []>} : vector<16x32xbf16>, vector<32x128xbf16>, vector<16x128xf32> -> vector<16x128xf32>
      %290 = arith.addf %287, %289 : vector<16x128xf32>
      %291 = math.tanh %290 : vector<16x128xf32>
      %292 = arith.mulf %291, %37 : vector<16x128xf32>
      %293 = arith.addf %292, %40 : vector<16x128xf32>
      %294 = vector.extract_strided_slice %293 {offsets = [0, 0], sizes = [16, 32], strides = [1, 1]} : vector<16x128xf32> to vector<16x32xf32>
      %295 = vector.extract_strided_slice %293 {offsets = [0, 32], sizes = [16, 32], strides = [1, 1]} : vector<16x128xf32> to vector<16x32xf32>
      %296 = vector.extract_strided_slice %293 {offsets = [0, 64], sizes = [16, 32], strides = [1, 1]} : vector<16x128xf32> to vector<16x32xf32>
      %297 = vector.extract_strided_slice %293 {offsets = [0, 96], sizes = [16, 32], strides = [1, 1]} : vector<16x128xf32> to vector<16x32xf32>
      %298 = arith.mulf %295, %276 : vector<16x32xf32>
      %299 = arith.mulf %294, %296 : vector<16x32xf32>
      %300 = arith.addf %298, %299 : vector<16x32xf32>
      %301 = math.tanh %300 : vector<16x32xf32>
      %302 = arith.mulf %297, %301 : vector<16x32xf32>
      %303 = vector.extract_strided_slice %28 {offsets = [8, 0, 0], sizes = [1, 16, 1], strides = [1, 1, 1]} : vector<16x16x1xi1> to vector<1x16x1xi1>
      %304 = vector.shape_cast %303 : vector<1x16x1xi1> to vector<16x1xi1>
      %305 = vector.shape_cast %304 : vector<16x1xi1> to vector<16x1xi1>
      %306 = vector.broadcast %305 : vector<16x1xi1> to vector<16x32xi1>
      %307 = arith.select %306, %302, %273 : vector<16x32xi1>, vector<16x32xf32>
      %308 = vector.shape_cast %304 : vector<16x1xi1> to vector<16x1xi1>
      %309 = vector.broadcast %308 : vector<16x1xi1> to vector<16x32xi1>
      %310 = arith.select %309, %300, %276 : vector<16x32xi1>, vector<16x32xf32>
      %cst_90 = arith.constant 0.000000e+00 : f32
      %311 = vector.shape_cast %304 : vector<16x1xi1> to vector<16x1xi1>
      %312 = vector.broadcast %311 : vector<16x1xi1> to vector<16x32xi1>
      %313 = vector.broadcast %cst_90 : f32 to vector<16x32xf32>
      %314 = arith.select %312, %302, %313 : vector<16x32xi1>, vector<16x32xf32>
      %315 = arith.truncf %314 : vector<16x32xf32> to vector<16x32xbf16>
      %c0_i32_91 = arith.constant 0 : i32
      %c0_i32_92 = arith.constant 0 : i32
      %c0_i32_93 = arith.constant 0 : i32
      %316 = tpu.memref_slice %arg7[%c0_i32_26, %c0_i32_91, %c0_i32_92, %c0_i32_93] : memref<1x16x16x32xbf16, #tpu.memory_space<vmem>> -> memref<1x16x16x32xbf16, #tpu.memory_space<vmem>>
      %317 = tpu.memref_squeeze %316 : memref<1x16x16x32xbf16, #tpu.memory_space<vmem>> -> memref<16x16x32xbf16, #tpu.memory_space<vmem>>
      %c8 = arith.constant 8 : index
      %c0_94 = arith.constant 0 : index
      %c0_95 = arith.constant 0 : index
      %318 = vector.load %317[%c8, %c0_94, %c0_95] : memref<16x16x32xbf16, #tpu.memory_space<vmem>>, vector<1x16x32xbf16>
      %319 = vector.shape_cast %318 : vector<1x16x32xbf16> to vector<16x32xbf16>
      %320 = vector.shape_cast %315 : vector<16x32xbf16> to vector<1x16x32xbf16>
      tpu.vector_store %317[%c8, %c0_94, %c0_95], %320 {strides = array<i32>} : memref<16x16x32xbf16, #tpu.memory_space<vmem>>, vector<1x16x32xbf16>,
      %c112 = arith.constant 112 : index
      %c0_96 = arith.constant 0 : index
      %321 = vector.load %arg10[%c112, %c0_96] : memref<256x128xf32, #tpu.memory_space<vmem>>, vector<16x128xf32>
      %322 = arith.truncf %307 : vector<16x32xf32> to vector<16x32xbf16>
      %cst_97 = arith.constant dense<0.000000e+00> : vector<16x128xf32>
      %323 = tpu.matmul %322, %5, %cst_97 {dimension_numbers = #tpu.dot_dimension_numbers<[1], [0], [0], [1], [0, 0, 1, 1], [], []>} : vector<16x32xbf16>, vector<32x128xbf16>, vector<16x128xf32> -> vector<16x128xf32>
      %324 = arith.addf %321, %323 : vector<16x128xf32>
      %325 = math.tanh %324 : vector<16x128xf32>
      %326 = arith.mulf %325, %37 : vector<16x128xf32>
      %327 = arith.addf %326, %40 : vector<16x128xf32>
      %328 = vector.extract_strided_slice %327 {offsets = [0, 0], sizes = [16, 32], strides = [1, 1]} : vector<16x128xf32> to vector<16x32xf32>
      %329 = vector.extract_strided_slice %327 {offsets = [0, 32], sizes = [16, 32], strides = [1, 1]} : vector<16x128xf32> to vector<16x32xf32>
      %330 = vector.extract_strided_slice %327 {offsets = [0, 64], sizes = [16, 32], strides = [1, 1]} : vector<16x128xf32> to vector<16x32xf32>
      %331 = vector.extract_strided_slice %327 {offsets = [0, 96], sizes = [16, 32], strides = [1, 1]} : vector<16x128xf32> to vector<16x32xf32>
      %332 = arith.mulf %329, %310 : vector<16x32xf32>
      %333 = arith.mulf %328, %330 : vector<16x32xf32>
      %334 = arith.addf %332, %333 : vector<16x32xf32>
      %335 = math.tanh %334 : vector<16x32xf32>
      %336 = arith.mulf %331, %335 : vector<16x32xf32>
      %337 = vector.extract_strided_slice %28 {offsets = [7, 0, 0], sizes = [1, 16, 1], strides = [1, 1, 1]} : vector<16x16x1xi1> to vector<1x16x1xi1>
      %338 = vector.shape_cast %337 : vector<1x16x1xi1> to vector<16x1xi1>
      %339 = vector.shape_cast %338 : vector<16x1xi1> to vector<16x1xi1>
      %340 = vector.broadcast %339 : vector<16x1xi1> to vector<16x32xi1>
      %341 = arith.select %340, %336, %307 : vector<16x32xi1>, vector<16x32xf32>
      %342 = vector.shape_cast %338 : vector<16x1xi1> to vector<16x1xi1>
      %343 = vector.broadcast %342 : vector<16x1xi1> to vector<16x32xi1>
      %344 = arith.select %343, %334, %310 : vector<16x32xi1>, vector<16x32xf32>
      %cst_98 = arith.constant 0.000000e+00 : f32
      %345 = vector.shape_cast %338 : vector<16x1xi1> to vector<16x1xi1>
      %346 = vector.broadcast %345 : vector<16x1xi1> to vector<16x32xi1>
      %347 = vector.broadcast %cst_98 : f32 to vector<16x32xf32>
      %348 = arith.select %346, %336, %347 : vector<16x32xi1>, vector<16x32xf32>
      %349 = arith.truncf %348 : vector<16x32xf32> to vector<16x32xbf16>
      %c0_i32_99 = arith.constant 0 : i32
      %c0_i32_100 = arith.constant 0 : i32
      %c0_i32_101 = arith.constant 0 : i32
      %350 = tpu.memref_slice %arg7[%c0_i32_26, %c0_i32_99, %c0_i32_100, %c0_i32_101] : memref<1x16x16x32xbf16, #tpu.memory_space<vmem>> -> memref<1x16x16x32xbf16, #tpu.memory_space<vmem>>
      %351 = tpu.memref_squeeze %350 : memref<1x16x16x32xbf16, #tpu.memory_space<vmem>> -> memref<16x16x32xbf16, #tpu.memory_space<vmem>>
      %c7 = arith.constant 7 : index
      %c0_102 = arith.constant 0 : index
      %c0_103 = arith.constant 0 : index
      %352 = vector.load %351[%c7, %c0_102, %c0_103] : memref<16x16x32xbf16, #tpu.memory_space<vmem>>, vector<1x16x32xbf16>
      %353 = vector.shape_cast %352 : vector<1x16x32xbf16> to vector<16x32xbf16>
      %354 = vector.shape_cast %349 : vector<16x32xbf16> to vector<1x16x32xbf16>
      tpu.vector_store %351[%c7, %c0_102, %c0_103], %354 {strides = array<i32>} : memref<16x16x32xbf16, #tpu.memory_space<vmem>>, vector<1x16x32xbf16>,
      %c96 = arith.constant 96 : index
      %c0_104 = arith.constant 0 : index
      %355 = vector.load %arg10[%c96, %c0_104] : memref<256x128xf32, #tpu.memory_space<vmem>>, vector<16x128xf32>
      %356 = arith.truncf %341 : vector<16x32xf32> to vector<16x32xbf16>
      %cst_105 = arith.constant dense<0.000000e+00> : vector<16x128xf32>
      %357 = tpu.matmul %356, %5, %cst_105 {dimension_numbers = #tpu.dot_dimension_numbers<[1], [0], [0], [1], [0, 0, 1, 1], [], []>} : vector<16x32xbf16>, vector<32x128xbf16>, vector<16x128xf32> -> vector<16x128xf32>
      %358 = arith.addf %355, %357 : vector<16x128xf32>
      %359 = math.tanh %358 : vector<16x128xf32>
      %360 = arith.mulf %359, %37 : vector<16x128xf32>
      %361 = arith.addf %360, %40 : vector<16x128xf32>
      %362 = vector.extract_strided_slice %361 {offsets = [0, 0], sizes = [16, 32], strides = [1, 1]} : vector<16x128xf32> to vector<16x32xf32>
      %363 = vector.extract_strided_slice %361 {offsets = [0, 32], sizes = [16, 32], strides = [1, 1]} : vector<16x128xf32> to vector<16x32xf32>
      %364 = vector.extract_strided_slice %361 {offsets = [0, 64], sizes = [16, 32], strides = [1, 1]} : vector<16x128xf32> to vector<16x32xf32>
      %365 = vector.extract_strided_slice %361 {offsets = [0, 96], sizes = [16, 32], strides = [1, 1]} : vector<16x128xf32> to vector<16x32xf32>
      %366 = arith.mulf %363, %344 : vector<16x32xf32>
      %367 = arith.mulf %362, %364 : vector<16x32xf32>
      %368 = arith.addf %366, %367 : vector<16x32xf32>
      %369 = math.tanh %368 : vector<16x32xf32>
      %370 = arith.mulf %365, %369 : vector<16x32xf32>
      %371 = vector.extract_strided_slice %28 {offsets = [6, 0, 0], sizes = [1, 16, 1], strides = [1, 1, 1]} : vector<16x16x1xi1> to vector<1x16x1xi1>
      %372 = vector.shape_cast %371 : vector<1x16x1xi1> to vector<16x1xi1>
      %373 = vector.shape_cast %372 : vector<16x1xi1> to vector<16x1xi1>
      %374 = vector.broadcast %373 : vector<16x1xi1> to vector<16x32xi1>
      %375 = arith.select %374, %370, %341 : vector<16x32xi1>, vector<16x32xf32>
      %376 = vector.shape_cast %372 : vector<16x1xi1> to vector<16x1xi1>
      %377 = vector.broadcast %376 : vector<16x1xi1> to vector<16x32xi1>
      %378 = arith.select %377, %368, %344 : vector<16x32xi1>, vector<16x32xf32>
      %cst_106 = arith.constant 0.000000e+00 : f32
      %379 = vector.shape_cast %372 : vector<16x1xi1> to vector<16x1xi1>
      %380 = vector.broadcast %379 : vector<16x1xi1> to vector<16x32xi1>
      %381 = vector.broadcast %cst_106 : f32 to vector<16x32xf32>
      %382 = arith.select %380, %370, %381 : vector<16x32xi1>, vector<16x32xf32>
      %383 = arith.truncf %382 : vector<16x32xf32> to vector<16x32xbf16>
      %c0_i32_107 = arith.constant 0 : i32
      %c0_i32_108 = arith.constant 0 : i32
      %c0_i32_109 = arith.constant 0 : i32
      %384 = tpu.memref_slice %arg7[%c0_i32_26, %c0_i32_107, %c0_i32_108, %c0_i32_109] : memref<1x16x16x32xbf16, #tpu.memory_space<vmem>> -> memref<1x16x16x32xbf16, #tpu.memory_space<vmem>>
      %385 = tpu.memref_squeeze %384 : memref<1x16x16x32xbf16, #tpu.memory_space<vmem>> -> memref<16x16x32xbf16, #tpu.memory_space<vmem>>
      %c6 = arith.constant 6 : index
      %c0_110 = arith.constant 0 : index
      %c0_111 = arith.constant 0 : index
      %386 = vector.load %385[%c6, %c0_110, %c0_111] : memref<16x16x32xbf16, #tpu.memory_space<vmem>>, vector<1x16x32xbf16>
      %387 = vector.shape_cast %386 : vector<1x16x32xbf16> to vector<16x32xbf16>
      %388 = vector.shape_cast %383 : vector<16x32xbf16> to vector<1x16x32xbf16>
      tpu.vector_store %385[%c6, %c0_110, %c0_111], %388 {strides = array<i32>} : memref<16x16x32xbf16, #tpu.memory_space<vmem>>, vector<1x16x32xbf16>,
      %c80 = arith.constant 80 : index
      %c0_112 = arith.constant 0 : index
      %389 = vector.load %arg10[%c80, %c0_112] : memref<256x128xf32, #tpu.memory_space<vmem>>, vector<16x128xf32>
      %390 = arith.truncf %375 : vector<16x32xf32> to vector<16x32xbf16>
      %cst_113 = arith.constant dense<0.000000e+00> : vector<16x128xf32>
      %391 = tpu.matmul %390, %5, %cst_113 {dimension_numbers = #tpu.dot_dimension_numbers<[1], [0], [0], [1], [0, 0, 1, 1], [], []>} : vector<16x32xbf16>, vector<32x128xbf16>, vector<16x128xf32> -> vector<16x128xf32>
      %392 = arith.addf %389, %391 : vector<16x128xf32>
      %393 = math.tanh %392 : vector<16x128xf32>
      %394 = arith.mulf %393, %37 : vector<16x128xf32>
      %395 = arith.addf %394, %40 : vector<16x128xf32>
      %396 = vector.extract_strided_slice %395 {offsets = [0, 0], sizes = [16, 32], strides = [1, 1]} : vector<16x128xf32> to vector<16x32xf32>
      %397 = vector.extract_strided_slice %395 {offsets = [0, 32], sizes = [16, 32], strides = [1, 1]} : vector<16x128xf32> to vector<16x32xf32>
      %398 = vector.extract_strided_slice %395 {offsets = [0, 64], sizes = [16, 32], strides = [1, 1]} : vector<16x128xf32> to vector<16x32xf32>
      %399 = vector.extract_strided_slice %395 {offsets = [0, 96], sizes = [16, 32], strides = [1, 1]} : vector<16x128xf32> to vector<16x32xf32>
      %400 = arith.mulf %397, %378 : vector<16x32xf32>
      %401 = arith.mulf %396, %398 : vector<16x32xf32>
      %402 = arith.addf %400, %401 : vector<16x32xf32>
      %403 = math.tanh %402 : vector<16x32xf32>
      %404 = arith.mulf %399, %403 : vector<16x32xf32>
      %405 = vector.extract_strided_slice %28 {offsets = [5, 0, 0], sizes = [1, 16, 1], strides = [1, 1, 1]} : vector<16x16x1xi1> to vector<1x16x1xi1>
      %406 = vector.shape_cast %405 : vector<1x16x1xi1> to vector<16x1xi1>
      %407 = vector.shape_cast %406 : vector<16x1xi1> to vector<16x1xi1>
      %408 = vector.broadcast %407 : vector<16x1xi1> to vector<16x32xi1>
      %409 = arith.select %408, %404, %375 : vector<16x32xi1>, vector<16x32xf32>
      %410 = vector.shape_cast %406 : vector<16x1xi1> to vector<16x1xi1>
      %411 = vector.broadcast %410 : vector<16x1xi1> to vector<16x32xi1>
      %412 = arith.select %411, %402, %378 : vector<16x32xi1>, vector<16x32xf32>
      %cst_114 = arith.constant 0.000000e+00 : f32
      %413 = vector.shape_cast %406 : vector<16x1xi1> to vector<16x1xi1>
      %414 = vector.broadcast %413 : vector<16x1xi1> to vector<16x32xi1>
      %415 = vector.broadcast %cst_114 : f32 to vector<16x32xf32>
      %416 = arith.select %414, %404, %415 : vector<16x32xi1>, vector<16x32xf32>
      %417 = arith.truncf %416 : vector<16x32xf32> to vector<16x32xbf16>
      %c0_i32_115 = arith.constant 0 : i32
      %c0_i32_116 = arith.constant 0 : i32
      %c0_i32_117 = arith.constant 0 : i32
      %418 = tpu.memref_slice %arg7[%c0_i32_26, %c0_i32_115, %c0_i32_116, %c0_i32_117] : memref<1x16x16x32xbf16, #tpu.memory_space<vmem>> -> memref<1x16x16x32xbf16, #tpu.memory_space<vmem>>
      %419 = tpu.memref_squeeze %418 : memref<1x16x16x32xbf16, #tpu.memory_space<vmem>> -> memref<16x16x32xbf16, #tpu.memory_space<vmem>>
      %c5 = arith.constant 5 : index
      %c0_118 = arith.constant 0 : index
      %c0_119 = arith.constant 0 : index
      %420 = vector.load %419[%c5, %c0_118, %c0_119] : memref<16x16x32xbf16, #tpu.memory_space<vmem>>, vector<1x16x32xbf16>
      %421 = vector.shape_cast %420 : vector<1x16x32xbf16> to vector<16x32xbf16>
      %422 = vector.shape_cast %417 : vector<16x32xbf16> to vector<1x16x32xbf16>
      tpu.vector_store %419[%c5, %c0_118, %c0_119], %422 {strides = array<i32>} : memref<16x16x32xbf16, #tpu.memory_space<vmem>>, vector<1x16x32xbf16>,
      %c64 = arith.constant 64 : index
      %c0_120 = arith.constant 0 : index
      %423 = vector.load %arg10[%c64, %c0_120] : memref<256x128xf32, #tpu.memory_space<vmem>>, vector<16x128xf32>
      %424 = arith.truncf %409 : vector<16x32xf32> to vector<16x32xbf16>
      %cst_121 = arith.constant dense<0.000000e+00> : vector<16x128xf32>
      %425 = tpu.matmul %424, %5, %cst_121 {dimension_numbers = #tpu.dot_dimension_numbers<[1], [0], [0], [1], [0, 0, 1, 1], [], []>} : vector<16x32xbf16>, vector<32x128xbf16>, vector<16x128xf32> -> vector<16x128xf32>
      %426 = arith.addf %423, %425 : vector<16x128xf32>
      %427 = math.tanh %426 : vector<16x128xf32>
      %428 = arith.mulf %427, %37 : vector<16x128xf32>
      %429 = arith.addf %428, %40 : vector<16x128xf32>
      %430 = vector.extract_strided_slice %429 {offsets = [0, 0], sizes = [16, 32], strides = [1, 1]} : vector<16x128xf32> to vector<16x32xf32>
      %431 = vector.extract_strided_slice %429 {offsets = [0, 32], sizes = [16, 32], strides = [1, 1]} : vector<16x128xf32> to vector<16x32xf32>
      %432 = vector.extract_strided_slice %429 {offsets = [0, 64], sizes = [16, 32], strides = [1, 1]} : vector<16x128xf32> to vector<16x32xf32>
      %433 = vector.extract_strided_slice %429 {offsets = [0, 96], sizes = [16, 32], strides = [1, 1]} : vector<16x128xf32> to vector<16x32xf32>
      %434 = arith.mulf %431, %412 : vector<16x32xf32>
      %435 = arith.mulf %430, %432 : vector<16x32xf32>
      %436 = arith.addf %434, %435 : vector<16x32xf32>
      %437 = math.tanh %436 : vector<16x32xf32>
      %438 = arith.mulf %433, %437 : vector<16x32xf32>
      %439 = vector.extract_strided_slice %28 {offsets = [4, 0, 0], sizes = [1, 16, 1], strides = [1, 1, 1]} : vector<16x16x1xi1> to vector<1x16x1xi1>
      %440 = vector.shape_cast %439 : vector<1x16x1xi1> to vector<16x1xi1>
      %441 = vector.shape_cast %440 : vector<16x1xi1> to vector<16x1xi1>
      %442 = vector.broadcast %441 : vector<16x1xi1> to vector<16x32xi1>
      %443 = arith.select %442, %438, %409 : vector<16x32xi1>, vector<16x32xf32>
      %444 = vector.shape_cast %440 : vector<16x1xi1> to vector<16x1xi1>
      %445 = vector.broadcast %444 : vector<16x1xi1> to vector<16x32xi1>
      %446 = arith.select %445, %436, %412 : vector<16x32xi1>, vector<16x32xf32>
      %cst_122 = arith.constant 0.000000e+00 : f32
      %447 = vector.shape_cast %440 : vector<16x1xi1> to vector<16x1xi1>
      %448 = vector.broadcast %447 : vector<16x1xi1> to vector<16x32xi1>
      %449 = vector.broadcast %cst_122 : f32 to vector<16x32xf32>
      %450 = arith.select %448, %438, %449 : vector<16x32xi1>, vector<16x32xf32>
      %451 = arith.truncf %450 : vector<16x32xf32> to vector<16x32xbf16>
      %c0_i32_123 = arith.constant 0 : i32
      %c0_i32_124 = arith.constant 0 : i32
      %c0_i32_125 = arith.constant 0 : i32
      %452 = tpu.memref_slice %arg7[%c0_i32_26, %c0_i32_123, %c0_i32_124, %c0_i32_125] : memref<1x16x16x32xbf16, #tpu.memory_space<vmem>> -> memref<1x16x16x32xbf16, #tpu.memory_space<vmem>>
      %453 = tpu.memref_squeeze %452 : memref<1x16x16x32xbf16, #tpu.memory_space<vmem>> -> memref<16x16x32xbf16, #tpu.memory_space<vmem>>
      %c4 = arith.constant 4 : index
      %c0_126 = arith.constant 0 : index
      %c0_127 = arith.constant 0 : index
      %454 = vector.load %453[%c4, %c0_126, %c0_127] : memref<16x16x32xbf16, #tpu.memory_space<vmem>>, vector<1x16x32xbf16>
      %455 = vector.shape_cast %454 : vector<1x16x32xbf16> to vector<16x32xbf16>
      %456 = vector.shape_cast %451 : vector<16x32xbf16> to vector<1x16x32xbf16>
      tpu.vector_store %453[%c4, %c0_126, %c0_127], %456 {strides = array<i32>} : memref<16x16x32xbf16, #tpu.memory_space<vmem>>, vector<1x16x32xbf16>,
      %c48 = arith.constant 48 : index
      %c0_128 = arith.constant 0 : index
      %457 = vector.load %arg10[%c48, %c0_128] : memref<256x128xf32, #tpu.memory_space<vmem>>, vector<16x128xf32>
      %458 = arith.truncf %443 : vector<16x32xf32> to vector<16x32xbf16>
      %cst_129 = arith.constant dense<0.000000e+00> : vector<16x128xf32>
      %459 = tpu.matmul %458, %5, %cst_129 {dimension_numbers = #tpu.dot_dimension_numbers<[1], [0], [0], [1], [0, 0, 1, 1], [], []>} : vector<16x32xbf16>, vector<32x128xbf16>, vector<16x128xf32> -> vector<16x128xf32>
      %460 = arith.addf %457, %459 : vector<16x128xf32>
      %461 = math.tanh %460 : vector<16x128xf32>
      %462 = arith.mulf %461, %37 : vector<16x128xf32>
      %463 = arith.addf %462, %40 : vector<16x128xf32>
      %464 = vector.extract_strided_slice %463 {offsets = [0, 0], sizes = [16, 32], strides = [1, 1]} : vector<16x128xf32> to vector<16x32xf32>
      %465 = vector.extract_strided_slice %463 {offsets = [0, 32], sizes = [16, 32], strides = [1, 1]} : vector<16x128xf32> to vector<16x32xf32>
      %466 = vector.extract_strided_slice %463 {offsets = [0, 64], sizes = [16, 32], strides = [1, 1]} : vector<16x128xf32> to vector<16x32xf32>
      %467 = vector.extract_strided_slice %463 {offsets = [0, 96], sizes = [16, 32], strides = [1, 1]} : vector<16x128xf32> to vector<16x32xf32>
      %468 = arith.mulf %465, %446 : vector<16x32xf32>
      %469 = arith.mulf %464, %466 : vector<16x32xf32>
      %470 = arith.addf %468, %469 : vector<16x32xf32>
      %471 = math.tanh %470 : vector<16x32xf32>
      %472 = arith.mulf %467, %471 : vector<16x32xf32>
      %473 = vector.extract_strided_slice %28 {offsets = [3, 0, 0], sizes = [1, 16, 1], strides = [1, 1, 1]} : vector<16x16x1xi1> to vector<1x16x1xi1>
      %474 = vector.shape_cast %473 : vector<1x16x1xi1> to vector<16x1xi1>
      %475 = vector.shape_cast %474 : vector<16x1xi1> to vector<16x1xi1>
      %476 = vector.broadcast %475 : vector<16x1xi1> to vector<16x32xi1>
      %477 = arith.select %476, %472, %443 : vector<16x32xi1>, vector<16x32xf32>
      %478 = vector.shape_cast %474 : vector<16x1xi1> to vector<16x1xi1>
      %479 = vector.broadcast %478 : vector<16x1xi1> to vector<16x32xi1>
      %480 = arith.select %479, %470, %446 : vector<16x32xi1>, vector<16x32xf32>
      %cst_130 = arith.constant 0.000000e+00 : f32
      %481 = vector.shape_cast %474 : vector<16x1xi1> to vector<16x1xi1>
      %482 = vector.broadcast %481 : vector<16x1xi1> to vector<16x32xi1>
      %483 = vector.broadcast %cst_130 : f32 to vector<16x32xf32>
      %484 = arith.select %482, %472, %483 : vector<16x32xi1>, vector<16x32xf32>
      %485 = arith.truncf %484 : vector<16x32xf32> to vector<16x32xbf16>
      %c0_i32_131 = arith.constant 0 : i32
      %c0_i32_132 = arith.constant 0 : i32
      %c0_i32_133 = arith.constant 0 : i32
      %486 = tpu.memref_slice %arg7[%c0_i32_26, %c0_i32_131, %c0_i32_132, %c0_i32_133] : memref<1x16x16x32xbf16, #tpu.memory_space<vmem>> -> memref<1x16x16x32xbf16, #tpu.memory_space<vmem>>
      %487 = tpu.memref_squeeze %486 : memref<1x16x16x32xbf16, #tpu.memory_space<vmem>> -> memref<16x16x32xbf16, #tpu.memory_space<vmem>>
      %c3 = arith.constant 3 : index
      %c0_134 = arith.constant 0 : index
      %c0_135 = arith.constant 0 : index
      %488 = vector.load %487[%c3, %c0_134, %c0_135] : memref<16x16x32xbf16, #tpu.memory_space<vmem>>, vector<1x16x32xbf16>
      %489 = vector.shape_cast %488 : vector<1x16x32xbf16> to vector<16x32xbf16>
      %490 = vector.shape_cast %485 : vector<16x32xbf16> to vector<1x16x32xbf16>
      tpu.vector_store %487[%c3, %c0_134, %c0_135], %490 {strides = array<i32>} : memref<16x16x32xbf16, #tpu.memory_space<vmem>>, vector<1x16x32xbf16>,
      %c32 = arith.constant 32 : index
      %c0_136 = arith.constant 0 : index
      %491 = vector.load %arg10[%c32, %c0_136] : memref<256x128xf32, #tpu.memory_space<vmem>>, vector<16x128xf32>
      %492 = arith.truncf %477 : vector<16x32xf32> to vector<16x32xbf16>
      %cst_137 = arith.constant dense<0.000000e+00> : vector<16x128xf32>
      %493 = tpu.matmul %492, %5, %cst_137 {dimension_numbers = #tpu.dot_dimension_numbers<[1], [0], [0], [1], [0, 0, 1, 1], [], []>} : vector<16x32xbf16>, vector<32x128xbf16>, vector<16x128xf32> -> vector<16x128xf32>
      %494 = arith.addf %491, %493 : vector<16x128xf32>
      %495 = math.tanh %494 : vector<16x128xf32>
      %496 = arith.mulf %495, %37 : vector<16x128xf32>
      %497 = arith.addf %496, %40 : vector<16x128xf32>
      %498 = vector.extract_strided_slice %497 {offsets = [0, 0], sizes = [16, 32], strides = [1, 1]} : vector<16x128xf32> to vector<16x32xf32>
      %499 = vector.extract_strided_slice %497 {offsets = [0, 32], sizes = [16, 32], strides = [1, 1]} : vector<16x128xf32> to vector<16x32xf32>
      %500 = vector.extract_strided_slice %497 {offsets = [0, 64], sizes = [16, 32], strides = [1, 1]} : vector<16x128xf32> to vector<16x32xf32>
      %501 = vector.extract_strided_slice %497 {offsets = [0, 96], sizes = [16, 32], strides = [1, 1]} : vector<16x128xf32> to vector<16x32xf32>
      %502 = arith.mulf %499, %480 : vector<16x32xf32>
      %503 = arith.mulf %498, %500 : vector<16x32xf32>
      %504 = arith.addf %502, %503 : vector<16x32xf32>
      %505 = math.tanh %504 : vector<16x32xf32>
      %506 = arith.mulf %501, %505 : vector<16x32xf32>
      %507 = vector.extract_strided_slice %28 {offsets = [2, 0, 0], sizes = [1, 16, 1], strides = [1, 1, 1]} : vector<16x16x1xi1> to vector<1x16x1xi1>
      %508 = vector.shape_cast %507 : vector<1x16x1xi1> to vector<16x1xi1>
      %509 = vector.shape_cast %508 : vector<16x1xi1> to vector<16x1xi1>
      %510 = vector.broadcast %509 : vector<16x1xi1> to vector<16x32xi1>
      %511 = arith.select %510, %506, %477 : vector<16x32xi1>, vector<16x32xf32>
      %512 = vector.shape_cast %508 : vector<16x1xi1> to vector<16x1xi1>
      %513 = vector.broadcast %512 : vector<16x1xi1> to vector<16x32xi1>
      %514 = arith.select %513, %504, %480 : vector<16x32xi1>, vector<16x32xf32>
      %cst_138 = arith.constant 0.000000e+00 : f32
      %515 = vector.shape_cast %508 : vector<16x1xi1> to vector<16x1xi1>
      %516 = vector.broadcast %515 : vector<16x1xi1> to vector<16x32xi1>
      %517 = vector.broadcast %cst_138 : f32 to vector<16x32xf32>
      %518 = arith.select %516, %506, %517 : vector<16x32xi1>, vector<16x32xf32>
      %519 = arith.truncf %518 : vector<16x32xf32> to vector<16x32xbf16>
      %c0_i32_139 = arith.constant 0 : i32
      %c0_i32_140 = arith.constant 0 : i32
      %c0_i32_141 = arith.constant 0 : i32
      %520 = tpu.memref_slice %arg7[%c0_i32_26, %c0_i32_139, %c0_i32_140, %c0_i32_141] : memref<1x16x16x32xbf16, #tpu.memory_space<vmem>> -> memref<1x16x16x32xbf16, #tpu.memory_space<vmem>>
      %521 = tpu.memref_squeeze %520 : memref<1x16x16x32xbf16, #tpu.memory_space<vmem>> -> memref<16x16x32xbf16, #tpu.memory_space<vmem>>
      %c2 = arith.constant 2 : index
      %c0_142 = arith.constant 0 : index
      %c0_143 = arith.constant 0 : index
      %522 = vector.load %521[%c2, %c0_142, %c0_143] : memref<16x16x32xbf16, #tpu.memory_space<vmem>>, vector<1x16x32xbf16>
      %523 = vector.shape_cast %522 : vector<1x16x32xbf16> to vector<16x32xbf16>
      %524 = vector.shape_cast %519 : vector<16x32xbf16> to vector<1x16x32xbf16>
      tpu.vector_store %521[%c2, %c0_142, %c0_143], %524 {strides = array<i32>} : memref<16x16x32xbf16, #tpu.memory_space<vmem>>, vector<1x16x32xbf16>,
      %c16 = arith.constant 16 : index
      %c0_144 = arith.constant 0 : index
      %525 = vector.load %arg10[%c16, %c0_144] : memref<256x128xf32, #tpu.memory_space<vmem>>, vector<16x128xf32>
      %526 = arith.truncf %511 : vector<16x32xf32> to vector<16x32xbf16>
      %cst_145 = arith.constant dense<0.000000e+00> : vector<16x128xf32>
      %527 = tpu.matmul %526, %5, %cst_145 {dimension_numbers = #tpu.dot_dimension_numbers<[1], [0], [0], [1], [0, 0, 1, 1], [], []>} : vector<16x32xbf16>, vector<32x128xbf16>, vector<16x128xf32> -> vector<16x128xf32>
      %528 = arith.addf %525, %527 : vector<16x128xf32>
      %529 = math.tanh %528 : vector<16x128xf32>
      %530 = arith.mulf %529, %37 : vector<16x128xf32>
      %531 = arith.addf %530, %40 : vector<16x128xf32>
      %532 = vector.extract_strided_slice %531 {offsets = [0, 0], sizes = [16, 32], strides = [1, 1]} : vector<16x128xf32> to vector<16x32xf32>
      %533 = vector.extract_strided_slice %531 {offsets = [0, 32], sizes = [16, 32], strides = [1, 1]} : vector<16x128xf32> to vector<16x32xf32>
      %534 = vector.extract_strided_slice %531 {offsets = [0, 64], sizes = [16, 32], strides = [1, 1]} : vector<16x128xf32> to vector<16x32xf32>
      %535 = vector.extract_strided_slice %531 {offsets = [0, 96], sizes = [16, 32], strides = [1, 1]} : vector<16x128xf32> to vector<16x32xf32>
      %536 = arith.mulf %533, %514 : vector<16x32xf32>
      %537 = arith.mulf %532, %534 : vector<16x32xf32>
      %538 = arith.addf %536, %537 : vector<16x32xf32>
      %539 = math.tanh %538 : vector<16x32xf32>
      %540 = arith.mulf %535, %539 : vector<16x32xf32>
      %541 = vector.extract_strided_slice %28 {offsets = [1, 0, 0], sizes = [1, 16, 1], strides = [1, 1, 1]} : vector<16x16x1xi1> to vector<1x16x1xi1>
      %542 = vector.shape_cast %541 : vector<1x16x1xi1> to vector<16x1xi1>
      %543 = vector.shape_cast %542 : vector<16x1xi1> to vector<16x1xi1>
      %544 = vector.broadcast %543 : vector<16x1xi1> to vector<16x32xi1>
      %545 = arith.select %544, %540, %511 : vector<16x32xi1>, vector<16x32xf32>
      %546 = vector.shape_cast %542 : vector<16x1xi1> to vector<16x1xi1>
      %547 = vector.broadcast %546 : vector<16x1xi1> to vector<16x32xi1>
      %548 = arith.select %547, %538, %514 : vector<16x32xi1>, vector<16x32xf32>
      %cst_146 = arith.constant 0.000000e+00 : f32
      %549 = vector.shape_cast %542 : vector<16x1xi1> to vector<16x1xi1>
      %550 = vector.broadcast %549 : vector<16x1xi1> to vector<16x32xi1>
      %551 = vector.broadcast %cst_146 : f32 to vector<16x32xf32>
      %552 = arith.select %550, %540, %551 : vector<16x32xi1>, vector<16x32xf32>
      %553 = arith.truncf %552 : vector<16x32xf32> to vector<16x32xbf16>
      %c0_i32_147 = arith.constant 0 : i32
      %c0_i32_148 = arith.constant 0 : i32
      %c0_i32_149 = arith.constant 0 : i32
      %554 = tpu.memref_slice %arg7[%c0_i32_26, %c0_i32_147, %c0_i32_148, %c0_i32_149] : memref<1x16x16x32xbf16, #tpu.memory_space<vmem>> -> memref<1x16x16x32xbf16, #tpu.memory_space<vmem>>
      %555 = tpu.memref_squeeze %554 : memref<1x16x16x32xbf16, #tpu.memory_space<vmem>> -> memref<16x16x32xbf16, #tpu.memory_space<vmem>>
      %c1 = arith.constant 1 : index
      %c0_150 = arith.constant 0 : index
      %c0_151 = arith.constant 0 : index
      %556 = vector.load %555[%c1, %c0_150, %c0_151] : memref<16x16x32xbf16, #tpu.memory_space<vmem>>, vector<1x16x32xbf16>
      %557 = vector.shape_cast %556 : vector<1x16x32xbf16> to vector<16x32xbf16>
      %558 = vector.shape_cast %553 : vector<16x32xbf16> to vector<1x16x32xbf16>
      tpu.vector_store %555[%c1, %c0_150, %c0_151], %558 {strides = array<i32>} : memref<16x16x32xbf16, #tpu.memory_space<vmem>>, vector<1x16x32xbf16>,
      %c0_152 = arith.constant 0 : index
      %c0_153 = arith.constant 0 : index
      %559 = vector.load %arg10[%c0_152, %c0_153] : memref<256x128xf32, #tpu.memory_space<vmem>>, vector<16x128xf32>
      %560 = arith.truncf %545 : vector<16x32xf32> to vector<16x32xbf16>
      %cst_154 = arith.constant dense<0.000000e+00> : vector<16x128xf32>
      %561 = tpu.matmul %560, %5, %cst_154 {dimension_numbers = #tpu.dot_dimension_numbers<[1], [0], [0], [1], [0, 0, 1, 1], [], []>} : vector<16x32xbf16>, vector<32x128xbf16>, vector<16x128xf32> -> vector<16x128xf32>
      %562 = arith.addf %559, %561 : vector<16x128xf32>
      %563 = math.tanh %562 : vector<16x128xf32>
      %564 = arith.mulf %563, %37 : vector<16x128xf32>
      %565 = arith.addf %564, %40 : vector<16x128xf32>
      %566 = vector.extract_strided_slice %565 {offsets = [0, 0], sizes = [16, 32], strides = [1, 1]} : vector<16x128xf32> to vector<16x32xf32>
      %567 = vector.extract_strided_slice %565 {offsets = [0, 32], sizes = [16, 32], strides = [1, 1]} : vector<16x128xf32> to vector<16x32xf32>
      %568 = vector.extract_strided_slice %565 {offsets = [0, 64], sizes = [16, 32], strides = [1, 1]} : vector<16x128xf32> to vector<16x32xf32>
      %569 = vector.extract_strided_slice %565 {offsets = [0, 96], sizes = [16, 32], strides = [1, 1]} : vector<16x128xf32> to vector<16x32xf32>
      %570 = arith.mulf %567, %548 : vector<16x32xf32>
      %571 = arith.mulf %566, %568 : vector<16x32xf32>
      %572 = arith.addf %570, %571 : vector<16x32xf32>
      %573 = math.tanh %572 : vector<16x32xf32>
      %574 = arith.mulf %569, %573 : vector<16x32xf32>
      %575 = vector.extract_strided_slice %28 {offsets = [0, 0, 0], sizes = [1, 16, 1], strides = [1, 1, 1]} : vector<16x16x1xi1> to vector<1x16x1xi1>
      %576 = vector.shape_cast %575 : vector<1x16x1xi1> to vector<16x1xi1>
      %577 = vector.shape_cast %576 : vector<16x1xi1> to vector<16x1xi1>
      %578 = vector.broadcast %577 : vector<16x1xi1> to vector<16x32xi1>
      %579 = arith.select %578, %574, %545 : vector<16x32xi1>, vector<16x32xf32>
      %580 = vector.shape_cast %576 : vector<16x1xi1> to vector<16x1xi1>
      %581 = vector.broadcast %580 : vector<16x1xi1> to vector<16x32xi1>
      %582 = arith.select %581, %572, %548 : vector<16x32xi1>, vector<16x32xf32>
      %cst_155 = arith.constant 0.000000e+00 : f32
      %583 = vector.shape_cast %576 : vector<16x1xi1> to vector<16x1xi1>
      %584 = vector.broadcast %583 : vector<16x1xi1> to vector<16x32xi1>
      %585 = vector.broadcast %cst_155 : f32 to vector<16x32xf32>
      %586 = arith.select %584, %574, %585 : vector<16x32xi1>, vector<16x32xf32>
      %587 = arith.truncf %586 : vector<16x32xf32> to vector<16x32xbf16>
      %c0_i32_156 = arith.constant 0 : i32
      %c0_i32_157 = arith.constant 0 : i32
      %c0_i32_158 = arith.constant 0 : i32
      %588 = tpu.memref_slice %arg7[%c0_i32_26, %c0_i32_156, %c0_i32_157, %c0_i32_158] : memref<1x16x16x32xbf16, #tpu.memory_space<vmem>> -> memref<1x16x16x32xbf16, #tpu.memory_space<vmem>>
      %589 = tpu.memref_squeeze %588 : memref<1x16x16x32xbf16, #tpu.memory_space<vmem>> -> memref<16x16x32xbf16, #tpu.memory_space<vmem>>
      %c0_159 = arith.constant 0 : index
      %c0_160 = arith.constant 0 : index
      %c0_161 = arith.constant 0 : index
      %590 = vector.load %589[%c0_159, %c0_160, %c0_161] : memref<16x16x32xbf16, #tpu.memory_space<vmem>>, vector<1x16x32xbf16>
      %591 = vector.shape_cast %590 : vector<1x16x32xbf16> to vector<16x32xbf16>
      %592 = vector.shape_cast %587 : vector<16x32xbf16> to vector<1x16x32xbf16>
      tpu.vector_store %589[%c0_159, %c0_160, %c0_161], %592 {strides = array<i32>} : memref<16x16x32xbf16, #tpu.memory_space<vmem>>, vector<1x16x32xbf16>,
      %c0_162 = arith.constant 0 : index
      %c0_163 = arith.constant 0 : index
      %593 = vector.load %arg8[%c0_162, %c0_163] : memref<16x32xf32, #tpu.memory_space<vmem>>, vector<16x32xf32>
      tpu.vector_store %arg8[%c0_162, %c0_163], %579 {strides = array<i32>} : memref<16x32xf32, #tpu.memory_space<vmem>>, vector<16x32xf32>,
      %c0_164 = arith.constant 0 : index
      %c0_165 = arith.constant 0 : index
      %594 = vector.load %arg9[%c0_164, %c0_165] : memref<16x32xf32, #tpu.memory_space<vmem>>, vector<16x32xf32>
      tpu.vector_store %arg9[%c0_164, %c0_165], %582 {strides = array<i32>} : memref<16x32xf32, #tpu.memory_space<vmem>>, vector<16x32xf32>,
    } else {
    }
    return
  }
  func.func @transform_0(%arg0: i32, %arg1: i32) -> (i32, i32, i32, i32) {
    %c2_i32 = arith.constant 2 : i32
    %0 = arith.muli %c2_i32, %arg1 : i32
    %c0_i32 = arith.constant 0 : i32
    %1 = arith.subi %c0_i32, %0 : i32
    %2 = arith.muli %arg0, %1 : i32
    %3 = arith.addi %arg1, %2 : i32
    %c0_i32_0 = arith.constant 0 : i32
    %c0_i32_1 = arith.constant 0 : i32
    %c0_i32_2 = arith.constant 0 : i32
    %c0_i32_3 = arith.constant 0 : i32
    return %c0_i32_0, %3, %c0_i32_1, %c0_i32_2 : i32, i32, i32, i32
  }
  func.func @transform_1(%arg0: i32, %arg1: i32) -> (i32, i32) {
    %c0_i32 = arith.constant 0 : i32
    %c0_i32_0 = arith.constant 0 : i32
    %c0_i32_1 = arith.constant 0 : i32
    return %c0_i32, %c0_i32_0 : i32, i32
  }
  func.func @transform_2(%arg0: i32, %arg1: i32) -> (i32, i32, i32, i32) {
    %c0_i32 = arith.constant 0 : i32
    %c0_i32_0 = arith.constant 0 : i32
    %c0_i32_1 = arith.constant 0 : i32
    %c0_i32_2 = arith.constant 0 : i32
    return %arg0, %c0_i32, %c0_i32_0, %c0_i32_1 : i32, i32, i32, i32
  }
  func.func @transform_3(%arg0: i32, %arg1: i32) -> (i32, i32, i32) {
    %c0_i32 = arith.constant 0 : i32
    %c0_i32_0 = arith.constant 0 : i32
    %c0_i32_1 = arith.constant 0 : i32
    return %arg0, %c0_i32, %c0_i32_0 : i32, i32, i32
  }
  func.func @transform_4(%arg0: i32, %arg1: i32) -> (i32, i32, i32) {
    %c0_i32 = arith.constant 0 : i32
    %c0_i32_0 = arith.constant 0 : i32
    %c0_i32_1 = arith.constant 0 : i32
    return %arg0, %c0_i32, %c0_i32_0 : i32, i32, i32
  }
  func.func @transform_5(%arg0: i32, %arg1: i32) -> (i32, i32, i32, i32) {
    %c2_i32 = arith.constant 2 : i32
    %0 = arith.muli %c2_i32, %arg1 : i32
    %c0_i32 = arith.constant 0 : i32
    %1 = arith.subi %c0_i32, %0 : i32
    %2 = arith.muli %arg0, %1 : i32
    %3 = arith.addi %arg1, %2 : i32
    %c0_i32_0 = arith.constant 0 : i32
    %c0_i32_1 = arith.constant 0 : i32
    %c0_i32_2 = arith.constant 0 : i32
    return %arg0, %3, %c0_i32_0, %c0_i32_1 : i32, i32, i32, i32
  }
}

</mosaic_0001>

<llo_original>
// kernel: tpu_custom_call.1
$region0: #{tpu_custom_call.1}
  #allocation0 [shape = 'u32[]', space=smem, size = 0x4, offset = 0x4, fixed_abs, tag = 'smem constant byte address 0x4 - core index']
  #allocation1 [shape = 'u32[144,128]{1,0:T(1,128)}', space=vmem, size = 0x12000, scoped, tag = 'internal scratch']
  #allocation2 [shape = 'f32[16,32]{1,0:T(8,128)}', space=vmem, size = 0x2000, scoped, tag = 'scratch operand']
  #allocation3 [shape = 'f32[16,32]{1,0:T(8,128)}', space=vmem, size = 0x2000, scoped, tag = 'scratch operand']
  #allocation4 [shape = 'f32[256,128]{1,0:T(8,128)}', space=vmem, size = 0x20000, scoped, tag = 'scratch operand']
  %s0 = inlined_call_operand.vmem [shape: f32[1,16,16,8], index: 0, kind: input, shape index: {}]
  %s1 = inlined_call_operand.vmem [shape: s32[16,1], index: 1, kind: input, shape index: {}]
  %s2 = inlined_call_operand.vmem [shape: bf16[2,1,8,128], index: 2, kind: input, shape index: {}]
  %s3 = inlined_call_operand.vmem [shape: bf16[2,32,128], index: 3, kind: input, shape index: {}]
  %s4 = inlined_call_operand.vmem [shape: f32[2,1,128], index: 4, kind: input, shape index: {}]
  %s5 = inlined_call_operand.hbm [shape: bf16[2,16,16,32], index: 5, kind: output, shape index: {}]
  %s6 = sld [smem:[#allocation0]]
  $region65: #{tpu_custom_call.1} parent=0
    _
  %s8 = ssub.s32 1, %s6
  %s9 = scalar_select 0, %s8, %s6
  $region1: #{tpu_custom_call.1} parent=0
    #allocation5 [shape = 'u8[131072]{0}', space=vmem, size = 0x20000, scoped, tag = 'output window, operand 0']
    #allocation6 [shape = 's32[2]{0}', space=sflag, size = 0x8, scoped, tag = 'scoped memory for tpu_custom_call.1']
    %10 = vsyncpa [#allocation6], 0
    %s11 = scalar_lea.sflag [#allocation6], 1
    %12 = vsyncpa %s11, 0
    loop: start=0, step=1, limit=4
    $region2: #{tpu_custom_call.1} parent=1 // loop_pre_header
      _
    $region3: #{tpu_custom_call.1} parent=1 // loop_header
      %s14 = sphi 0, %s18
      %p15 = scmp.ge.s32.totalorder %s14, 4
      %s21 = sphi 0, %s33
      %s22 = sphi 0, %s29
      %s23 = sphi 0, %s21
      %s24 = sphi 0, %s22
      %s25 = sphi 0, %s23
      %s26 = sphi 0, %s24
      %s44 = sphi 0, %s46
      %s47 = sphi 0, %s44
      %s48 = sphi 0, %s47
      %s64 = sphi 0, %s48
      %s68 = sphi 0, %s68
      %s70 = sphi 0, %s68
      %s71 = sphi 0, %s70
      %s85 = sphi 0, %s71
      %s91 = sphi 0, %s93
      %s94 = sphi 0, %s91
      %s95 = sphi 0, %s94
      %s111 = sphi 0, %s95
      %s117 = sphi 0, %s119
      %s120 = sphi 0, %s117
      %s121 = sphi 0, %s120
      %s137 = sphi 0, %s121
      %s143 = sphi 0, %s145
      %s146 = sphi 0, %s143
      %s147 = sphi 0, %s146
      %s163 = sphi 0, %s147
      %s179 = sphi 0, %s181
      %s182 = sphi 0, %s179
      %s183 = sphi 0, %s182
      %s199 = sphi 0, %s183
    $region4: #{tpu_custom_call.1} parent=1 // loop_header_branch
      %17 = sbr.rel (%p15) target = $region8
    $region5: #{tpu_custom_call.1} parent=1 // loop_body
      %s19 = ssub.s32 %s14, 1
      %s20 = ssub.s32 %s14, 2
      %s27 = sadd.s32 1, %s22
      %p28 = scmp.ge.s32.totalorder %s27, 1
      %s29 = scalar_select %p28, 0, %s27
      %s30 = sadd.s32 1, %s21
      %s31 = scalar_select %p28, %s30, %s21
      %p32 = scmp.ge.s32.totalorder %s31, 2
      %s33 = scalar_select %p32, 0, %s31
      %s34 = smul.u32 %s22, 2
      %s35 = ssub.s32 0, %s34
      %s36 = smul.u32 %s21, %s35
      %s37 = sadd.s32 %s22, %s36
      %s38 = smul.u32 %s29, 2
      %s39 = ssub.s32 0, %s38
      %s40 = smul.u32 %s33, %s39
      %s41 = sadd.s32 %s29, %s40
      %s42 = ssub.s32 %s37, %s41
      %p43 = scmp.eq.s32.totalorder %s42, 0
      %s45 = sadd.s32 %s44, 1
      %s46 = scalar_select %p43, %s44, %s45
      %p49 = pneg %p43
      %p50 = scmp.eq.s32.totalorder %s14, 1
      %p51 = por %p49, %p50
      %p52 = scmp.ne.s32.totalorder %s44, %s47
      %p53 = scmp.eq.s32.totalorder %s14, 0
      %p54 = por %p52, %p53
      %p55 = scmp.ne.s32.totalorder %s44, %s47
      %p56 = scmp.eq.s32.totalorder %s19, 1
      %p57 = por %p55, %p56
      %p58 = scmp.ne.s32.totalorder %s47, %s48
      %p59 = scmp.eq.s32.totalorder %s19, 0
      %p60 = por %p58, %p59
      %p61 = scmp.ne.s32.totalorder %s47, %s48
      %p62 = scmp.eq.s32.totalorder %s20, 1
      %p63 = por %p61, %p62
      %p65 = scmp.ne.s32.totalorder %s48, %s64
      %p66 = scmp.eq.s32.totalorder %s20, 0
      %p67 = por %p65, %p66
      %s69 = sadd.s32 %s68, 1
      %p72 = scmp.eq.s32.totalorder %s14, 1
      %p73 = scmp.ne.s32.totalorder %s68, %s70
      %p74 = scmp.eq.s32.totalorder %s14, 0
      %p75 = por %p73, %p74
      %p76 = scmp.ne.s32.totalorder %s68, %s70
      %p77 = scmp.eq.s32.totalorder %s19, 1
      %p78 = por %p76, %p77
      %p79 = scmp.ne.s32.totalorder %s70, %s71
      %p80 = scmp.eq.s32.totalorder %s19, 0
      %p81 = por %p79, %p80
      %p82 = scmp.ne.s32.totalorder %s70, %s71
      %p83 = scmp.eq.s32.totalorder %s20, 1
      %p84 = por %p82, %p83
      %p86 = scmp.ne.s32.totalorder %s71, %s85
      %p87 = scmp.eq.s32.totalorder %s20, 0
      %p88 = por %p86, %p87
      %s89 = ssub.s32 %s21, %s33
      %p90 = scmp.eq.s32.totalorder %s89, 0
      %s92 = sadd.s32 %s91, 1
      %s93 = scalar_select %p90, %s91, %s92
      %p96 = pneg %p90
      %p97 = scmp.eq.s32.totalorder %s14, 1
      %p98 = por %p96, %p97
      %p99 = scmp.ne.s32.totalorder %s91, %s94
      %p100 = scmp.eq.s32.totalorder %s14, 0
      %p101 = por %p99, %p100
      %p102 = scmp.ne.s32.totalorder %s91, %s94
      %p103 = scmp.eq.s32.totalorder %s19, 1
      %p104 = por %p102, %p103
      %p105 = scmp.ne.s32.totalorder %s94, %s95
      %p106 = scmp.eq.s32.totalorder %s19, 0
      %p107 = por %p105, %p106
      %p108 = scmp.ne.s32.totalorder %s94, %s95
      %p109 = scmp.eq.s32.totalorder %s20, 1
      %p110 = por %p108, %p109
      %p112 = scmp.ne.s32.totalorder %s95, %s111
      %p113 = scmp.eq.s32.totalorder %s20, 0
      %p114 = por %p112, %p113
      %s115 = ssub.s32 %s21, %s33
      %p116 = scmp.eq.s32.totalorder %s115, 0
      %s118 = sadd.s32 %s117, 1
      %s119 = scalar_select %p116, %s117, %s118
      %p122 = pneg %p116
      %p123 = scmp.eq.s32.totalorder %s14, 1
      %p124 = por %p122, %p123
      %p125 = scmp.ne.s32.totalorder %s117, %s120
      %p126 = scmp.eq.s32.totalorder %s14, 0
      %p127 = por %p125, %p126
      %p128 = scmp.ne.s32.totalorder %s117, %s120
      %p129 = scmp.eq.s32.totalorder %s19, 1
      %p130 = por %p128, %p129
      %p131 = scmp.ne.s32.totalorder %s120, %s121
      %p132 = scmp.eq.s32.totalorder %s19, 0
      %p133 = por %p131, %p132
      %p134 = scmp.ne.s32.totalorder %s120, %s121
      %p135 = scmp.eq.s32.totalorder %s20, 1
      %p136 = por %p134, %p135
      %p138 = scmp.ne.s32.totalorder %s121, %s137
      %p139 = scmp.eq.s32.totalorder %s20, 0
      %p140 = por %p138, %p139
      %s141 = ssub.s32 %s21, %s33
      %p142 = scmp.eq.s32.totalorder %s141, 0
      %s144 = sadd.s32 %s143, 1
      %s145 = scalar_select %p142, %s143, %s144
      %p148 = pneg %p142
      %p149 = scmp.eq.s32.totalorder %s14, 1
      %p150 = por %p148, %p149
      %p151 = scmp.ne.s32.totalorder %s143, %s146
      %p152 = scmp.eq.s32.totalorder %s14, 0
      %p153 = por %p151, %p152
      %p154 = scmp.ne.s32.totalorder %s143, %s146
      %p155 = scmp.eq.s32.totalorder %s19, 1
      %p156 = por %p154, %p155
      %p157 = scmp.ne.s32.totalorder %s146, %s147
      %p158 = scmp.eq.s32.totalorder %s19, 0
      %p159 = por %p157, %p158
      %p160 = scmp.ne.s32.totalorder %s146, %s147
      %p161 = scmp.eq.s32.totalorder %s20, 1
      %p162 = por %p160, %p161
      %p164 = scmp.ne.s32.totalorder %s147, %s163
      %p165 = scmp.eq.s32.totalorder %s20, 0
      %p166 = por %p164, %p165
      %s167 = smul.u32 %s22, 2
      %s168 = ssub.s32 0, %s167
      %s169 = smul.u32 %s21, %s168
      %s170 = sadd.s32 %s22, %s169
      %s171 = smul.u32 %s29, 2
      %s172 = ssub.s32 0, %s171
      %s173 = smul.u32 %s33, %s172
      %s174 = sadd.s32 %s29, %s173
      %s175 = ssub.s32 %s21, %s33
      %s176 = ssub.s32 %s170, %s174
      %s177 = sor.u32 %s175, %s176
      %p178 = scmp.eq.s32.totalorder %s177, 0
      %s180 = sadd.s32 %s179, 1
      %s181 = scalar_select %p178, %s179, %s180
      %p184 = pneg %p178
      %p185 = scmp.eq.s32.totalorder %s14, 1
      %p186 = por %p184, %p185
      %p187 = scmp.ne.s32.totalorder %s179, %s182
      %p188 = scmp.eq.s32.totalorder %s14, 0
      %p189 = por %p187, %p188
      %p190 = scmp.ne.s32.totalorder %s179, %s182
      %p191 = scmp.eq.s32.totalorder %s19, 1
      %p192 = por %p190, %p191
      %p193 = scmp.ne.s32.totalorder %s182, %s183
      %p194 = scmp.eq.s32.totalorder %s19, 0
      %p195 = por %p193, %p194
      %p196 = scmp.ne.s32.totalorder %s182, %s183
      %p197 = scmp.eq.s32.totalorder %s20, 1
      %p198 = por %p196, %p197
      %p200 = scmp.ne.s32.totalorder %s183, %s199
      %p201 = scmp.eq.s32.totalorder %s20, 0
      %p202 = por %p200, %p201
      %p203 = scmp.le.s32.totalorder 1, %s14
      %p204 = scmp.lt.s32.totalorder %s14, 3
      %p205 = pnand %p203, %p204
      %p206 = pneg %p205
      // Predicated region
      $region9: #{tpu_custom_call.1} parent=5 // pred_check
        _
      $region10: #{tpu_custom_call.1} parent=5 // pred_check_branch
        %208 = sbr.rel (%p205) target = $region12
      $region11: #{tpu_custom_call.1} parent=5 // pred_region
        %s209 = ssub.s32 %s14, 1
        // Predicated region
        $region13: #{tpu_custom_call.1} parent=11 // pred_check
          %p210 = pneg %p81
        $region14: #{tpu_custom_call.1} parent=11 // pred_check_branch
          %212 = sbr.rel (%p210) target = $region16
        $region15: #{tpu_custom_call.1} parent=11 // pred_region
          _
        $region16: #{tpu_custom_call.1} parent=11 // pred_fallthru
          _
      $region12: #{tpu_custom_call.1} parent=5 // pred_fallthru
        _
      %p213 = scmp.lt.s32.totalorder %s14, 2
      // Predicated region
      $region17: #{tpu_custom_call.1} parent=5 // pred_check
        %p214 = pneg %p213
      $region18: #{tpu_custom_call.1} parent=5 // pred_check_branch
        %216 = sbr.rel (%p214) target = $region20
      $region19: #{tpu_custom_call.1} parent=5 // pred_region
        // Predicated region
        $region21: #{tpu_custom_call.1} parent=19 // pred_check
          %p217 = pneg %p54
        $region22: #{tpu_custom_call.1} parent=19 // pred_check_branch
          %219 = sbr.rel (%p217) target = $region24
        $region23: #{tpu_custom_call.1} parent=19 // pred_region
          %s220 = smul.u32 %s22, 2
          %s221 = ssub.s32 0, %s220
          %s222 = smul.u32 %s21, %s221
          %s223 = sadd.s32 %s22, %s222
          %s224 = smul.u32 16, %s223
          %p225 = scmp.lt.s32.totalorder %s224, 15
          %s226 = scalar_select %p225, %s224, 15
          %s227 = smul.addr %s226, 2
          %s228 = smul.addr %s227, 8
          %s229 = scalar_lea.vmem %s0, %s228
          %s230 = smul.u32 %s22, 2
          %s231 = ssub.s32 0, %s230
          %s232 = smul.u32 %s21, %s231
          %s233 = sadd.s32 %s22, %s232
          %s234 = smul.u32 16, %s233
        $region24: #{tpu_custom_call.1} parent=19 // pred_fallthru
          _
        // Predicated region
        $region25: #{tpu_custom_call.1} parent=19 // pred_check
          %p235 = pneg %p101
        $region26: #{tpu_custom_call.1} parent=19 // pred_check_branch
          %237 = sbr.rel (%p235) target = $region28
        $region27: #{tpu_custom_call.1} parent=19 // pred_region
          %p238 = scmp.lt.s32.totalorder %s21, 1
          %s239 = scalar_select %p238, %s21, 1
          %s240 = smul.addr %s239, 4
          %s241 = scalar_lea.vmem %s2, %s240
        $region28: #{tpu_custom_call.1} parent=19 // pred_fallthru
          _
        // Predicated region
        $region29: #{tpu_custom_call.1} parent=19 // pred_check
          %p242 = pneg %p127
        $region30: #{tpu_custom_call.1} parent=19 // pred_check_branch
          %244 = sbr.rel (%p242) target = $region32
        $region31: #{tpu_custom_call.1} parent=19 // pred_region
          %p245 = scmp.lt.s32.totalorder %s21, 1
          %s246 = scalar_select %p245, %s21, 1
          %s247 = smul.addr %s246, 4
          %s248 = smul.addr %s247, 4
          %s249 = scalar_lea.vmem %s3, %s248
        $region32: #{tpu_custom_call.1} parent=19 // pred_fallthru
          _
        // Predicated region
        $region33: #{tpu_custom_call.1} parent=19 // pred_check
          %p250 = pneg %p153
        $region34: #{tpu_custom_call.1} parent=19 // pred_check_branch
          %252 = sbr.rel (%p250) target = $region36
        $region35: #{tpu_custom_call.1} parent=19 // pred_region
          %p253 = scmp.lt.s32.totalorder %s21, 1
          %s254 = scalar_select %p253, %s21, 1
          %s255 = scalar_lea.vmem %s4, %s254
        $region36: #{tpu_custom_call.1} parent=19 // pred_fallthru
          _
      $region20: #{tpu_custom_call.1} parent=5 // pred_fallthru
        _
      %p256 = scmp.le.s32.totalorder 1, %s14
      %p257 = scmp.lt.s32.totalorder %s14, 3
      %p258 = pnand %p256, %p257
      %p259 = pneg %p258
      // Predicated region
      $region37: #{tpu_custom_call.1} parent=5 // pred_check
        _
      $region38: #{tpu_custom_call.1} parent=5 // pred_check_branch
        %261 = sbr.rel (%p258) target = $region40
      $region39: #{tpu_custom_call.1} parent=5 // pred_region
        %s262 = ssub.s32 %s14, 1
        %s263 = smul.u32 %s24, 2
        %s264 = ssub.s32 0, %s263
        %s265 = smul.u32 %s23, %s264
        %s266 = sadd.s32 %s24, %s265
        %s267 = smul.u32 16, %s266
        %p268 = scmp.lt.s32.totalorder %s267, 15
        %s269 = scalar_select %p268, %s267, 15
        %s270 = smul.addr %s269, 2
        %s271 = smul.addr %s270, 8
        %s272 = scalar_lea.vmem %s0, %s271
        %p273 = pneg %p60
        %p274 = pneg %p57
        %p275 = pneg %p81
        %p276 = pneg %p78
        %p277 = scmp.lt.s32.totalorder %s23, 1
        %s278 = scalar_select %p277, %s23, 1
        %s279 = smul.addr %s278, 4
        %s280 = scalar_lea.vmem %s2, %s279
        %p281 = pneg %p107
        %p282 = pneg %p104
        %p283 = scmp.lt.s32.totalorder %s23, 1
        %s284 = scalar_select %p283, %s23, 1
        %s285 = smul.addr %s284, 4
        %s286 = smul.addr %s285, 4
        %s287 = scalar_lea.vmem %s3, %s286
        %p288 = pneg %p133
        %p289 = pneg %p130
        %p290 = scmp.lt.s32.totalorder %s23, 1
        %s291 = scalar_select %p290, %s23, 1
        %s292 = scalar_lea.vmem %s4, %s291
        %p293 = pneg %p159
        %p294 = pneg %p156
        %p295 = pneg %p195
        %p296 = pneg %p192
        %s297 = sand.u32 %s182, 1
        %s298 = scalar_lea.sflag [#allocation6], %s297
        %s299 = sand.u32 %s182, 1
        %s300 = smul.addr %s299, 128
        %s301 = scalar_lea.vmem [#allocation5], %s300
        %s302 = smul.u32 %s24, 2
        %s303 = ssub.s32 0, %s302
        %s304 = smul.u32 %s23, %s303
        %s305 = sadd.s32 %s24, %s304
        %s306 = smul.u32 16, %s305
        %p307 = scmp.lt.s32.totalorder %s306, 15
        %s308 = scalar_select %p307, %s306, 15
        %s309 = smul.addr %s308, 2
        %s310 = smul.addr %s309, 8
        %s311 = scalar_lea.vmem %s0, %s310
        %s312 = smul.u32 %s24, 2
        %s313 = ssub.s32 0, %s312
        %s314 = smul.u32 %s23, %s313
        %s315 = sadd.s32 %s24, %s314
        %s316 = smul.u32 16, %s315
        %p317 = scmp.lt.s32.totalorder %s23, 1
        %s318 = scalar_select %p317, %s23, 1
        %s319 = smul.addr %s318, 4
        %s320 = scalar_lea.vmem %s2, %s319
        %p321 = scmp.lt.s32.totalorder %s23, 1
        %s322 = scalar_select %p321, %s23, 1
        %s323 = smul.addr %s322, 4
        %s324 = smul.addr %s323, 4
        %s325 = scalar_lea.vmem %s3, %s324
        %p326 = scmp.lt.s32.totalorder %s23, 1
        %s327 = scalar_select %p326, %s23, 1
        %s328 = scalar_lea.vmem %s4, %s327
        %s329 = smul.u32 %s24, 2
        %s330 = ssub.s32 0, %s329
        %s331 = smul.u32 %s23, %s330
        %s332 = sadd.s32 %s24, %s331
        %s333 = smul.u32 16, %s332
        %p335 = scmp.eq.s32.totalorder %s24, 0
        // Predicated region
        $region41: #{tpu_custom_call.1} parent=39 // pred_check
          %p336 = pneg %p335
        $region42: #{tpu_custom_call.1} parent=39 // pred_check_branch
          %338 = sbr.rel (%p336) target = $region44
        $region43: #{tpu_custom_call.1} parent=39 // pred_region
          %vm339 = vcmask 261120
          %340 = vst.msk [vmem:[#allocation2] sm:$0xff] %vm339, 0.0
          %341 = vst.msk [vmem:[#allocation2 + $0x8] sm:$0xff] %vm339, 0.0
          %342 = vst.msk [vmem:[#allocation3] sm:$0xff] %vm339, 0.0
          %343 = vst.msk [vmem:[#allocation3 + $0x8] sm:$0xff] %vm339, 0.0
        $region44: #{tpu_custom_call.1} parent=39 // pred_fallthru
          _
        %v344 = vld [vmem:[%s1] sm:$0xff]
        %v345 = vld [vmem:[%s1 + $0x8] sm:$0xff]
        %v346 = vld [vmem:[%s325] sm:$0xf]
        %v347 = vld [vmem:[%s325 + $0x4] sm:$0xf]
        %v348 = vld [vmem:[%s325 + $0x8] sm:$0xf]
        %v349 = vld [vmem:[%s325 + $0xc] sm:$0xf]
        %v350 = vld [vmem:[%s328] sm:$0x1]
        %v351 = vld [vmem:[%s311] sm:$0xff]
        %v352 = vld [vmem:[%s311 + $0x8] sm:$0xff]
        %v353 = vld [vmem:[%s311 + $0x10] sm:$0xff]
        %v354 = vld [vmem:[%s311 + $0x18] sm:$0xff]
        %v355 = vld [vmem:[%s311 + $0x20] sm:$0xff]
        %v356 = vld [vmem:[%s311 + $0x28] sm:$0xff]
        %v357 = vld [vmem:[%s311 + $0x30] sm:$0xff]
        %v358 = vld [vmem:[%s311 + $0x38] sm:$0xff]
        %v359 = vld [vmem:[%s311 + $0x40] sm:$0xff]
        %v360 = vld [vmem:[%s311 + $0x48] sm:$0xff]
        %v361 = vld [vmem:[%s311 + $0x50] sm:$0xff]
        %v362 = vld [vmem:[%s311 + $0x58] sm:$0xff]
        %v363 = vld [vmem:[%s311 + $0x60] sm:$0xff]
        %v364 = vld [vmem:[%s311 + $0x68] sm:$0xff]
        %v365 = vld [vmem:[%s311 + $0x70] sm:$0xff]
        %v366 = vld [vmem:[%s311 + $0x78] sm:$0xff]
        %v367 = vld [vmem:[%s311 + $0x80] sm:$0xff]
        %v368 = vld [vmem:[%s311 + $0x88] sm:$0xff]
        %v369 = vld [vmem:[%s311 + $0x90] sm:$0xff]
        %v370 = vld [vmem:[%s311 + $0x98] sm:$0xff]
        %v371 = vld [vmem:[%s311 + $0xa0] sm:$0xff]
        %v372 = vld [vmem:[%s311 + $0xa8] sm:$0xff]
        %v373 = vld [vmem:[%s311 + $0xb0] sm:$0xff]
        %v374 = vld [vmem:[%s311 + $0xb8] sm:$0xff]
        %v375 = vld [vmem:[%s311 + $0xc0] sm:$0xff]
        %v376 = vld [vmem:[%s311 + $0xc8] sm:$0xff]
        %v377 = vld [vmem:[%s311 + $0xd0] sm:$0xff]
        %v378 = vld [vmem:[%s311 + $0xd8] sm:$0xff]
        %v379 = vld [vmem:[%s311 + $0xe0] sm:$0xff]
        %v380 = vld [vmem:[%s311 + $0xe8] sm:$0xff]
        %v381 = vld [vmem:[%s311 + $0xf0] sm:$0xff]
        %v382 = vld [vmem:[%s311 + $0xf8] sm:$0xff]
        %v383 = vpack.c.bf16 %v352, %v351
        %v384 = vpack.c.bf16 %v354, %v353
        %v385 = vpack.c.bf16 %v356, %v355
        %v386 = vpack.c.bf16 %v358, %v357
        %v387 = vpack.c.bf16 %v360, %v359
        %v388 = vpack.c.bf16 %v362, %v361
        %v389 = vpack.c.bf16 %v364, %v363
        %v390 = vpack.c.bf16 %v366, %v365
        %v391 = vpack.c.bf16 %v368, %v367
        %v392 = vpack.c.bf16 %v370, %v369
        %v393 = vpack.c.bf16 %v372, %v371
        %v394 = vpack.c.bf16 %v374, %v373
        %v395 = vpack.c.bf16 %v376, %v375
        %v396 = vpack.c.bf16 %v378, %v377
        %v397 = vpack.c.bf16 %v380, %v379
        %v398 = vpack.c.bf16 %v382, %v381
        %v399 = vld [vmem:[%s320] sm:$0xf]
        %v401 = vlaneseq
        %v402 = vshrl.u32 %v401, 7
        %v403 = vsub.s32 0, %v402
        %v404 = vrot.slane %v350, %v403
        %vm406 = vcmask 64512
        %v408 = vsel %vm406, %v383, 0
        %v411 = vsel %vm406, %v384, 0
        %v414 = vsel %vm406, %v385, 0
        %v417 = vsel %vm406, %v386, 0
        %v420 = vsel %vm406, %v387, 0
        %v423 = vsel %vm406, %v388, 0
        %v426 = vsel %vm406, %v389, 0
        %v429 = vsel %vm406, %v390, 0
        %v432 = vsel %vm406, %v391, 0
        %v435 = vsel %vm406, %v392, 0
        %v438 = vsel %vm406, %v393, 0
        %v441 = vsel %vm406, %v394, 0
        %v444 = vsel %vm406, %v395, 0
        %v447 = vsel %vm406, %v396, 0
        %v450 = vsel %vm406, %v397, 0
        %v453 = vsel %vm406, %v398, 0
        %vm455 = vcmask 1043456
        %v457 = vsel %vm455, %v399, 0
        %459 = vmatprep.subr.bf16.mxu0 0
        %460 = vmatpush1.bf16.msra.mxu0 %v457
        %461 = vmatprep.subr.bf16.mxu0 0
        %462 = vmatpush1.bf16.msra.mxu0 0
        %463 = vmatprep.subr.bf16.mxu0 0
        %464 = vmatpush1.bf16.msra.mxu0 0
        %465 = vmatprep.subr.bf16.mxu0 0
        %466 = vmatpush1.bf16.msra.mxu0 0
        %467 = vmatprep.subr.bf16.mxu0 0
        %468 = vmatpush1.bf16.msra.mxu0 0
        %469 = vmatprep.subr.bf16.mxu0 0
        %470 = vmatpush1.bf16.msra.mxu0 0
        %471 = vmatprep.subr.bf16.mxu0 0
        %472 = vmatpush1.bf16.msra.mxu0 0
        %473 = vmatprep.subr.bf16.mxu0 0
        %474 = vmatpush1.bf16.msra.mxu0 0
        %475 = vmatprep.subr.bf16.mxu0 0
        %476 = vmatpush1.bf16.msra.mxu0 0
        %477 = vmatprep.subr.bf16.mxu0 0
        %478 = vmatpush1.bf16.msra.mxu0 0
        %479 = vmatprep.subr.bf16.mxu0 0
        %480 = vmatpush1.bf16.msra.mxu0 0
        %481 = vmatprep.subr.bf16.mxu0 0
        %482 = vmatpush1.bf16.msra.mxu0 0
        %483 = vmatprep.subr.bf16.mxu0 0
        %484 = vmatpush1.bf16.msra.mxu0 0
        %485 = vmatprep.subr.bf16.mxu0 0
        %486 = vmatpush1.bf16.msra.mxu0 0
        %487 = vmatprep.subr.bf16.mxu0 0
        %488 = vmatpush1.bf16.msra.mxu0 0
        %489 = vmatprep.subr.bf16.mxu0 0
        %490 = vmatpush1.bf16.msra.mxu0 0
        %491 = vmatprep.mubr.bf16.mxu0 0
        %492 = vmatmul.mubr.bf16.gmra.mrb[0].mxu0 %v408
        %v493 = vpop.f32.mrb[0].mxu0
        %v494 = vadd.f32 %v404, %v493
        %v495 = vpop.f32.mrb[0].mxu0
        %v496 = vpop.f32.mrb[0].mxu0
        %v497 = vadd.f32 %v404, %v496
        %v498 = vpop.f32.mrb[0].mxu0
        %499 = vmatprep.mubr.bf16.mxu0 0
        %500 = vmatmul.mubr.bf16.gmra.mrb[0].mxu0 %v411
        %v501 = vpop.f32.mrb[0].mxu0
        %v502 = vadd.f32 %v404, %v501
        %v503 = vpop.f32.mrb[0].mxu0
        %v504 = vpop.f32.mrb[0].mxu0
        %v505 = vadd.f32 %v404, %v504
        %v506 = vpop.f32.mrb[0].mxu0
        %507 = vmatprep.mubr.bf16.mxu0 0
        %508 = vmatmul.mubr.bf16.gmra.mrb[0].mxu0 %v414
        %v509 = vpop.f32.mrb[0].mxu0
        %v510 = vadd.f32 %v404, %v509
        %v511 = vpop.f32.mrb[0].mxu0
        %v512 = vpop.f32.mrb[0].mxu0
        %v513 = vadd.f32 %v404, %v512
        %v514 = vpop.f32.mrb[0].mxu0
        %515 = vmatprep.mubr.bf16.mxu0 0
        %516 = vmatmul.mubr.bf16.gmra.mrb[0].mxu0 %v417
        %v517 = vpop.f32.mrb[0].mxu0
        %v518 = vadd.f32 %v404, %v517
        %v519 = vpop.f32.mrb[0].mxu0
        %v520 = vpop.f32.mrb[0].mxu0
        %v521 = vadd.f32 %v404, %v520
        %v522 = vpop.f32.mrb[0].mxu0
        %523 = vmatprep.mubr.bf16.mxu0 0
        %524 = vmatmul.mubr.bf16.gmra.mrb[0].mxu0 %v420
        %v525 = vpop.f32.mrb[0].mxu0
        %v526 = vadd.f32 %v404, %v525
        %v527 = vpop.f32.mrb[0].mxu0
        %v528 = vpop.f32.mrb[0].mxu0
        %v529 = vadd.f32 %v404, %v528
        %v530 = vpop.f32.mrb[0].mxu0
        %531 = vmatprep.mubr.bf16.mxu0 0
        %532 = vmatmul.mubr.bf16.gmra.mrb[0].mxu0 %v423
        %v533 = vpop.f32.mrb[0].mxu0
        %v534 = vadd.f32 %v404, %v533
        %v535 = vpop.f32.mrb[0].mxu0
        %v536 = vpop.f32.mrb[0].mxu0
        %v537 = vadd.f32 %v404, %v536
        %v538 = vpop.f32.mrb[0].mxu0
        %539 = vmatprep.mubr.bf16.mxu0 0
        %540 = vmatmul.mubr.bf16.gmra.mrb[0].mxu0 %v426
        %v541 = vpop.f32.mrb[0].mxu0
        %v542 = vadd.f32 %v404, %v541
        %v543 = vpop.f32.mrb[0].mxu0
        %v544 = vpop.f32.mrb[0].mxu0
        %v545 = vadd.f32 %v404, %v544
        %v546 = vpop.f32.mrb[0].mxu0
        %547 = vmatprep.mubr.bf16.mxu0 0
        %548 = vmatmul.mubr.bf16.gmra.mrb[0].mxu0 %v429
        %v549 = vpop.f32.mrb[0].mxu0
        %v550 = vadd.f32 %v404, %v549
        %v551 = vpop.f32.mrb[0].mxu0
        %v552 = vpop.f32.mrb[0].mxu0
        %v553 = vadd.f32 %v404, %v552
        %v554 = vpop.f32.mrb[0].mxu0
        %555 = vmatprep.mubr.bf16.mxu0 0
        %556 = vmatmul.mubr.bf16.gmra.mrb[0].mxu0 %v432
        %v557 = vpop.f32.mrb[0].mxu0
        %v558 = vadd.f32 %v404, %v557
        %v559 = vpop.f32.mrb[0].mxu0
        %v560 = vpop.f32.mrb[0].mxu0
        %v561 = vadd.f32 %v404, %v560
        %v562 = vpop.f32.mrb[0].mxu0
        %563 = vmatprep.mubr.bf16.mxu0 0
        %564 = vmatmul.mubr.bf16.gmra.mrb[0].mxu0 %v435
        %v565 = vpop.f32.mrb[0].mxu0
        %v566 = vadd.f32 %v404, %v565
        %v567 = vpop.f32.mrb[0].mxu0
        %v568 = vpop.f32.mrb[0].mxu0
        %v569 = vadd.f32 %v404, %v568
        %v570 = vpop.f32.mrb[0].mxu0
        %571 = vmatprep.mubr.bf16.mxu0 0
        %572 = vmatmul.mubr.bf16.gmra.mrb[0].mxu0 %v438
        %v573 = vpop.f32.mrb[0].mxu0
        %v574 = vadd.f32 %v404, %v573
        %v575 = vpop.f32.mrb[0].mxu0
        %v576 = vpop.f32.mrb[0].mxu0
        %v577 = vadd.f32 %v404, %v576
        %v578 = vpop.f32.mrb[0].mxu0
        %579 = vmatprep.mubr.bf16.mxu0 0
        %580 = vmatmul.mubr.bf16.gmra.mrb[0].mxu0 %v441
        %v581 = vpop.f32.mrb[0].mxu0
        %v582 = vadd.f32 %v404, %v581
        %v583 = vpop.f32.mrb[0].mxu0
        %v584 = vpop.f32.mrb[0].mxu0
        %v585 = vadd.f32 %v404, %v584
        %v586 = vpop.f32.mrb[0].mxu0
        %587 = vmatprep.mubr.bf16.mxu0 0
        %588 = vmatmul.mubr.bf16.gmra.mrb[0].mxu0 %v444
        %v589 = vpop.f32.mrb[0].mxu0
        %v590 = vadd.f32 %v404, %v589
        %v591 = vpop.f32.mrb[0].mxu0
        %v592 = vpop.f32.mrb[0].mxu0
        %v593 = vadd.f32 %v404, %v592
        %v594 = vpop.f32.mrb[0].mxu0
        %595 = vmatprep.mubr.bf16.mxu0 0
        %596 = vmatmul.mubr.bf16.gmra.mrb[0].mxu0 %v447
        %v597 = vpop.f32.mrb[0].mxu0
        %v598 = vadd.f32 %v404, %v597
        %v599 = vpop.f32.mrb[0].mxu0
        %v600 = vpop.f32.mrb[0].mxu0
        %v601 = vadd.f32 %v404, %v600
        %v602 = vpop.f32.mrb[0].mxu0
        %603 = vmatprep.mubr.bf16.mxu0 0
        %604 = vmatmul.mubr.bf16.gmra.mrb[0].mxu0 %v450
        %v605 = vpop.f32.mrb[0].mxu0
        %v606 = vadd.f32 %v404, %v605
        %v607 = vpop.f32.mrb[0].mxu0
        %v608 = vpop.f32.mrb[0].mxu0
        %v609 = vadd.f32 %v404, %v608
        %v610 = vpop.f32.mrb[0].mxu0
        %611 = vmatprep.mubr.bf16.mxu0 0
        %612 = vmatmul.mubr.bf16.gmra.mrb[0].mxu0 %v453
        %v613 = vpop.f32.mrb[0].mxu0
        %v614 = vadd.f32 %v404, %v613
        %v615 = vpop.f32.mrb[0].mxu0
        %v616 = vpop.f32.mrb[0].mxu0
        %v617 = vadd.f32 %v404, %v616
        %v618 = vpop.f32.mrb[0].mxu0
        %619 = vdwg.mxu0
        %620 = vst [vmem:[#allocation4] sm:$0xff] %v494
        %621 = vst [vmem:[#allocation4 + $0x8] sm:$0xff] %v497
        %622 = vst [vmem:[#allocation4 + $0x10] sm:$0xff] %v502
        %623 = vst [vmem:[#allocation4 + $0x18] sm:$0xff] %v505
        %624 = vst [vmem:[#allocation4 + $0x20] sm:$0xff] %v510
        %625 = vst [vmem:[#allocation4 + $0x28] sm:$0xff] %v513
        %626 = vst [vmem:[#allocation4 + $0x30] sm:$0xff] %v518
        %627 = vst [vmem:[#allocation4 + $0x38] sm:$0xff] %v521
        %628 = vst [vmem:[#allocation4 + $0x40] sm:$0xff] %v526
        %629 = vst [vmem:[#allocation4 + $0x48] sm:$0xff] %v529
        %630 = vst [vmem:[#allocation4 + $0x50] sm:$0xff] %v534
        %631 = vst [vmem:[#allocation4 + $0x58] sm:$0xff] %v537
        %632 = vst [vmem:[#allocation4 + $0x60] sm:$0xff] %v542
        %633 = vst [vmem:[#allocation4 + $0x68] sm:$0xff] %v545
        %634 = vst [vmem:[#allocation4 + $0x70] sm:$0xff] %v550
        %635 = vst [vmem:[#allocation4 + $0x78] sm:$0xff] %v553
        %636 = vst [vmem:[#allocation4 + $0x80] sm:$0xff] %v558
        %637 = vst [vmem:[#allocation4 + $0x88] sm:$0xff] %v561
        %638 = vst [vmem:[#allocation4 + $0x90] sm:$0xff] %v566
        %639 = vst [vmem:[#allocation4 + $0x98] sm:$0xff] %v569
        %640 = vst [vmem:[#allocation4 + $0xa0] sm:$0xff] %v574
        %641 = vst [vmem:[#allocation4 + $0xa8] sm:$0xff] %v577
        %642 = vst [vmem:[#allocation4 + $0xb0] sm:$0xff] %v582
        %643 = vst [vmem:[#allocation4 + $0xb8] sm:$0xff] %v585
        %644 = vst [vmem:[#allocation4 + $0xc0] sm:$0xff] %v590
        %645 = vst [vmem:[#allocation4 + $0xc8] sm:$0xff] %v593
        %646 = vst [vmem:[#allocation4 + $0xd0] sm:$0xff] %v598
        %647 = vst [vmem:[#allocation4 + $0xd8] sm:$0xff] %v601
        %648 = vst [vmem:[#allocation4 + $0xe0] sm:$0xff] %v606
        %649 = vst [vmem:[#allocation4 + $0xe8] sm:$0xff] %v609
        %650 = vst [vmem:[#allocation4 + $0xf0] sm:$0xff] %v614
        %651 = vst [vmem:[#allocation4 + $0xf8] sm:$0xff] %v617
        %s652 = smul.u32 %s24, 2
        %s653 = ssub.s32 0, %s652
        %s654 = smul.u32 %s23, %s653
        %s655 = sadd.s32 %s24, %s654
        %s656 = smul.u32 %s655, 16
        %v657 = vstv %s656
        %v658 = vadd.s32 %v657, 1
        %v659 = vadd.s32 %v657, 2
        %v660 = vadd.s32 %v657, 3
        %v661 = vadd.s32 %v657, 4
        %v662 = vadd.s32 %v657, 5
        %v663 = vadd.s32 %v657, 6
        %v664 = vadd.s32 %v657, 7
        %v665 = vadd.s32 %v657, 8
        %v666 = vadd.s32 %v657, 9
        %v667 = vadd.s32 %v657, 10
        %v668 = vadd.s32 %v657, 11
        %v669 = vadd.s32 %v657, 12
        %v670 = vadd.s32 %v657, 13
        %v671 = vadd.s32 %v657, 14
        %v672 = vadd.s32 %v657, 15
        %vm673 = vcmp.lt.s32.totalorder %v657, %v344
        %vm674 = vcmp.lt.s32.totalorder %v657, %v345
        %vm675 = vcmp.lt.s32.totalorder %v658, %v344
        %vm676 = vcmp.lt.s32.totalorder %v658, %v345
        %vm677 = vcmp.lt.s32.totalorder %v659, %v344
        %vm678 = vcmp.lt.s32.totalorder %v659, %v345
        %vm679 = vcmp.lt.s32.totalorder %v660, %v344
        %vm680 = vcmp.lt.s32.totalorder %v660, %v345
        %vm681 = vcmp.lt.s32.totalorder %v661, %v344
        %vm682 = vcmp.lt.s32.totalorder %v661, %v345
        %vm683 = vcmp.lt.s32.totalorder %v662, %v344
        %vm684 = vcmp.lt.s32.totalorder %v662, %v345
        %vm685 = vcmp.lt.s32.totalorder %v663, %v344
        %vm686 = vcmp.lt.s32.totalorder %v663, %v345
        %vm687 = vcmp.lt.s32.totalorder %v664, %v344
        %vm688 = vcmp.lt.s32.totalorder %v664, %v345
        %vm689 = vcmp.lt.s32.totalorder %v665, %v344
        %vm690 = vcmp.lt.s32.totalorder %v665, %v345
        %vm691 = vcmp.lt.s32.totalorder %v666, %v344
        %vm692 = vcmp.lt.s32.totalorder %v666, %v345
        %vm693 = vcmp.lt.s32.totalorder %v667, %v344
        %vm694 = vcmp.lt.s32.totalorder %v667, %v345
        %vm695 = vcmp.lt.s32.totalorder %v668, %v344
        %vm696 = vcmp.lt.s32.totalorder %v668, %v345
        %vm697 = vcmp.lt.s32.totalorder %v669, %v344
        %vm698 = vcmp.lt.s32.totalorder %v669, %v345
        %vm699 = vcmp.lt.s32.totalorder %v670, %v344
        %vm700 = vcmp.lt.s32.totalorder %v670, %v345
        %vm701 = vcmp.lt.s32.totalorder %v671, %v344
        %vm702 = vcmp.lt.s32.totalorder %v671, %v345
        %vm703 = vcmp.lt.s32.totalorder %v672, %v344
        %vm704 = vcmp.lt.s32.totalorder %v672, %v345
        %v705 = vlaneseq
        %v706 = vand.u32 %v705, 127
        %vm707 = vcmp.ge.s32.totalorder %v706, 64
        %vm708 = vcmp.lt.s32.totalorder %v706, 96
        %vm709 = vmand %vm707, %vm708
        %v710 = vsel %vm709, 1.0, 0.5
        %v711 = vsel %vm709, 0.0, 0.5
        %p712 = scmp.eq.s32.totalorder %s23, 0
        // Predicated region
        $region45: #{tpu_custom_call.1} parent=39 // pred_check
          %p713 = pneg %p712
        $region46: #{tpu_custom_call.1} parent=39 // pred_check_branch
          %715 = sbr.rel (%p713) target = $region48
        $region47: #{tpu_custom_call.1} parent=39 // pred_region
          %v716 = vld [vmem:[#allocation2] sm:$0xff]
          %v717 = vld [vmem:[#allocation2 + $0x8] sm:$0xff]
          %v718 = vld [vmem:[#allocation3] sm:$0xff]
          %v719 = vld [vmem:[#allocation3 + $0x8] sm:$0xff]
          %v720 = vld [vmem:[#allocation4] sm:$0xff]
          %v721 = vld [vmem:[#allocation4 + $0x8] sm:$0xff]
          %v722 = vpack.c.bf16 %v717, %v716
          %v727 = vunpack.c.l.b16 %v346
          %v728 = vunpack.c.l.b16 %v347
          %v729 = vunpack.c.l.b16 %v348
          %v730 = vunpack.c.l.b16 %v349
          %v731 = vpack.c.b16 %v728, %v727
          %v732 = vpack.c.b16 %v730, %v729
          %vm735 = vcmask 261120
          %v737 = vsel %vm735, %v722, 0
          %739 = vmatprep.subr.bf16.mxu0 0
          %740 = vmatpush1.bf16.msra.mxu0 %v731
          %741 = vmatprep.subr.bf16.mxu0 0
          %742 = vmatpush1.bf16.msra.mxu0 %v732
          %743 = vmatprep.subr.bf16.mxu0 0
          %744 = vmatpush1.bf16.msra.mxu0 0
          %745 = vmatprep.subr.bf16.mxu0 0
          %746 = vmatpush1.bf16.msra.mxu0 0
          %747 = vmatprep.subr.bf16.mxu0 0
          %748 = vmatpush1.bf16.msra.mxu0 0
          %749 = vmatprep.subr.bf16.mxu0 0
          %750 = vmatpush1.bf16.msra.mxu0 0
          %751 = vmatprep.subr.bf16.mxu0 0
          %752 = vmatpush1.bf16.msra.mxu0 0
          %753 = vmatprep.subr.bf16.mxu0 0
          %754 = vmatpush1.bf16.msra.mxu0 0
          %755 = vmatprep.subr.bf16.mxu0 0
          %756 = vmatpush1.bf16.msra.mxu0 0
          %757 = vmatprep.subr.bf16.mxu0 0
          %758 = vmatpush1.bf16.msra.mxu0 0
          %759 = vmatprep.subr.bf16.mxu0 0
          %760 = vmatpush1.bf16.msra.mxu0 0
          %761 = vmatprep.subr.bf16.mxu0 0
          %762 = vmatpush1.bf16.msra.mxu0 0
          %763 = vmatprep.subr.bf16.mxu0 0
          %764 = vmatpush1.bf16.msra.mxu0 0
          %765 = vmatprep.subr.bf16.mxu0 0
          %766 = vmatpush1.bf16.msra.mxu0 0
          %767 = vmatprep.subr.bf16.mxu0 0
          %768 = vmatpush1.bf16.msra.mxu0 0
          %769 = vmatprep.subr.bf16.mxu0 0
          %770 = vmatpush1.bf16.msra.mxu0 0
          %771 = vmatprep.mubr.bf16.mxu0 0
          %772 = vmatmul.mubr.bf16.gmra.mrb[0].mxu0 %v737
          %v773 = vpop.f32.mrb[0].mxu0
          %v774 = vadd.f32 0.0, %v773
          %v775 = vpop.f32.mrb[0].mxu0
          %v776 = vpop.f32.mrb[0].mxu0
          %v777 = vadd.f32 0.0, %v776
          %v778 = vpop.f32.mrb[0].mxu0
          %779 = vdwg.mxu0
          %v780 = vadd.f32 %v720, %v774
          %v781 = vadd.f32 %v721, %v777
          %v782 = vtanh.pop %v780
          %v783 = vtanh.pop %v781
          %v784 = vmul.f32 %v782, %v710
          %v785 = vmul.f32 %v783, %v710
          %v786 = vadd.f32 %v784, %v711
          %v787 = vadd.f32 %v785, %v711
          %790 = vrot.lane.b32.xlu0 %v718, 32
          %v791 = vpop.permute.xlu0 %790
          %792 = vrot.lane.b32.xlu0 %v719, 32
          %v793 = vpop.permute.xlu0 %792
          %v796 = vmul.f32 %v786, %v791
          %v797 = vmul.f32 %v787, %v793
          %800 = vrot.lane.b32.xlu0 %v786, 64
          %v801 = vpop.permute.xlu0 %800
          %802 = vrot.lane.b32.xlu0 %v787, 64
          %v803 = vpop.permute.xlu0 %802
          %v806 = vmul.f32 %v786, %v801
          %v807 = vmul.f32 %v787, %v803
          %810 = vrot.lane.b32.xlu0 %v806, 32
          %v811 = vpop.permute.xlu0 %810
          %812 = vrot.lane.b32.xlu0 %v807, 32
          %v813 = vpop.permute.xlu0 %812
          %v816 = vadd.f32 %v796, %v811
          %v817 = vadd.f32 %v797, %v813
          %v818 = vtanh.pop %v816
          %v819 = vtanh.pop %v817
          %822 = vrot.lane.b32.xlu0 %v818, 64
          %v823 = vpop.permute.xlu0 %822
          %824 = vrot.lane.b32.xlu0 %v819, 64
          %v825 = vpop.permute.xlu0 %824
          %v828 = vmul.f32 %v786, %v823
          %v829 = vmul.f32 %v787, %v825
          %v830 = vsel %vm673, 1, 0
          %v831 = vsel %vm674, 1, 0
          %832 = vset.pattern.permute.xlu0 0
          %833 = vperm.xlu0 %832, %v830
          %v834 = vpop.permute.xlu0 %833
          %835 = vset.pattern.permute.xlu0 0
          %836 = vperm.xlu0 %835, %v831
          %v837 = vpop.permute.xlu0 %836
          %vm838 = vcmp.eq.s32.totalorder %v834, 1
          %vm839 = vcmp.eq.s32.totalorder %v837, 1
          %842 = vrot.lane.b32.xlu0 %v716, 96
          %v843 = vpop.permute.xlu0 %842
          %844 = vrot.lane.b32.xlu0 %v717, 96
          %v845 = vpop.permute.xlu0 %844
          %v848 = vsel %vm838, %v828, %v843
          %v849 = vsel %vm839, %v829, %v845
          %v850 = vsel %vm838, %v816, %v791
          %v851 = vsel %vm839, %v817, %v793
          %v852 = vsel %vm838, %v828, 0.0
          %v853 = vsel %vm839, %v829, 0.0
          %v854 = vpack.c.bf16 %v853, %v852
          %v856 = vunpack.c.l.b16 %v854
          %v857 = vunpack.c.h.b16 %v854
          %v858 = vpack.c.b16 %v856, %v856
          %v859 = vpack.c.b16 %v857, %v857
          %860 = vrot.lane.b32.xlu0 %v858, 32
          %v861 = vpop.permute.xlu0 %860
          %862 = vrot.lane.b32.xlu0 %v859, 32
          %v863 = vpop.permute.xlu0 %862
          %vm866 = vcmask 257024
          %867 = vst.msk [vmem:[%s301] sm:$0xf] %vm866, %v861
          %868 = vst.msk [vmem:[%s301 + $0x4] sm:$0xf] %vm866, %v863
          %v869 = vld [vmem:[#allocation4 + $0x10] sm:$0xff]
          %v870 = vld [vmem:[#allocation4 + $0x18] sm:$0xff]
          %v871 = vpack.c.bf16 %v849, %v848
          %873 = vrot.lane.b32.xlu0 %v871, 32
          %v874 = vpop.permute.xlu0 %873
          %v876 = vsel %vm735, %v874, 0
          %878 = vmatprep.subr.bf16.mxu0 0
          %879 = vmatpush1.bf16.msra.mxu0 %v731
          %880 = vmatprep.subr.bf16.mxu0 0
          %881 = vmatpush1.bf16.msra.mxu0 %v732
          %882 = vmatprep.subr.bf16.mxu0 0
          %883 = vmatpush1.bf16.msra.mxu0 0
          %884 = vmatprep.subr.bf16.mxu0 0
          %885 = vmatpush1.bf16.msra.mxu0 0
          %886 = vmatprep.subr.bf16.mxu0 0
          %887 = vmatpush1.bf16.msra.mxu0 0
          %888 = vmatprep.subr.bf16.mxu0 0
          %889 = vmatpush1.bf16.msra.mxu0 0
          %890 = vmatprep.subr.bf16.mxu0 0
          %891 = vmatpush1.bf16.msra.mxu0 0
          %892 = vmatprep.subr.bf16.mxu0 0
          %893 = vmatpush1.bf16.msra.mxu0 0
          %894 = vmatprep.subr.bf16.mxu0 0
          %895 = vmatpush1.bf16.msra.mxu0 0
          %896 = vmatprep.subr.bf16.mxu0 0
          %897 = vmatpush1.bf16.msra.mxu0 0
          %898 = vmatprep.subr.bf16.mxu0 0
          %899 = vmatpush1.bf16.msra.mxu0 0
          %900 = vmatprep.subr.bf16.mxu0 0
          %901 = vmatpush1.bf16.msra.mxu0 0
          %902 = vmatprep.subr.bf16.mxu0 0
          %903 = vmatpush1.bf16.msra.mxu0 0
          %904 = vmatprep.subr.bf16.mxu0 0
          %905 = vmatpush1.bf16.msra.mxu0 0
          %906 = vmatprep.subr.bf16.mxu0 0
          %907 = vmatpush1.bf16.msra.mxu0 0
          %908 = vmatprep.subr.bf16.mxu0 0
          %909 = vmatpush1.bf16.msra.mxu0 0
          %910 = vmatprep.mubr.bf16.mxu0 0
          %911 = vmatmul.mubr.bf16.gmra.mrb[0].mxu0 %v876
          %v912 = vpop.f32.mrb[0].mxu0
          %v913 = vadd.f32 0.0, %v912
          %v914 = vpop.f32.mrb[0].mxu0
          %v915 = vpop.f32.mrb[0].mxu0
          %v916 = vadd.f32 0.0, %v915
          %v917 = vpop.f32.mrb[0].mxu0
          %918 = vdwg.mxu0
          %v919 = vadd.f32 %v869, %v913
          %v920 = vadd.f32 %v870, %v916
          %v921 = vtanh.pop %v919
          %v922 = vtanh.pop %v920
          %v923 = vmul.f32 %v921, %v710
          %v924 = vmul.f32 %v922, %v710
          %v925 = vadd.f32 %v923, %v711
          %v926 = vadd.f32 %v924, %v711
          %v927 = vmul.f32 %v925, %v850
          %v928 = vmul.f32 %v926, %v851
          %931 = vrot.lane.b32.xlu0 %v925, 64
          %v932 = vpop.permute.xlu0 %931
          %933 = vrot.lane.b32.xlu0 %v926, 64
          %v934 = vpop.permute.xlu0 %933
          %v937 = vmul.f32 %v925, %v932
          %v938 = vmul.f32 %v926, %v934
          %941 = vrot.lane.b32.xlu0 %v937, 32
          %v942 = vpop.permute.xlu0 %941
          %943 = vrot.lane.b32.xlu0 %v938, 32
          %v944 = vpop.permute.xlu0 %943
          %v947 = vadd.f32 %v927, %v942
          %v948 = vadd.f32 %v928, %v944
          %v949 = vtanh.pop %v947
          %v950 = vtanh.pop %v948
          %953 = vrot.lane.b32.xlu0 %v949, 64
          %v954 = vpop.permute.xlu0 %953
          %955 = vrot.lane.b32.xlu0 %v950, 64
          %v956 = vpop.permute.xlu0 %955
          %v959 = vmul.f32 %v925, %v954
          %v960 = vmul.f32 %v926, %v956
          %v961 = vsel %vm675, 1, 0
          %v962 = vsel %vm676, 1, 0
          %963 = vset.pattern.permute.xlu0 0
          %964 = vperm.xlu0 %963, %v961
          %v965 = vpop.permute.xlu0 %964
          %966 = vset.pattern.permute.xlu0 0
          %967 = vperm.xlu0 %966, %v962
          %v968 = vpop.permute.xlu0 %967
          %vm969 = vcmp.eq.s32.totalorder %v965, 1
          %vm970 = vcmp.eq.s32.totalorder %v968, 1
          %v971 = vsel %vm969, %v959, %v848
          %v972 = vsel %vm970, %v960, %v849
          %v973 = vsel %vm969, %v947, %v850
          %v974 = vsel %vm970, %v948, %v851
          %v975 = vsel %vm969, %v959, 0.0
          %v976 = vsel %vm970, %v960, 0.0
          %v977 = vpack.c.bf16 %v976, %v975
          %v979 = vunpack.c.l.b16 %v977
          %v980 = vunpack.c.h.b16 %v977
          %v981 = vpack.c.b16 %v979, %v979
          %v982 = vpack.c.b16 %v980, %v980
          %983 = vrot.lane.b32.xlu0 %v981, 32
          %v984 = vpop.permute.xlu0 %983
          %985 = vrot.lane.b32.xlu0 %v982, 32
          %v986 = vpop.permute.xlu0 %985
          %s989 = scalar_lea.vmem %s301, 8 [#allocation5]
          %990 = vst.msk [vmem:[%s989] sm:$0xf] %vm866, %v984
          %991 = vst.msk [vmem:[%s989 + $0x4] sm:$0xf] %vm866, %v986
          %v992 = vld [vmem:[#allocation4 + $0x20] sm:$0xff]
          %v993 = vld [vmem:[#allocation4 + $0x28] sm:$0xff]
          %v994 = vpack.c.bf16 %v972, %v971
          %996 = vrot.lane.b32.xlu0 %v994, 32
          %v997 = vpop.permute.xlu0 %996
          %v999 = vsel %vm735, %v997, 0
          %1001 = vmatprep.subr.bf16.mxu0 0
          %1002 = vmatpush1.bf16.msra.mxu0 %v731
          %1003 = vmatprep.subr.bf16.mxu0 0
          %1004 = vmatpush1.bf16.msra.mxu0 %v732
          %1005 = vmatprep.subr.bf16.mxu0 0
          %1006 = vmatpush1.bf16.msra.mxu0 0
          %1007 = vmatprep.subr.bf16.mxu0 0
          %1008 = vmatpush1.bf16.msra.mxu0 0
          %1009 = vmatprep.subr.bf16.mxu0 0
          %1010 = vmatpush1.bf16.msra.mxu0 0
          %1011 = vmatprep.subr.bf16.mxu0 0
          %1012 = vmatpush1.bf16.msra.mxu0 0
          %1013 = vmatprep.subr.bf16.mxu0 0
          %1014 = vmatpush1.bf16.msra.mxu0 0
          %1015 = vmatprep.subr.bf16.mxu0 0
          %1016 = vmatpush1.bf16.msra.mxu0 0
          %1017 = vmatprep.subr.bf16.mxu0 0
          %1018 = vmatpush1.bf16.msra.mxu0 0
          %1019 = vmatprep.subr.bf16.mxu0 0
          %1020 = vmatpush1.bf16.msra.mxu0 0
          %1021 = vmatprep.subr.bf16.mxu0 0
          %1022 = vmatpush1.bf16.msra.mxu0 0
          %1023 = vmatprep.subr.bf16.mxu0 0
          %1024 = vmatpush1.bf16.msra.mxu0 0
          %1025 = vmatprep.subr.bf16.mxu0 0
          %1026 = vmatpush1.bf16.msra.mxu0 0
          %1027 = vmatprep.subr.bf16.mxu0 0
          %1028 = vmatpush1.bf16.msra.mxu0 0
          %1029 = vmatprep.subr.bf16.mxu0 0
          %1030 = vmatpush1.bf16.msra.mxu0 0
          %1031 = vmatprep.subr.bf16.mxu0 0
          %1032 = vmatpush1.bf16.msra.mxu0 0
          %1033 = vmatprep.mubr.bf16.mxu0 0
          %1034 = vmatmul.mubr.bf16.gmra.mrb[0].mxu0 %v999
          %v1035 = vpop.f32.mrb[0].mxu0
          %v1036 = vadd.f32 0.0, %v1035
          %v1037 = vpop.f32.mrb[0].mxu0
          %v1038 = vpop.f32.mrb[0].mxu0
          %v1039 = vadd.f32 0.0, %v1038
          %v1040 = vpop.f32.mrb[0].mxu0
          %1041 = vdwg.mxu0
          %v1042 = vadd.f32 %v992, %v1036
          %v1043 = vadd.f32 %v993, %v1039
          %v1044 = vtanh.pop %v1042
          %v1045 = vtanh.pop %v1043
          %v1046 = vmul.f32 %v1044, %v710
          %v1047 = vmul.f32 %v1045, %v710
          %v1048 = vadd.f32 %v1046, %v711
          %v1049 = vadd.f32 %v1047, %v711
          %v1050 = vmul.f32 %v1048, %v973
          %v1051 = vmul.f32 %v1049, %v974
          %1054 = vrot.lane.b32.xlu0 %v1048, 64
          %v1055 = vpop.permute.xlu0 %1054
          %1056 = vrot.lane.b32.xlu0 %v1049, 64
          %v1057 = vpop.permute.xlu0 %1056
          %v1060 = vmul.f32 %v1048, %v1055
          %v1061 = vmul.f32 %v1049, %v1057
          %1064 = vrot.lane.b32.xlu0 %v1060, 32
          %v1065 = vpop.permute.xlu0 %1064
          %1066 = vrot.lane.b32.xlu0 %v1061, 32
          %v1067 = vpop.permute.xlu0 %1066
          %v1070 = vadd.f32 %v1050, %v1065
          %v1071 = vadd.f32 %v1051, %v1067
          %v1072 = vtanh.pop %v1070
          %v1073 = vtanh.pop %v1071
          %1076 = vrot.lane.b32.xlu0 %v1072, 64
          %v1077 = vpop.permute.xlu0 %1076
          %1078 = vrot.lane.b32.xlu0 %v1073, 64
          %v1079 = vpop.permute.xlu0 %1078
          %v1082 = vmul.f32 %v1048, %v1077
          %v1083 = vmul.f32 %v1049, %v1079
          %v1084 = vsel %vm677, 1, 0
          %v1085 = vsel %vm678, 1, 0
          %1086 = vset.pattern.permute.xlu0 0
          %1087 = vperm.xlu0 %1086, %v1084
          %v1088 = vpop.permute.xlu0 %1087
          %1089 = vset.pattern.permute.xlu0 0
          %1090 = vperm.xlu0 %1089, %v1085
          %v1091 = vpop.permute.xlu0 %1090
          %vm1092 = vcmp.eq.s32.totalorder %v1088, 1
          %vm1093 = vcmp.eq.s32.totalorder %v1091, 1
          %v1094 = vsel %vm1092, %v1082, %v971
          %v1095 = vsel %vm1093, %v1083, %v972
          %v1096 = vsel %vm1092, %v1070, %v973
          %v1097 = vsel %vm1093, %v1071, %v974
          %v1098 = vsel %vm1092, %v1082, 0.0
          %v1099 = vsel %vm1093, %v1083, 0.0
          %v1100 = vpack.c.bf16 %v1099, %v1098
          %v1102 = vunpack.c.l.b16 %v1100
          %v1103 = vunpack.c.h.b16 %v1100
          %v1104 = vpack.c.b16 %v1102, %v1102
          %v1105 = vpack.c.b16 %v1103, %v1103
          %1106 = vrot.lane.b32.xlu0 %v1104, 32
          %v1107 = vpop.permute.xlu0 %1106
          %1108 = vrot.lane.b32.xlu0 %v1105, 32
          %v1109 = vpop.permute.xlu0 %1108
          %s1112 = scalar_lea.vmem %s301, 16 [#allocation5]
          %1113 = vst.msk [vmem:[%s1112] sm:$0xf] %vm866, %v1107
          %1114 = vst.msk [vmem:[%s1112 + $0x4] sm:$0xf] %vm866, %v1109
          %v1115 = vld [vmem:[#allocation4 + $0x30] sm:$0xff]
          %v1116 = vld [vmem:[#allocation4 + $0x38] sm:$0xff]
          %v1117 = vpack.c.bf16 %v1095, %v1094
          %1119 = vrot.lane.b32.xlu0 %v1117, 32
          %v1120 = vpop.permute.xlu0 %1119
          %v1122 = vsel %vm735, %v1120, 0
          %1124 = vmatprep.subr.bf16.mxu0 0
          %1125 = vmatpush1.bf16.msra.mxu0 %v731
          %1126 = vmatprep.subr.bf16.mxu0 0
          %1127 = vmatpush1.bf16.msra.mxu0 %v732
          %1128 = vmatprep.subr.bf16.mxu0 0
          %1129 = vmatpush1.bf16.msra.mxu0 0
          %1130 = vmatprep.subr.bf16.mxu0 0
          %1131 = vmatpush1.bf16.msra.mxu0 0
          %1132 = vmatprep.subr.bf16.mxu0 0
          %1133 = vmatpush1.bf16.msra.mxu0 0
          %1134 = vmatprep.subr.bf16.mxu0 0
          %1135 = vmatpush1.bf16.msra.mxu0 0
          %1136 = vmatprep.subr.bf16.mxu0 0
          %1137 = vmatpush1.bf16.msra.mxu0 0
          %1138 = vmatprep.subr.bf16.mxu0 0
          %1139 = vmatpush1.bf16.msra.mxu0 0
          %1140 = vmatprep.subr.bf16.mxu0 0
          %1141 = vmatpush1.bf16.msra.mxu0 0
          %1142 = vmatprep.subr.bf16.mxu0 0
          %1143 = vmatpush1.bf16.msra.mxu0 0
          %1144 = vmatprep.subr.bf16.mxu0 0
          %1145 = vmatpush1.bf16.msra.mxu0 0
          %1146 = vmatprep.subr.bf16.mxu0 0
          %1147 = vmatpush1.bf16.msra.mxu0 0
          %1148 = vmatprep.subr.bf16.mxu0 0
          %1149 = vmatpush1.bf16.msra.mxu0 0
          %1150 = vmatprep.subr.bf16.mxu0 0
          %1151 = vmatpush1.bf16.msra.mxu0 0
          %1152 = vmatprep.subr.bf16.mxu0 0
          %1153 = vmatpush1.bf16.msra.mxu0 0
          %1154 = vmatprep.subr.bf16.mxu0 0
          %1155 = vmatpush1.bf16.msra.mxu0 0
          %1156 = vmatprep.mubr.bf16.mxu0 0
          %1157 = vmatmul.mubr.bf16.gmra.mrb[0].mxu0 %v1122
          %v1158 = vpop.f32.mrb[0].mxu0
          %v1159 = vadd.f32 0.0, %v1158
          %v1160 = vpop.f32.mrb[0].mxu0
          %v1161 = vpop.f32.mrb[0].mxu0
          %v1162 = vadd.f32 0.0, %v1161
          %v1163 = vpop.f32.mrb[0].mxu0
          %1164 = vdwg.mxu0
          %v1165 = vadd.f32 %v1115, %v1159
          %v1166 = vadd.f32 %v1116, %v1162
          %v1167 = vtanh.pop %v1165
          %v1168 = vtanh.pop %v1166
          %v1169 = vmul.f32 %v1167, %v710
          %v1170 = vmul.f32 %v1168, %v710
          %v1171 = vadd.f32 %v1169, %v711
          %v1172 = vadd.f32 %v1170, %v711
          %v1173 = vmul.f32 %v1171, %v1096
          %v1174 = vmul.f32 %v1172, %v1097
          %1177 = vrot.lane.b32.xlu0 %v1171, 64
          %v1178 = vpop.permute.xlu0 %1177
          %1179 = vrot.lane.b32.xlu0 %v1172, 64
          %v1180 = vpop.permute.xlu0 %1179
          %v1183 = vmul.f32 %v1171, %v1178
          %v1184 = vmul.f32 %v1172, %v1180
          %1187 = vrot.lane.b32.xlu0 %v1183, 32
          %v1188 = vpop.permute.xlu0 %1187
          %1189 = vrot.lane.b32.xlu0 %v1184, 32
          %v1190 = vpop.permute.xlu0 %1189
          %v1193 = vadd.f32 %v1173, %v1188
          %v1194 = vadd.f32 %v1174, %v1190
          %v1195 = vtanh.pop %v1193
          %v1196 = vtanh.pop %v1194
          %1199 = vrot.lane.b32.xlu0 %v1195, 64
          %v1200 = vpop.permute.xlu0 %1199
          %1201 = vrot.lane.b32.xlu0 %v1196, 64
          %v1202 = vpop.permute.xlu0 %1201
          %v1205 = vmul.f32 %v1171, %v1200
          %v1206 = vmul.f32 %v1172, %v1202
          %v1207 = vsel %vm679, 1, 0
          %v1208 = vsel %vm680, 1, 0
          %1209 = vset.pattern.permute.xlu0 0
          %1210 = vperm.xlu0 %1209, %v1207
          %v1211 = vpop.permute.xlu0 %1210
          %1212 = vset.pattern.permute.xlu0 0
          %1213 = vperm.xlu0 %1212, %v1208
          %v1214 = vpop.permute.xlu0 %1213
          %vm1215 = vcmp.eq.s32.totalorder %v1211, 1
          %vm1216 = vcmp.eq.s32.totalorder %v1214, 1
          %v1217 = vsel %vm1215, %v1205, %v1094
          %v1218 = vsel %vm1216, %v1206, %v1095
          %v1219 = vsel %vm1215, %v1193, %v1096
          %v1220 = vsel %vm1216, %v1194, %v1097
          %v1221 = vsel %vm1215, %v1205, 0.0
          %v1222 = vsel %vm1216, %v1206, 0.0
          %v1223 = vpack.c.bf16 %v1222, %v1221
          %v1225 = vunpack.c.l.b16 %v1223
          %v1226 = vunpack.c.h.b16 %v1223
          %v1227 = vpack.c.b16 %v1225, %v1225
          %v1228 = vpack.c.b16 %v1226, %v1226
          %1229 = vrot.lane.b32.xlu0 %v1227, 32
          %v1230 = vpop.permute.xlu0 %1229
          %1231 = vrot.lane.b32.xlu0 %v1228, 32
          %v1232 = vpop.permute.xlu0 %1231
          %s1235 = scalar_lea.vmem %s301, 24 [#allocation5]
          %1236 = vst.msk [vmem:[%s1235] sm:$0xf] %vm866, %v1230
          %1237 = vst.msk [vmem:[%s1235 + $0x4] sm:$0xf] %vm866, %v1232
          %v1238 = vld [vmem:[#allocation4 + $0x40] sm:$0xff]
          %v1239 = vld [vmem:[#allocation4 + $0x48] sm:$0xff]
          %v1240 = vpack.c.bf16 %v1218, %v1217
          %1242 = vrot.lane.b32.xlu0 %v1240, 32
          %v1243 = vpop.permute.xlu0 %1242
          %v1245 = vsel %vm735, %v1243, 0
          %1247 = vmatprep.subr.bf16.mxu0 0
          %1248 = vmatpush1.bf16.msra.mxu0 %v731
          %1249 = vmatprep.subr.bf16.mxu0 0
          %1250 = vmatpush1.bf16.msra.mxu0 %v732
          %1251 = vmatprep.subr.bf16.mxu0 0
          %1252 = vmatpush1.bf16.msra.mxu0 0
          %1253 = vmatprep.subr.bf16.mxu0 0
          %1254 = vmatpush1.bf16.msra.mxu0 0
          %1255 = vmatprep.subr.bf16.mxu0 0
          %1256 = vmatpush1.bf16.msra.mxu0 0
          %1257 = vmatprep.subr.bf16.mxu0 0
          %1258 = vmatpush1.bf16.msra.mxu0 0
          %1259 = vmatprep.subr.bf16.mxu0 0
          %1260 = vmatpush1.bf16.msra.mxu0 0
          %1261 = vmatprep.subr.bf16.mxu0 0
          %1262 = vmatpush1.bf16.msra.mxu0 0
          %1263 = vmatprep.subr.bf16.mxu0 0
          %1264 = vmatpush1.bf16.msra.mxu0 0
          %1265 = vmatprep.subr.bf16.mxu0 0
          %1266 = vmatpush1.bf16.msra.mxu0 0
          %1267 = vmatprep.subr.bf16.mxu0 0
          %1268 = vmatpush1.bf16.msra.mxu0 0
          %1269 = vmatprep.subr.bf16.mxu0 0
          %1270 = vmatpush1.bf16.msra.mxu0 0
          %1271 = vmatprep.subr.bf16.mxu0 0
          %1272 = vmatpush1.bf16.msra.mxu0 0
          %1273 = vmatprep.subr.bf16.mxu0 0
          %1274 = vmatpush1.bf16.msra.mxu0 0
          %1275 = vmatprep.subr.bf16.mxu0 0
          %1276 = vmatpush1.bf16.msra.mxu0 0
          %1277 = vmatprep.subr.bf16.mxu0 0
          %1278 = vmatpush1.bf16.msra.mxu0 0
          %1279 = vmatprep.mubr.bf16.mxu0 0
          %1280 = vmatmul.mubr.bf16.gmra.mrb[0].mxu0 %v1245
          %v1281 = vpop.f32.mrb[0].mxu0
          %v1282 = vadd.f32 0.0, %v1281
          %v1283 = vpop.f32.mrb[0].mxu0
          %v1284 = vpop.f32.mrb[0].mxu0
          %v1285 = vadd.f32 0.0, %v1284
          %v1286 = vpop.f32.mrb[0].mxu0
          %1287 = vdwg.mxu0
          %v1288 = vadd.f32 %v1238, %v1282
          %v1289 = vadd.f32 %v1239, %v1285
          %v1290 = vtanh.pop %v1288
          %v1291 = vtanh.pop %v1289
          %v1292 = vmul.f32 %v1290, %v710
          %v1293 = vmul.f32 %v1291, %v710
          %v1294 = vadd.f32 %v1292, %v711
          %v1295 = vadd.f32 %v1293, %v711
          %v1296 = vmul.f32 %v1294, %v1219
          %v1297 = vmul.f32 %v1295, %v1220
          %1300 = vrot.lane.b32.xlu0 %v1294, 64
          %v1301 = vpop.permute.xlu0 %1300
          %1302 = vrot.lane.b32.xlu0 %v1295, 64
          %v1303 = vpop.permute.xlu0 %1302
          %v1306 = vmul.f32 %v1294, %v1301
          %v1307 = vmul.f32 %v1295, %v1303
          %1310 = vrot.lane.b32.xlu0 %v1306, 32
          %v1311 = vpop.permute.xlu0 %1310
          %1312 = vrot.lane.b32.xlu0 %v1307, 32
          %v1313 = vpop.permute.xlu0 %1312
          %v1316 = vadd.f32 %v1296, %v1311
          %v1317 = vadd.f32 %v1297, %v1313
          %v1318 = vtanh.pop %v1316
          %v1319 = vtanh.pop %v1317
          %1322 = vrot.lane.b32.xlu0 %v1318, 64
          %v1323 = vpop.permute.xlu0 %1322
          %1324 = vrot.lane.b32.xlu0 %v1319, 64
          %v1325 = vpop.permute.xlu0 %1324
          %v1328 = vmul.f32 %v1294, %v1323
          %v1329 = vmul.f32 %v1295, %v1325
          %v1330 = vsel %vm681, 1, 0
          %v1331 = vsel %vm682, 1, 0
          %1332 = vset.pattern.permute.xlu0 0
          %1333 = vperm.xlu0 %1332, %v1330
          %v1334 = vpop.permute.xlu0 %1333
          %1335 = vset.pattern.permute.xlu0 0
          %1336 = vperm.xlu0 %1335, %v1331
          %v1337 = vpop.permute.xlu0 %1336
          %vm1338 = vcmp.eq.s32.totalorder %v1334, 1
          %vm1339 = vcmp.eq.s32.totalorder %v1337, 1
          %v1340 = vsel %vm1338, %v1328, %v1217
          %v1341 = vsel %vm1339, %v1329, %v1218
          %v1342 = vsel %vm1338, %v1316, %v1219
          %v1343 = vsel %vm1339, %v1317, %v1220
          %v1344 = vsel %vm1338, %v1328, 0.0
          %v1345 = vsel %vm1339, %v1329, 0.0
          %v1346 = vpack.c.bf16 %v1345, %v1344
          %v1348 = vunpack.c.l.b16 %v1346
          %v1349 = vunpack.c.h.b16 %v1346
          %v1350 = vpack.c.b16 %v1348, %v1348
          %v1351 = vpack.c.b16 %v1349, %v1349
          %1352 = vrot.lane.b32.xlu0 %v1350, 32
          %v1353 = vpop.permute.xlu0 %1352
          %1354 = vrot.lane.b32.xlu0 %v1351, 32
          %v1355 = vpop.permute.xlu0 %1354
          %s1358 = scalar_lea.vmem %s301, 32 [#allocation5]
          %1359 = vst.msk [vmem:[%s1358] sm:$0xf] %vm866, %v1353
          %1360 = vst.msk [vmem:[%s1358 + $0x4] sm:$0xf] %vm866, %v1355
          %v1361 = vld [vmem:[#allocation4 + $0x50] sm:$0xff]
          %v1362 = vld [vmem:[#allocation4 + $0x58] sm:$0xff]
          %v1363 = vpack.c.bf16 %v1341, %v1340
          %1365 = vrot.lane.b32.xlu0 %v1363, 32
          %v1366 = vpop.permute.xlu0 %1365
          %v1368 = vsel %vm735, %v1366, 0
          %1370 = vmatprep.subr.bf16.mxu0 0
          %1371 = vmatpush1.bf16.msra.mxu0 %v731
          %1372 = vmatprep.subr.bf16.mxu0 0
          %1373 = vmatpush1.bf16.msra.mxu0 %v732
          %1374 = vmatprep.subr.bf16.mxu0 0
          %1375 = vmatpush1.bf16.msra.mxu0 0
          %1376 = vmatprep.subr.bf16.mxu0 0
          %1377 = vmatpush1.bf16.msra.mxu0 0
          %1378 = vmatprep.subr.bf16.mxu0 0
          %1379 = vmatpush1.bf16.msra.mxu0 0
          %1380 = vmatprep.subr.bf16.mxu0 0
          %1381 = vmatpush1.bf16.msra.mxu0 0
          %1382 = vmatprep.subr.bf16.mxu0 0
          %1383 = vmatpush1.bf16.msra.mxu0 0
          %1384 = vmatprep.subr.bf16.mxu0 0
          %1385 = vmatpush1.bf16.msra.mxu0 0
          %1386 = vmatprep.subr.bf16.mxu0 0
          %1387 = vmatpush1.bf16.msra.mxu0 0
          %1388 = vmatprep.subr.bf16.mxu0 0
          %1389 = vmatpush1.bf16.msra.mxu0 0
          %1390 = vmatprep.subr.bf16.mxu0 0
          %1391 = vmatpush1.bf16.msra.mxu0 0
          %1392 = vmatprep.subr.bf16.mxu0 0
          %1393 = vmatpush1.bf16.msra.mxu0 0
          %1394 = vmatprep.subr.bf16.mxu0 0
          %1395 = vmatpush1.bf16.msra.mxu0 0
          %1396 = vmatprep.subr.bf16.mxu0 0
          %1397 = vmatpush1.bf16.msra.mxu0 0
          %1398 = vmatprep.subr.bf16.mxu0 0
          %1399 = vmatpush1.bf16.msra.mxu0 0
          %1400 = vmatprep.subr.bf16.mxu0 0
          %1401 = vmatpush1.bf16.msra.mxu0 0
          %1402 = vmatprep.mubr.bf16.mxu0 0
          %1403 = vmatmul.mubr.bf16.gmra.mrb[0].mxu0 %v1368
          %v1404 = vpop.f32.mrb[0].mxu0
          %v1405 = vadd.f32 0.0, %v1404
          %v1406 = vpop.f32.mrb[0].mxu0
          %v1407 = vpop.f32.mrb[0].mxu0
          %v1408 = vadd.f32 0.0, %v1407
          %v1409 = vpop.f32.mrb[0].mxu0
          %1410 = vdwg.mxu0
          %v1411 = vadd.f32 %v1361, %v1405
          %v1412 = vadd.f32 %v1362, %v1408
          %v1413 = vtanh.pop %v1411
          %v1414 = vtanh.pop %v1412
          %v1415 = vmul.f32 %v1413, %v710
          %v1416 = vmul.f32 %v1414, %v710
          %v1417 = vadd.f32 %v1415, %v711
          %v1418 = vadd.f32 %v1416, %v711
          %v1419 = vmul.f32 %v1417, %v1342
          %v1420 = vmul.f32 %v1418, %v1343
          %1423 = vrot.lane.b32.xlu0 %v1417, 64
          %v1424 = vpop.permute.xlu0 %1423
          %1425 = vrot.lane.b32.xlu0 %v1418, 64
          %v1426 = vpop.permute.xlu0 %1425
          %v1429 = vmul.f32 %v1417, %v1424
          %v1430 = vmul.f32 %v1418, %v1426
          %1433 = vrot.lane.b32.xlu0 %v1429, 32
          %v1434 = vpop.permute.xlu0 %1433
          %1435 = vrot.lane.b32.xlu0 %v1430, 32
          %v1436 = vpop.permute.xlu0 %1435
          %v1439 = vadd.f32 %v1419, %v1434
          %v1440 = vadd.f32 %v1420, %v1436
          %v1441 = vtanh.pop %v1439
          %v1442 = vtanh.pop %v1440
          %1445 = vrot.lane.b32.xlu0 %v1441, 64
          %v1446 = vpop.permute.xlu0 %1445
          %1447 = vrot.lane.b32.xlu0 %v1442, 64
          %v1448 = vpop.permute.xlu0 %1447
          %v1451 = vmul.f32 %v1417, %v1446
          %v1452 = vmul.f32 %v1418, %v1448
          %v1453 = vsel %vm683, 1, 0
          %v1454 = vsel %vm684, 1, 0
          %1455 = vset.pattern.permute.xlu0 0
          %1456 = vperm.xlu0 %1455, %v1453
          %v1457 = vpop.permute.xlu0 %1456
          %1458 = vset.pattern.permute.xlu0 0
          %1459 = vperm.xlu0 %1458, %v1454
          %v1460 = vpop.permute.xlu0 %1459
          %vm1461 = vcmp.eq.s32.totalorder %v1457, 1
          %vm1462 = vcmp.eq.s32.totalorder %v1460, 1
          %v1463 = vsel %vm1461, %v1451, %v1340
          %v1464 = vsel %vm1462, %v1452, %v1341
          %v1465 = vsel %vm1461, %v1439, %v1342
          %v1466 = vsel %vm1462, %v1440, %v1343
          %v1467 = vsel %vm1461, %v1451, 0.0
          %v1468 = vsel %vm1462, %v1452, 0.0
          %v1469 = vpack.c.bf16 %v1468, %v1467
          %v1471 = vunpack.c.l.b16 %v1469
          %v1472 = vunpack.c.h.b16 %v1469
          %v1473 = vpack.c.b16 %v1471, %v1471
          %v1474 = vpack.c.b16 %v1472, %v1472
          %1475 = vrot.lane.b32.xlu0 %v1473, 32
          %v1476 = vpop.permute.xlu0 %1475
          %1477 = vrot.lane.b32.xlu0 %v1474, 32
          %v1478 = vpop.permute.xlu0 %1477
          %s1481 = scalar_lea.vmem %s301, 40 [#allocation5]
          %1482 = vst.msk [vmem:[%s1481] sm:$0xf] %vm866, %v1476
          %1483 = vst.msk [vmem:[%s1481 + $0x4] sm:$0xf] %vm866, %v1478
          %v1484 = vld [vmem:[#allocation4 + $0x60] sm:$0xff]
          %v1485 = vld [vmem:[#allocation4 + $0x68] sm:$0xff]
          %v1486 = vpack.c.bf16 %v1464, %v1463
          %1488 = vrot.lane.b32.xlu0 %v1486, 32
          %v1489 = vpop.permute.xlu0 %1488
          %v1491 = vsel %vm735, %v1489, 0
          %1493 = vmatprep.subr.bf16.mxu0 0
          %1494 = vmatpush1.bf16.msra.mxu0 %v731
          %1495 = vmatprep.subr.bf16.mxu0 0
          %1496 = vmatpush1.bf16.msra.mxu0 %v732
          %1497 = vmatprep.subr.bf16.mxu0 0
          %1498 = vmatpush1.bf16.msra.mxu0 0
          %1499 = vmatprep.subr.bf16.mxu0 0
          %1500 = vmatpush1.bf16.msra.mxu0 0
          %1501 = vmatprep.subr.bf16.mxu0 0
          %1502 = vmatpush1.bf16.msra.mxu0 0
          %1503 = vmatprep.subr.bf16.mxu0 0
          %1504 = vmatpush1.bf16.msra.mxu0 0
          %1505 = vmatprep.subr.bf16.mxu0 0
          %1506 = vmatpush1.bf16.msra.mxu0 0
          %1507 = vmatprep.subr.bf16.mxu0 0
          %1508 = vmatpush1.bf16.msra.mxu0 0
          %1509 = vmatprep.subr.bf16.mxu0 0
          %1510 = vmatpush1.bf16.msra.mxu0 0
          %1511 = vmatprep.subr.bf16.mxu0 0
          %1512 = vmatpush1.bf16.msra.mxu0 0
          %1513 = vmatprep.subr.bf16.mxu0 0
          %1514 = vmatpush1.bf16.msra.mxu0 0
          %1515 = vmatprep.subr.bf16.mxu0 0
          %1516 = vmatpush1.bf16.msra.mxu0 0
          %1517 = vmatprep.subr.bf16.mxu0 0
          %1518 = vmatpush1.bf16.msra.mxu0 0
          %1519 = vmatprep.subr.bf16.mxu0 0
          %1520 = vmatpush1.bf16.msra.mxu0 0
          %1521 = vmatprep.subr.bf16.mxu0 0
          %1522 = vmatpush1.bf16.msra.mxu0 0
          %1523 = vmatprep.subr.bf16.mxu0 0
          %1524 = vmatpush1.bf16.msra.mxu0 0
          %1525 = vmatprep.mubr.bf16.mxu0 0
          %1526 = vmatmul.mubr.bf16.gmra.mrb[0].mxu0 %v1491
          %v1527 = vpop.f32.mrb[0].mxu0
          %v1528 = vadd.f32 0.0, %v1527
          %v1529 = vpop.f32.mrb[0].mxu0
          %v1530 = vpop.f32.mrb[0].mxu0
          %v1531 = vadd.f32 0.0, %v1530
          %v1532 = vpop.f32.mrb[0].mxu0
          %1533 = vdwg.mxu0
          %v1534 = vadd.f32 %v1484, %v1528
          %v1535 = vadd.f32 %v1485, %v1531
          %v1536 = vtanh.pop %v1534
          %v1537 = vtanh.pop %v1535
          %v1538 = vmul.f32 %v1536, %v710
          %v1539 = vmul.f32 %v1537, %v710
          %v1540 = vadd.f32 %v1538, %v711
          %v1541 = vadd.f32 %v1539, %v711
          %v1542 = vmul.f32 %v1540, %v1465
          %v1543 = vmul.f32 %v1541, %v1466
          %1546 = vrot.lane.b32.xlu0 %v1540, 64
          %v1547 = vpop.permute.xlu0 %1546
          %1548 = vrot.lane.b32.xlu0 %v1541, 64
          %v1549 = vpop.permute.xlu0 %1548
          %v1552 = vmul.f32 %v1540, %v1547
          %v1553 = vmul.f32 %v1541, %v1549
          %1556 = vrot.lane.b32.xlu0 %v1552, 32
          %v1557 = vpop.permute.xlu0 %1556
          %1558 = vrot.lane.b32.xlu0 %v1553, 32
          %v1559 = vpop.permute.xlu0 %1558
          %v1562 = vadd.f32 %v1542, %v1557
          %v1563 = vadd.f32 %v1543, %v1559
          %v1564 = vtanh.pop %v1562
          %v1565 = vtanh.pop %v1563
          %1568 = vrot.lane.b32.xlu0 %v1564, 64
          %v1569 = vpop.permute.xlu0 %1568
          %1570 = vrot.lane.b32.xlu0 %v1565, 64
          %v1571 = vpop.permute.xlu0 %1570
          %v1574 = vmul.f32 %v1540, %v1569
          %v1575 = vmul.f32 %v1541, %v1571
          %v1576 = vsel %vm685, 1, 0
          %v1577 = vsel %vm686, 1, 0
          %1578 = vset.pattern.permute.xlu0 0
          %1579 = vperm.xlu0 %1578, %v1576
          %v1580 = vpop.permute.xlu0 %1579
          %1581 = vset.pattern.permute.xlu0 0
          %1582 = vperm.xlu0 %1581, %v1577
          %v1583 = vpop.permute.xlu0 %1582
          %vm1584 = vcmp.eq.s32.totalorder %v1580, 1
          %vm1585 = vcmp.eq.s32.totalorder %v1583, 1
          %v1586 = vsel %vm1584, %v1574, %v1463
          %v1587 = vsel %vm1585, %v1575, %v1464
          %v1588 = vsel %vm1584, %v1562, %v1465
          %v1589 = vsel %vm1585, %v1563, %v1466
          %v1590 = vsel %vm1584, %v1574, 0.0
          %v1591 = vsel %vm1585, %v1575, 0.0
          %v1592 = vpack.c.bf16 %v1591, %v1590
          %v1594 = vunpack.c.l.b16 %v1592
          %v1595 = vunpack.c.h.b16 %v1592
          %v1596 = vpack.c.b16 %v1594, %v1594
          %v1597 = vpack.c.b16 %v1595, %v1595
          %1598 = vrot.lane.b32.xlu0 %v1596, 32
          %v1599 = vpop.permute.xlu0 %1598
          %1600 = vrot.lane.b32.xlu0 %v1597, 32
          %v1601 = vpop.permute.xlu0 %1600
          %s1604 = scalar_lea.vmem %s301, 48 [#allocation5]
          %1605 = vst.msk [vmem:[%s1604] sm:$0xf] %vm866, %v1599
          %1606 = vst.msk [vmem:[%s1604 + $0x4] sm:$0xf] %vm866, %v1601
          %v1607 = vld [vmem:[#allocation4 + $0x70] sm:$0xff]
          %v1608 = vld [vmem:[#allocation4 + $0x78] sm:$0xff]
          %v1609 = vpack.c.bf16 %v1587, %v1586
          %1611 = vrot.lane.b32.xlu0 %v1609, 32
          %v1612 = vpop.permute.xlu0 %1611
          %v1614 = vsel %vm735, %v1612, 0
          %1616 = vmatprep.subr.bf16.mxu0 0
          %1617 = vmatpush1.bf16.msra.mxu0 %v731
          %1618 = vmatprep.subr.bf16.mxu0 0
          %1619 = vmatpush1.bf16.msra.mxu0 %v732
          %1620 = vmatprep.subr.bf16.mxu0 0
          %1621 = vmatpush1.bf16.msra.mxu0 0
          %1622 = vmatprep.subr.bf16.mxu0 0
          %1623 = vmatpush1.bf16.msra.mxu0 0
          %1624 = vmatprep.subr.bf16.mxu0 0
          %1625 = vmatpush1.bf16.msra.mxu0 0
          %1626 = vmatprep.subr.bf16.mxu0 0
          %1627 = vmatpush1.bf16.msra.mxu0 0
          %1628 = vmatprep.subr.bf16.mxu0 0
          %1629 = vmatpush1.bf16.msra.mxu0 0
          %1630 = vmatprep.subr.bf16.mxu0 0
          %1631 = vmatpush1.bf16.msra.mxu0 0
          %1632 = vmatprep.subr.bf16.mxu0 0
          %1633 = vmatpush1.bf16.msra.mxu0 0
          %1634 = vmatprep.subr.bf16.mxu0 0
          %1635 = vmatpush1.bf16.msra.mxu0 0
          %1636 = vmatprep.subr.bf16.mxu0 0
          %1637 = vmatpush1.bf16.msra.mxu0 0
          %1638 = vmatprep.subr.bf16.mxu0 0
          %1639 = vmatpush1.bf16.msra.mxu0 0
          %1640 = vmatprep.subr.bf16.mxu0 0
          %1641 = vmatpush1.bf16.msra.mxu0 0
          %1642 = vmatprep.subr.bf16.mxu0 0
          %1643 = vmatpush1.bf16.msra.mxu0 0
          %1644 = vmatprep.subr.bf16.mxu0 0
          %1645 = vmatpush1.bf16.msra.mxu0 0
          %1646 = vmatprep.subr.bf16.mxu0 0
          %1647 = vmatpush1.bf16.msra.mxu0 0
          %1648 = vmatprep.mubr.bf16.mxu0 0
          %1649 = vmatmul.mubr.bf16.gmra.mrb[0].mxu0 %v1614
          %v1650 = vpop.f32.mrb[0].mxu0
          %v1651 = vadd.f32 0.0, %v1650
          %v1652 = vpop.f32.mrb[0].mxu0
          %v1653 = vpop.f32.mrb[0].mxu0
          %v1654 = vadd.f32 0.0, %v1653
          %v1655 = vpop.f32.mrb[0].mxu0
          %1656 = vdwg.mxu0
          %v1657 = vadd.f32 %v1607, %v1651
          %v1658 = vadd.f32 %v1608, %v1654
          %v1659 = vtanh.pop %v1657
          %v1660 = vtanh.pop %v1658
          %v1661 = vmul.f32 %v1659, %v710
          %v1662 = vmul.f32 %v1660, %v710
          %v1663 = vadd.f32 %v1661, %v711
          %v1664 = vadd.f32 %v1662, %v711
          %v1665 = vmul.f32 %v1663, %v1588
          %v1666 = vmul.f32 %v1664, %v1589
          %1669 = vrot.lane.b32.xlu0 %v1663, 64
          %v1670 = vpop.permute.xlu0 %1669
          %1671 = vrot.lane.b32.xlu0 %v1664, 64
          %v1672 = vpop.permute.xlu0 %1671
          %v1675 = vmul.f32 %v1663, %v1670
          %v1676 = vmul.f32 %v1664, %v1672
          %1679 = vrot.lane.b32.xlu0 %v1675, 32
          %v1680 = vpop.permute.xlu0 %1679
          %1681 = vrot.lane.b32.xlu0 %v1676, 32
          %v1682 = vpop.permute.xlu0 %1681
          %v1685 = vadd.f32 %v1665, %v1680
          %v1686 = vadd.f32 %v1666, %v1682
          %v1687 = vtanh.pop %v1685
          %v1688 = vtanh.pop %v1686
          %1691 = vrot.lane.b32.xlu0 %v1687, 64
          %v1692 = vpop.permute.xlu0 %1691
          %1693 = vrot.lane.b32.xlu0 %v1688, 64
          %v1694 = vpop.permute.xlu0 %1693
          %v1697 = vmul.f32 %v1663, %v1692
          %v1698 = vmul.f32 %v1664, %v1694
          %v1699 = vsel %vm687, 1, 0
          %v1700 = vsel %vm688, 1, 0
          %1701 = vset.pattern.permute.xlu0 0
          %1702 = vperm.xlu0 %1701, %v1699
          %v1703 = vpop.permute.xlu0 %1702
          %1704 = vset.pattern.permute.xlu0 0
          %1705 = vperm.xlu0 %1704, %v1700
          %v1706 = vpop.permute.xlu0 %1705
          %vm1707 = vcmp.eq.s32.totalorder %v1703, 1
          %vm1708 = vcmp.eq.s32.totalorder %v1706, 1
          %v1709 = vsel %vm1707, %v1697, %v1586
          %v1710 = vsel %vm1708, %v1698, %v1587
          %v1711 = vsel %vm1707, %v1685, %v1588
          %v1712 = vsel %vm1708, %v1686, %v1589
          %v1713 = vsel %vm1707, %v1697, 0.0
          %v1714 = vsel %vm1708, %v1698, 0.0
          %v1715 = vpack.c.bf16 %v1714, %v1713
          %v1717 = vunpack.c.l.b16 %v1715
          %v1718 = vunpack.c.h.b16 %v1715
          %v1719 = vpack.c.b16 %v1717, %v1717
          %v1720 = vpack.c.b16 %v1718, %v1718
          %1721 = vrot.lane.b32.xlu0 %v1719, 32
          %v1722 = vpop.permute.xlu0 %1721
          %1723 = vrot.lane.b32.xlu0 %v1720, 32
          %v1724 = vpop.permute.xlu0 %1723
          %s1727 = scalar_lea.vmem %s301, 56 [#allocation5]
          %1728 = vst.msk [vmem:[%s1727] sm:$0xf] %vm866, %v1722
          %1729 = vst.msk [vmem:[%s1727 + $0x4] sm:$0xf] %vm866, %v1724
          %v1730 = vld [vmem:[#allocation4 + $0x80] sm:$0xff]
          %v1731 = vld [vmem:[#allocation4 + $0x88] sm:$0xff]
          %v1732 = vpack.c.bf16 %v1710, %v1709
          %1734 = vrot.lane.b32.xlu0 %v1732, 32
          %v1735 = vpop.permute.xlu0 %1734
          %v1737 = vsel %vm735, %v1735, 0
          %1739 = vmatprep.subr.bf16.mxu0 0
          %1740 = vmatpush1.bf16.msra.mxu0 %v731
          %1741 = vmatprep.subr.bf16.mxu0 0
          %1742 = vmatpush1.bf16.msra.mxu0 %v732
          %1743 = vmatprep.subr.bf16.mxu0 0
          %1744 = vmatpush1.bf16.msra.mxu0 0
          %1745 = vmatprep.subr.bf16.mxu0 0
          %1746 = vmatpush1.bf16.msra.mxu0 0
          %1747 = vmatprep.subr.bf16.mxu0 0
          %1748 = vmatpush1.bf16.msra.mxu0 0
          %1749 = vmatprep.subr.bf16.mxu0 0
          %1750 = vmatpush1.bf16.msra.mxu0 0
          %1751 = vmatprep.subr.bf16.mxu0 0
          %1752 = vmatpush1.bf16.msra.mxu0 0
          %1753 = vmatprep.subr.bf16.mxu0 0
          %1754 = vmatpush1.bf16.msra.mxu0 0
          %1755 = vmatprep.subr.bf16.mxu0 0
          %1756 = vmatpush1.bf16.msra.mxu0 0
          %1757 = vmatprep.subr.bf16.mxu0 0
          %1758 = vmatpush1.bf16.msra.mxu0 0
          %1759 = vmatprep.subr.bf16.mxu0 0
          %1760 = vmatpush1.bf16.msra.mxu0 0
          %1761 = vmatprep.subr.bf16.mxu0 0
          %1762 = vmatpush1.bf16.msra.mxu0 0
          %1763 = vmatprep.subr.bf16.mxu0 0
          %1764 = vmatpush1.bf16.msra.mxu0 0
          %1765 = vmatprep.subr.bf16.mxu0 0
          %1766 = vmatpush1.bf16.msra.mxu0 0
          %1767 = vmatprep.subr.bf16.mxu0 0
          %1768 = vmatpush1.bf16.msra.mxu0 0
          %1769 = vmatprep.subr.bf16.mxu0 0
          %1770 = vmatpush1.bf16.msra.mxu0 0
          %1771 = vmatprep.mubr.bf16.mxu0 0
          %1772 = vmatmul.mubr.bf16.gmra.mrb[0].mxu0 %v1737
          %v1773 = vpop.f32.mrb[0].mxu0
          %v1774 = vadd.f32 0.0, %v1773
          %v1775 = vpop.f32.mrb[0].mxu0
          %v1776 = vpop.f32.mrb[0].mxu0
          %v1777 = vadd.f32 0.0, %v1776
          %v1778 = vpop.f32.mrb[0].mxu0
          %1779 = vdwg.mxu0
          %v1780 = vadd.f32 %v1730, %v1774
          %v1781 = vadd.f32 %v1731, %v1777
          %v1782 = vtanh.pop %v1780
          %v1783 = vtanh.pop %v1781
          %v1784 = vmul.f32 %v1782, %v710
          %v1785 = vmul.f32 %v1783, %v710
          %v1786 = vadd.f32 %v1784, %v711
          %v1787 = vadd.f32 %v1785, %v711
          %v1788 = vmul.f32 %v1786, %v1711
          %v1789 = vmul.f32 %v1787, %v1712
          %1792 = vrot.lane.b32.xlu0 %v1786, 64
          %v1793 = vpop.permute.xlu0 %1792
          %1794 = vrot.lane.b32.xlu0 %v1787, 64
          %v1795 = vpop.permute.xlu0 %1794
          %v1798 = vmul.f32 %v1786, %v1793
          %v1799 = vmul.f32 %v1787, %v1795
          %1802 = vrot.lane.b32.xlu0 %v1798, 32
          %v1803 = vpop.permute.xlu0 %1802
          %1804 = vrot.lane.b32.xlu0 %v1799, 32
          %v1805 = vpop.permute.xlu0 %1804
          %v1808 = vadd.f32 %v1788, %v1803
          %v1809 = vadd.f32 %v1789, %v1805
          %v1810 = vtanh.pop %v1808
          %v1811 = vtanh.pop %v1809
          %1814 = vrot.lane.b32.xlu0 %v1810, 64
          %v1815 = vpop.permute.xlu0 %1814
          %1816 = vrot.lane.b32.xlu0 %v1811, 64
          %v1817 = vpop.permute.xlu0 %1816
          %v1820 = vmul.f32 %v1786, %v1815
          %v1821 = vmul.f32 %v1787, %v1817
          %v1822 = vsel %vm689, 1, 0
          %v1823 = vsel %vm690, 1, 0
          %1824 = vset.pattern.permute.xlu0 0
          %1825 = vperm.xlu0 %1824, %v1822
          %v1826 = vpop.permute.xlu0 %1825
          %1827 = vset.pattern.permute.xlu0 0
          %1828 = vperm.xlu0 %1827, %v1823
          %v1829 = vpop.permute.xlu0 %1828
          %vm1830 = vcmp.eq.s32.totalorder %v1826, 1
          %vm1831 = vcmp.eq.s32.totalorder %v1829, 1
          %v1832 = vsel %vm1830, %v1820, %v1709
          %v1833 = vsel %vm1831, %v1821, %v1710
          %v1834 = vsel %vm1830, %v1808, %v1711
          %v1835 = vsel %vm1831, %v1809, %v1712
          %v1836 = vsel %vm1830, %v1820, 0.0
          %v1837 = vsel %vm1831, %v1821, 0.0
          %v1838 = vpack.c.bf16 %v1837, %v1836
          %v1840 = vunpack.c.l.b16 %v1838
          %v1841 = vunpack.c.h.b16 %v1838
          %v1842 = vpack.c.b16 %v1840, %v1840
          %v1843 = vpack.c.b16 %v1841, %v1841
          %1844 = vrot.lane.b32.xlu0 %v1842, 32
          %v1845 = vpop.permute.xlu0 %1844
          %1846 = vrot.lane.b32.xlu0 %v1843, 32
          %v1847 = vpop.permute.xlu0 %1846
          %s1850 = scalar_lea.vmem %s301, 64 [#allocation5]
          %1851 = vst.msk [vmem:[%s1850] sm:$0xf] %vm866, %v1845
          %1852 = vst.msk [vmem:[%s1850 + $0x4] sm:$0xf] %vm866, %v1847
          %v1853 = vld [vmem:[#allocation4 + $0x90] sm:$0xff]
          %v1854 = vld [vmem:[#allocation4 + $0x98] sm:$0xff]
          %v1855 = vpack.c.bf16 %v1833, %v1832
          %1857 = vrot.lane.b32.xlu0 %v1855, 32
          %v1858 = vpop.permute.xlu0 %1857
          %v1860 = vsel %vm735, %v1858, 0
          %1862 = vmatprep.subr.bf16.mxu0 0
          %1863 = vmatpush1.bf16.msra.mxu0 %v731
          %1864 = vmatprep.subr.bf16.mxu0 0
          %1865 = vmatpush1.bf16.msra.mxu0 %v732
          %1866 = vmatprep.subr.bf16.mxu0 0
          %1867 = vmatpush1.bf16.msra.mxu0 0
          %1868 = vmatprep.subr.bf16.mxu0 0
          %1869 = vmatpush1.bf16.msra.mxu0 0
          %1870 = vmatprep.subr.bf16.mxu0 0
          %1871 = vmatpush1.bf16.msra.mxu0 0
          %1872 = vmatprep.subr.bf16.mxu0 0
          %1873 = vmatpush1.bf16.msra.mxu0 0
          %1874 = vmatprep.subr.bf16.mxu0 0
          %1875 = vmatpush1.bf16.msra.mxu0 0
          %1876 = vmatprep.subr.bf16.mxu0 0
          %1877 = vmatpush1.bf16.msra.mxu0 0
          %1878 = vmatprep.subr.bf16.mxu0 0
          %1879 = vmatpush1.bf16.msra.mxu0 0
          %1880 = vmatprep.subr.bf16.mxu0 0
          %1881 = vmatpush1.bf16.msra.mxu0 0
          %1882 = vmatprep.subr.bf16.mxu0 0
          %1883 = vmatpush1.bf16.msra.mxu0 0
          %1884 = vmatprep.subr.bf16.mxu0 0
          %1885 = vmatpush1.bf16.msra.mxu0 0
          %1886 = vmatprep.subr.bf16.mxu0 0
          %1887 = vmatpush1.bf16.msra.mxu0 0
          %1888 = vmatprep.subr.bf16.mxu0 0
          %1889 = vmatpush1.bf16.msra.mxu0 0
          %1890 = vmatprep.subr.bf16.mxu0 0
          %1891 = vmatpush1.bf16.msra.mxu0 0
          %1892 = vmatprep.subr.bf16.mxu0 0
          %1893 = vmatpush1.bf16.msra.mxu0 0
          %1894 = vmatprep.mubr.bf16.mxu0 0
          %1895 = vmatmul.mubr.bf16.gmra.mrb[0].mxu0 %v1860
          %v1896 = vpop.f32.mrb[0].mxu0
          %v1897 = vadd.f32 0.0, %v1896
          %v1898 = vpop.f32.mrb[0].mxu0
          %v1899 = vpop.f32.mrb[0].mxu0
          %v1900 = vadd.f32 0.0, %v1899
          %v1901 = vpop.f32.mrb[0].mxu0
          %1902 = vdwg.mxu0
          %v1903 = vadd.f32 %v1853, %v1897
          %v1904 = vadd.f32 %v1854, %v1900
          %v1905 = vtanh.pop %v1903
          %v1906 = vtanh.pop %v1904
          %v1907 = vmul.f32 %v1905, %v710
          %v1908 = vmul.f32 %v1906, %v710
          %v1909 = vadd.f32 %v1907, %v711
          %v1910 = vadd.f32 %v1908, %v711
          %v1911 = vmul.f32 %v1909, %v1834
          %v1912 = vmul.f32 %v1910, %v1835
          %1915 = vrot.lane.b32.xlu0 %v1909, 64
          %v1916 = vpop.permute.xlu0 %1915
          %1917 = vrot.lane.b32.xlu0 %v1910, 64
          %v1918 = vpop.permute.xlu0 %1917
          %v1921 = vmul.f32 %v1909, %v1916
          %v1922 = vmul.f32 %v1910, %v1918
          %1925 = vrot.lane.b32.xlu0 %v1921, 32
          %v1926 = vpop.permute.xlu0 %1925
          %1927 = vrot.lane.b32.xlu0 %v1922, 32
          %v1928 = vpop.permute.xlu0 %1927
          %v1931 = vadd.f32 %v1911, %v1926
          %v1932 = vadd.f32 %v1912, %v1928
          %v1933 = vtanh.pop %v1931
          %v1934 = vtanh.pop %v1932
          %1937 = vrot.lane.b32.xlu0 %v1933, 64
          %v1938 = vpop.permute.xlu0 %1937
          %1939 = vrot.lane.b32.xlu0 %v1934, 64
          %v1940 = vpop.permute.xlu0 %1939
          %v1943 = vmul.f32 %v1909, %v1938
          %v1944 = vmul.f32 %v1910, %v1940
          %v1945 = vsel %vm691, 1, 0
          %v1946 = vsel %vm692, 1, 0
          %1947 = vset.pattern.permute.xlu0 0
          %1948 = vperm.xlu0 %1947, %v1945
          %v1949 = vpop.permute.xlu0 %1948
          %1950 = vset.pattern.permute.xlu0 0
          %1951 = vperm.xlu0 %1950, %v1946
          %v1952 = vpop.permute.xlu0 %1951
          %vm1953 = vcmp.eq.s32.totalorder %v1949, 1
          %vm1954 = vcmp.eq.s32.totalorder %v1952, 1
          %v1955 = vsel %vm1953, %v1943, %v1832
          %v1956 = vsel %vm1954, %v1944, %v1833
          %v1957 = vsel %vm1953, %v1931, %v1834
          %v1958 = vsel %vm1954, %v1932, %v1835
          %v1959 = vsel %vm1953, %v1943, 0.0
          %v1960 = vsel %vm1954, %v1944, 0.0
          %v1961 = vpack.c.bf16 %v1960, %v1959
          %v1963 = vunpack.c.l.b16 %v1961
          %v1964 = vunpack.c.h.b16 %v1961
          %v1965 = vpack.c.b16 %v1963, %v1963
          %v1966 = vpack.c.b16 %v1964, %v1964
          %1967 = vrot.lane.b32.xlu0 %v1965, 32
          %v1968 = vpop.permute.xlu0 %1967
          %1969 = vrot.lane.b32.xlu0 %v1966, 32
          %v1970 = vpop.permute.xlu0 %1969
          %s1973 = scalar_lea.vmem %s301, 72 [#allocation5]
          %1974 = vst.msk [vmem:[%s1973] sm:$0xf] %vm866, %v1968
          %1975 = vst.msk [vmem:[%s1973 + $0x4] sm:$0xf] %vm866, %v1970
          %v1976 = vld [vmem:[#allocation4 + $0xa0] sm:$0xff]
          %v1977 = vld [vmem:[#allocation4 + $0xa8] sm:$0xff]
          %v1978 = vpack.c.bf16 %v1956, %v1955
          %1980 = vrot.lane.b32.xlu0 %v1978, 32
          %v1981 = vpop.permute.xlu0 %1980
          %v1983 = vsel %vm735, %v1981, 0
          %1985 = vmatprep.subr.bf16.mxu0 0
          %1986 = vmatpush1.bf16.msra.mxu0 %v731
          %1987 = vmatprep.subr.bf16.mxu0 0
          %1988 = vmatpush1.bf16.msra.mxu0 %v732
          %1989 = vmatprep.subr.bf16.mxu0 0
          %1990 = vmatpush1.bf16.msra.mxu0 0
          %1991 = vmatprep.subr.bf16.mxu0 0
          %1992 = vmatpush1.bf16.msra.mxu0 0
          %1993 = vmatprep.subr.bf16.mxu0 0
          %1994 = vmatpush1.bf16.msra.mxu0 0
          %1995 = vmatprep.subr.bf16.mxu0 0
          %1996 = vmatpush1.bf16.msra.mxu0 0
          %1997 = vmatprep.subr.bf16.mxu0 0
          %1998 = vmatpush1.bf16.msra.mxu0 0
          %1999 = vmatprep.subr.bf16.mxu0 0
          %2000 = vmatpush1.bf16.msra.mxu0 0
          %2001 = vmatprep.subr.bf16.mxu0 0
          %2002 = vmatpush1.bf16.msra.mxu0 0
          %2003 = vmatprep.subr.bf16.mxu0 0
          %2004 = vmatpush1.bf16.msra.mxu0 0
          %2005 = vmatprep.subr.bf16.mxu0 0
          %2006 = vmatpush1.bf16.msra.mxu0 0
          %2007 = vmatprep.subr.bf16.mxu0 0
          %2008 = vmatpush1.bf16.msra.mxu0 0
          %2009 = vmatprep.subr.bf16.mxu0 0
          %2010 = vmatpush1.bf16.msra.mxu0 0
          %2011 = vmatprep.subr.bf16.mxu0 0
          %2012 = vmatpush1.bf16.msra.mxu0 0
          %2013 = vmatprep.subr.bf16.mxu0 0
          %2014 = vmatpush1.bf16.msra.mxu0 0
          %2015 = vmatprep.subr.bf16.mxu0 0
          %2016 = vmatpush1.bf16.msra.mxu0 0
          %2017 = vmatprep.mubr.bf16.mxu0 0
          %2018 = vmatmul.mubr.bf16.gmra.mrb[0].mxu0 %v1983
          %v2019 = vpop.f32.mrb[0].mxu0
          %v2020 = vadd.f32 0.0, %v2019
          %v2021 = vpop.f32.mrb[0].mxu0
          %v2022 = vpop.f32.mrb[0].mxu0
          %v2023 = vadd.f32 0.0, %v2022
          %v2024 = vpop.f32.mrb[0].mxu0
          %2025 = vdwg.mxu0
          %v2026 = vadd.f32 %v1976, %v2020
          %v2027 = vadd.f32 %v1977, %v2023
          %v2028 = vtanh.pop %v2026
          %v2029 = vtanh.pop %v2027
          %v2030 = vmul.f32 %v2028, %v710
          %v2031 = vmul.f32 %v2029, %v710
          %v2032 = vadd.f32 %v2030, %v711
          %v2033 = vadd.f32 %v2031, %v711
          %v2034 = vmul.f32 %v2032, %v1957
          %v2035 = vmul.f32 %v2033, %v1958
          %2038 = vrot.lane.b32.xlu0 %v2032, 64
          %v2039 = vpop.permute.xlu0 %2038
          %2040 = vrot.lane.b32.xlu0 %v2033, 64
          %v2041 = vpop.permute.xlu0 %2040
          %v2044 = vmul.f32 %v2032, %v2039
          %v2045 = vmul.f32 %v2033, %v2041
          %2048 = vrot.lane.b32.xlu0 %v2044, 32
          %v2049 = vpop.permute.xlu0 %2048
          %2050 = vrot.lane.b32.xlu0 %v2045, 32
          %v2051 = vpop.permute.xlu0 %2050
          %v2054 = vadd.f32 %v2034, %v2049
          %v2055 = vadd.f32 %v2035, %v2051
          %v2056 = vtanh.pop %v2054
          %v2057 = vtanh.pop %v2055
          %2060 = vrot.lane.b32.xlu0 %v2056, 64
          %v2061 = vpop.permute.xlu0 %2060
          %2062 = vrot.lane.b32.xlu0 %v2057, 64
          %v2063 = vpop.permute.xlu0 %2062
          %v2066 = vmul.f32 %v2032, %v2061
          %v2067 = vmul.f32 %v2033, %v2063
          %v2068 = vsel %vm693, 1, 0
          %v2069 = vsel %vm694, 1, 0
          %2070 = vset.pattern.permute.xlu0 0
          %2071 = vperm.xlu0 %2070, %v2068
          %v2072 = vpop.permute.xlu0 %2071
          %2073 = vset.pattern.permute.xlu0 0
          %2074 = vperm.xlu0 %2073, %v2069
          %v2075 = vpop.permute.xlu0 %2074
          %vm2076 = vcmp.eq.s32.totalorder %v2072, 1
          %vm2077 = vcmp.eq.s32.totalorder %v2075, 1
          %v2078 = vsel %vm2076, %v2066, %v1955
          %v2079 = vsel %vm2077, %v2067, %v1956
          %v2080 = vsel %vm2076, %v2054, %v1957
          %v2081 = vsel %vm2077, %v2055, %v1958
          %v2082 = vsel %vm2076, %v2066, 0.0
          %v2083 = vsel %vm2077, %v2067, 0.0
          %v2084 = vpack.c.bf16 %v2083, %v2082
          %v2086 = vunpack.c.l.b16 %v2084
          %v2087 = vunpack.c.h.b16 %v2084
          %v2088 = vpack.c.b16 %v2086, %v2086
          %v2089 = vpack.c.b16 %v2087, %v2087
          %2090 = vrot.lane.b32.xlu0 %v2088, 32
          %v2091 = vpop.permute.xlu0 %2090
          %2092 = vrot.lane.b32.xlu0 %v2089, 32
          %v2093 = vpop.permute.xlu0 %2092
          %s2096 = scalar_lea.vmem %s301, 80 [#allocation5]
          %2097 = vst.msk [vmem:[%s2096] sm:$0xf] %vm866, %v2091
          %2098 = vst.msk [vmem:[%s2096 + $0x4] sm:$0xf] %vm866, %v2093
          %v2099 = vld [vmem:[#allocation4 + $0xb0] sm:$0xff]
          %v2100 = vld [vmem:[#allocation4 + $0xb8] sm:$0xff]
          %v2101 = vpack.c.bf16 %v2079, %v2078
          %2103 = vrot.lane.b32.xlu0 %v2101, 32
          %v2104 = vpop.permute.xlu0 %2103
          %v2106 = vsel %vm735, %v2104, 0
          %2108 = vmatprep.subr.bf16.mxu0 0
          %2109 = vmatpush1.bf16.msra.mxu0 %v731
          %2110 = vmatprep.subr.bf16.mxu0 0
          %2111 = vmatpush1.bf16.msra.mxu0 %v732
          %2112 = vmatprep.subr.bf16.mxu0 0
          %2113 = vmatpush1.bf16.msra.mxu0 0
          %2114 = vmatprep.subr.bf16.mxu0 0
          %2115 = vmatpush1.bf16.msra.mxu0 0
          %2116 = vmatprep.subr.bf16.mxu0 0
          %2117 = vmatpush1.bf16.msra.mxu0 0
          %2118 = vmatprep.subr.bf16.mxu0 0
          %2119 = vmatpush1.bf16.msra.mxu0 0
          %2120 = vmatprep.subr.bf16.mxu0 0
          %2121 = vmatpush1.bf16.msra.mxu0 0
          %2122 = vmatprep.subr.bf16.mxu0 0
          %2123 = vmatpush1.bf16.msra.mxu0 0
          %2124 = vmatprep.subr.bf16.mxu0 0
          %2125 = vmatpush1.bf16.msra.mxu0 0
          %2126 = vmatprep.subr.bf16.mxu0 0
          %2127 = vmatpush1.bf16.msra.mxu0 0
          %2128 = vmatprep.subr.bf16.mxu0 0
          %2129 = vmatpush1.bf16.msra.mxu0 0
          %2130 = vmatprep.subr.bf16.mxu0 0
          %2131 = vmatpush1.bf16.msra.mxu0 0
          %2132 = vmatprep.subr.bf16.mxu0 0
          %2133 = vmatpush1.bf16.msra.mxu0 0
          %2134 = vmatprep.subr.bf16.mxu0 0
          %2135 = vmatpush1.bf16.msra.mxu0 0
          %2136 = vmatprep.subr.bf16.mxu0 0
          %2137 = vmatpush1.bf16.msra.mxu0 0
          %2138 = vmatprep.subr.bf16.mxu0 0
          %2139 = vmatpush1.bf16.msra.mxu0 0
          %2140 = vmatprep.mubr.bf16.mxu0 0
          %2141 = vmatmul.mubr.bf16.gmra.mrb[0].mxu0 %v2106
          %v2142 = vpop.f32.mrb[0].mxu0
          %v2143 = vadd.f32 0.0, %v2142
          %v2144 = vpop.f32.mrb[0].mxu0
          %v2145 = vpop.f32.mrb[0].mxu0
          %v2146 = vadd.f32 0.0, %v2145
          %v2147 = vpop.f32.mrb[0].mxu0
          %2148 = vdwg.mxu0
          %v2149 = vadd.f32 %v2099, %v2143
          %v2150 = vadd.f32 %v2100, %v2146
          %v2151 = vtanh.pop %v2149
          %v2152 = vtanh.pop %v2150
          %v2153 = vmul.f32 %v2151, %v710
          %v2154 = vmul.f32 %v2152, %v710
          %v2155 = vadd.f32 %v2153, %v711
          %v2156 = vadd.f32 %v2154, %v711
          %v2157 = vmul.f32 %v2155, %v2080
          %v2158 = vmul.f32 %v2156, %v2081
          %2161 = vrot.lane.b32.xlu0 %v2155, 64
          %v2162 = vpop.permute.xlu0 %2161
          %2163 = vrot.lane.b32.xlu0 %v2156, 64
          %v2164 = vpop.permute.xlu0 %2163
          %v2167 = vmul.f32 %v2155, %v2162
          %v2168 = vmul.f32 %v2156, %v2164
          %2171 = vrot.lane.b32.xlu0 %v2167, 32
          %v2172 = vpop.permute.xlu0 %2171
          %2173 = vrot.lane.b32.xlu0 %v2168, 32
          %v2174 = vpop.permute.xlu0 %2173
          %v2177 = vadd.f32 %v2157, %v2172
          %v2178 = vadd.f32 %v2158, %v2174
          %v2179 = vtanh.pop %v2177
          %v2180 = vtanh.pop %v2178
          %2183 = vrot.lane.b32.xlu0 %v2179, 64
          %v2184 = vpop.permute.xlu0 %2183
          %2185 = vrot.lane.b32.xlu0 %v2180, 64
          %v2186 = vpop.permute.xlu0 %2185
          %v2189 = vmul.f32 %v2155, %v2184
          %v2190 = vmul.f32 %v2156, %v2186
          %v2191 = vsel %vm695, 1, 0
          %v2192 = vsel %vm696, 1, 0
          %2193 = vset.pattern.permute.xlu0 0
          %2194 = vperm.xlu0 %2193, %v2191
          %v2195 = vpop.permute.xlu0 %2194
          %2196 = vset.pattern.permute.xlu0 0
          %2197 = vperm.xlu0 %2196, %v2192
          %v2198 = vpop.permute.xlu0 %2197
          %vm2199 = vcmp.eq.s32.totalorder %v2195, 1
          %vm2200 = vcmp.eq.s32.totalorder %v2198, 1
          %v2201 = vsel %vm2199, %v2189, %v2078
          %v2202 = vsel %vm2200, %v2190, %v2079
          %v2203 = vsel %vm2199, %v2177, %v2080
          %v2204 = vsel %vm2200, %v2178, %v2081
          %v2205 = vsel %vm2199, %v2189, 0.0
          %v2206 = vsel %vm2200, %v2190, 0.0
          %v2207 = vpack.c.bf16 %v2206, %v2205
          %v2209 = vunpack.c.l.b16 %v2207
          %v2210 = vunpack.c.h.b16 %v2207
          %v2211 = vpack.c.b16 %v2209, %v2209
          %v2212 = vpack.c.b16 %v2210, %v2210
          %2213 = vrot.lane.b32.xlu0 %v2211, 32
          %v2214 = vpop.permute.xlu0 %2213
          %2215 = vrot.lane.b32.xlu0 %v2212, 32
          %v2216 = vpop.permute.xlu0 %2215
          %s2219 = scalar_lea.vmem %s301, 88 [#allocation5]
          %2220 = vst.msk [vmem:[%s2219] sm:$0xf] %vm866, %v2214
          %2221 = vst.msk [vmem:[%s2219 + $0x4] sm:$0xf] %vm866, %v2216
          %v2222 = vld [vmem:[#allocation4 + $0xc0] sm:$0xff]
          %v2223 = vld [vmem:[#allocation4 + $0xc8] sm:$0xff]
          %v2224 = vpack.c.bf16 %v2202, %v2201
          %2226 = vrot.lane.b32.xlu0 %v2224, 32
          %v2227 = vpop.permute.xlu0 %2226
          %v2229 = vsel %vm735, %v2227, 0
          %2231 = vmatprep.subr.bf16.mxu0 0
          %2232 = vmatpush1.bf16.msra.mxu0 %v731
          %2233 = vmatprep.subr.bf16.mxu0 0
          %2234 = vmatpush1.bf16.msra.mxu0 %v732
          %2235 = vmatprep.subr.bf16.mxu0 0
          %2236 = vmatpush1.bf16.msra.mxu0 0
          %2237 = vmatprep.subr.bf16.mxu0 0
          %2238 = vmatpush1.bf16.msra.mxu0 0
          %2239 = vmatprep.subr.bf16.mxu0 0
          %2240 = vmatpush1.bf16.msra.mxu0 0
          %2241 = vmatprep.subr.bf16.mxu0 0
          %2242 = vmatpush1.bf16.msra.mxu0 0
          %2243 = vmatprep.subr.bf16.mxu0 0
          %2244 = vmatpush1.bf16.msra.mxu0 0
          %2245 = vmatprep.subr.bf16.mxu0 0
          %2246 = vmatpush1.bf16.msra.mxu0 0
          %2247 = vmatprep.subr.bf16.mxu0 0
          %2248 = vmatpush1.bf16.msra.mxu0 0
          %2249 = vmatprep.subr.bf16.mxu0 0
          %2250 = vmatpush1.bf16.msra.mxu0 0
          %2251 = vmatprep.subr.bf16.mxu0 0
          %2252 = vmatpush1.bf16.msra.mxu0 0
          %2253 = vmatprep.subr.bf16.mxu0 0
          %2254 = vmatpush1.bf16.msra.mxu0 0
          %2255 = vmatprep.subr.bf16.mxu0 0
          %2256 = vmatpush1.bf16.msra.mxu0 0
          %2257 = vmatprep.subr.bf16.mxu0 0
          %2258 = vmatpush1.bf16.msra.mxu0 0
          %2259 = vmatprep.subr.bf16.mxu0 0
          %2260 = vmatpush1.bf16.msra.mxu0 0
          %2261 = vmatprep.subr.bf16.mxu0 0
          %2262 = vmatpush1.bf16.msra.mxu0 0
          %2263 = vmatprep.mubr.bf16.mxu0 0
          %2264 = vmatmul.mubr.bf16.gmra.mrb[0].mxu0 %v2229
          %v2265 = vpop.f32.mrb[0].mxu0
          %v2266 = vadd.f32 0.0, %v2265
          %v2267 = vpop.f32.mrb[0].mxu0
          %v2268 = vpop.f32.mrb[0].mxu0
          %v2269 = vadd.f32 0.0, %v2268
          %v2270 = vpop.f32.mrb[0].mxu0
          %2271 = vdwg.mxu0
          %v2272 = vadd.f32 %v2222, %v2266
          %v2273 = vadd.f32 %v2223, %v2269
          %v2274 = vtanh.pop %v2272
          %v2275 = vtanh.pop %v2273
          %v2276 = vmul.f32 %v2274, %v710
          %v2277 = vmul.f32 %v2275, %v710
          %v2278 = vadd.f32 %v2276, %v711
          %v2279 = vadd.f32 %v2277, %v711
          %v2280 = vmul.f32 %v2278, %v2203
          %v2281 = vmul.f32 %v2279, %v2204
          %2284 = vrot.lane.b32.xlu0 %v2278, 64
          %v2285 = vpop.permute.xlu0 %2284
          %2286 = vrot.lane.b32.xlu0 %v2279, 64
          %v2287 = vpop.permute.xlu0 %2286
          %v2290 = vmul.f32 %v2278, %v2285
          %v2291 = vmul.f32 %v2279, %v2287
          %2294 = vrot.lane.b32.xlu0 %v2290, 32
          %v2295 = vpop.permute.xlu0 %2294
          %2296 = vrot.lane.b32.xlu0 %v2291, 32
          %v2297 = vpop.permute.xlu0 %2296
          %v2300 = vadd.f32 %v2280, %v2295
          %v2301 = vadd.f32 %v2281, %v2297
          %v2302 = vtanh.pop %v2300
          %v2303 = vtanh.pop %v2301
          %2306 = vrot.lane.b32.xlu0 %v2302, 64
          %v2307 = vpop.permute.xlu0 %2306
          %2308 = vrot.lane.b32.xlu0 %v2303, 64
          %v2309 = vpop.permute.xlu0 %2308
          %v2312 = vmul.f32 %v2278, %v2307
          %v2313 = vmul.f32 %v2279, %v2309
          %v2314 = vsel %vm697, 1, 0
          %v2315 = vsel %vm698, 1, 0
          %2316 = vset.pattern.permute.xlu0 0
          %2317 = vperm.xlu0 %2316, %v2314
          %v2318 = vpop.permute.xlu0 %2317
          %2319 = vset.pattern.permute.xlu0 0
          %2320 = vperm.xlu0 %2319, %v2315
          %v2321 = vpop.permute.xlu0 %2320
          %vm2322 = vcmp.eq.s32.totalorder %v2318, 1
          %vm2323 = vcmp.eq.s32.totalorder %v2321, 1
          %v2324 = vsel %vm2322, %v2312, %v2201
          %v2325 = vsel %vm2323, %v2313, %v2202
          %v2326 = vsel %vm2322, %v2300, %v2203
          %v2327 = vsel %vm2323, %v2301, %v2204
          %v2328 = vsel %vm2322, %v2312, 0.0
          %v2329 = vsel %vm2323, %v2313, 0.0
          %v2330 = vpack.c.bf16 %v2329, %v2328
          %v2332 = vunpack.c.l.b16 %v2330
          %v2333 = vunpack.c.h.b16 %v2330
          %v2334 = vpack.c.b16 %v2332, %v2332
          %v2335 = vpack.c.b16 %v2333, %v2333
          %2336 = vrot.lane.b32.xlu0 %v2334, 32
          %v2337 = vpop.permute.xlu0 %2336
          %2338 = vrot.lane.b32.xlu0 %v2335, 32
          %v2339 = vpop.permute.xlu0 %2338
          %s2342 = scalar_lea.vmem %s301, 96 [#allocation5]
          %2343 = vst.msk [vmem:[%s2342] sm:$0xf] %vm866, %v2337
          %2344 = vst.msk [vmem:[%s2342 + $0x4] sm:$0xf] %vm866, %v2339
          %v2345 = vld [vmem:[#allocation4 + $0xd0] sm:$0xff]
          %v2346 = vld [vmem:[#allocation4 + $0xd8] sm:$0xff]
          %v2347 = vpack.c.bf16 %v2325, %v2324
          %2349 = vrot.lane.b32.xlu0 %v2347, 32
          %v2350 = vpop.permute.xlu0 %2349
          %v2352 = vsel %vm735, %v2350, 0
          %2354 = vmatprep.subr.bf16.mxu0 0
          %2355 = vmatpush1.bf16.msra.mxu0 %v731
          %2356 = vmatprep.subr.bf16.mxu0 0
          %2357 = vmatpush1.bf16.msra.mxu0 %v732
          %2358 = vmatprep.subr.bf16.mxu0 0
          %2359 = vmatpush1.bf16.msra.mxu0 0
          %2360 = vmatprep.subr.bf16.mxu0 0
          %2361 = vmatpush1.bf16.msra.mxu0 0
          %2362 = vmatprep.subr.bf16.mxu0 0
          %2363 = vmatpush1.bf16.msra.mxu0 0
          %2364 = vmatprep.subr.bf16.mxu0 0
          %2365 = vmatpush1.bf16.msra.mxu0 0
          %2366 = vmatprep.subr.bf16.mxu0 0
          %2367 = vmatpush1.bf16.msra.mxu0 0
          %2368 = vmatprep.subr.bf16.mxu0 0
          %2369 = vmatpush1.bf16.msra.mxu0 0
          %2370 = vmatprep.subr.bf16.mxu0 0
          %2371 = vmatpush1.bf16.msra.mxu0 0
          %2372 = vmatprep.subr.bf16.mxu0 0
          %2373 = vmatpush1.bf16.msra.mxu0 0
          %2374 = vmatprep.subr.bf16.mxu0 0
          %2375 = vmatpush1.bf16.msra.mxu0 0
          %2376 = vmatprep.subr.bf16.mxu0 0
          %2377 = vmatpush1.bf16.msra.mxu0 0
          %2378 = vmatprep.subr.bf16.mxu0 0
          %2379 = vmatpush1.bf16.msra.mxu0 0
          %2380 = vmatprep.subr.bf16.mxu0 0
          %2381 = vmatpush1.bf16.msra.mxu0 0
          %2382 = vmatprep.subr.bf16.mxu0 0
          %2383 = vmatpush1.bf16.msra.mxu0 0
          %2384 = vmatprep.subr.bf16.mxu0 0
          %2385 = vmatpush1.bf16.msra.mxu0 0
          %2386 = vmatprep.mubr.bf16.mxu0 0
          %2387 = vmatmul.mubr.bf16.gmra.mrb[0].mxu0 %v2352
          %v2388 = vpop.f32.mrb[0].mxu0
          %v2389 = vadd.f32 0.0, %v2388
          %v2390 = vpop.f32.mrb[0].mxu0
          %v2391 = vpop.f32.mrb[0].mxu0
          %v2392 = vadd.f32 0.0, %v2391
          %v2393 = vpop.f32.mrb[0].mxu0
          %2394 = vdwg.mxu0
          %v2395 = vadd.f32 %v2345, %v2389
          %v2396 = vadd.f32 %v2346, %v2392
          %v2397 = vtanh.pop %v2395
          %v2398 = vtanh.pop %v2396
          %v2399 = vmul.f32 %v2397, %v710
          %v2400 = vmul.f32 %v2398, %v710
          %v2401 = vadd.f32 %v2399, %v711
          %v2402 = vadd.f32 %v2400, %v711
          %v2403 = vmul.f32 %v2401, %v2326
          %v2404 = vmul.f32 %v2402, %v2327
          %2407 = vrot.lane.b32.xlu0 %v2401, 64
          %v2408 = vpop.permute.xlu0 %2407
          %2409 = vrot.lane.b32.xlu0 %v2402, 64
          %v2410 = vpop.permute.xlu0 %2409
          %v2413 = vmul.f32 %v2401, %v2408
          %v2414 = vmul.f32 %v2402, %v2410
          %2417 = vrot.lane.b32.xlu0 %v2413, 32
          %v2418 = vpop.permute.xlu0 %2417
          %2419 = vrot.lane.b32.xlu0 %v2414, 32
          %v2420 = vpop.permute.xlu0 %2419
          %v2423 = vadd.f32 %v2403, %v2418
          %v2424 = vadd.f32 %v2404, %v2420
          %v2425 = vtanh.pop %v2423
          %v2426 = vtanh.pop %v2424
          %2429 = vrot.lane.b32.xlu0 %v2425, 64
          %v2430 = vpop.permute.xlu0 %2429
          %2431 = vrot.lane.b32.xlu0 %v2426, 64
          %v2432 = vpop.permute.xlu0 %2431
          %v2435 = vmul.f32 %v2401, %v2430
          %v2436 = vmul.f32 %v2402, %v2432
          %v2437 = vsel %vm699, 1, 0
          %v2438 = vsel %vm700, 1, 0
          %2439 = vset.pattern.permute.xlu0 0
          %2440 = vperm.xlu0 %2439, %v2437
          %v2441 = vpop.permute.xlu0 %2440
          %2442 = vset.pattern.permute.xlu0 0
          %2443 = vperm.xlu0 %2442, %v2438
          %v2444 = vpop.permute.xlu0 %2443
          %vm2445 = vcmp.eq.s32.totalorder %v2441, 1
          %vm2446 = vcmp.eq.s32.totalorder %v2444, 1
          %v2447 = vsel %vm2445, %v2435, %v2324
          %v2448 = vsel %vm2446, %v2436, %v2325
          %v2449 = vsel %vm2445, %v2423, %v2326
          %v2450 = vsel %vm2446, %v2424, %v2327
          %v2451 = vsel %vm2445, %v2435, 0.0
          %v2452 = vsel %vm2446, %v2436, 0.0
          %v2453 = vpack.c.bf16 %v2452, %v2451
          %v2455 = vunpack.c.l.b16 %v2453
          %v2456 = vunpack.c.h.b16 %v2453
          %v2457 = vpack.c.b16 %v2455, %v2455
          %v2458 = vpack.c.b16 %v2456, %v2456
          %2459 = vrot.lane.b32.xlu0 %v2457, 32
          %v2460 = vpop.permute.xlu0 %2459
          %2461 = vrot.lane.b32.xlu0 %v2458, 32
          %v2462 = vpop.permute.xlu0 %2461
          %s2465 = scalar_lea.vmem %s301, 104 [#allocation5]
          %2466 = vst.msk [vmem:[%s2465] sm:$0xf] %vm866, %v2460
          %2467 = vst.msk [vmem:[%s2465 + $0x4] sm:$0xf] %vm866, %v2462
          %v2468 = vld [vmem:[#allocation4 + $0xe0] sm:$0xff]
          %v2469 = vld [vmem:[#allocation4 + $0xe8] sm:$0xff]
          %v2470 = vpack.c.bf16 %v2448, %v2447
          %2472 = vrot.lane.b32.xlu0 %v2470, 32
          %v2473 = vpop.permute.xlu0 %2472
          %v2475 = vsel %vm735, %v2473, 0
          %2477 = vmatprep.subr.bf16.mxu0 0
          %2478 = vmatpush1.bf16.msra.mxu0 %v731
          %2479 = vmatprep.subr.bf16.mxu0 0
          %2480 = vmatpush1.bf16.msra.mxu0 %v732
          %2481 = vmatprep.subr.bf16.mxu0 0
          %2482 = vmatpush1.bf16.msra.mxu0 0
          %2483 = vmatprep.subr.bf16.mxu0 0
          %2484 = vmatpush1.bf16.msra.mxu0 0
          %2485 = vmatprep.subr.bf16.mxu0 0
          %2486 = vmatpush1.bf16.msra.mxu0 0
          %2487 = vmatprep.subr.bf16.mxu0 0
          %2488 = vmatpush1.bf16.msra.mxu0 0
          %2489 = vmatprep.subr.bf16.mxu0 0
          %2490 = vmatpush1.bf16.msra.mxu0 0
          %2491 = vmatprep.subr.bf16.mxu0 0
          %2492 = vmatpush1.bf16.msra.mxu0 0
          %2493 = vmatprep.subr.bf16.mxu0 0
          %2494 = vmatpush1.bf16.msra.mxu0 0
          %2495 = vmatprep.subr.bf16.mxu0 0
          %2496 = vmatpush1.bf16.msra.mxu0 0
          %2497 = vmatprep.subr.bf16.mxu0 0
          %2498 = vmatpush1.bf16.msra.mxu0 0
          %2499 = vmatprep.subr.bf16.mxu0 0
          %2500 = vmatpush1.bf16.msra.mxu0 0
          %2501 = vmatprep.subr.bf16.mxu0 0
          %2502 = vmatpush1.bf16.msra.mxu0 0
          %2503 = vmatprep.subr.bf16.mxu0 0
          %2504 = vmatpush1.bf16.msra.mxu0 0
          %2505 = vmatprep.subr.bf16.mxu0 0
          %2506 = vmatpush1.bf16.msra.mxu0 0
          %2507 = vmatprep.subr.bf16.mxu0 0
          %2508 = vmatpush1.bf16.msra.mxu0 0
          %2509 = vmatprep.mubr.bf16.mxu0 0
          %2510 = vmatmul.mubr.bf16.gmra.mrb[0].mxu0 %v2475
          %v2511 = vpop.f32.mrb[0].mxu0
          %v2512 = vadd.f32 0.0, %v2511
          %v2513 = vpop.f32.mrb[0].mxu0
          %v2514 = vpop.f32.mrb[0].mxu0
          %v2515 = vadd.f32 0.0, %v2514
          %v2516 = vpop.f32.mrb[0].mxu0
          %2517 = vdwg.mxu0
          %v2518 = vadd.f32 %v2468, %v2512
          %v2519 = vadd.f32 %v2469, %v2515
          %v2520 = vtanh.pop %v2518
          %v2521 = vtanh.pop %v2519
          %v2522 = vmul.f32 %v2520, %v710
          %v2523 = vmul.f32 %v2521, %v710
          %v2524 = vadd.f32 %v2522, %v711
          %v2525 = vadd.f32 %v2523, %v711
          %v2526 = vmul.f32 %v2524, %v2449
          %v2527 = vmul.f32 %v2525, %v2450
          %2530 = vrot.lane.b32.xlu0 %v2524, 64
          %v2531 = vpop.permute.xlu0 %2530
          %2532 = vrot.lane.b32.xlu0 %v2525, 64
          %v2533 = vpop.permute.xlu0 %2532
          %v2536 = vmul.f32 %v2524, %v2531
          %v2537 = vmul.f32 %v2525, %v2533
          %2540 = vrot.lane.b32.xlu0 %v2536, 32
          %v2541 = vpop.permute.xlu0 %2540
          %2542 = vrot.lane.b32.xlu0 %v2537, 32
          %v2543 = vpop.permute.xlu0 %2542
          %v2546 = vadd.f32 %v2526, %v2541
          %v2547 = vadd.f32 %v2527, %v2543
          %v2548 = vtanh.pop %v2546
          %v2549 = vtanh.pop %v2547
          %2552 = vrot.lane.b32.xlu0 %v2548, 64
          %v2553 = vpop.permute.xlu0 %2552
          %2554 = vrot.lane.b32.xlu0 %v2549, 64
          %v2555 = vpop.permute.xlu0 %2554
          %v2558 = vmul.f32 %v2524, %v2553
          %v2559 = vmul.f32 %v2525, %v2555
          %v2560 = vsel %vm701, 1, 0
          %v2561 = vsel %vm702, 1, 0
          %2562 = vset.pattern.permute.xlu0 0
          %2563 = vperm.xlu0 %2562, %v2560
          %v2564 = vpop.permute.xlu0 %2563
          %2565 = vset.pattern.permute.xlu0 0
          %2566 = vperm.xlu0 %2565, %v2561
          %v2567 = vpop.permute.xlu0 %2566
          %vm2568 = vcmp.eq.s32.totalorder %v2564, 1
          %vm2569 = vcmp.eq.s32.totalorder %v2567, 1
          %v2570 = vsel %vm2568, %v2558, %v2447
          %v2571 = vsel %vm2569, %v2559, %v2448
          %v2572 = vsel %vm2568, %v2546, %v2449
          %v2573 = vsel %vm2569, %v2547, %v2450
          %v2574 = vsel %vm2568, %v2558, 0.0
          %v2575 = vsel %vm2569, %v2559, 0.0
          %v2576 = vpack.c.bf16 %v2575, %v2574
          %v2578 = vunpack.c.l.b16 %v2576
          %v2579 = vunpack.c.h.b16 %v2576
          %v2580 = vpack.c.b16 %v2578, %v2578
          %v2581 = vpack.c.b16 %v2579, %v2579
          %2582 = vrot.lane.b32.xlu0 %v2580, 32
          %v2583 = vpop.permute.xlu0 %2582
          %2584 = vrot.lane.b32.xlu0 %v2581, 32
          %v2585 = vpop.permute.xlu0 %2584
          %s2588 = scalar_lea.vmem %s301, 112 [#allocation5]
          %2589 = vst.msk [vmem:[%s2588] sm:$0xf] %vm866, %v2583
          %2590 = vst.msk [vmem:[%s2588 + $0x4] sm:$0xf] %vm866, %v2585
          %v2591 = vld [vmem:[#allocation4 + $0xf0] sm:$0xff]
          %v2592 = vld [vmem:[#allocation4 + $0xf8] sm:$0xff]
          %v2593 = vpack.c.bf16 %v2571, %v2570
          %2595 = vrot.lane.b32.xlu0 %v2593, 32
          %v2596 = vpop.permute.xlu0 %2595
          %v2598 = vsel %vm735, %v2596, 0
          %2600 = vmatprep.subr.bf16.mxu0 0
          %2601 = vmatpush1.bf16.msra.mxu0 %v731
          %2602 = vmatprep.subr.bf16.mxu0 0
          %2603 = vmatpush1.bf16.msra.mxu0 %v732
          %2604 = vmatprep.subr.bf16.mxu0 0
          %2605 = vmatpush1.bf16.msra.mxu0 0
          %2606 = vmatprep.subr.bf16.mxu0 0
          %2607 = vmatpush1.bf16.msra.mxu0 0
          %2608 = vmatprep.subr.bf16.mxu0 0
          %2609 = vmatpush1.bf16.msra.mxu0 0
          %2610 = vmatprep.subr.bf16.mxu0 0
          %2611 = vmatpush1.bf16.msra.mxu0 0
          %2612 = vmatprep.subr.bf16.mxu0 0
          %2613 = vmatpush1.bf16.msra.mxu0 0
          %2614 = vmatprep.subr.bf16.mxu0 0
          %2615 = vmatpush1.bf16.msra.mxu0 0
          %2616 = vmatprep.subr.bf16.mxu0 0
          %2617 = vmatpush1.bf16.msra.mxu0 0
          %2618 = vmatprep.subr.bf16.mxu0 0
          %2619 = vmatpush1.bf16.msra.mxu0 0
          %2620 = vmatprep.subr.bf16.mxu0 0
          %2621 = vmatpush1.bf16.msra.mxu0 0
          %2622 = vmatprep.subr.bf16.mxu0 0
          %2623 = vmatpush1.bf16.msra.mxu0 0
          %2624 = vmatprep.subr.bf16.mxu0 0
          %2625 = vmatpush1.bf16.msra.mxu0 0
          %2626 = vmatprep.subr.bf16.mxu0 0
          %2627 = vmatpush1.bf16.msra.mxu0 0
          %2628 = vmatprep.subr.bf16.mxu0 0
          %2629 = vmatpush1.bf16.msra.mxu0 0
          %2630 = vmatprep.subr.bf16.mxu0 0
          %2631 = vmatpush1.bf16.msra.mxu0 0
          %2632 = vmatprep.mubr.bf16.mxu0 0
          %2633 = vmatmul.mubr.bf16.gmra.mrb[0].mxu0 %v2598
          %v2634 = vpop.f32.mrb[0].mxu0
          %v2635 = vadd.f32 0.0, %v2634
          %v2636 = vpop.f32.mrb[0].mxu0
          %v2637 = vpop.f32.mrb[0].mxu0
          %v2638 = vadd.f32 0.0, %v2637
          %v2639 = vpop.f32.mrb[0].mxu0
          %2640 = vdwg.mxu0
          %v2641 = vadd.f32 %v2591, %v2635
          %v2642 = vadd.f32 %v2592, %v2638
          %v2643 = vtanh.pop %v2641
          %v2644 = vtanh.pop %v2642
          %v2645 = vmul.f32 %v2643, %v710
          %v2646 = vmul.f32 %v2644, %v710
          %v2647 = vadd.f32 %v2645, %v711
          %v2648 = vadd.f32 %v2646, %v711
          %v2649 = vmul.f32 %v2647, %v2572
          %v2650 = vmul.f32 %v2648, %v2573
          %2653 = vrot.lane.b32.xlu0 %v2647, 64
          %v2654 = vpop.permute.xlu0 %2653
          %2655 = vrot.lane.b32.xlu0 %v2648, 64
          %v2656 = vpop.permute.xlu0 %2655
          %v2659 = vmul.f32 %v2647, %v2654
          %v2660 = vmul.f32 %v2648, %v2656
          %2663 = vrot.lane.b32.xlu0 %v2659, 32
          %v2664 = vpop.permute.xlu0 %2663
          %2665 = vrot.lane.b32.xlu0 %v2660, 32
          %v2666 = vpop.permute.xlu0 %2665
          %v2669 = vadd.f32 %v2649, %v2664
          %v2670 = vadd.f32 %v2650, %v2666
          %v2671 = vtanh.pop %v2669
          %v2672 = vtanh.pop %v2670
          %2675 = vrot.lane.b32.xlu0 %v2671, 64
          %v2676 = vpop.permute.xlu0 %2675
          %2677 = vrot.lane.b32.xlu0 %v2672, 64
          %v2678 = vpop.permute.xlu0 %2677
          %v2681 = vmul.f32 %v2647, %v2676
          %v2682 = vmul.f32 %v2648, %v2678
          %v2683 = vsel %vm703, 1, 0
          %v2684 = vsel %vm704, 1, 0
          %2685 = vset.pattern.permute.xlu0 0
          %2686 = vperm.xlu0 %2685, %v2683
          %v2687 = vpop.permute.xlu0 %2686
          %2688 = vset.pattern.permute.xlu0 0
          %2689 = vperm.xlu0 %2688, %v2684
          %v2690 = vpop.permute.xlu0 %2689
          %vm2691 = vcmp.eq.s32.totalorder %v2687, 1
          %vm2692 = vcmp.eq.s32.totalorder %v2690, 1
          %v2693 = vsel %vm2691, %v2681, %v2570
          %v2694 = vsel %vm2692, %v2682, %v2571
          %v2695 = vsel %vm2691, %v2669, %v2572
          %v2696 = vsel %vm2692, %v2670, %v2573
          %v2697 = vsel %vm2691, %v2681, 0.0
          %v2698 = vsel %vm2692, %v2682, 0.0
          %v2699 = vpack.c.bf16 %v2698, %v2697
          %v2701 = vunpack.c.l.b16 %v2699
          %v2702 = vunpack.c.h.b16 %v2699
          %v2703 = vpack.c.b16 %v2701, %v2701
          %v2704 = vpack.c.b16 %v2702, %v2702
          %2705 = vrot.lane.b32.xlu0 %v2703, 32
          %v2706 = vpop.permute.xlu0 %2705
          %2707 = vrot.lane.b32.xlu0 %v2704, 32
          %v2708 = vpop.permute.xlu0 %2707
          %s2711 = scalar_lea.vmem %s301, 120 [#allocation5]
          %2712 = vst.msk [vmem:[%s2711] sm:$0xf] %vm866, %v2706
          %2713 = vst.msk [vmem:[%s2711 + $0x4] sm:$0xf] %vm866, %v2708
          %2716 = vrot.lane.b32.xlu0 %v2693, 32
          %v2717 = vpop.permute.xlu0 %2716
          %2718 = vrot.lane.b32.xlu0 %v2694, 32
          %v2719 = vpop.permute.xlu0 %2718
          %2722 = vst.msk [vmem:[#allocation2] sm:$0xff] %vm735, %v2717
          %2723 = vst.msk [vmem:[#allocation2 + $0x8] sm:$0xff] %vm735, %v2719
          %2726 = vrot.lane.b32.xlu0 %v2695, 96
          %v2727 = vpop.permute.xlu0 %2726
          %2728 = vrot.lane.b32.xlu0 %v2696, 96
          %v2729 = vpop.permute.xlu0 %2728
          %2732 = vst.msk [vmem:[#allocation3] sm:$0xff] %vm735, %v2727
          %2733 = vst.msk [vmem:[#allocation3 + $0x8] sm:$0xff] %vm735, %v2729
        $region48: #{tpu_custom_call.1} parent=39 // pred_fallthru
          _
        %p2734 = scmp.eq.s32.totalorder %s23, 1
        // Predicated region
        $region49: #{tpu_custom_call.1} parent=39 // pred_check
          %p2735 = pneg %p2734
        $region50: #{tpu_custom_call.1} parent=39 // pred_check_branch
          %2737 = sbr.rel (%p2735) target = $region52
        $region51: #{tpu_custom_call.1} parent=39 // pred_region
          %v2738 = vld [vmem:[#allocation2] sm:$0xff]
          %v2739 = vld [vmem:[#allocation2 + $0x8] sm:$0xff]
          %v2740 = vld [vmem:[#allocation3] sm:$0xff]
          %v2741 = vld [vmem:[#allocation3 + $0x8] sm:$0xff]
          %v2742 = vld [vmem:[#allocation4 + $0xf0] sm:$0xff]
          %v2743 = vld [vmem:[#allocation4 + $0xf8] sm:$0xff]
          %v2744 = vpack.c.bf16 %v2739, %v2738
          %v2749 = vunpack.c.l.b16 %v346
          %v2750 = vunpack.c.l.b16 %v347
          %v2751 = vunpack.c.l.b16 %v348
          %v2752 = vunpack.c.l.b16 %v349
          %v2753 = vpack.c.b16 %v2750, %v2749
          %v2754 = vpack.c.b16 %v2752, %v2751
          %vm2757 = vcmask 261120
          %v2759 = vsel %vm2757, %v2744, 0
          %2761 = vmatprep.subr.bf16.mxu0 0
          %2762 = vmatpush1.bf16.msra.mxu0 %v2753
          %2763 = vmatprep.subr.bf16.mxu0 0
          %2764 = vmatpush1.bf16.msra.mxu0 %v2754
          %2765 = vmatprep.subr.bf16.mxu0 0
          %2766 = vmatpush1.bf16.msra.mxu0 0
          %2767 = vmatprep.subr.bf16.mxu0 0
          %2768 = vmatpush1.bf16.msra.mxu0 0
          %2769 = vmatprep.subr.bf16.mxu0 0
          %2770 = vmatpush1.bf16.msra.mxu0 0
          %2771 = vmatprep.subr.bf16.mxu0 0
          %2772 = vmatpush1.bf16.msra.mxu0 0
          %2773 = vmatprep.subr.bf16.mxu0 0
          %2774 = vmatpush1.bf16.msra.mxu0 0
          %2775 = vmatprep.subr.bf16.mxu0 0
          %2776 = vmatpush1.bf16.msra.mxu0 0
          %2777 = vmatprep.subr.bf16.mxu0 0
          %2778 = vmatpush1.bf16.msra.mxu0 0
          %2779 = vmatprep.subr.bf16.mxu0 0
          %2780 = vmatpush1.bf16.msra.mxu0 0
          %2781 = vmatprep.subr.bf16.mxu0 0
          %2782 = vmatpush1.bf16.msra.mxu0 0
          %2783 = vmatprep.subr.bf16.mxu0 0
          %2784 = vmatpush1.bf16.msra.mxu0 0
          %2785 = vmatprep.subr.bf16.mxu0 0
          %2786 = vmatpush1.bf16.msra.mxu0 0
          %2787 = vmatprep.subr.bf16.mxu0 0
          %2788 = vmatpush1.bf16.msra.mxu0 0
          %2789 = vmatprep.subr.bf16.mxu0 0
          %2790 = vmatpush1.bf16.msra.mxu0 0
          %2791 = vmatprep.subr.bf16.mxu0 0
          %2792 = vmatpush1.bf16.msra.mxu0 0
          %2793 = vmatprep.mubr.bf16.mxu0 0
          %2794 = vmatmul.mubr.bf16.gmra.mrb[0].mxu0 %v2759
          %v2795 = vpop.f32.mrb[0].mxu0
          %v2796 = vadd.f32 0.0, %v2795
          %v2797 = vpop.f32.mrb[0].mxu0
          %v2798 = vpop.f32.mrb[0].mxu0
          %v2799 = vadd.f32 0.0, %v2798
          %v2800 = vpop.f32.mrb[0].mxu0
          %2801 = vdwg.mxu0
          %v2802 = vadd.f32 %v2742, %v2796
          %v2803 = vadd.f32 %v2743, %v2799
          %v2804 = vtanh.pop %v2802
          %v2805 = vtanh.pop %v2803
          %v2806 = vmul.f32 %v2804, %v710
          %v2807 = vmul.f32 %v2805, %v710
          %v2808 = vadd.f32 %v2806, %v711
          %v2809 = vadd.f32 %v2807, %v711
          %2812 = vrot.lane.b32.xlu0 %v2740, 32
          %v2813 = vpop.permute.xlu0 %2812
          %2814 = vrot.lane.b32.xlu0 %v2741, 32
          %v2815 = vpop.permute.xlu0 %2814
          %v2818 = vmul.f32 %v2808, %v2813
          %v2819 = vmul.f32 %v2809, %v2815
          %2822 = vrot.lane.b32.xlu0 %v2808, 64
          %v2823 = vpop.permute.xlu0 %2822
          %2824 = vrot.lane.b32.xlu0 %v2809, 64
          %v2825 = vpop.permute.xlu0 %2824
          %v2828 = vmul.f32 %v2808, %v2823
          %v2829 = vmul.f32 %v2809, %v2825
          %2832 = vrot.lane.b32.xlu0 %v2828, 32
          %v2833 = vpop.permute.xlu0 %2832
          %2834 = vrot.lane.b32.xlu0 %v2829, 32
          %v2835 = vpop.permute.xlu0 %2834
          %v2838 = vadd.f32 %v2818, %v2833
          %v2839 = vadd.f32 %v2819, %v2835
          %v2840 = vtanh.pop %v2838
          %v2841 = vtanh.pop %v2839
          %2844 = vrot.lane.b32.xlu0 %v2840, 64
          %v2845 = vpop.permute.xlu0 %2844
          %2846 = vrot.lane.b32.xlu0 %v2841, 64
          %v2847 = vpop.permute.xlu0 %2846
          %v2850 = vmul.f32 %v2808, %v2845
          %v2851 = vmul.f32 %v2809, %v2847
          %v2852 = vsel %vm703, 1, 0
          %v2853 = vsel %vm704, 1, 0
          %2854 = vset.pattern.permute.xlu0 0
          %2855 = vperm.xlu0 %2854, %v2852
          %v2856 = vpop.permute.xlu0 %2855
          %2857 = vset.pattern.permute.xlu0 0
          %2858 = vperm.xlu0 %2857, %v2853
          %v2859 = vpop.permute.xlu0 %2858
          %vm2860 = vcmp.eq.s32.totalorder %v2856, 1
          %vm2861 = vcmp.eq.s32.totalorder %v2859, 1
          %2864 = vrot.lane.b32.xlu0 %v2738, 96
          %v2865 = vpop.permute.xlu0 %2864
          %2866 = vrot.lane.b32.xlu0 %v2739, 96
          %v2867 = vpop.permute.xlu0 %2866
          %v2870 = vsel %vm2860, %v2850, %v2865
          %v2871 = vsel %vm2861, %v2851, %v2867
          %v2872 = vsel %vm2860, %v2838, %v2813
          %v2873 = vsel %vm2861, %v2839, %v2815
          %v2874 = vsel %vm2860, %v2850, 0.0
          %v2875 = vsel %vm2861, %v2851, 0.0
          %v2876 = vpack.c.bf16 %v2875, %v2874
          %v2878 = vunpack.c.l.b16 %v2876
          %v2879 = vunpack.c.h.b16 %v2876
          %v2880 = vpack.c.b16 %v2878, %v2878
          %v2881 = vpack.c.b16 %v2879, %v2879
          %2882 = vrot.lane.b32.xlu0 %v2880, 32
          %v2883 = vpop.permute.xlu0 %2882
          %2884 = vrot.lane.b32.xlu0 %v2881, 32
          %v2885 = vpop.permute.xlu0 %2884
          %s2888 = scalar_lea.vmem %s301, 120 [#allocation5]
          %vm2889 = vcmask 257024
          %2890 = vst.msk [vmem:[%s2888] sm:$0xf] %vm2889, %v2883
          %2891 = vst.msk [vmem:[%s2888 + $0x4] sm:$0xf] %vm2889, %v2885
          %v2892 = vld [vmem:[#allocation4 + $0xe0] sm:$0xff]
          %v2893 = vld [vmem:[#allocation4 + $0xe8] sm:$0xff]
          %v2894 = vpack.c.bf16 %v2871, %v2870
          %2896 = vrot.lane.b32.xlu0 %v2894, 32
          %v2897 = vpop.permute.xlu0 %2896
          %v2899 = vsel %vm2757, %v2897, 0
          %2901 = vmatprep.subr.bf16.mxu0 0
          %2902 = vmatpush1.bf16.msra.mxu0 %v2753
          %2903 = vmatprep.subr.bf16.mxu0 0
          %2904 = vmatpush1.bf16.msra.mxu0 %v2754
          %2905 = vmatprep.subr.bf16.mxu0 0
          %2906 = vmatpush1.bf16.msra.mxu0 0
          %2907 = vmatprep.subr.bf16.mxu0 0
          %2908 = vmatpush1.bf16.msra.mxu0 0
          %2909 = vmatprep.subr.bf16.mxu0 0
          %2910 = vmatpush1.bf16.msra.mxu0 0
          %2911 = vmatprep.subr.bf16.mxu0 0
          %2912 = vmatpush1.bf16.msra.mxu0 0
          %2913 = vmatprep.subr.bf16.mxu0 0
          %2914 = vmatpush1.bf16.msra.mxu0 0
          %2915 = vmatprep.subr.bf16.mxu0 0
          %2916 = vmatpush1.bf16.msra.mxu0 0
          %2917 = vmatprep.subr.bf16.mxu0 0
          %2918 = vmatpush1.bf16.msra.mxu0 0
          %2919 = vmatprep.subr.bf16.mxu0 0
          %2920 = vmatpush1.bf16.msra.mxu0 0
          %2921 = vmatprep.subr.bf16.mxu0 0
          %2922 = vmatpush1.bf16.msra.mxu0 0
          %2923 = vmatprep.subr.bf16.mxu0 0
          %2924 = vmatpush1.bf16.msra.mxu0 0
          %2925 = vmatprep.subr.bf16.mxu0 0
          %2926 = vmatpush1.bf16.msra.mxu0 0
          %2927 = vmatprep.subr.bf16.mxu0 0
          %2928 = vmatpush1.bf16.msra.mxu0 0
          %2929 = vmatprep.subr.bf16.mxu0 0
          %2930 = vmatpush1.bf16.msra.mxu0 0
          %2931 = vmatprep.subr.bf16.mxu0 0
          %2932 = vmatpush1.bf16.msra.mxu0 0
          %2933 = vmatprep.mubr.bf16.mxu0 0
          %2934 = vmatmul.mubr.bf16.gmra.mrb[0].mxu0 %v2899
          %v2935 = vpop.f32.mrb[0].mxu0
          %v2936 = vadd.f32 0.0, %v2935
          %v2937 = vpop.f32.mrb[0].mxu0
          %v2938 = vpop.f32.mrb[0].mxu0
          %v2939 = vadd.f32 0.0, %v2938
          %v2940 = vpop.f32.mrb[0].mxu0
          %2941 = vdwg.mxu0
          %v2942 = vadd.f32 %v2892, %v2936
          %v2943 = vadd.f32 %v2893, %v2939
          %v2944 = vtanh.pop %v2942
          %v2945 = vtanh.pop %v2943
          %v2946 = vmul.f32 %v2944, %v710
          %v2947 = vmul.f32 %v2945, %v710
          %v2948 = vadd.f32 %v2946, %v711
          %v2949 = vadd.f32 %v2947, %v711
          %v2950 = vmul.f32 %v2948, %v2872
          %v2951 = vmul.f32 %v2949, %v2873
          %2954 = vrot.lane.b32.xlu0 %v2948, 64
          %v2955 = vpop.permute.xlu0 %2954
          %2956 = vrot.lane.b32.xlu0 %v2949, 64
          %v2957 = vpop.permute.xlu0 %2956
          %v2960 = vmul.f32 %v2948, %v2955
          %v2961 = vmul.f32 %v2949, %v2957
          %2964 = vrot.lane.b32.xlu0 %v2960, 32
          %v2965 = vpop.permute.xlu0 %2964
          %2966 = vrot.lane.b32.xlu0 %v2961, 32
          %v2967 = vpop.permute.xlu0 %2966
          %v2970 = vadd.f32 %v2950, %v2965
          %v2971 = vadd.f32 %v2951, %v2967
          %v2972 = vtanh.pop %v2970
          %v2973 = vtanh.pop %v2971
          %2976 = vrot.lane.b32.xlu0 %v2972, 64
          %v2977 = vpop.permute.xlu0 %2976
          %2978 = vrot.lane.b32.xlu0 %v2973, 64
          %v2979 = vpop.permute.xlu0 %2978
          %v2982 = vmul.f32 %v2948, %v2977
          %v2983 = vmul.f32 %v2949, %v2979
          %v2984 = vsel %vm701, 1, 0
          %v2985 = vsel %vm702, 1, 0
          %2986 = vset.pattern.permute.xlu0 0
          %2987 = vperm.xlu0 %2986, %v2984
          %v2988 = vpop.permute.xlu0 %2987
          %2989 = vset.pattern.permute.xlu0 0
          %2990 = vperm.xlu0 %2989, %v2985
          %v2991 = vpop.permute.xlu0 %2990
          %vm2992 = vcmp.eq.s32.totalorder %v2988, 1
          %vm2993 = vcmp.eq.s32.totalorder %v2991, 1
          %v2994 = vsel %vm2992, %v2982, %v2870
          %v2995 = vsel %vm2993, %v2983, %v2871
          %v2996 = vsel %vm2992, %v2970, %v2872
          %v2997 = vsel %vm2993, %v2971, %v2873
          %v2998 = vsel %vm2992, %v2982, 0.0
          %v2999 = vsel %vm2993, %v2983, 0.0
          %v3000 = vpack.c.bf16 %v2999, %v2998
          %v3002 = vunpack.c.l.b16 %v3000
          %v3003 = vunpack.c.h.b16 %v3000
          %v3004 = vpack.c.b16 %v3002, %v3002
          %v3005 = vpack.c.b16 %v3003, %v3003
          %3006 = vrot.lane.b32.xlu0 %v3004, 32
          %v3007 = vpop.permute.xlu0 %3006
          %3008 = vrot.lane.b32.xlu0 %v3005, 32
          %v3009 = vpop.permute.xlu0 %3008
          %s3012 = scalar_lea.vmem %s301, 112 [#allocation5]
          %3013 = vst.msk [vmem:[%s3012] sm:$0xf] %vm2889, %v3007
          %3014 = vst.msk [vmem:[%s3012 + $0x4] sm:$0xf] %vm2889, %v3009
          %v3015 = vld [vmem:[#allocation4 + $0xd0] sm:$0xff]
          %v3016 = vld [vmem:[#allocation4 + $0xd8] sm:$0xff]
          %v3017 = vpack.c.bf16 %v2995, %v2994
          %3019 = vrot.lane.b32.xlu0 %v3017, 32
          %v3020 = vpop.permute.xlu0 %3019
          %v3022 = vsel %vm2757, %v3020, 0
          %3024 = vmatprep.subr.bf16.mxu0 0
          %3025 = vmatpush1.bf16.msra.mxu0 %v2753
          %3026 = vmatprep.subr.bf16.mxu0 0
          %3027 = vmatpush1.bf16.msra.mxu0 %v2754
          %3028 = vmatprep.subr.bf16.mxu0 0
          %3029 = vmatpush1.bf16.msra.mxu0 0
          %3030 = vmatprep.subr.bf16.mxu0 0
          %3031 = vmatpush1.bf16.msra.mxu0 0
          %3032 = vmatprep.subr.bf16.mxu0 0
          %3033 = vmatpush1.bf16.msra.mxu0 0
          %3034 = vmatprep.subr.bf16.mxu0 0
          %3035 = vmatpush1.bf16.msra.mxu0 0
          %3036 = vmatprep.subr.bf16.mxu0 0
          %3037 = vmatpush1.bf16.msra.mxu0 0
          %3038 = vmatprep.subr.bf16.mxu0 0
          %3039 = vmatpush1.bf16.msra.mxu0 0
          %3040 = vmatprep.subr.bf16.mxu0 0
          %3041 = vmatpush1.bf16.msra.mxu0 0
          %3042 = vmatprep.subr.bf16.mxu0 0
          %3043 = vmatpush1.bf16.msra.mxu0 0
          %3044 = vmatprep.subr.bf16.mxu0 0
          %3045 = vmatpush1.bf16.msra.mxu0 0
          %3046 = vmatprep.subr.bf16.mxu0 0
          %3047 = vmatpush1.bf16.msra.mxu0 0
          %3048 = vmatprep.subr.bf16.mxu0 0
          %3049 = vmatpush1.bf16.msra.mxu0 0
          %3050 = vmatprep.subr.bf16.mxu0 0
          %3051 = vmatpush1.bf16.msra.mxu0 0
          %3052 = vmatprep.subr.bf16.mxu0 0
          %3053 = vmatpush1.bf16.msra.mxu0 0
          %3054 = vmatprep.subr.bf16.mxu0 0
          %3055 = vmatpush1.bf16.msra.mxu0 0
          %3056 = vmatprep.mubr.bf16.mxu0 0
          %3057 = vmatmul.mubr.bf16.gmra.mrb[0].mxu0 %v3022
          %v3058 = vpop.f32.mrb[0].mxu0
          %v3059 = vadd.f32 0.0, %v3058
          %v3060 = vpop.f32.mrb[0].mxu0
          %v3061 = vpop.f32.mrb[0].mxu0
          %v3062 = vadd.f32 0.0, %v3061
          %v3063 = vpop.f32.mrb[0].mxu0
          %3064 = vdwg.mxu0
          %v3065 = vadd.f32 %v3015, %v3059
          %v3066 = vadd.f32 %v3016, %v3062
          %v3067 = vtanh.pop %v3065
          %v3068 = vtanh.pop %v3066
          %v3069 = vmul.f32 %v3067, %v710
          %v3070 = vmul.f32 %v3068, %v710
          %v3071 = vadd.f32 %v3069, %v711
          %v3072 = vadd.f32 %v3070, %v711
          %v3073 = vmul.f32 %v3071, %v2996
          %v3074 = vmul.f32 %v3072, %v2997
          %3077 = vrot.lane.b32.xlu0 %v3071, 64
          %v3078 = vpop.permute.xlu0 %3077
          %3079 = vrot.lane.b32.xlu0 %v3072, 64
          %v3080 = vpop.permute.xlu0 %3079
          %v3083 = vmul.f32 %v3071, %v3078
          %v3084 = vmul.f32 %v3072, %v3080
          %3087 = vrot.lane.b32.xlu0 %v3083, 32
          %v3088 = vpop.permute.xlu0 %3087
          %3089 = vrot.lane.b32.xlu0 %v3084, 32
          %v3090 = vpop.permute.xlu0 %3089
          %v3093 = vadd.f32 %v3073, %v3088
          %v3094 = vadd.f32 %v3074, %v3090
          %v3095 = vtanh.pop %v3093
          %v3096 = vtanh.pop %v3094
          %3099 = vrot.lane.b32.xlu0 %v3095, 64
          %v3100 = vpop.permute.xlu0 %3099
          %3101 = vrot.lane.b32.xlu0 %v3096, 64
          %v3102 = vpop.permute.xlu0 %3101
          %v3105 = vmul.f32 %v3071, %v3100
          %v3106 = vmul.f32 %v3072, %v3102
          %v3107 = vsel %vm699, 1, 0
          %v3108 = vsel %vm700, 1, 0
          %3109 = vset.pattern.permute.xlu0 0
          %3110 = vperm.xlu0 %3109, %v3107
          %v3111 = vpop.permute.xlu0 %3110
          %3112 = vset.pattern.permute.xlu0 0
          %3113 = vperm.xlu0 %3112, %v3108
          %v3114 = vpop.permute.xlu0 %3113
          %vm3115 = vcmp.eq.s32.totalorder %v3111, 1
          %vm3116 = vcmp.eq.s32.totalorder %v3114, 1
          %v3117 = vsel %vm3115, %v3105, %v2994
          %v3118 = vsel %vm3116, %v3106, %v2995
          %v3119 = vsel %vm3115, %v3093, %v2996
          %v3120 = vsel %vm3116, %v3094, %v2997
          %v3121 = vsel %vm3115, %v3105, 0.0
          %v3122 = vsel %vm3116, %v3106, 0.0
          %v3123 = vpack.c.bf16 %v3122, %v3121
          %v3125 = vunpack.c.l.b16 %v3123
          %v3126 = vunpack.c.h.b16 %v3123
          %v3127 = vpack.c.b16 %v3125, %v3125
          %v3128 = vpack.c.b16 %v3126, %v3126
          %3129 = vrot.lane.b32.xlu0 %v3127, 32
          %v3130 = vpop.permute.xlu0 %3129
          %3131 = vrot.lane.b32.xlu0 %v3128, 32
          %v3132 = vpop.permute.xlu0 %3131
          %s3135 = scalar_lea.vmem %s301, 104 [#allocation5]
          %3136 = vst.msk [vmem:[%s3135] sm:$0xf] %vm2889, %v3130
          %3137 = vst.msk [vmem:[%s3135 + $0x4] sm:$0xf] %vm2889, %v3132
          %v3138 = vld [vmem:[#allocation4 + $0xc0] sm:$0xff]
          %v3139 = vld [vmem:[#allocation4 + $0xc8] sm:$0xff]
          %v3140 = vpack.c.bf16 %v3118, %v3117
          %3142 = vrot.lane.b32.xlu0 %v3140, 32
          %v3143 = vpop.permute.xlu0 %3142
          %v3145 = vsel %vm2757, %v3143, 0
          %3147 = vmatprep.subr.bf16.mxu0 0
          %3148 = vmatpush1.bf16.msra.mxu0 %v2753
          %3149 = vmatprep.subr.bf16.mxu0 0
          %3150 = vmatpush1.bf16.msra.mxu0 %v2754
          %3151 = vmatprep.subr.bf16.mxu0 0
          %3152 = vmatpush1.bf16.msra.mxu0 0
          %3153 = vmatprep.subr.bf16.mxu0 0
          %3154 = vmatpush1.bf16.msra.mxu0 0
          %3155 = vmatprep.subr.bf16.mxu0 0
          %3156 = vmatpush1.bf16.msra.mxu0 0
          %3157 = vmatprep.subr.bf16.mxu0 0
          %3158 = vmatpush1.bf16.msra.mxu0 0
          %3159 = vmatprep.subr.bf16.mxu0 0
          %3160 = vmatpush1.bf16.msra.mxu0 0
          %3161 = vmatprep.subr.bf16.mxu0 0
          %3162 = vmatpush1.bf16.msra.mxu0 0
          %3163 = vmatprep.subr.bf16.mxu0 0
          %3164 = vmatpush1.bf16.msra.mxu0 0
          %3165 = vmatprep.subr.bf16.mxu0 0
          %3166 = vmatpush1.bf16.msra.mxu0 0
          %3167 = vmatprep.subr.bf16.mxu0 0
          %3168 = vmatpush1.bf16.msra.mxu0 0
          %3169 = vmatprep.subr.bf16.mxu0 0
          %3170 = vmatpush1.bf16.msra.mxu0 0
          %3171 = vmatprep.subr.bf16.mxu0 0
          %3172 = vmatpush1.bf16.msra.mxu0 0
          %3173 = vmatprep.subr.bf16.mxu0 0
          %3174 = vmatpush1.bf16.msra.mxu0 0
          %3175 = vmatprep.subr.bf16.mxu0 0
          %3176 = vmatpush1.bf16.msra.mxu0 0
          %3177 = vmatprep.subr.bf16.mxu0 0
          %3178 = vmatpush1.bf16.msra.mxu0 0
          %3179 = vmatprep.mubr.bf16.mxu0 0
          %3180 = vmatmul.mubr.bf16.gmra.mrb[0].mxu0 %v3145
          %v3181 = vpop.f32.mrb[0].mxu0
          %v3182 = vadd.f32 0.0, %v3181
          %v3183 = vpop.f32.mrb[0].mxu0
          %v3184 = vpop.f32.mrb[0].mxu0
          %v3185 = vadd.f32 0.0, %v3184
          %v3186 = vpop.f32.mrb[0].mxu0
          %3187 = vdwg.mxu0
          %v3188 = vadd.f32 %v3138, %v3182
          %v3189 = vadd.f32 %v3139, %v3185
          %v3190 = vtanh.pop %v3188
          %v3191 = vtanh.pop %v3189
          %v3192 = vmul.f32 %v3190, %v710
          %v3193 = vmul.f32 %v3191, %v710
          %v3194 = vadd.f32 %v3192, %v711
          %v3195 = vadd.f32 %v3193, %v711
          %v3196 = vmul.f32 %v3194, %v3119
          %v3197 = vmul.f32 %v3195, %v3120
          %3200 = vrot.lane.b32.xlu0 %v3194, 64
          %v3201 = vpop.permute.xlu0 %3200
          %3202 = vrot.lane.b32.xlu0 %v3195, 64
          %v3203 = vpop.permute.xlu0 %3202
          %v3206 = vmul.f32 %v3194, %v3201
          %v3207 = vmul.f32 %v3195, %v3203
          %3210 = vrot.lane.b32.xlu0 %v3206, 32
          %v3211 = vpop.permute.xlu0 %3210
          %3212 = vrot.lane.b32.xlu0 %v3207, 32
          %v3213 = vpop.permute.xlu0 %3212
          %v3216 = vadd.f32 %v3196, %v3211
          %v3217 = vadd.f32 %v3197, %v3213
          %v3218 = vtanh.pop %v3216
          %v3219 = vtanh.pop %v3217
          %3222 = vrot.lane.b32.xlu0 %v3218, 64
          %v3223 = vpop.permute.xlu0 %3222
          %3224 = vrot.lane.b32.xlu0 %v3219, 64
          %v3225 = vpop.permute.xlu0 %3224
          %v3228 = vmul.f32 %v3194, %v3223
          %v3229 = vmul.f32 %v3195, %v3225
          %v3230 = vsel %vm697, 1, 0
          %v3231 = vsel %vm698, 1, 0
          %3232 = vset.pattern.permute.xlu0 0
          %3233 = vperm.xlu0 %3232, %v3230
          %v3234 = vpop.permute.xlu0 %3233
          %3235 = vset.pattern.permute.xlu0 0
          %3236 = vperm.xlu0 %3235, %v3231
          %v3237 = vpop.permute.xlu0 %3236
          %vm3238 = vcmp.eq.s32.totalorder %v3234, 1
          %vm3239 = vcmp.eq.s32.totalorder %v3237, 1
          %v3240 = vsel %vm3238, %v3228, %v3117
          %v3241 = vsel %vm3239, %v3229, %v3118
          %v3242 = vsel %vm3238, %v3216, %v3119
          %v3243 = vsel %vm3239, %v3217, %v3120
          %v3244 = vsel %vm3238, %v3228, 0.0
          %v3245 = vsel %vm3239, %v3229, 0.0
          %v3246 = vpack.c.bf16 %v3245, %v3244
          %v3248 = vunpack.c.l.b16 %v3246
          %v3249 = vunpack.c.h.b16 %v3246
          %v3250 = vpack.c.b16 %v3248, %v3248
          %v3251 = vpack.c.b16 %v3249, %v3249
          %3252 = vrot.lane.b32.xlu0 %v3250, 32
          %v3253 = vpop.permute.xlu0 %3252
          %3254 = vrot.lane.b32.xlu0 %v3251, 32
          %v3255 = vpop.permute.xlu0 %3254
          %s3258 = scalar_lea.vmem %s301, 96 [#allocation5]
          %3259 = vst.msk [vmem:[%s3258] sm:$0xf] %vm2889, %v3253
          %3260 = vst.msk [vmem:[%s3258 + $0x4] sm:$0xf] %vm2889, %v3255
          %v3261 = vld [vmem:[#allocation4 + $0xb0] sm:$0xff]
          %v3262 = vld [vmem:[#allocation4 + $0xb8] sm:$0xff]
          %v3263 = vpack.c.bf16 %v3241, %v3240
          %3265 = vrot.lane.b32.xlu0 %v3263, 32
          %v3266 = vpop.permute.xlu0 %3265
          %v3268 = vsel %vm2757, %v3266, 0
          %3270 = vmatprep.subr.bf16.mxu0 0
          %3271 = vmatpush1.bf16.msra.mxu0 %v2753
          %3272 = vmatprep.subr.bf16.mxu0 0
          %3273 = vmatpush1.bf16.msra.mxu0 %v2754
          %3274 = vmatprep.subr.bf16.mxu0 0
          %3275 = vmatpush1.bf16.msra.mxu0 0
          %3276 = vmatprep.subr.bf16.mxu0 0
          %3277 = vmatpush1.bf16.msra.mxu0 0
          %3278 = vmatprep.subr.bf16.mxu0 0
          %3279 = vmatpush1.bf16.msra.mxu0 0
          %3280 = vmatprep.subr.bf16.mxu0 0
          %3281 = vmatpush1.bf16.msra.mxu0 0
          %3282 = vmatprep.subr.bf16.mxu0 0
          %3283 = vmatpush1.bf16.msra.mxu0 0
          %3284 = vmatprep.subr.bf16.mxu0 0
          %3285 = vmatpush1.bf16.msra.mxu0 0
          %3286 = vmatprep.subr.bf16.mxu0 0
          %3287 = vmatpush1.bf16.msra.mxu0 0
          %3288 = vmatprep.subr.bf16.mxu0 0
          %3289 = vmatpush1.bf16.msra.mxu0 0
          %3290 = vmatprep.subr.bf16.mxu0 0
          %3291 = vmatpush1.bf16.msra.mxu0 0
          %3292 = vmatprep.subr.bf16.mxu0 0
          %3293 = vmatpush1.bf16.msra.mxu0 0
          %3294 = vmatprep.subr.bf16.mxu0 0
          %3295 = vmatpush1.bf16.msra.mxu0 0
          %3296 = vmatprep.subr.bf16.mxu0 0
          %3297 = vmatpush1.bf16.msra.mxu0 0
          %3298 = vmatprep.subr.bf16.mxu0 0
          %3299 = vmatpush1.bf16.msra.mxu0 0
          %3300 = vmatprep.subr.bf16.mxu0 0
          %3301 = vmatpush1.bf16.msra.mxu0 0
          %3302 = vmatprep.mubr.bf16.mxu0 0
          %3303 = vmatmul.mubr.bf16.gmra.mrb[0].mxu0 %v3268
          %v3304 = vpop.f32.mrb[0].mxu0
          %v3305 = vadd.f32 0.0, %v3304
          %v3306 = vpop.f32.mrb[0].mxu0
          %v3307 = vpop.f32.mrb[0].mxu0
          %v3308 = vadd.f32 0.0, %v3307
          %v3309 = vpop.f32.mrb[0].mxu0
          %3310 = vdwg.mxu0
          %v3311 = vadd.f32 %v3261, %v3305
          %v3312 = vadd.f32 %v3262, %v3308
          %v3313 = vtanh.pop %v3311
          %v3314 = vtanh.pop %v3312
          %v3315 = vmul.f32 %v3313, %v710
          %v3316 = vmul.f32 %v3314, %v710
          %v3317 = vadd.f32 %v3315, %v711
          %v3318 = vadd.f32 %v3316, %v711
          %v3319 = vmul.f32 %v3317, %v3242
          %v3320 = vmul.f32 %v3318, %v3243
          %3323 = vrot.lane.b32.xlu0 %v3317, 64
          %v3324 = vpop.permute.xlu0 %3323
          %3325 = vrot.lane.b32.xlu0 %v3318, 64
          %v3326 = vpop.permute.xlu0 %3325
          %v3329 = vmul.f32 %v3317, %v3324
          %v3330 = vmul.f32 %v3318, %v3326
          %3333 = vrot.lane.b32.xlu0 %v3329, 32
          %v3334 = vpop.permute.xlu0 %3333
          %3335 = vrot.lane.b32.xlu0 %v3330, 32
          %v3336 = vpop.permute.xlu0 %3335
          %v3339 = vadd.f32 %v3319, %v3334
          %v3340 = vadd.f32 %v3320, %v3336
          %v3341 = vtanh.pop %v3339
          %v3342 = vtanh.pop %v3340
          %3345 = vrot.lane.b32.xlu0 %v3341, 64
          %v3346 = vpop.permute.xlu0 %3345
          %3347 = vrot.lane.b32.xlu0 %v3342, 64
          %v3348 = vpop.permute.xlu0 %3347
          %v3351 = vmul.f32 %v3317, %v3346
          %v3352 = vmul.f32 %v3318, %v3348
          %v3353 = vsel %vm695, 1, 0
          %v3354 = vsel %vm696, 1, 0
          %3355 = vset.pattern.permute.xlu0 0
          %3356 = vperm.xlu0 %3355, %v3353
          %v3357 = vpop.permute.xlu0 %3356
          %3358 = vset.pattern.permute.xlu0 0
          %3359 = vperm.xlu0 %3358, %v3354
          %v3360 = vpop.permute.xlu0 %3359
          %vm3361 = vcmp.eq.s32.totalorder %v3357, 1
          %vm3362 = vcmp.eq.s32.totalorder %v3360, 1
          %v3363 = vsel %vm3361, %v3351, %v3240
          %v3364 = vsel %vm3362, %v3352, %v3241
          %v3365 = vsel %vm3361, %v3339, %v3242
          %v3366 = vsel %vm3362, %v3340, %v3243
          %v3367 = vsel %vm3361, %v3351, 0.0
          %v3368 = vsel %vm3362, %v3352, 0.0
          %v3369 = vpack.c.bf16 %v3368, %v3367
          %v3371 = vunpack.c.l.b16 %v3369
          %v3372 = vunpack.c.h.b16 %v3369
          %v3373 = vpack.c.b16 %v3371, %v3371
          %v3374 = vpack.c.b16 %v3372, %v3372
          %3375 = vrot.lane.b32.xlu0 %v3373, 32
          %v3376 = vpop.permute.xlu0 %3375
          %3377 = vrot.lane.b32.xlu0 %v3374, 32
          %v3378 = vpop.permute.xlu0 %3377
          %s3381 = scalar_lea.vmem %s301, 88 [#allocation5]
          %3382 = vst.msk [vmem:[%s3381] sm:$0xf] %vm2889, %v3376
          %3383 = vst.msk [vmem:[%s3381 + $0x4] sm:$0xf] %vm2889, %v3378
          %v3384 = vld [vmem:[#allocation4 + $0xa0] sm:$0xff]
          %v3385 = vld [vmem:[#allocation4 + $0xa8] sm:$0xff]
          %v3386 = vpack.c.bf16 %v3364, %v3363
          %3388 = vrot.lane.b32.xlu0 %v3386, 32
          %v3389 = vpop.permute.xlu0 %3388
          %v3391 = vsel %vm2757, %v3389, 0
          %3393 = vmatprep.subr.bf16.mxu0 0
          %3394 = vmatpush1.bf16.msra.mxu0 %v2753
          %3395 = vmatprep.subr.bf16.mxu0 0
          %3396 = vmatpush1.bf16.msra.mxu0 %v2754
          %3397 = vmatprep.subr.bf16.mxu0 0
          %3398 = vmatpush1.bf16.msra.mxu0 0
          %3399 = vmatprep.subr.bf16.mxu0 0
          %3400 = vmatpush1.bf16.msra.mxu0 0
          %3401 = vmatprep.subr.bf16.mxu0 0
          %3402 = vmatpush1.bf16.msra.mxu0 0
          %3403 = vmatprep.subr.bf16.mxu0 0
          %3404 = vmatpush1.bf16.msra.mxu0 0
          %3405 = vmatprep.subr.bf16.mxu0 0
          %3406 = vmatpush1.bf16.msra.mxu0 0
          %3407 = vmatprep.subr.bf16.mxu0 0
          %3408 = vmatpush1.bf16.msra.mxu0 0
          %3409 = vmatprep.subr.bf16.mxu0 0
          %3410 = vmatpush1.bf16.msra.mxu0 0
          %3411 = vmatprep.subr.bf16.mxu0 0
          %3412 = vmatpush1.bf16.msra.mxu0 0
          %3413 = vmatprep.subr.bf16.mxu0 0
          %3414 = vmatpush1.bf16.msra.mxu0 0
          %3415 = vmatprep.subr.bf16.mxu0 0
          %3416 = vmatpush1.bf16.msra.mxu0 0
          %3417 = vmatprep.subr.bf16.mxu0 0
          %3418 = vmatpush1.bf16.msra.mxu0 0
          %3419 = vmatprep.subr.bf16.mxu0 0
          %3420 = vmatpush1.bf16.msra.mxu0 0
          %3421 = vmatprep.subr.bf16.mxu0 0
          %3422 = vmatpush1.bf16.msra.mxu0 0
          %3423 = vmatprep.subr.bf16.mxu0 0
          %3424 = vmatpush1.bf16.msra.mxu0 0
          %3425 = vmatprep.mubr.bf16.mxu0 0
          %3426 = vmatmul.mubr.bf16.gmra.mrb[0].mxu0 %v3391
          %v3427 = vpop.f32.mrb[0].mxu0
          %v3428 = vadd.f32 0.0, %v3427
          %v3429 = vpop.f32.mrb[0].mxu0
          %v3430 = vpop.f32.mrb[0].mxu0
          %v3431 = vadd.f32 0.0, %v3430
          %v3432 = vpop.f32.mrb[0].mxu0
          %3433 = vdwg.mxu0
          %v3434 = vadd.f32 %v3384, %v3428
          %v3435 = vadd.f32 %v3385, %v3431
          %v3436 = vtanh.pop %v3434
          %v3437 = vtanh.pop %v3435
          %v3438 = vmul.f32 %v3436, %v710
          %v3439 = vmul.f32 %v3437, %v710
          %v3440 = vadd.f32 %v3438, %v711
          %v3441 = vadd.f32 %v3439, %v711
          %v3442 = vmul.f32 %v3440, %v3365
          %v3443 = vmul.f32 %v3441, %v3366
          %3446 = vrot.lane.b32.xlu0 %v3440, 64
          %v3447 = vpop.permute.xlu0 %3446
          %3448 = vrot.lane.b32.xlu0 %v3441, 64
          %v3449 = vpop.permute.xlu0 %3448
          %v3452 = vmul.f32 %v3440, %v3447
          %v3453 = vmul.f32 %v3441, %v3449
          %3456 = vrot.lane.b32.xlu0 %v3452, 32
          %v3457 = vpop.permute.xlu0 %3456
          %3458 = vrot.lane.b32.xlu0 %v3453, 32
          %v3459 = vpop.permute.xlu0 %3458
          %v3462 = vadd.f32 %v3442, %v3457
          %v3463 = vadd.f32 %v3443, %v3459
          %v3464 = vtanh.pop %v3462
          %v3465 = vtanh.pop %v3463
          %3468 = vrot.lane.b32.xlu0 %v3464, 64
          %v3469 = vpop.permute.xlu0 %3468
          %3470 = vrot.lane.b32.xlu0 %v3465, 64
          %v3471 = vpop.permute.xlu0 %3470
          %v3474 = vmul.f32 %v3440, %v3469
          %v3475 = vmul.f32 %v3441, %v3471
          %v3476 = vsel %vm693, 1, 0
          %v3477 = vsel %vm694, 1, 0
          %3478 = vset.pattern.permute.xlu0 0
          %3479 = vperm.xlu0 %3478, %v3476
          %v3480 = vpop.permute.xlu0 %3479
          %3481 = vset.pattern.permute.xlu0 0
          %3482 = vperm.xlu0 %3481, %v3477
          %v3483 = vpop.permute.xlu0 %3482
          %vm3484 = vcmp.eq.s32.totalorder %v3480, 1
          %vm3485 = vcmp.eq.s32.totalorder %v3483, 1
          %v3486 = vsel %vm3484, %v3474, %v3363
          %v3487 = vsel %vm3485, %v3475, %v3364
          %v3488 = vsel %vm3484, %v3462, %v3365
          %v3489 = vsel %vm3485, %v3463, %v3366
          %v3490 = vsel %vm3484, %v3474, 0.0
          %v3491 = vsel %vm3485, %v3475, 0.0
          %v3492 = vpack.c.bf16 %v3491, %v3490
          %v3494 = vunpack.c.l.b16 %v3492
          %v3495 = vunpack.c.h.b16 %v3492
          %v3496 = vpack.c.b16 %v3494, %v3494
          %v3497 = vpack.c.b16 %v3495, %v3495
          %3498 = vrot.lane.b32.xlu0 %v3496, 32
          %v3499 = vpop.permute.xlu0 %3498
          %3500 = vrot.lane.b32.xlu0 %v3497, 32
          %v3501 = vpop.permute.xlu0 %3500
          %s3504 = scalar_lea.vmem %s301, 80 [#allocation5]
          %3505 = vst.msk [vmem:[%s3504] sm:$0xf] %vm2889, %v3499
          %3506 = vst.msk [vmem:[%s3504 + $0x4] sm:$0xf] %vm2889, %v3501
          %v3507 = vld [vmem:[#allocation4 + $0x90] sm:$0xff]
          %v3508 = vld [vmem:[#allocation4 + $0x98] sm:$0xff]
          %v3509 = vpack.c.bf16 %v3487, %v3486
          %3511 = vrot.lane.b32.xlu0 %v3509, 32
          %v3512 = vpop.permute.xlu0 %3511
          %v3514 = vsel %vm2757, %v3512, 0
          %3516 = vmatprep.subr.bf16.mxu0 0
          %3517 = vmatpush1.bf16.msra.mxu0 %v2753
          %3518 = vmatprep.subr.bf16.mxu0 0
          %3519 = vmatpush1.bf16.msra.mxu0 %v2754
          %3520 = vmatprep.subr.bf16.mxu0 0
          %3521 = vmatpush1.bf16.msra.mxu0 0
          %3522 = vmatprep.subr.bf16.mxu0 0
          %3523 = vmatpush1.bf16.msra.mxu0 0
          %3524 = vmatprep.subr.bf16.mxu0 0
          %3525 = vmatpush1.bf16.msra.mxu0 0
          %3526 = vmatprep.subr.bf16.mxu0 0
          %3527 = vmatpush1.bf16.msra.mxu0 0
          %3528 = vmatprep.subr.bf16.mxu0 0
          %3529 = vmatpush1.bf16.msra.mxu0 0
          %3530 = vmatprep.subr.bf16.mxu0 0
          %3531 = vmatpush1.bf16.msra.mxu0 0
          %3532 = vmatprep.subr.bf16.mxu0 0
          %3533 = vmatpush1.bf16.msra.mxu0 0
          %3534 = vmatprep.subr.bf16.mxu0 0
          %3535 = vmatpush1.bf16.msra.mxu0 0
          %3536 = vmatprep.subr.bf16.mxu0 0
          %3537 = vmatpush1.bf16.msra.mxu0 0
          %3538 = vmatprep.subr.bf16.mxu0 0
          %3539 = vmatpush1.bf16.msra.mxu0 0
          %3540 = vmatprep.subr.bf16.mxu0 0
          %3541 = vmatpush1.bf16.msra.mxu0 0
          %3542 = vmatprep.subr.bf16.mxu0 0
          %3543 = vmatpush1.bf16.msra.mxu0 0
          %3544 = vmatprep.subr.bf16.mxu0 0
          %3545 = vmatpush1.bf16.msra.mxu0 0
          %3546 = vmatprep.subr.bf16.mxu0 0
          %3547 = vmatpush1.bf16.msra.mxu0 0
          %3548 = vmatprep.mubr.bf16.mxu0 0
          %3549 = vmatmul.mubr.bf16.gmra.mrb[0].mxu0 %v3514
          %v3550 = vpop.f32.mrb[0].mxu0
          %v3551 = vadd.f32 0.0, %v3550
          %v3552 = vpop.f32.mrb[0].mxu0
          %v3553 = vpop.f32.mrb[0].mxu0
          %v3554 = vadd.f32 0.0, %v3553
          %v3555 = vpop.f32.mrb[0].mxu0
          %3556 = vdwg.mxu0
          %v3557 = vadd.f32 %v3507, %v3551
          %v3558 = vadd.f32 %v3508, %v3554
          %v3559 = vtanh.pop %v3557
          %v3560 = vtanh.pop %v3558
          %v3561 = vmul.f32 %v3559, %v710
          %v3562 = vmul.f32 %v3560, %v710
          %v3563 = vadd.f32 %v3561, %v711
          %v3564 = vadd.f32 %v3562, %v711
          %v3565 = vmul.f32 %v3563, %v3488
          %v3566 = vmul.f32 %v3564, %v3489
          %3569 = vrot.lane.b32.xlu0 %v3563, 64
          %v3570 = vpop.permute.xlu0 %3569
          %3571 = vrot.lane.b32.xlu0 %v3564, 64
          %v3572 = vpop.permute.xlu0 %3571
          %v3575 = vmul.f32 %v3563, %v3570
          %v3576 = vmul.f32 %v3564, %v3572
          %3579 = vrot.lane.b32.xlu0 %v3575, 32
          %v3580 = vpop.permute.xlu0 %3579
          %3581 = vrot.lane.b32.xlu0 %v3576, 32
          %v3582 = vpop.permute.xlu0 %3581
          %v3585 = vadd.f32 %v3565, %v3580
          %v3586 = vadd.f32 %v3566, %v3582
          %v3587 = vtanh.pop %v3585
          %v3588 = vtanh.pop %v3586
          %3591 = vrot.lane.b32.xlu0 %v3587, 64
          %v3592 = vpop.permute.xlu0 %3591
          %3593 = vrot.lane.b32.xlu0 %v3588, 64
          %v3594 = vpop.permute.xlu0 %3593
          %v3597 = vmul.f32 %v3563, %v3592
          %v3598 = vmul.f32 %v3564, %v3594
          %v3599 = vsel %vm691, 1, 0
          %v3600 = vsel %vm692, 1, 0
          %3601 = vset.pattern.permute.xlu0 0
          %3602 = vperm.xlu0 %3601, %v3599
          %v3603 = vpop.permute.xlu0 %3602
          %3604 = vset.pattern.permute.xlu0 0
          %3605 = vperm.xlu0 %3604, %v3600
          %v3606 = vpop.permute.xlu0 %3605
          %vm3607 = vcmp.eq.s32.totalorder %v3603, 1
          %vm3608 = vcmp.eq.s32.totalorder %v3606, 1
          %v3609 = vsel %vm3607, %v3597, %v3486
          %v3610 = vsel %vm3608, %v3598, %v3487
          %v3611 = vsel %vm3607, %v3585, %v3488
          %v3612 = vsel %vm3608, %v3586, %v3489
          %v3613 = vsel %vm3607, %v3597, 0.0
          %v3614 = vsel %vm3608, %v3598, 0.0
          %v3615 = vpack.c.bf16 %v3614, %v3613
          %v3617 = vunpack.c.l.b16 %v3615
          %v3618 = vunpack.c.h.b16 %v3615
          %v3619 = vpack.c.b16 %v3617, %v3617
          %v3620 = vpack.c.b16 %v3618, %v3618
          %3621 = vrot.lane.b32.xlu0 %v3619, 32
          %v3622 = vpop.permute.xlu0 %3621
          %3623 = vrot.lane.b32.xlu0 %v3620, 32
          %v3624 = vpop.permute.xlu0 %3623
          %s3627 = scalar_lea.vmem %s301, 72 [#allocation5]
          %3628 = vst.msk [vmem:[%s3627] sm:$0xf] %vm2889, %v3622
          %3629 = vst.msk [vmem:[%s3627 + $0x4] sm:$0xf] %vm2889, %v3624
          %v3630 = vld [vmem:[#allocation4 + $0x80] sm:$0xff]
          %v3631 = vld [vmem:[#allocation4 + $0x88] sm:$0xff]
          %v3632 = vpack.c.bf16 %v3610, %v3609
          %3634 = vrot.lane.b32.xlu0 %v3632, 32
          %v3635 = vpop.permute.xlu0 %3634
          %v3637 = vsel %vm2757, %v3635, 0
          %3639 = vmatprep.subr.bf16.mxu0 0
          %3640 = vmatpush1.bf16.msra.mxu0 %v2753
          %3641 = vmatprep.subr.bf16.mxu0 0
          %3642 = vmatpush1.bf16.msra.mxu0 %v2754
          %3643 = vmatprep.subr.bf16.mxu0 0
          %3644 = vmatpush1.bf16.msra.mxu0 0
          %3645 = vmatprep.subr.bf16.mxu0 0
          %3646 = vmatpush1.bf16.msra.mxu0 0
          %3647 = vmatprep.subr.bf16.mxu0 0
          %3648 = vmatpush1.bf16.msra.mxu0 0
          %3649 = vmatprep.subr.bf16.mxu0 0
          %3650 = vmatpush1.bf16.msra.mxu0 0
          %3651 = vmatprep.subr.bf16.mxu0 0
          %3652 = vmatpush1.bf16.msra.mxu0 0
          %3653 = vmatprep.subr.bf16.mxu0 0
          %3654 = vmatpush1.bf16.msra.mxu0 0
          %3655 = vmatprep.subr.bf16.mxu0 0
          %3656 = vmatpush1.bf16.msra.mxu0 0
          %3657 = vmatprep.subr.bf16.mxu0 0
          %3658 = vmatpush1.bf16.msra.mxu0 0
          %3659 = vmatprep.subr.bf16.mxu0 0
          %3660 = vmatpush1.bf16.msra.mxu0 0
          %3661 = vmatprep.subr.bf16.mxu0 0
          %3662 = vmatpush1.bf16.msra.mxu0 0
          %3663 = vmatprep.subr.bf16.mxu0 0
          %3664 = vmatpush1.bf16.msra.mxu0 0
          %3665 = vmatprep.subr.bf16.mxu0 0
          %3666 = vmatpush1.bf16.msra.mxu0 0
          %3667 = vmatprep.subr.bf16.mxu0 0
          %3668 = vmatpush1.bf16.msra.mxu0 0
          %3669 = vmatprep.subr.bf16.mxu0 0
          %3670 = vmatpush1.bf16.msra.mxu0 0
          %3671 = vmatprep.mubr.bf16.mxu0 0
          %3672 = vmatmul.mubr.bf16.gmra.mrb[0].mxu0 %v3637
          %v3673 = vpop.f32.mrb[0].mxu0
          %v3674 = vadd.f32 0.0, %v3673
          %v3675 = vpop.f32.mrb[0].mxu0
          %v3676 = vpop.f32.mrb[0].mxu0
          %v3677 = vadd.f32 0.0, %v3676
          %v3678 = vpop.f32.mrb[0].mxu0
          %3679 = vdwg.mxu0
          %v3680 = vadd.f32 %v3630, %v3674
          %v3681 = vadd.f32 %v3631, %v3677
          %v3682 = vtanh.pop %v3680
          %v3683 = vtanh.pop %v3681
          %v3684 = vmul.f32 %v3682, %v710
          %v3685 = vmul.f32 %v3683, %v710
          %v3686 = vadd.f32 %v3684, %v711
          %v3687 = vadd.f32 %v3685, %v711
          %v3688 = vmul.f32 %v3686, %v3611
          %v3689 = vmul.f32 %v3687, %v3612
          %3692 = vrot.lane.b32.xlu0 %v3686, 64
          %v3693 = vpop.permute.xlu0 %3692
          %3694 = vrot.lane.b32.xlu0 %v3687, 64
          %v3695 = vpop.permute.xlu0 %3694
          %v3698 = vmul.f32 %v3686, %v3693
          %v3699 = vmul.f32 %v3687, %v3695
          %3702 = vrot.lane.b32.xlu0 %v3698, 32
          %v3703 = vpop.permute.xlu0 %3702
          %3704 = vrot.lane.b32.xlu0 %v3699, 32
          %v3705 = vpop.permute.xlu0 %3704
          %v3708 = vadd.f32 %v3688, %v3703
          %v3709 = vadd.f32 %v3689, %v3705
          %v3710 = vtanh.pop %v3708
          %v3711 = vtanh.pop %v3709
          %3714 = vrot.lane.b32.xlu0 %v3710, 64
          %v3715 = vpop.permute.xlu0 %3714
          %3716 = vrot.lane.b32.xlu0 %v3711, 64
          %v3717 = vpop.permute.xlu0 %3716
          %v3720 = vmul.f32 %v3686, %v3715
          %v3721 = vmul.f32 %v3687, %v3717
          %v3722 = vsel %vm689, 1, 0
          %v3723 = vsel %vm690, 1, 0
          %3724 = vset.pattern.permute.xlu0 0
          %3725 = vperm.xlu0 %3724, %v3722
          %v3726 = vpop.permute.xlu0 %3725
          %3727 = vset.pattern.permute.xlu0 0
          %3728 = vperm.xlu0 %3727, %v3723
          %v3729 = vpop.permute.xlu0 %3728
          %vm3730 = vcmp.eq.s32.totalorder %v3726, 1
          %vm3731 = vcmp.eq.s32.totalorder %v3729, 1
          %v3732 = vsel %vm3730, %v3720, %v3609
          %v3733 = vsel %vm3731, %v3721, %v3610
          %v3734 = vsel %vm3730, %v3708, %v3611
          %v3735 = vsel %vm3731, %v3709, %v3612
          %v3736 = vsel %vm3730, %v3720, 0.0
          %v3737 = vsel %vm3731, %v3721, 0.0
          %v3738 = vpack.c.bf16 %v3737, %v3736
          %v3740 = vunpack.c.l.b16 %v3738
          %v3741 = vunpack.c.h.b16 %v3738
          %v3742 = vpack.c.b16 %v3740, %v3740
          %v3743 = vpack.c.b16 %v3741, %v3741
          %3744 = vrot.lane.b32.xlu0 %v3742, 32
          %v3745 = vpop.permute.xlu0 %3744
          %3746 = vrot.lane.b32.xlu0 %v3743, 32
          %v3747 = vpop.permute.xlu0 %3746
          %s3750 = scalar_lea.vmem %s301, 64 [#allocation5]
          %3751 = vst.msk [vmem:[%s3750] sm:$0xf] %vm2889, %v3745
          %3752 = vst.msk [vmem:[%s3750 + $0x4] sm:$0xf] %vm2889, %v3747
          %v3753 = vld [vmem:[#allocation4 + $0x70] sm:$0xff]
          %v3754 = vld [vmem:[#allocation4 + $0x78] sm:$0xff]
          %v3755 = vpack.c.bf16 %v3733, %v3732
          %3757 = vrot.lane.b32.xlu0 %v3755, 32
          %v3758 = vpop.permute.xlu0 %3757
          %v3760 = vsel %vm2757, %v3758, 0
          %3762 = vmatprep.subr.bf16.mxu0 0
          %3763 = vmatpush1.bf16.msra.mxu0 %v2753
          %3764 = vmatprep.subr.bf16.mxu0 0
          %3765 = vmatpush1.bf16.msra.mxu0 %v2754
          %3766 = vmatprep.subr.bf16.mxu0 0
          %3767 = vmatpush1.bf16.msra.mxu0 0
          %3768 = vmatprep.subr.bf16.mxu0 0
          %3769 = vmatpush1.bf16.msra.mxu0 0
          %3770 = vmatprep.subr.bf16.mxu0 0
          %3771 = vmatpush1.bf16.msra.mxu0 0
          %3772 = vmatprep.subr.bf16.mxu0 0
          %3773 = vmatpush1.bf16.msra.mxu0 0
          %3774 = vmatprep.subr.bf16.mxu0 0
          %3775 = vmatpush1.bf16.msra.mxu0 0
          %3776 = vmatprep.subr.bf16.mxu0 0
          %3777 = vmatpush1.bf16.msra.mxu0 0
          %3778 = vmatprep.subr.bf16.mxu0 0
          %3779 = vmatpush1.bf16.msra.mxu0 0
          %3780 = vmatprep.subr.bf16.mxu0 0
          %3781 = vmatpush1.bf16.msra.mxu0 0
          %3782 = vmatprep.subr.bf16.mxu0 0
          %3783 = vmatpush1.bf16.msra.mxu0 0
          %3784 = vmatprep.subr.bf16.mxu0 0
          %3785 = vmatpush1.bf16.msra.mxu0 0
          %3786 = vmatprep.subr.bf16.mxu0 0
          %3787 = vmatpush1.bf16.msra.mxu0 0
          %3788 = vmatprep.subr.bf16.mxu0 0
          %3789 = vmatpush1.bf16.msra.mxu0 0
          %3790 = vmatprep.subr.bf16.mxu0 0
          %3791 = vmatpush1.bf16.msra.mxu0 0
          %3792 = vmatprep.subr.bf16.mxu0 0
          %3793 = vmatpush1.bf16.msra.mxu0 0
          %3794 = vmatprep.mubr.bf16.mxu0 0
          %3795 = vmatmul.mubr.bf16.gmra.mrb[0].mxu0 %v3760
          %v3796 = vpop.f32.mrb[0].mxu0
          %v3797 = vadd.f32 0.0, %v3796
          %v3798 = vpop.f32.mrb[0].mxu0
          %v3799 = vpop.f32.mrb[0].mxu0
          %v3800 = vadd.f32 0.0, %v3799
          %v3801 = vpop.f32.mrb[0].mxu0
          %3802 = vdwg.mxu0
          %v3803 = vadd.f32 %v3753, %v3797
          %v3804 = vadd.f32 %v3754, %v3800
          %v3805 = vtanh.pop %v3803
          %v3806 = vtanh.pop %v3804
          %v3807 = vmul.f32 %v3805, %v710
          %v3808 = vmul.f32 %v3806, %v710
          %v3809 = vadd.f32 %v3807, %v711
          %v3810 = vadd.f32 %v3808, %v711
          %v3811 = vmul.f32 %v3809, %v3734
          %v3812 = vmul.f32 %v3810, %v3735
          %3815 = vrot.lane.b32.xlu0 %v3809, 64
          %v3816 = vpop.permute.xlu0 %3815
          %3817 = vrot.lane.b32.xlu0 %v3810, 64
          %v3818 = vpop.permute.xlu0 %3817
          %v3821 = vmul.f32 %v3809, %v3816
          %v3822 = vmul.f32 %v3810, %v3818
          %3825 = vrot.lane.b32.xlu0 %v3821, 32
          %v3826 = vpop.permute.xlu0 %3825
          %3827 = vrot.lane.b32.xlu0 %v3822, 32
          %v3828 = vpop.permute.xlu0 %3827
          %v3831 = vadd.f32 %v3811, %v3826
          %v3832 = vadd.f32 %v3812, %v3828
          %v3833 = vtanh.pop %v3831
          %v3834 = vtanh.pop %v3832
          %3837 = vrot.lane.b32.xlu0 %v3833, 64
          %v3838 = vpop.permute.xlu0 %3837
          %3839 = vrot.lane.b32.xlu0 %v3834, 64
          %v3840 = vpop.permute.xlu0 %3839
          %v3843 = vmul.f32 %v3809, %v3838
          %v3844 = vmul.f32 %v3810, %v3840
          %v3845 = vsel %vm687, 1, 0
          %v3846 = vsel %vm688, 1, 0
          %3847 = vset.pattern.permute.xlu0 0
          %3848 = vperm.xlu0 %3847, %v3845
          %v3849 = vpop.permute.xlu0 %3848
          %3850 = vset.pattern.permute.xlu0 0
          %3851 = vperm.xlu0 %3850, %v3846
          %v3852 = vpop.permute.xlu0 %3851
          %vm3853 = vcmp.eq.s32.totalorder %v3849, 1
          %vm3854 = vcmp.eq.s32.totalorder %v3852, 1
          %v3855 = vsel %vm3853, %v3843, %v3732
          %v3856 = vsel %vm3854, %v3844, %v3733
          %v3857 = vsel %vm3853, %v3831, %v3734
          %v3858 = vsel %vm3854, %v3832, %v3735
          %v3859 = vsel %vm3853, %v3843, 0.0
          %v3860 = vsel %vm3854, %v3844, 0.0
          %v3861 = vpack.c.bf16 %v3860, %v3859
          %v3863 = vunpack.c.l.b16 %v3861
          %v3864 = vunpack.c.h.b16 %v3861
          %v3865 = vpack.c.b16 %v3863, %v3863
          %v3866 = vpack.c.b16 %v3864, %v3864
          %3867 = vrot.lane.b32.xlu0 %v3865, 32
          %v3868 = vpop.permute.xlu0 %3867
          %3869 = vrot.lane.b32.xlu0 %v3866, 32
          %v3870 = vpop.permute.xlu0 %3869
          %s3873 = scalar_lea.vmem %s301, 56 [#allocation5]
          %3874 = vst.msk [vmem:[%s3873] sm:$0xf] %vm2889, %v3868
          %3875 = vst.msk [vmem:[%s3873 + $0x4] sm:$0xf] %vm2889, %v3870
          %v3876 = vld [vmem:[#allocation4 + $0x60] sm:$0xff]
          %v3877 = vld [vmem:[#allocation4 + $0x68] sm:$0xff]
          %v3878 = vpack.c.bf16 %v3856, %v3855
          %3880 = vrot.lane.b32.xlu0 %v3878, 32
          %v3881 = vpop.permute.xlu0 %3880
          %v3883 = vsel %vm2757, %v3881, 0
          %3885 = vmatprep.subr.bf16.mxu0 0
          %3886 = vmatpush1.bf16.msra.mxu0 %v2753
          %3887 = vmatprep.subr.bf16.mxu0 0
          %3888 = vmatpush1.bf16.msra.mxu0 %v2754
          %3889 = vmatprep.subr.bf16.mxu0 0
          %3890 = vmatpush1.bf16.msra.mxu0 0
          %3891 = vmatprep.subr.bf16.mxu0 0
          %3892 = vmatpush1.bf16.msra.mxu0 0
          %3893 = vmatprep.subr.bf16.mxu0 0
          %3894 = vmatpush1.bf16.msra.mxu0 0
          %3895 = vmatprep.subr.bf16.mxu0 0
          %3896 = vmatpush1.bf16.msra.mxu0 0
          %3897 = vmatprep.subr.bf16.mxu0 0
          %3898 = vmatpush1.bf16.msra.mxu0 0
          %3899 = vmatprep.subr.bf16.mxu0 0
          %3900 = vmatpush1.bf16.msra.mxu0 0
          %3901 = vmatprep.subr.bf16.mxu0 0
          %3902 = vmatpush1.bf16.msra.mxu0 0
          %3903 = vmatprep.subr.bf16.mxu0 0
          %3904 = vmatpush1.bf16.msra.mxu0 0
          %3905 = vmatprep.subr.bf16.mxu0 0
          %3906 = vmatpush1.bf16.msra.mxu0 0
          %3907 = vmatprep.subr.bf16.mxu0 0
          %3908 = vmatpush1.bf16.msra.mxu0 0
          %3909 = vmatprep.subr.bf16.mxu0 0
          %3910 = vmatpush1.bf16.msra.mxu0 0
          %3911 = vmatprep.subr.bf16.mxu0 0
          %3912 = vmatpush1.bf16.msra.mxu0 0
          %3913 = vmatprep.subr.bf16.mxu0 0
          %3914 = vmatpush1.bf16.msra.mxu0 0
          %3915 = vmatprep.subr.bf16.mxu0 0
          %3916 = vmatpush1.bf16.msra.mxu0 0
          %3917 = vmatprep.mubr.bf16.mxu0 0
          %3918 = vmatmul.mubr.bf16.gmra.mrb[0].mxu0 %v3883
          %v3919 = vpop.f32.mrb[0].mxu0
          %v3920 = vadd.f32 0.0, %v3919
          %v3921 = vpop.f32.mrb[0].mxu0
          %v3922 = vpop.f32.mrb[0].mxu0
          %v3923 = vadd.f32 0.0, %v3922
          %v3924 = vpop.f32.mrb[0].mxu0
          %3925 = vdwg.mxu0
          %v3926 = vadd.f32 %v3876, %v3920
          %v3927 = vadd.f32 %v3877, %v3923
          %v3928 = vtanh.pop %v3926
          %v3929 = vtanh.pop %v3927
          %v3930 = vmul.f32 %v3928, %v710
          %v3931 = vmul.f32 %v3929, %v710
          %v3932 = vadd.f32 %v3930, %v711
          %v3933 = vadd.f32 %v3931, %v711
          %v3934 = vmul.f32 %v3932, %v3857
          %v3935 = vmul.f32 %v3933, %v3858
          %3938 = vrot.lane.b32.xlu0 %v3932, 64
          %v3939 = vpop.permute.xlu0 %3938
          %3940 = vrot.lane.b32.xlu0 %v3933, 64
          %v3941 = vpop.permute.xlu0 %3940
          %v3944 = vmul.f32 %v3932, %v3939
          %v3945 = vmul.f32 %v3933, %v3941
          %3948 = vrot.lane.b32.xlu0 %v3944, 32
          %v3949 = vpop.permute.xlu0 %3948
          %3950 = vrot.lane.b32.xlu0 %v3945, 32
          %v3951 = vpop.permute.xlu0 %3950
          %v3954 = vadd.f32 %v3934, %v3949
          %v3955 = vadd.f32 %v3935, %v3951
          %v3956 = vtanh.pop %v3954
          %v3957 = vtanh.pop %v3955
          %3960 = vrot.lane.b32.xlu0 %v3956, 64
          %v3961 = vpop.permute.xlu0 %3960
          %3962 = vrot.lane.b32.xlu0 %v3957, 64
          %v3963 = vpop.permute.xlu0 %3962
          %v3966 = vmul.f32 %v3932, %v3961
          %v3967 = vmul.f32 %v3933, %v3963
          %v3968 = vsel %vm685, 1, 0
          %v3969 = vsel %vm686, 1, 0
          %3970 = vset.pattern.permute.xlu0 0
          %3971 = vperm.xlu0 %3970, %v3968
          %v3972 = vpop.permute.xlu0 %3971
          %3973 = vset.pattern.permute.xlu0 0
          %3974 = vperm.xlu0 %3973, %v3969
          %v3975 = vpop.permute.xlu0 %3974
          %vm3976 = vcmp.eq.s32.totalorder %v3972, 1
          %vm3977 = vcmp.eq.s32.totalorder %v3975, 1
          %v3978 = vsel %vm3976, %v3966, %v3855
          %v3979 = vsel %vm3977, %v3967, %v3856
          %v3980 = vsel %vm3976, %v3954, %v3857
          %v3981 = vsel %vm3977, %v3955, %v3858
          %v3982 = vsel %vm3976, %v3966, 0.0
          %v3983 = vsel %vm3977, %v3967, 0.0
          %v3984 = vpack.c.bf16 %v3983, %v3982
          %v3986 = vunpack.c.l.b16 %v3984
          %v3987 = vunpack.c.h.b16 %v3984
          %v3988 = vpack.c.b16 %v3986, %v3986
          %v3989 = vpack.c.b16 %v3987, %v3987
          %3990 = vrot.lane.b32.xlu0 %v3988, 32
          %v3991 = vpop.permute.xlu0 %3990
          %3992 = vrot.lane.b32.xlu0 %v3989, 32
          %v3993 = vpop.permute.xlu0 %3992
          %s3996 = scalar_lea.vmem %s301, 48 [#allocation5]
          %3997 = vst.msk [vmem:[%s3996] sm:$0xf] %vm2889, %v3991
          %3998 = vst.msk [vmem:[%s3996 + $0x4] sm:$0xf] %vm2889, %v3993
          %v3999 = vld [vmem:[#allocation4 + $0x50] sm:$0xff]
          %v4000 = vld [vmem:[#allocation4 + $0x58] sm:$0xff]
          %v4001 = vpack.c.bf16 %v3979, %v3978
          %4003 = vrot.lane.b32.xlu0 %v4001, 32
          %v4004 = vpop.permute.xlu0 %4003
          %v4006 = vsel %vm2757, %v4004, 0
          %4008 = vmatprep.subr.bf16.mxu0 0
          %4009 = vmatpush1.bf16.msra.mxu0 %v2753
          %4010 = vmatprep.subr.bf16.mxu0 0
          %4011 = vmatpush1.bf16.msra.mxu0 %v2754
          %4012 = vmatprep.subr.bf16.mxu0 0
          %4013 = vmatpush1.bf16.msra.mxu0 0
          %4014 = vmatprep.subr.bf16.mxu0 0
          %4015 = vmatpush1.bf16.msra.mxu0 0
          %4016 = vmatprep.subr.bf16.mxu0 0
          %4017 = vmatpush1.bf16.msra.mxu0 0
          %4018 = vmatprep.subr.bf16.mxu0 0
          %4019 = vmatpush1.bf16.msra.mxu0 0
          %4020 = vmatprep.subr.bf16.mxu0 0
          %4021 = vmatpush1.bf16.msra.mxu0 0
          %4022 = vmatprep.subr.bf16.mxu0 0
          %4023 = vmatpush1.bf16.msra.mxu0 0
          %4024 = vmatprep.subr.bf16.mxu0 0
          %4025 = vmatpush1.bf16.msra.mxu0 0
          %4026 = vmatprep.subr.bf16.mxu0 0
          %4027 = vmatpush1.bf16.msra.mxu0 0
          %4028 = vmatprep.subr.bf16.mxu0 0
          %4029 = vmatpush1.bf16.msra.mxu0 0
          %4030 = vmatprep.subr.bf16.mxu0 0
          %4031 = vmatpush1.bf16.msra.mxu0 0
          %4032 = vmatprep.subr.bf16.mxu0 0
          %4033 = vmatpush1.bf16.msra.mxu0 0
          %4034 = vmatprep.subr.bf16.mxu0 0
          %4035 = vmatpush1.bf16.msra.mxu0 0
          %4036 = vmatprep.subr.bf16.mxu0 0
          %4037 = vmatpush1.bf16.msra.mxu0 0
          %4038 = vmatprep.subr.bf16.mxu0 0
          %4039 = vmatpush1.bf16.msra.mxu0 0
          %4040 = vmatprep.mubr.bf16.mxu0 0
          %4041 = vmatmul.mubr.bf16.gmra.mrb[0].mxu0 %v4006
          %v4042 = vpop.f32.mrb[0].mxu0
          %v4043 = vadd.f32 0.0, %v4042
          %v4044 = vpop.f32.mrb[0].mxu0
          %v4045 = vpop.f32.mrb[0].mxu0
          %v4046 = vadd.f32 0.0, %v4045
          %v4047 = vpop.f32.mrb[0].mxu0
          %4048 = vdwg.mxu0
          %v4049 = vadd.f32 %v3999, %v4043
          %v4050 = vadd.f32 %v4000, %v4046
          %v4051 = vtanh.pop %v4049
          %v4052 = vtanh.pop %v4050
          %v4053 = vmul.f32 %v4051, %v710
          %v4054 = vmul.f32 %v4052, %v710
          %v4055 = vadd.f32 %v4053, %v711
          %v4056 = vadd.f32 %v4054, %v711
          %v4057 = vmul.f32 %v4055, %v3980
          %v4058 = vmul.f32 %v4056, %v3981
          %4061 = vrot.lane.b32.xlu0 %v4055, 64
          %v4062 = vpop.permute.xlu0 %4061
          %4063 = vrot.lane.b32.xlu0 %v4056, 64
          %v4064 = vpop.permute.xlu0 %4063
          %v4067 = vmul.f32 %v4055, %v4062
          %v4068 = vmul.f32 %v4056, %v4064
          %4071 = vrot.lane.b32.xlu0 %v4067, 32
          %v4072 = vpop.permute.xlu0 %4071
          %4073 = vrot.lane.b32.xlu0 %v4068, 32
          %v4074 = vpop.permute.xlu0 %4073
          %v4077 = vadd.f32 %v4057, %v4072
          %v4078 = vadd.f32 %v4058, %v4074
          %v4079 = vtanh.pop %v4077
          %v4080 = vtanh.pop %v4078
          %4083 = vrot.lane.b32.xlu0 %v4079, 64
          %v4084 = vpop.permute.xlu0 %4083
          %4085 = vrot.lane.b32.xlu0 %v4080, 64
          %v4086 = vpop.permute.xlu0 %4085
          %v4089 = vmul.f32 %v4055, %v4084
          %v4090 = vmul.f32 %v4056, %v4086
          %v4091 = vsel %vm683, 1, 0
          %v4092 = vsel %vm684, 1, 0
          %4093 = vset.pattern.permute.xlu0 0
          %4094 = vperm.xlu0 %4093, %v4091
          %v4095 = vpop.permute.xlu0 %4094
          %4096 = vset.pattern.permute.xlu0 0
          %4097 = vperm.xlu0 %4096, %v4092
          %v4098 = vpop.permute.xlu0 %4097
          %vm4099 = vcmp.eq.s32.totalorder %v4095, 1
          %vm4100 = vcmp.eq.s32.totalorder %v4098, 1
          %v4101 = vsel %vm4099, %v4089, %v3978
          %v4102 = vsel %vm4100, %v4090, %v3979
          %v4103 = vsel %vm4099, %v4077, %v3980
          %v4104 = vsel %vm4100, %v4078, %v3981
          %v4105 = vsel %vm4099, %v4089, 0.0
          %v4106 = vsel %vm4100, %v4090, 0.0
          %v4107 = vpack.c.bf16 %v4106, %v4105
          %v4109 = vunpack.c.l.b16 %v4107
          %v4110 = vunpack.c.h.b16 %v4107
          %v4111 = vpack.c.b16 %v4109, %v4109
          %v4112 = vpack.c.b16 %v4110, %v4110
          %4113 = vrot.lane.b32.xlu0 %v4111, 32
          %v4114 = vpop.permute.xlu0 %4113
          %4115 = vrot.lane.b32.xlu0 %v4112, 32
          %v4116 = vpop.permute.xlu0 %4115
          %s4119 = scalar_lea.vmem %s301, 40 [#allocation5]
          %4120 = vst.msk [vmem:[%s4119] sm:$0xf] %vm2889, %v4114
          %4121 = vst.msk [vmem:[%s4119 + $0x4] sm:$0xf] %vm2889, %v4116
          %v4122 = vld [vmem:[#allocation4 + $0x40] sm:$0xff]
          %v4123 = vld [vmem:[#allocation4 + $0x48] sm:$0xff]
          %v4124 = vpack.c.bf16 %v4102, %v4101
          %4126 = vrot.lane.b32.xlu0 %v4124, 32
          %v4127 = vpop.permute.xlu0 %4126
          %v4129 = vsel %vm2757, %v4127, 0
          %4131 = vmatprep.subr.bf16.mxu0 0
          %4132 = vmatpush1.bf16.msra.mxu0 %v2753
          %4133 = vmatprep.subr.bf16.mxu0 0
          %4134 = vmatpush1.bf16.msra.mxu0 %v2754
          %4135 = vmatprep.subr.bf16.mxu0 0
          %4136 = vmatpush1.bf16.msra.mxu0 0
          %4137 = vmatprep.subr.bf16.mxu0 0
          %4138 = vmatpush1.bf16.msra.mxu0 0
          %4139 = vmatprep.subr.bf16.mxu0 0
          %4140 = vmatpush1.bf16.msra.mxu0 0
          %4141 = vmatprep.subr.bf16.mxu0 0
          %4142 = vmatpush1.bf16.msra.mxu0 0
          %4143 = vmatprep.subr.bf16.mxu0 0
          %4144 = vmatpush1.bf16.msra.mxu0 0
          %4145 = vmatprep.subr.bf16.mxu0 0
          %4146 = vmatpush1.bf16.msra.mxu0 0
          %4147 = vmatprep.subr.bf16.mxu0 0
          %4148 = vmatpush1.bf16.msra.mxu0 0
          %4149 = vmatprep.subr.bf16.mxu0 0
          %4150 = vmatpush1.bf16.msra.mxu0 0
          %4151 = vmatprep.subr.bf16.mxu0 0
          %4152 = vmatpush1.bf16.msra.mxu0 0
          %4153 = vmatprep.subr.bf16.mxu0 0
          %4154 = vmatpush1.bf16.msra.mxu0 0
          %4155 = vmatprep.subr.bf16.mxu0 0
          %4156 = vmatpush1.bf16.msra.mxu0 0
          %4157 = vmatprep.subr.bf16.mxu0 0
          %4158 = vmatpush1.bf16.msra.mxu0 0
          %4159 = vmatprep.subr.bf16.mxu0 0
          %4160 = vmatpush1.bf16.msra.mxu0 0
          %4161 = vmatprep.subr.bf16.mxu0 0
          %4162 = vmatpush1.bf16.msra.mxu0 0
          %4163 = vmatprep.mubr.bf16.mxu0 0
          %4164 = vmatmul.mubr.bf16.gmra.mrb[0].mxu0 %v4129
          %v4165 = vpop.f32.mrb[0].mxu0
          %v4166 = vadd.f32 0.0, %v4165
          %v4167 = vpop.f32.mrb[0].mxu0
          %v4168 = vpop.f32.mrb[0].mxu0
          %v4169 = vadd.f32 0.0, %v4168
          %v4170 = vpop.f32.mrb[0].mxu0
          %4171 = vdwg.mxu0
          %v4172 = vadd.f32 %v4122, %v4166
          %v4173 = vadd.f32 %v4123, %v4169
          %v4174 = vtanh.pop %v4172
          %v4175 = vtanh.pop %v4173
          %v4176 = vmul.f32 %v4174, %v710
          %v4177 = vmul.f32 %v4175, %v710
          %v4178 = vadd.f32 %v4176, %v711
          %v4179 = vadd.f32 %v4177, %v711
          %v4180 = vmul.f32 %v4178, %v4103
          %v4181 = vmul.f32 %v4179, %v4104
          %4184 = vrot.lane.b32.xlu0 %v4178, 64
          %v4185 = vpop.permute.xlu0 %4184
          %4186 = vrot.lane.b32.xlu0 %v4179, 64
          %v4187 = vpop.permute.xlu0 %4186
          %v4190 = vmul.f32 %v4178, %v4185
          %v4191 = vmul.f32 %v4179, %v4187
          %4194 = vrot.lane.b32.xlu0 %v4190, 32
          %v4195 = vpop.permute.xlu0 %4194
          %4196 = vrot.lane.b32.xlu0 %v4191, 32
          %v4197 = vpop.permute.xlu0 %4196
          %v4200 = vadd.f32 %v4180, %v4195
          %v4201 = vadd.f32 %v4181, %v4197
          %v4202 = vtanh.pop %v4200
          %v4203 = vtanh.pop %v4201
          %4206 = vrot.lane.b32.xlu0 %v4202, 64
          %v4207 = vpop.permute.xlu0 %4206
          %4208 = vrot.lane.b32.xlu0 %v4203, 64
          %v4209 = vpop.permute.xlu0 %4208
          %v4212 = vmul.f32 %v4178, %v4207
          %v4213 = vmul.f32 %v4179, %v4209
          %v4214 = vsel %vm681, 1, 0
          %v4215 = vsel %vm682, 1, 0
          %4216 = vset.pattern.permute.xlu0 0
          %4217 = vperm.xlu0 %4216, %v4214
          %v4218 = vpop.permute.xlu0 %4217
          %4219 = vset.pattern.permute.xlu0 0
          %4220 = vperm.xlu0 %4219, %v4215
          %v4221 = vpop.permute.xlu0 %4220
          %vm4222 = vcmp.eq.s32.totalorder %v4218, 1
          %vm4223 = vcmp.eq.s32.totalorder %v4221, 1
          %v4224 = vsel %vm4222, %v4212, %v4101
          %v4225 = vsel %vm4223, %v4213, %v4102
          %v4226 = vsel %vm4222, %v4200, %v4103
          %v4227 = vsel %vm4223, %v4201, %v4104
          %v4228 = vsel %vm4222, %v4212, 0.0
          %v4229 = vsel %vm4223, %v4213, 0.0
          %v4230 = vpack.c.bf16 %v4229, %v4228
          %v4232 = vunpack.c.l.b16 %v4230
          %v4233 = vunpack.c.h.b16 %v4230
          %v4234 = vpack.c.b16 %v4232, %v4232
          %v4235 = vpack.c.b16 %v4233, %v4233
          %4236 = vrot.lane.b32.xlu0 %v4234, 32
          %v4237 = vpop.permute.xlu0 %4236
          %4238 = vrot.lane.b32.xlu0 %v4235, 32
          %v4239 = vpop.permute.xlu0 %4238
          %s4242 = scalar_lea.vmem %s301, 32 [#allocation5]
          %4243 = vst.msk [vmem:[%s4242] sm:$0xf] %vm2889, %v4237
          %4244 = vst.msk [vmem:[%s4242 + $0x4] sm:$0xf] %vm2889, %v4239
          %v4245 = vld [vmem:[#allocation4 + $0x30] sm:$0xff]
          %v4246 = vld [vmem:[#allocation4 + $0x38] sm:$0xff]
          %v4247 = vpack.c.bf16 %v4225, %v4224
          %4249 = vrot.lane.b32.xlu0 %v4247, 32
          %v4250 = vpop.permute.xlu0 %4249
          %v4252 = vsel %vm2757, %v4250, 0
          %4254 = vmatprep.subr.bf16.mxu0 0
          %4255 = vmatpush1.bf16.msra.mxu0 %v2753
          %4256 = vmatprep.subr.bf16.mxu0 0
          %4257 = vmatpush1.bf16.msra.mxu0 %v2754
          %4258 = vmatprep.subr.bf16.mxu0 0
          %4259 = vmatpush1.bf16.msra.mxu0 0
          %4260 = vmatprep.subr.bf16.mxu0 0
          %4261 = vmatpush1.bf16.msra.mxu0 0
          %4262 = vmatprep.subr.bf16.mxu0 0
          %4263 = vmatpush1.bf16.msra.mxu0 0
          %4264 = vmatprep.subr.bf16.mxu0 0
          %4265 = vmatpush1.bf16.msra.mxu0 0
          %4266 = vmatprep.subr.bf16.mxu0 0
          %4267 = vmatpush1.bf16.msra.mxu0 0
          %4268 = vmatprep.subr.bf16.mxu0 0
          %4269 = vmatpush1.bf16.msra.mxu0 0
          %4270 = vmatprep.subr.bf16.mxu0 0
          %4271 = vmatpush1.bf16.msra.mxu0 0
          %4272 = vmatprep.subr.bf16.mxu0 0
          %4273 = vmatpush1.bf16.msra.mxu0 0
          %4274 = vmatprep.subr.bf16.mxu0 0
          %4275 = vmatpush1.bf16.msra.mxu0 0
          %4276 = vmatprep.subr.bf16.mxu0 0
          %4277 = vmatpush1.bf16.msra.mxu0 0
          %4278 = vmatprep.subr.bf16.mxu0 0
          %4279 = vmatpush1.bf16.msra.mxu0 0
          %4280 = vmatprep.subr.bf16.mxu0 0
          %4281 = vmatpush1.bf16.msra.mxu0 0
          %4282 = vmatprep.subr.bf16.mxu0 0
          %4283 = vmatpush1.bf16.msra.mxu0 0
          %4284 = vmatprep.subr.bf16.mxu0 0
          %4285 = vmatpush1.bf16.msra.mxu0 0
          %4286 = vmatprep.mubr.bf16.mxu0 0
          %4287 = vmatmul.mubr.bf16.gmra.mrb[0].mxu0 %v4252
          %v4288 = vpop.f32.mrb[0].mxu0
          %v4289 = vadd.f32 0.0, %v4288
          %v4290 = vpop.f32.mrb[0].mxu0
          %v4291 = vpop.f32.mrb[0].mxu0
          %v4292 = vadd.f32 0.0, %v4291
          %v4293 = vpop.f32.mrb[0].mxu0
          %4294 = vdwg.mxu0
          %v4295 = vadd.f32 %v4245, %v4289
          %v4296 = vadd.f32 %v4246, %v4292
          %v4297 = vtanh.pop %v4295
          %v4298 = vtanh.pop %v4296
          %v4299 = vmul.f32 %v4297, %v710
          %v4300 = vmul.f32 %v4298, %v710
          %v4301 = vadd.f32 %v4299, %v711
          %v4302 = vadd.f32 %v4300, %v711
          %v4303 = vmul.f32 %v4301, %v4226
          %v4304 = vmul.f32 %v4302, %v4227
          %4307 = vrot.lane.b32.xlu0 %v4301, 64
          %v4308 = vpop.permute.xlu0 %4307
          %4309 = vrot.lane.b32.xlu0 %v4302, 64
          %v4310 = vpop.permute.xlu0 %4309
          %v4313 = vmul.f32 %v4301, %v4308
          %v4314 = vmul.f32 %v4302, %v4310
          %4317 = vrot.lane.b32.xlu0 %v4313, 32
          %v4318 = vpop.permute.xlu0 %4317
          %4319 = vrot.lane.b32.xlu0 %v4314, 32
          %v4320 = vpop.permute.xlu0 %4319
          %v4323 = vadd.f32 %v4303, %v4318
          %v4324 = vadd.f32 %v4304, %v4320
          %v4325 = vtanh.pop %v4323
          %v4326 = vtanh.pop %v4324
          %4329 = vrot.lane.b32.xlu0 %v4325, 64
          %v4330 = vpop.permute.xlu0 %4329
          %4331 = vrot.lane.b32.xlu0 %v4326, 64
          %v4332 = vpop.permute.xlu0 %4331
          %v4335 = vmul.f32 %v4301, %v4330
          %v4336 = vmul.f32 %v4302, %v4332
          %v4337 = vsel %vm679, 1, 0
          %v4338 = vsel %vm680, 1, 0
          %4339 = vset.pattern.permute.xlu0 0
          %4340 = vperm.xlu0 %4339, %v4337
          %v4341 = vpop.permute.xlu0 %4340
          %4342 = vset.pattern.permute.xlu0 0
          %4343 = vperm.xlu0 %4342, %v4338
          %v4344 = vpop.permute.xlu0 %4343
          %vm4345 = vcmp.eq.s32.totalorder %v4341, 1
          %vm4346 = vcmp.eq.s32.totalorder %v4344, 1
          %v4347 = vsel %vm4345, %v4335, %v4224
          %v4348 = vsel %vm4346, %v4336, %v4225
          %v4349 = vsel %vm4345, %v4323, %v4226
          %v4350 = vsel %vm4346, %v4324, %v4227
          %v4351 = vsel %vm4345, %v4335, 0.0
          %v4352 = vsel %vm4346, %v4336, 0.0
          %v4353 = vpack.c.bf16 %v4352, %v4351
          %v4355 = vunpack.c.l.b16 %v4353
          %v4356 = vunpack.c.h.b16 %v4353
          %v4357 = vpack.c.b16 %v4355, %v4355
          %v4358 = vpack.c.b16 %v4356, %v4356
          %4359 = vrot.lane.b32.xlu0 %v4357, 32
          %v4360 = vpop.permute.xlu0 %4359
          %4361 = vrot.lane.b32.xlu0 %v4358, 32
          %v4362 = vpop.permute.xlu0 %4361
          %s4365 = scalar_lea.vmem %s301, 24 [#allocation5]
          %4366 = vst.msk [vmem:[%s4365] sm:$0xf] %vm2889, %v4360
          %4367 = vst.msk [vmem:[%s4365 + $0x4] sm:$0xf] %vm2889, %v4362
          %v4368 = vld [vmem:[#allocation4 + $0x20] sm:$0xff]
          %v4369 = vld [vmem:[#allocation4 + $0x28] sm:$0xff]
          %v4370 = vpack.c.bf16 %v4348, %v4347
          %4372 = vrot.lane.b32.xlu0 %v4370, 32
          %v4373 = vpop.permute.xlu0 %4372
          %v4375 = vsel %vm2757, %v4373, 0
          %4377 = vmatprep.subr.bf16.mxu0 0
          %4378 = vmatpush1.bf16.msra.mxu0 %v2753
          %4379 = vmatprep.subr.bf16.mxu0 0
          %4380 = vmatpush1.bf16.msra.mxu0 %v2754
          %4381 = vmatprep.subr.bf16.mxu0 0
          %4382 = vmatpush1.bf16.msra.mxu0 0
          %4383 = vmatprep.subr.bf16.mxu0 0
          %4384 = vmatpush1.bf16.msra.mxu0 0
          %4385 = vmatprep.subr.bf16.mxu0 0
          %4386 = vmatpush1.bf16.msra.mxu0 0
          %4387 = vmatprep.subr.bf16.mxu0 0
          %4388 = vmatpush1.bf16.msra.mxu0 0
          %4389 = vmatprep.subr.bf16.mxu0 0
          %4390 = vmatpush1.bf16.msra.mxu0 0
          %4391 = vmatprep.subr.bf16.mxu0 0
          %4392 = vmatpush1.bf16.msra.mxu0 0
          %4393 = vmatprep.subr.bf16.mxu0 0
          %4394 = vmatpush1.bf16.msra.mxu0 0
          %4395 = vmatprep.subr.bf16.mxu0 0
          %4396 = vmatpush1.bf16.msra.mxu0 0
          %4397 = vmatprep.subr.bf16.mxu0 0
          %4398 = vmatpush1.bf16.msra.mxu0 0
          %4399 = vmatprep.subr.bf16.mxu0 0
          %4400 = vmatpush1.bf16.msra.mxu0 0
          %4401 = vmatprep.subr.bf16.mxu0 0
          %4402 = vmatpush1.bf16.msra.mxu0 0
          %4403 = vmatprep.subr.bf16.mxu0 0
          %4404 = vmatpush1.bf16.msra.mxu0 0
          %4405 = vmatprep.subr.bf16.mxu0 0
          %4406 = vmatpush1.bf16.msra.mxu0 0
          %4407 = vmatprep.subr.bf16.mxu0 0
          %4408 = vmatpush1.bf16.msra.mxu0 0
          %4409 = vmatprep.mubr.bf16.mxu0 0
          %4410 = vmatmul.mubr.bf16.gmra.mrb[0].mxu0 %v4375
          %v4411 = vpop.f32.mrb[0].mxu0
          %v4412 = vadd.f32 0.0, %v4411
          %v4413 = vpop.f32.mrb[0].mxu0
          %v4414 = vpop.f32.mrb[0].mxu0
          %v4415 = vadd.f32 0.0, %v4414
          %v4416 = vpop.f32.mrb[0].mxu0
          %4417 = vdwg.mxu0
          %v4418 = vadd.f32 %v4368, %v4412
          %v4419 = vadd.f32 %v4369, %v4415
          %v4420 = vtanh.pop %v4418
          %v4421 = vtanh.pop %v4419
          %v4422 = vmul.f32 %v4420, %v710
          %v4423 = vmul.f32 %v4421, %v710
          %v4424 = vadd.f32 %v4422, %v711
          %v4425 = vadd.f32 %v4423, %v711
          %v4426 = vmul.f32 %v4424, %v4349
          %v4427 = vmul.f32 %v4425, %v4350
          %4430 = vrot.lane.b32.xlu0 %v4424, 64
          %v4431 = vpop.permute.xlu0 %4430
          %4432 = vrot.lane.b32.xlu0 %v4425, 64
          %v4433 = vpop.permute.xlu0 %4432
          %v4436 = vmul.f32 %v4424, %v4431
          %v4437 = vmul.f32 %v4425, %v4433
          %4440 = vrot.lane.b32.xlu0 %v4436, 32
          %v4441 = vpop.permute.xlu0 %4440
          %4442 = vrot.lane.b32.xlu0 %v4437, 32
          %v4443 = vpop.permute.xlu0 %4442
          %v4446 = vadd.f32 %v4426, %v4441
          %v4447 = vadd.f32 %v4427, %v4443
          %v4448 = vtanh.pop %v4446
          %v4449 = vtanh.pop %v4447
          %4452 = vrot.lane.b32.xlu0 %v4448, 64
          %v4453 = vpop.permute.xlu0 %4452
          %4454 = vrot.lane.b32.xlu0 %v4449, 64
          %v4455 = vpop.permute.xlu0 %4454
          %v4458 = vmul.f32 %v4424, %v4453
          %v4459 = vmul.f32 %v4425, %v4455
          %v4460 = vsel %vm677, 1, 0
          %v4461 = vsel %vm678, 1, 0
          %4462 = vset.pattern.permute.xlu0 0
          %4463 = vperm.xlu0 %4462, %v4460
          %v4464 = vpop.permute.xlu0 %4463
          %4465 = vset.pattern.permute.xlu0 0
          %4466 = vperm.xlu0 %4465, %v4461
          %v4467 = vpop.permute.xlu0 %4466
          %vm4468 = vcmp.eq.s32.totalorder %v4464, 1
          %vm4469 = vcmp.eq.s32.totalorder %v4467, 1
          %v4470 = vsel %vm4468, %v4458, %v4347
          %v4471 = vsel %vm4469, %v4459, %v4348
          %v4472 = vsel %vm4468, %v4446, %v4349
          %v4473 = vsel %vm4469, %v4447, %v4350
          %v4474 = vsel %vm4468, %v4458, 0.0
          %v4475 = vsel %vm4469, %v4459, 0.0
          %v4476 = vpack.c.bf16 %v4475, %v4474
          %v4478 = vunpack.c.l.b16 %v4476
          %v4479 = vunpack.c.h.b16 %v4476
          %v4480 = vpack.c.b16 %v4478, %v4478
          %v4481 = vpack.c.b16 %v4479, %v4479
          %4482 = vrot.lane.b32.xlu0 %v4480, 32
          %v4483 = vpop.permute.xlu0 %4482
          %4484 = vrot.lane.b32.xlu0 %v4481, 32
          %v4485 = vpop.permute.xlu0 %4484
          %s4488 = scalar_lea.vmem %s301, 16 [#allocation5]
          %4489 = vst.msk [vmem:[%s4488] sm:$0xf] %vm2889, %v4483
          %4490 = vst.msk [vmem:[%s4488 + $0x4] sm:$0xf] %vm2889, %v4485
          %v4491 = vld [vmem:[#allocation4 + $0x10] sm:$0xff]
          %v4492 = vld [vmem:[#allocation4 + $0x18] sm:$0xff]
          %v4493 = vpack.c.bf16 %v4471, %v4470
          %4495 = vrot.lane.b32.xlu0 %v4493, 32
          %v4496 = vpop.permute.xlu0 %4495
          %v4498 = vsel %vm2757, %v4496, 0
          %4500 = vmatprep.subr.bf16.mxu0 0
          %4501 = vmatpush1.bf16.msra.mxu0 %v2753
          %4502 = vmatprep.subr.bf16.mxu0 0
          %4503 = vmatpush1.bf16.msra.mxu0 %v2754
          %4504 = vmatprep.subr.bf16.mxu0 0
          %4505 = vmatpush1.bf16.msra.mxu0 0
          %4506 = vmatprep.subr.bf16.mxu0 0
          %4507 = vmatpush1.bf16.msra.mxu0 0
          %4508 = vmatprep.subr.bf16.mxu0 0
          %4509 = vmatpush1.bf16.msra.mxu0 0
          %4510 = vmatprep.subr.bf16.mxu0 0
          %4511 = vmatpush1.bf16.msra.mxu0 0
          %4512 = vmatprep.subr.bf16.mxu0 0
          %4513 = vmatpush1.bf16.msra.mxu0 0
          %4514 = vmatprep.subr.bf16.mxu0 0
          %4515 = vmatpush1.bf16.msra.mxu0 0
          %4516 = vmatprep.subr.bf16.mxu0 0
          %4517 = vmatpush1.bf16.msra.mxu0 0
          %4518 = vmatprep.subr.bf16.mxu0 0
          %4519 = vmatpush1.bf16.msra.mxu0 0
          %4520 = vmatprep.subr.bf16.mxu0 0
          %4521 = vmatpush1.bf16.msra.mxu0 0
          %4522 = vmatprep.subr.bf16.mxu0 0
          %4523 = vmatpush1.bf16.msra.mxu0 0
          %4524 = vmatprep.subr.bf16.mxu0 0
          %4525 = vmatpush1.bf16.msra.mxu0 0
          %4526 = vmatprep.subr.bf16.mxu0 0
          %4527 = vmatpush1.bf16.msra.mxu0 0
          %4528 = vmatprep.subr.bf16.mxu0 0
          %4529 = vmatpush1.bf16.msra.mxu0 0
          %4530 = vmatprep.subr.bf16.mxu0 0
          %4531 = vmatpush1.bf16.msra.mxu0 0
          %4532 = vmatprep.mubr.bf16.mxu0 0
          %4533 = vmatmul.mubr.bf16.gmra.mrb[0].mxu0 %v4498
          %v4534 = vpop.f32.mrb[0].mxu0
          %v4535 = vadd.f32 0.0, %v4534
          %v4536 = vpop.f32.mrb[0].mxu0
          %v4537 = vpop.f32.mrb[0].mxu0
          %v4538 = vadd.f32 0.0, %v4537
          %v4539 = vpop.f32.mrb[0].mxu0
          %4540 = vdwg.mxu0
          %v4541 = vadd.f32 %v4491, %v4535
          %v4542 = vadd.f32 %v4492, %v4538
          %v4543 = vtanh.pop %v4541
          %v4544 = vtanh.pop %v4542
          %v4545 = vmul.f32 %v4543, %v710
          %v4546 = vmul.f32 %v4544, %v710
          %v4547 = vadd.f32 %v4545, %v711
          %v4548 = vadd.f32 %v4546, %v711
          %v4549 = vmul.f32 %v4547, %v4472
          %v4550 = vmul.f32 %v4548, %v4473
          %4553 = vrot.lane.b32.xlu0 %v4547, 64
          %v4554 = vpop.permute.xlu0 %4553
          %4555 = vrot.lane.b32.xlu0 %v4548, 64
          %v4556 = vpop.permute.xlu0 %4555
          %v4559 = vmul.f32 %v4547, %v4554
          %v4560 = vmul.f32 %v4548, %v4556
          %4563 = vrot.lane.b32.xlu0 %v4559, 32
          %v4564 = vpop.permute.xlu0 %4563
          %4565 = vrot.lane.b32.xlu0 %v4560, 32
          %v4566 = vpop.permute.xlu0 %4565
          %v4569 = vadd.f32 %v4549, %v4564
          %v4570 = vadd.f32 %v4550, %v4566
          %v4571 = vtanh.pop %v4569
          %v4572 = vtanh.pop %v4570
          %4575 = vrot.lane.b32.xlu0 %v4571, 64
          %v4576 = vpop.permute.xlu0 %4575
          %4577 = vrot.lane.b32.xlu0 %v4572, 64
          %v4578 = vpop.permute.xlu0 %4577
          %v4581 = vmul.f32 %v4547, %v4576
          %v4582 = vmul.f32 %v4548, %v4578
          %v4583 = vsel %vm675, 1, 0
          %v4584 = vsel %vm676, 1, 0
          %4585 = vset.pattern.permute.xlu0 0
          %4586 = vperm.xlu0 %4585, %v4583
          %v4587 = vpop.permute.xlu0 %4586
          %4588 = vset.pattern.permute.xlu0 0
          %4589 = vperm.xlu0 %4588, %v4584
          %v4590 = vpop.permute.xlu0 %4589
          %vm4591 = vcmp.eq.s32.totalorder %v4587, 1
          %vm4592 = vcmp.eq.s32.totalorder %v4590, 1
          %v4593 = vsel %vm4591, %v4581, %v4470
          %v4594 = vsel %vm4592, %v4582, %v4471
          %v4595 = vsel %vm4591, %v4569, %v4472
          %v4596 = vsel %vm4592, %v4570, %v4473
          %v4597 = vsel %vm4591, %v4581, 0.0
          %v4598 = vsel %vm4592, %v4582, 0.0
          %v4599 = vpack.c.bf16 %v4598, %v4597
          %v4601 = vunpack.c.l.b16 %v4599
          %v4602 = vunpack.c.h.b16 %v4599
          %v4603 = vpack.c.b16 %v4601, %v4601
          %v4604 = vpack.c.b16 %v4602, %v4602
          %4605 = vrot.lane.b32.xlu0 %v4603, 32
          %v4606 = vpop.permute.xlu0 %4605
          %4607 = vrot.lane.b32.xlu0 %v4604, 32
          %v4608 = vpop.permute.xlu0 %4607
          %s4611 = scalar_lea.vmem %s301, 8 [#allocation5]
          %4612 = vst.msk [vmem:[%s4611] sm:$0xf] %vm2889, %v4606
          %4613 = vst.msk [vmem:[%s4611 + $0x4] sm:$0xf] %vm2889, %v4608
          %v4614 = vld [vmem:[#allocation4] sm:$0xff]
          %v4615 = vld [vmem:[#allocation4 + $0x8] sm:$0xff]
          %v4616 = vpack.c.bf16 %v4594, %v4593
          %4618 = vrot.lane.b32.xlu0 %v4616, 32
          %v4619 = vpop.permute.xlu0 %4618
          %v4621 = vsel %vm2757, %v4619, 0
          %4623 = vmatprep.subr.bf16.mxu0 0
          %4624 = vmatpush1.bf16.msra.mxu0 %v2753
          %4625 = vmatprep.subr.bf16.mxu0 0
          %4626 = vmatpush1.bf16.msra.mxu0 %v2754
          %4627 = vmatprep.subr.bf16.mxu0 0
          %4628 = vmatpush1.bf16.msra.mxu0 0
          %4629 = vmatprep.subr.bf16.mxu0 0
          %4630 = vmatpush1.bf16.msra.mxu0 0
          %4631 = vmatprep.subr.bf16.mxu0 0
          %4632 = vmatpush1.bf16.msra.mxu0 0
          %4633 = vmatprep.subr.bf16.mxu0 0
          %4634 = vmatpush1.bf16.msra.mxu0 0
          %4635 = vmatprep.subr.bf16.mxu0 0
          %4636 = vmatpush1.bf16.msra.mxu0 0
          %4637 = vmatprep.subr.bf16.mxu0 0
          %4638 = vmatpush1.bf16.msra.mxu0 0
          %4639 = vmatprep.subr.bf16.mxu0 0
          %4640 = vmatpush1.bf16.msra.mxu0 0
          %4641 = vmatprep.subr.bf16.mxu0 0
          %4642 = vmatpush1.bf16.msra.mxu0 0
          %4643 = vmatprep.subr.bf16.mxu0 0
          %4644 = vmatpush1.bf16.msra.mxu0 0
          %4645 = vmatprep.subr.bf16.mxu0 0
          %4646 = vmatpush1.bf16.msra.mxu0 0
          %4647 = vmatprep.subr.bf16.mxu0 0
          %4648 = vmatpush1.bf16.msra.mxu0 0
          %4649 = vmatprep.subr.bf16.mxu0 0
          %4650 = vmatpush1.bf16.msra.mxu0 0
          %4651 = vmatprep.subr.bf16.mxu0 0
          %4652 = vmatpush1.bf16.msra.mxu0 0
          %4653 = vmatprep.subr.bf16.mxu0 0
          %4654 = vmatpush1.bf16.msra.mxu0 0
          %4655 = vmatprep.mubr.bf16.mxu0 0
          %4656 = vmatmul.mubr.bf16.gmra.mrb[0].mxu0 %v4621
          %v4657 = vpop.f32.mrb[0].mxu0
          %v4658 = vadd.f32 0.0, %v4657
          %v4659 = vpop.f32.mrb[0].mxu0
          %v4660 = vpop.f32.mrb[0].mxu0
          %v4661 = vadd.f32 0.0, %v4660
          %v4662 = vpop.f32.mrb[0].mxu0
          %4663 = vdwg.mxu0
          %v4664 = vadd.f32 %v4614, %v4658
          %v4665 = vadd.f32 %v4615, %v4661
          %v4666 = vtanh.pop %v4664
          %v4667 = vtanh.pop %v4665
          %v4668 = vmul.f32 %v4666, %v710
          %v4669 = vmul.f32 %v4667, %v710
          %v4670 = vadd.f32 %v4668, %v711
          %v4671 = vadd.f32 %v4669, %v711
          %v4672 = vmul.f32 %v4670, %v4595
          %v4673 = vmul.f32 %v4671, %v4596
          %4676 = vrot.lane.b32.xlu0 %v4670, 64
          %v4677 = vpop.permute.xlu0 %4676
          %4678 = vrot.lane.b32.xlu0 %v4671, 64
          %v4679 = vpop.permute.xlu0 %4678
          %v4682 = vmul.f32 %v4670, %v4677
          %v4683 = vmul.f32 %v4671, %v4679
          %4686 = vrot.lane.b32.xlu0 %v4682, 32
          %v4687 = vpop.permute.xlu0 %4686
          %4688 = vrot.lane.b32.xlu0 %v4683, 32
          %v4689 = vpop.permute.xlu0 %4688
          %v4692 = vadd.f32 %v4672, %v4687
          %v4693 = vadd.f32 %v4673, %v4689
          %v4694 = vtanh.pop %v4692
          %v4695 = vtanh.pop %v4693
          %4698 = vrot.lane.b32.xlu0 %v4694, 64
          %v4699 = vpop.permute.xlu0 %4698
          %4700 = vrot.lane.b32.xlu0 %v4695, 64
          %v4701 = vpop.permute.xlu0 %4700
          %v4704 = vmul.f32 %v4670, %v4699
          %v4705 = vmul.f32 %v4671, %v4701
          %v4706 = vsel %vm673, 1, 0
          %v4707 = vsel %vm674, 1, 0
          %4708 = vset.pattern.permute.xlu0 0
          %4709 = vperm.xlu0 %4708, %v4706
          %v4710 = vpop.permute.xlu0 %4709
          %4711 = vset.pattern.permute.xlu0 0
          %4712 = vperm.xlu0 %4711, %v4707
          %v4713 = vpop.permute.xlu0 %4712
          %vm4714 = vcmp.eq.s32.totalorder %v4710, 1
          %vm4715 = vcmp.eq.s32.totalorder %v4713, 1
          %v4716 = vsel %vm4714, %v4704, %v4593
          %v4717 = vsel %vm4715, %v4705, %v4594
          %v4718 = vsel %vm4714, %v4692, %v4595
          %v4719 = vsel %vm4715, %v4693, %v4596
          %v4720 = vsel %vm4714, %v4704, 0.0
          %v4721 = vsel %vm4715, %v4705, 0.0
          %v4722 = vpack.c.bf16 %v4721, %v4720
          %v4724 = vunpack.c.l.b16 %v4722
          %v4725 = vunpack.c.h.b16 %v4722
          %v4726 = vpack.c.b16 %v4724, %v4724
          %v4727 = vpack.c.b16 %v4725, %v4725
          %4728 = vrot.lane.b32.xlu0 %v4726, 32
          %v4729 = vpop.permute.xlu0 %4728
          %4730 = vrot.lane.b32.xlu0 %v4727, 32
          %v4731 = vpop.permute.xlu0 %4730
          %4734 = vst.msk [vmem:[%s301] sm:$0xf] %vm2889, %v4729
          %4735 = vst.msk [vmem:[%s301 + $0x4] sm:$0xf] %vm2889, %v4731
          %4738 = vrot.lane.b32.xlu0 %v4716, 32
          %v4739 = vpop.permute.xlu0 %4738
          %4740 = vrot.lane.b32.xlu0 %v4717, 32
          %v4741 = vpop.permute.xlu0 %4740
          %4744 = vst.msk [vmem:[#allocation2] sm:$0xff] %vm2757, %v4739
          %4745 = vst.msk [vmem:[#allocation2 + $0x8] sm:$0xff] %vm2757, %v4741
          %4748 = vrot.lane.b32.xlu0 %v4718, 96
          %v4749 = vpop.permute.xlu0 %4748
          %4750 = vrot.lane.b32.xlu0 %v4719, 96
          %v4751 = vpop.permute.xlu0 %4750
          %4754 = vst.msk [vmem:[#allocation3] sm:$0xff] %vm2757, %v4749
          %4755 = vst.msk [vmem:[#allocation3 + $0x8] sm:$0xff] %vm2757, %v4751
        $region52: #{tpu_custom_call.1} parent=39 // pred_fallthru
          _
        %s4756 = sand.u32 %s182, 1
        %s4757 = scalar_lea.sflag [#allocation6], %s4756
        %s4758 = sand.u32 %s182, 1
        %s4759 = smul.addr %s4758, 128
        %s4760 = scalar_lea.vmem [#allocation5], %s4759
        // Predicated region
        $region53: #{tpu_custom_call.1} parent=39 // pred_check
          %p4761 = pneg %p192
        $region54: #{tpu_custom_call.1} parent=39 // pred_check_branch
          %4763 = sbr.rel (%p4761) target = $region56
        $region55: #{tpu_custom_call.1} parent=39 // pred_region
          %s4764 = smul.u32 %s24, 2
          %s4765 = ssub.s32 0, %s4764
          %s4766 = smul.u32 %s23, %s4765
          %s4767 = sadd.s32 %s24, %s4766
          %s4768 = smul.u32 16, %s4767
          %s4770 = ssub.s32 2048, 2048
          %4771 = vsyncadd %s4757, %s4770
          %s4772 = smul.addr %s4768, 2
          %s4773 = smul.addr %s23, 32
          %s4774 = sadd.s32 %s4772, %s4773
          %s4775 = smul.addr %s4774, 64
          %s4776 = scalar_lea.hbm %s5, %s4775
          %s4777 = sshll.u32 %s4760, 4
          %s4778 = int_to_ptr.vmem [resolvable:$true] %s4777
          %4783 = dma.vmem_to_hbm [thread:$0]  %s4778, 2048, %s4776, %s4757, 64, 64, 4
        $region56: #{tpu_custom_call.1} parent=39 // pred_fallthru
          _
      $region40: #{tpu_custom_call.1} parent=5 // pred_fallthru
        _
      %p4784 = scmp.le.s32.totalorder 2, %s14
      // Predicated region
      $region57: #{tpu_custom_call.1} parent=5 // pred_check
        %p4785 = pneg %p4784
      $region58: #{tpu_custom_call.1} parent=5 // pred_check_branch
        %4787 = sbr.rel (%p4785) target = $region60
      $region59: #{tpu_custom_call.1} parent=5 // pred_region
        %s4788 = ssub.s32 %s14, 2
        // Predicated region
        $region61: #{tpu_custom_call.1} parent=59 // pred_check
          %p4789 = pneg %p198
        $region62: #{tpu_custom_call.1} parent=59 // pred_check_branch
          %4791 = sbr.rel (%p4789) target = $region64
        $region63: #{tpu_custom_call.1} parent=59 // pred_region
          %s4792 = sand.u32 %s183, 1
          %s4793 = scalar_lea.sflag [#allocation6], %s4792
          %s4794 = sand.u32 %s183, 1
          %s4795 = smul.addr %s4794, 128
          %s4796 = scalar_lea.vmem [#allocation5], %s4795
          %4797 = dma.done %s4793, 2048
        $region64: #{tpu_custom_call.1} parent=59 // pred_fallthru
          _
      $region60: #{tpu_custom_call.1} parent=5 // pred_fallthru
        _
    $region6: #{tpu_custom_call.1} parent=1 // loop_footer
      %s18 = sadd.s32 1, %s14
    $region7: #{tpu_custom_call.1} parent=1 // loop_footer_branch
      %13 = sbr.rel target = $region3
    $region8: #{tpu_custom_call.1} parent=1 // loop_exit
      _
    %4798 = vsyncpa [#allocation6], 1
    %s4799 = scalar_lea.sflag [#allocation6], 1
    %4800 = vsyncpa %s4799, 1

</llo_original>
